<compile_context>
chip_gen: v7x
topology: tpu7x:2x2x1
jax: 0.10.0
libtpu: 0.0.40
codegen_flags: <defaults>
</compile_context>

<pallas_src>
import jax
import jax.numpy as jnp
from jax.experimental import pallas as pl
from jax.experimental.pallas import tpu as pltpu

EPS = 1e-5
LANE = 128
TARGET_TILE_ROWS = 2048            # target matmul rows per tile (sweep 1024-4096)
VMEM_LIMIT_BYTES = 64 * 1024 * 1024


def _round_up(x, m):
    return (x + m - 1) // m * m


def _pick_tile_rows(H, W, target=TARGET_TILE_ROWS):
    """Largest divisor TH of H with TH*(W+2) <= target (falls back to 1)."""
    best = 1
    for th in range(1, H + 1):
        if H % th == 0 and th * (W + 2) <= target:
            best = th
    return best


# ---------------------------------------------------------------------------
# Kernel A: 3x3 conv (in-kernel im2col, 9 accumulating MXU matmuls) + per-tile
#           BatchNorm partial statistics.
# ---------------------------------------------------------------------------
def _make_conv_kernel(W, R_out):
    Wp2 = W + 2

    def kernel(slab_ref, w_ref, mask_ref, y_ref, s_ref):
        # slab_ref: (1, R_in, Cin) bf16  flattened (TH+2, W+2, Cin) row tile + halo
        # w_ref:    (9, Cin, Cp)   bf16  per-tap weights (block constant over grid)
        # mask_ref: (R_out, 1)     f32   1 for valid output columns, 0 for the two
        #                                wrap-around garbage columns of each row
        # y_ref:    (1, R_out, Cp) bf16  pre-BN conv output tile (lane dense)
        # s_ref:    (1, 2, Cp)     f32   per-tile (sum, sum of squares)
        slab = slab_ref[0]                                     # (R_in, Cin)
        acc = None
        for t in range(9):
            dy, dx = t // 3, t % 3
            start = dy * Wp2 + dx
            lhs = slab[start:start + R_out, :]                 # (R_out, Cin) bf16
            p = jnp.dot(lhs, w_ref[t], preferred_element_type=jnp.float32)
            acc = p if acc is None else acc + p
        acc = acc * mask_ref[...]                              # zero garbage columns
        y_ref[0] = acc.astype(y_ref.dtype)
        s_ref[0, 0:1, :] = jnp.sum(acc, axis=0, keepdims=True)
        s_ref[0, 1:2, :] = jnp.sum(acc * acc, axis=0, keepdims=True)

    return kernel


def _conv3x3_pass(slabs, w9, mask, *, W, R_out):
    """Run kernel A over all row tiles.  Returns (y_pre bf16, stats f32)."""
    nT, R_in, Cin = slabs.shape
    n_taps, _, Cp = w9.shape
    # TODO(synk): for very wide layers (Cin*Cout >~ 1M) stream the resident weight
    # block (tap grid axis or pl.Buffered(1)) so it stays inside v7x's 64 MiB VMEM.
    return pl.pallas_call(
        _make_conv_kernel(W, R_out),
        grid=(nT,),
        in_specs=[
            pl.BlockSpec((1, R_in, Cin), lambda i: (i, 0, 0)),
            pl.BlockSpec((n_taps, Cin, Cp), lambda i: (0, 0, 0)),
            pl.BlockSpec((R_out, 1), lambda i: (0, 0)),
        ],
        out_specs=(
            pl.BlockSpec((1, R_out, Cp), lambda i: (i, 0, 0)),
            pl.BlockSpec((1, 2, Cp), lambda i: (i, 0, 0)),
        ),
        out_shape=(
            jax.ShapeDtypeStruct((nT, R_out, Cp), jnp.bfloat16),
            jax.ShapeDtypeStruct((nT, 2, Cp), jnp.float32),
        ),
        compiler_params=pltpu.CompilerParams(
            dimension_semantics=("parallel",),
            vmem_limit_bytes=VMEM_LIMIT_BYTES,
        ),
    )(slabs, w9, mask)


# ---------------------------------------------------------------------------
# Kernel B: fused BatchNorm affine (one FMA) + ReLU epilogue (final block only).
# ---------------------------------------------------------------------------
def _bn_relu_kernel(y_ref, scale_ref, shift_ref, o_ref):
    y = y_ref[0].astype(jnp.float32)                           # (R_out, Cp)
    o_ref[0] = jnp.maximum(y * scale_ref[...] + shift_ref[...], 0.0)


def _bn_relu_pass(y_pre, scale, shift):
    nT, R_out, Cp = y_pre.shape
    return pl.pallas_call(
        _bn_relu_kernel,
        grid=(nT,),
        in_specs=[
            pl.BlockSpec((1, R_out, Cp), lambda i: (i, 0, 0)),
            pl.BlockSpec((1, Cp), lambda i: (0, 0)),
            pl.BlockSpec((1, Cp), lambda i: (0, 0)),
        ],
        out_specs=pl.BlockSpec((1, R_out, Cp), lambda i: (i, 0, 0)),
        out_shape=jax.ShapeDtypeStruct((nT, R_out, Cp), jnp.float32),
        compiler_params=pltpu.CompilerParams(
            dimension_semantics=("parallel",),
            vmem_limit_bytes=VMEM_LIMIT_BYTES,
        ),
    )(y_pre, scale, shift)


# ---------------------------------------------------------------------------
# Host-side glue (single fused XLA passes; no 9x tap materialization).
# ---------------------------------------------------------------------------
def _build_slabs(x_nhwc, TH):
    """(N,H,W,C) -> (N*(H//TH), R_in, C) bf16 halo'd, flattened row-tile slabs."""
    N, H, W, C = x_nhwc.shape
    nT = H // TH
    R_nat = (TH + 2) * (W + 2)
    R_in = _round_up(R_nat + 2, 8)     # +2 keeps the oversized last tap slice in bounds
    xp = jnp.pad(x_nhwc, ((0, 0), (1, 1), (1, 1), (0, 0)))
    row_ids = (jnp.arange(nT)[:, None] * TH + jnp.arange(TH + 2)[None, :]).reshape(-1)
    xh = jnp.take(xp, row_ids, axis=1)                         # (N, nT*(TH+2), W+2, C)
    xh = xh.reshape(N * nT, R_nat, C)
    xh = jnp.pad(xh, ((0, 0), (0, R_in - R_nat), (0, 0)))
    return xh.astype(jnp.bfloat16)


def _lane_mask(R_out, W):
    r = jnp.arange(R_out) % (W + 2)
    return (r < W).astype(jnp.float32).reshape(R_out, 1)


def _fold_bn(part, gamma, beta, count, Cout, Cp):
    """Per-tile (sum, sumsq) partials -> fused BN scale/shift, each (1, Cp) f32."""
    ssum = jnp.sum(part[:, 0, :], axis=0)
    ssq = jnp.sum(part[:, 1, :], axis=0)
    mean = ssum / count
    # NOTE: E[x^2]-E[x]^2 in f32 is fine at activation scale; a mean-shifted /
    # Welford variant would be needed for very large-mean activations.
    var = jnp.maximum(ssq / count - mean * mean, 0.0)
    g = jnp.pad(gamma.astype(jnp.float32), (0, Cp - Cout))
    b = jnp.pad(beta.astype(jnp.float32), (0, Cp - Cout))
    scale = g * jax.lax.rsqrt(var + EPS)
    shift = b - mean * scale
    return scale.reshape(1, Cp), shift.reshape(1, Cp)


def _tiles_to_nhwc(y_tiles, N, H, W, TH, Cout):
    """(N*(H//TH), TH*(W+2), Cp) tile layout -> (N, H, W, Cout)."""
    nT = H // TH
    y = y_tiles.reshape(N, nT, TH, W + 2, y_tiles.shape[-1])[:, :, :, :W, :Cout]
    return y.reshape(N, H, W, Cout)


def double_conv(x_nchw, params, *, target_rows=TARGET_TILE_ROWS):
    """DoubleConv.forward: NCHW in, NCHW out (transpose only at the boundary)."""
    N, Cin, H, W = x_nchw.shape
    Cout = params["g1"].shape[0]
    Cp = params["w1"].shape[-1]
    TH = _pick_tile_rows(H, W, target_rows)
    R_out = TH * (W + 2)
    count = N * H * W
    mask = _lane_mask(R_out, W)

    x_nhwc = jnp.transpose(x_nchw, (0, 2, 3, 1))               # NCHW -> NHWC, once

    # Block 1: conv + per-tile stats (Pallas), then fold BN into scale/shift.
    y1_pre, part1 = _conv3x3_pass(_build_slabs(x_nhwc, TH), params["w1"], mask,
                                  W=W, R_out=R_out)
    scale1, shift1 = _fold_bn(part1, params["g1"], params["be1"], count, Cout, Cp)

    # Block 1 epilogue (BN1 scale/shift + ReLU) fused into the single XLA pass
    # that builds conv2's halo slabs -- no standalone activation round trip.
    a1 = _tiles_to_nhwc(y1_pre, N, H, W, TH, Cout).astype(jnp.float32)
    a1 = jnp.maximum(a1 * scale1[0, :Cout] + shift1[0, :Cout], 0.0)

    # Block 2: conv + stats (Pallas), BN fold, then the final epilogue kernel.
    y2_pre, part2 = _conv3x3_pass(_build_slabs(a1, TH), params["w2"], mask,
                                  W=W, R_out=R_out)
    scale2, shift2 = _fold_bn(part2, params["g2"], params["be2"], count, Cout, Cp)
    act2 = _bn_relu_pass(y2_pre, scale2, shift2)

    out_nhwc = _tiles_to_nhwc(act2, N, H, W, TH, Cout)
    return jnp.transpose(out_nhwc, (0, 3, 1, 2))               # NHWC -> NCHW, once


# ---------------------------------------------------------------------------
# Parameter preparation (PyTorch layouts -> kernel layouts) and reference.
# ---------------------------------------------------------------------------
def _torch_weight_to_taps(w_oihw, Cp):
    """(Cout, Cin, 3, 3) OIHW -> (9, Cin, Cp) bf16 per-tap matmul weights."""
    cout, cin = w_oihw.shape[0], w_oihw.shape[1]
    w = jnp.transpose(w_oihw, (2, 3, 1, 0)).reshape(9, cin, cout)   # (ky*3+kx, ci, co)
    return jnp.pad(w, ((0, 0), (0, 0), (0, Cp - cout))).astype(jnp.bfloat16)


def prepare_params(w1_oihw, g1, be1, w2_oihw, g2, be2):
    cout = w1_oihw.shape[0]
    Cp = _round_up(cout, LANE)
    return dict(
        w1=_torch_weight_to_taps(w1_oihw, Cp), g1=g1, be1=be1,
        w2=_torch_weight_to_taps(w2_oihw, Cp), g2=g2, be2=be2,
    )


def _reference_double_conv(x, w1, b1, g1, be1, w2, b2, g2, be2,
                           conv_dtype=jnp.float32):
    """Pure-JAX reference (PyTorch training-mode BN forward), with conv biases."""
    def block(x, w, b, g, be):
        y = jax.lax.conv_general_dilated(
            x.astype(conv_dtype), w.astype(conv_dtype), (1, 1), "SAME",
            dimension_numbers=("NCHW", "OIHW", "NCHW"),
            preferred_element_type=jnp.float32)
        y = y + b[None, :, None, None]
        mean = jnp.mean(y, axis=(0, 2, 3), keepdims=True)
        var = jnp.mean(jnp.square(y - mean), axis=(0, 2, 3), keepdims=True)
        y = (y - mean) * jax.lax.rsqrt(var + EPS)
        y = y * g[None, :, None, None] + be[None, :, None, None]
        return jnp.maximum(y, 0.0)
    return block(block(x, w1, b1, g1, be1), w2, b2, g2, be2)


if __name__ == "__main__":
    key = jax.random.PRNGKey(0)
    N, Cin, H, W = 2, 4, 16, 16
    Cout = 8

    k0, k1, k2, k3, k4 = jax.random.split(key, 5)
    x = jax.random.normal(k0, (N, Cin, H, W), jnp.float32)

    # PyTorch-shaped synthetic parameters (Conv2d weight OIHW; BN gamma=1, beta=0).
    w1_oihw = 0.1 * jax.random.normal(k1, (Cout, Cin, 3, 3), jnp.float32)
    b1 = 0.1 * jax.random.normal(k2, (Cout,), jnp.float32)     # cancelled by BN
    w2_oihw = 0.1 * jax.random.normal(k3, (Cout, Cout, 3, 3), jnp.float32)
    b2 = 0.1 * jax.random.normal(k4, (Cout,), jnp.float32)     # cancelled by BN
    g1 = jnp.ones((Cout,), jnp.float32)
    be1 = jnp.zeros((Cout,), jnp.float32)
    g2 = jnp.ones((Cout,), jnp.float32)
    be2 = jnp.zeros((Cout,), jnp.float32)

    params = prepare_params(w1_oihw, g1, be1, w2_oihw, g2, be2)

    fwd = jax.jit(double_conv)
    out = jax.block_until_ready(fwd(x, params))
    assert out.shape == (N, Cout, H, W), out.shape

    # (1) Check against a reference matching the kernel's MXU precision
    #     (bf16 conv inputs, f32 accumulation, biases included).
    ref_bf16 = jax.block_until_ready(_reference_double_conv(
        x, w1_oihw, b1, g1, be1, w2_oihw, b2, g2, be2, conv_dtype=jnp.bfloat16))
    err_bf16 = float(jnp.max(jnp.abs(out - ref_bf16)))
    assert err_bf16 < 3e-2, err_bf16

    # (2) Semantic check against the full-f32 PyTorch-style reference; the only
    #     differences are bf16 rounding of the MXU inputs and intermediates.
    ref_f32 = jax.block_until_ready(_reference_double_conv(
        x, w1_oihw, b1, g1, be1, w2_oihw, b2, g2, be2, conv_dtype=jnp.float32))
    err_f32 = float(jnp.max(jnp.abs(out - ref_f32)))
    assert err_f32 < 1.5e-1, err_f32

    print("KERNEL_OK")
</pallas_src>

<mosaic_0001>
module attributes {stable_mosaic.version = 11 : i64} {
  func.func @kernel(%arg0: i32, %arg1: memref<1x328x4xbf16, #tpu.memory_space<vmem>>, %arg2: memref<9x4x128xbf16, #tpu.memory_space<vmem>>, %arg3: memref<288x1xf32, #tpu.memory_space<vmem>>, %arg4: memref<1x288x128xbf16, #tpu.memory_space<vmem>>, %arg5: memref<1x2x128xf32, #tpu.memory_space<vmem>>) attributes {dimension_semantics = [#tpu.dimension_semantics<parallel>], iteration_bounds = array<i64: 2>, scalar_prefetch = 0 : i64, scratch_operands = 0 : i64, tpu.core_type = #tpu.core_type<tc>, window_params = [{transform_indices = @transform_0, window_bounds = array<i64: 1, 328, 4>}, {pipeline_mode = #tpu.pipeline_mode<synchronous>, transform_indices = @transform_1, window_bounds = array<i64: 9, 4, 128>}, {pipeline_mode = #tpu.pipeline_mode<synchronous>, transform_indices = @transform_2, window_bounds = array<i64: 288, 1>}, {transform_indices = @transform_3, window_bounds = array<i64: 1, 288, 128>}, {transform_indices = @transform_4, window_bounds = array<i64: 1, 2, 128>}]} {
    %c0 = arith.constant 0 : index
    %c0_0 = arith.constant 0 : index
    %c0_1 = arith.constant 0 : index
    %0 = vector.load %arg1[%c0, %c0_0, %c0_1] : memref<1x328x4xbf16, #tpu.memory_space<vmem>>, vector<1x328x4xbf16>
    %1 = vector.shape_cast %0 : vector<1x328x4xbf16> to vector<328x4xbf16>
    %2 = vector.extract_strided_slice %1 {offsets = [0, 0], sizes = [288, 4], strides = [1, 1]} : vector<328x4xbf16> to vector<288x4xbf16>
    %c0_2 = arith.constant 0 : index
    %c0_3 = arith.constant 0 : index
    %c0_4 = arith.constant 0 : index
    %3 = vector.load %arg2[%c0_2, %c0_3, %c0_4] : memref<9x4x128xbf16, #tpu.memory_space<vmem>>, vector<1x4x128xbf16>
    %4 = vector.shape_cast %3 : vector<1x4x128xbf16> to vector<4x128xbf16>
    %cst = arith.constant dense<0.000000e+00> : vector<288x128xf32>
    %5 = tpu.matmul %2, %4, %cst {dimension_numbers = #tpu.dot_dimension_numbers<[1], [0], [0], [1], [0, 0, 1, 1], [], []>} : vector<288x4xbf16>, vector<4x128xbf16>, vector<288x128xf32> -> vector<288x128xf32>
    %6 = vector.extract_strided_slice %1 {offsets = [1, 0], sizes = [288, 4], strides = [1, 1]} : vector<328x4xbf16> to vector<288x4xbf16>
    %c1 = arith.constant 1 : index
    %c0_5 = arith.constant 0 : index
    %c0_6 = arith.constant 0 : index
    %7 = vector.load %arg2[%c1, %c0_5, %c0_6] : memref<9x4x128xbf16, #tpu.memory_space<vmem>>, vector<1x4x128xbf16>
    %8 = vector.shape_cast %7 : vector<1x4x128xbf16> to vector<4x128xbf16>
    %cst_7 = arith.constant dense<0.000000e+00> : vector<288x128xf32>
    %9 = tpu.matmul %6, %8, %cst_7 {dimension_numbers = #tpu.dot_dimension_numbers<[1], [0], [0], [1], [0, 0, 1, 1], [], []>} : vector<288x4xbf16>, vector<4x128xbf16>, vector<288x128xf32> -> vector<288x128xf32>
    %10 = arith.addf %5, %9 : vector<288x128xf32>
    %11 = vector.extract_strided_slice %1 {offsets = [2, 0], sizes = [288, 4], strides = [1, 1]} : vector<328x4xbf16> to vector<288x4xbf16>
    %c2 = arith.constant 2 : index
    %c0_8 = arith.constant 0 : index
    %c0_9 = arith.constant 0 : index
    %12 = vector.load %arg2[%c2, %c0_8, %c0_9] : memref<9x4x128xbf16, #tpu.memory_space<vmem>>, vector<1x4x128xbf16>
    %13 = vector.shape_cast %12 : vector<1x4x128xbf16> to vector<4x128xbf16>
    %cst_10 = arith.constant dense<0.000000e+00> : vector<288x128xf32>
    %14 = tpu.matmul %11, %13, %cst_10 {dimension_numbers = #tpu.dot_dimension_numbers<[1], [0], [0], [1], [0, 0, 1, 1], [], []>} : vector<288x4xbf16>, vector<4x128xbf16>, vector<288x128xf32> -> vector<288x128xf32>
    %15 = arith.addf %10, %14 : vector<288x128xf32>
    %16 = vector.extract_strided_slice %1 {offsets = [18, 0], sizes = [288, 4], strides = [1, 1]} : vector<328x4xbf16> to vector<288x4xbf16>
    %c3 = arith.constant 3 : index
    %c0_11 = arith.constant 0 : index
    %c0_12 = arith.constant 0 : index
    %17 = vector.load %arg2[%c3, %c0_11, %c0_12] : memref<9x4x128xbf16, #tpu.memory_space<vmem>>, vector<1x4x128xbf16>
    %18 = vector.shape_cast %17 : vector<1x4x128xbf16> to vector<4x128xbf16>
    %cst_13 = arith.constant dense<0.000000e+00> : vector<288x128xf32>
    %19 = tpu.matmul %16, %18, %cst_13 {dimension_numbers = #tpu.dot_dimension_numbers<[1], [0], [0], [1], [0, 0, 1, 1], [], []>} : vector<288x4xbf16>, vector<4x128xbf16>, vector<288x128xf32> -> vector<288x128xf32>
    %20 = arith.addf %15, %19 : vector<288x128xf32>
    %21 = vector.extract_strided_slice %1 {offsets = [19, 0], sizes = [288, 4], strides = [1, 1]} : vector<328x4xbf16> to vector<288x4xbf16>
    %c4 = arith.constant 4 : index
    %c0_14 = arith.constant 0 : index
    %c0_15 = arith.constant 0 : index
    %22 = vector.load %arg2[%c4, %c0_14, %c0_15] : memref<9x4x128xbf16, #tpu.memory_space<vmem>>, vector<1x4x128xbf16>
    %23 = vector.shape_cast %22 : vector<1x4x128xbf16> to vector<4x128xbf16>
    %cst_16 = arith.constant dense<0.000000e+00> : vector<288x128xf32>
    %24 = tpu.matmul %21, %23, %cst_16 {dimension_numbers = #tpu.dot_dimension_numbers<[1], [0], [0], [1], [0, 0, 1, 1], [], []>} : vector<288x4xbf16>, vector<4x128xbf16>, vector<288x128xf32> -> vector<288x128xf32>
    %25 = arith.addf %20, %24 : vector<288x128xf32>
    %26 = vector.extract_strided_slice %1 {offsets = [20, 0], sizes = [288, 4], strides = [1, 1]} : vector<328x4xbf16> to vector<288x4xbf16>
    %c5 = arith.constant 5 : index
    %c0_17 = arith.constant 0 : index
    %c0_18 = arith.constant 0 : index
    %27 = vector.load %arg2[%c5, %c0_17, %c0_18] : memref<9x4x128xbf16, #tpu.memory_space<vmem>>, vector<1x4x128xbf16>
    %28 = vector.shape_cast %27 : vector<1x4x128xbf16> to vector<4x128xbf16>
    %cst_19 = arith.constant dense<0.000000e+00> : vector<288x128xf32>
    %29 = tpu.matmul %26, %28, %cst_19 {dimension_numbers = #tpu.dot_dimension_numbers<[1], [0], [0], [1], [0, 0, 1, 1], [], []>} : vector<288x4xbf16>, vector<4x128xbf16>, vector<288x128xf32> -> vector<288x128xf32>
    %30 = arith.addf %25, %29 : vector<288x128xf32>
    %31 = vector.extract_strided_slice %1 {offsets = [36, 0], sizes = [288, 4], strides = [1, 1]} : vector<328x4xbf16> to vector<288x4xbf16>
    %c6 = arith.constant 6 : index
    %c0_20 = arith.constant 0 : index
    %c0_21 = arith.constant 0 : index
    %32 = vector.load %arg2[%c6, %c0_20, %c0_21] : memref<9x4x128xbf16, #tpu.memory_space<vmem>>, vector<1x4x128xbf16>
    %33 = vector.shape_cast %32 : vector<1x4x128xbf16> to vector<4x128xbf16>
    %cst_22 = arith.constant dense<0.000000e+00> : vector<288x128xf32>
    %34 = tpu.matmul %31, %33, %cst_22 {dimension_numbers = #tpu.dot_dimension_numbers<[1], [0], [0], [1], [0, 0, 1, 1], [], []>} : vector<288x4xbf16>, vector<4x128xbf16>, vector<288x128xf32> -> vector<288x128xf32>
    %35 = arith.addf %30, %34 : vector<288x128xf32>
    %36 = vector.extract_strided_slice %1 {offsets = [37, 0], sizes = [288, 4], strides = [1, 1]} : vector<328x4xbf16> to vector<288x4xbf16>
    %c7 = arith.constant 7 : index
    %c0_23 = arith.constant 0 : index
    %c0_24 = arith.constant 0 : index
    %37 = vector.load %arg2[%c7, %c0_23, %c0_24] : memref<9x4x128xbf16, #tpu.memory_space<vmem>>, vector<1x4x128xbf16>
    %38 = vector.shape_cast %37 : vector<1x4x128xbf16> to vector<4x128xbf16>
    %cst_25 = arith.constant dense<0.000000e+00> : vector<288x128xf32>
    %39 = tpu.matmul %36, %38, %cst_25 {dimension_numbers = #tpu.dot_dimension_numbers<[1], [0], [0], [1], [0, 0, 1, 1], [], []>} : vector<288x4xbf16>, vector<4x128xbf16>, vector<288x128xf32> -> vector<288x128xf32>
    %40 = arith.addf %35, %39 : vector<288x128xf32>
    %41 = vector.extract_strided_slice %1 {offsets = [38, 0], sizes = [288, 4], strides = [1, 1]} : vector<328x4xbf16> to vector<288x4xbf16>
    %c8 = arith.constant 8 : index
    %c0_26 = arith.constant 0 : index
    %c0_27 = arith.constant 0 : index
    %42 = vector.load %arg2[%c8, %c0_26, %c0_27] : memref<9x4x128xbf16, #tpu.memory_space<vmem>>, vector<1x4x128xbf16>
    %43 = vector.shape_cast %42 : vector<1x4x128xbf16> to vector<4x128xbf16>
    %cst_28 = arith.constant dense<0.000000e+00> : vector<288x128xf32>
    %44 = tpu.matmul %41, %43, %cst_28 {dimension_numbers = #tpu.dot_dimension_numbers<[1], [0], [0], [1], [0, 0, 1, 1], [], []>} : vector<288x4xbf16>, vector<4x128xbf16>, vector<288x128xf32> -> vector<288x128xf32>
    %45 = arith.addf %40, %44 : vector<288x128xf32>
    %c0_29 = arith.constant 0 : index
    %c0_30 = arith.constant 0 : index
    %46 = vector.load %arg3[%c0_29, %c0_30] : memref<288x1xf32, #tpu.memory_space<vmem>>, vector<288x1xf32>
    %47 = vector.broadcast %46 : vector<288x1xf32> to vector<288x128xf32>
    %48 = arith.mulf %45, %47 : vector<288x128xf32>
    %49 = arith.truncf %48 : vector<288x128xf32> to vector<288x128xbf16>
    %c0_31 = arith.constant 0 : index
    %c0_32 = arith.constant 0 : index
    %c0_33 = arith.constant 0 : index
    %50 = vector.load %arg4[%c0_31, %c0_32, %c0_33] : memref<1x288x128xbf16, #tpu.memory_space<vmem>>, vector<1x288x128xbf16>
    %51 = vector.shape_cast %50 : vector<1x288x128xbf16> to vector<288x128xbf16>
    %52 = vector.shape_cast %49 : vector<288x128xbf16> to vector<1x288x128xbf16>
    tpu.vector_store %arg4[%c0_31, %c0_32, %c0_33], %52 {strides = array<i32>} : memref<1x288x128xbf16, #tpu.memory_space<vmem>>, vector<1x288x128xbf16>,
    %cst_34 = arith.constant dense<0.000000e+00> : vector<128xf32>
    %53 = vector.multi_reduction <add>, %48, %cst_34 [0] : vector<288x128xf32> to vector<128xf32>
    %54 = vector.shape_cast %53 : vector<128xf32> to vector<1x128xf32>
    %c0_35 = arith.constant 0 : index
    %c0_36 = arith.constant 0 : index
    %c0_37 = arith.constant 0 : index
    %55 = vector.load %arg5[%c0_35, %c0_36, %c0_37] : memref<1x2x128xf32, #tpu.memory_space<vmem>>, vector<1x1x128xf32>
    %56 = vector.shape_cast %55 : vector<1x1x128xf32> to vector<1x128xf32>
    %57 = vector.shape_cast %54 : vector<1x128xf32> to vector<1x1x128xf32>
    tpu.vector_store %arg5[%c0_35, %c0_36, %c0_37], %57 {strides = array<i32>} : memref<1x2x128xf32, #tpu.memory_space<vmem>>, vector<1x1x128xf32>,
    %58 = arith.mulf %48, %48 : vector<288x128xf32>
    %cst_38 = arith.constant dense<0.000000e+00> : vector<128xf32>
    %59 = vector.multi_reduction <add>, %58, %cst_38 [0] : vector<288x128xf32> to vector<128xf32>
    %60 = vector.shape_cast %59 : vector<128xf32> to vector<1x128xf32>
    %c0_39 = arith.constant 0 : index
    %c1_40 = arith.constant 1 : index
    %c0_41 = arith.constant 0 : index
    %61 = vector.load %arg5[%c0_39, %c1_40, %c0_41] : memref<1x2x128xf32, #tpu.memory_space<vmem>>, vector<1x1x128xf32>
    %62 = vector.shape_cast %61 : vector<1x1x128xf32> to vector<1x128xf32>
    %63 = vector.shape_cast %60 : vector<1x128xf32> to vector<1x1x128xf32>
    tpu.vector_store %arg5[%c0_39, %c1_40, %c0_41], %63 {strides = array<i32>} : memref<1x2x128xf32, #tpu.memory_space<vmem>>, vector<1x1x128xf32>,
    return
  }
  func.func @transform_0(%arg0: i32) -> (i32, i32, i32) {
    %c0_i32 = arith.constant 0 : i32
    %c0_i32_0 = arith.constant 0 : i32
    %c0_i32_1 = arith.constant 0 : i32
    return %arg0, %c0_i32, %c0_i32_0 : i32, i32, i32
  }
  func.func @transform_1(%arg0: i32) -> (i32, i32, i32) {
    %c0_i32 = arith.constant 0 : i32
    %c0_i32_0 = arith.constant 0 : i32
    %c0_i32_1 = arith.constant 0 : i32
    %c0_i32_2 = arith.constant 0 : i32
    return %c0_i32, %c0_i32_0, %c0_i32_1 : i32, i32, i32
  }
  func.func @transform_2(%arg0: i32) -> (i32, i32) {
    %c0_i32 = arith.constant 0 : i32
    %c0_i32_0 = arith.constant 0 : i32
    %c0_i32_1 = arith.constant 0 : i32
    return %c0_i32, %c0_i32_0 : i32, i32
  }
  func.func @transform_3(%arg0: i32) -> (i32, i32, i32) {
    %c0_i32 = arith.constant 0 : i32
    %c0_i32_0 = arith.constant 0 : i32
    %c0_i32_1 = arith.constant 0 : i32
    return %arg0, %c0_i32, %c0_i32_0 : i32, i32, i32
  }
  func.func @transform_4(%arg0: i32) -> (i32, i32, i32) {
    %c0_i32 = arith.constant 0 : i32
    %c0_i32_0 = arith.constant 0 : i32
    %c0_i32_1 = arith.constant 0 : i32
    return %arg0, %c0_i32, %c0_i32_0 : i32, i32, i32
  }
}

module attributes {stable_mosaic.version = 11 : i64} {
  func.func @kernel(%arg0: i32, %arg1: memref<1x328x8xbf16, #tpu.memory_space<vmem>>, %arg2: memref<9x8x128xbf16, #tpu.memory_space<vmem>>, %arg3: memref<288x1xf32, #tpu.memory_space<vmem>>, %arg4: memref<1x288x128xbf16, #tpu.memory_space<vmem>>, %arg5: memref<1x2x128xf32, #tpu.memory_space<vmem>>) attributes {dimension_semantics = [#tpu.dimension_semantics<parallel>], iteration_bounds = array<i64: 2>, scalar_prefetch = 0 : i64, scratch_operands = 0 : i64, tpu.core_type = #tpu.core_type<tc>, window_params = [{transform_indices = @transform_0, window_bounds = array<i64: 1, 328, 8>}, {pipeline_mode = #tpu.pipeline_mode<synchronous>, transform_indices = @transform_1, window_bounds = array<i64: 9, 8, 128>}, {pipeline_mode = #tpu.pipeline_mode<synchronous>, transform_indices = @transform_2, window_bounds = array<i64: 288, 1>}, {transform_indices = @transform_3, window_bounds = array<i64: 1, 288, 128>}, {transform_indices = @transform_4, window_bounds = array<i64: 1, 2, 128>}]} {
    %c0 = arith.constant 0 : index
    %c0_0 = arith.constant 0 : index
    %c0_1 = arith.constant 0 : index
    %0 = vector.load %arg1[%c0, %c0_0, %c0_1] : memref<1x328x8xbf16, #tpu.memory_space<vmem>>, vector<1x328x8xbf16>
    %1 = vector.shape_cast %0 : vector<1x328x8xbf16> to vector<328x8xbf16>
    %2 = vector.extract_strided_slice %1 {offsets = [0, 0], sizes = [288, 8], strides = [1, 1]} : vector<328x8xbf16> to vector<288x8xbf16>
    %c0_2 = arith.constant 0 : index
    %c0_3 = arith.constant 0 : index
    %c0_4 = arith.constant 0 : index
    %3 = vector.load %arg2[%c0_2, %c0_3, %c0_4] : memref<9x8x128xbf16, #tpu.memory_space<vmem>>, vector<1x8x128xbf16>
    %4 = vector.shape_cast %3 : vector<1x8x128xbf16> to vector<8x128xbf16>
    %cst = arith.constant dense<0.000000e+00> : vector<288x128xf32>
    %5 = tpu.matmul %2, %4, %cst {dimension_numbers = #tpu.dot_dimension_numbers<[1], [0], [0], [1], [0, 0, 1, 1], [], []>} : vector<288x8xbf16>, vector<8x128xbf16>, vector<288x128xf32> -> vector<288x128xf32>
    %6 = vector.extract_strided_slice %1 {offsets = [1, 0], sizes = [288, 8], strides = [1, 1]} : vector<328x8xbf16> to vector<288x8xbf16>
    %c1 = arith.constant 1 : index
    %c0_5 = arith.constant 0 : index
    %c0_6 = arith.constant 0 : index
    %7 = vector.load %arg2[%c1, %c0_5, %c0_6] : memref<9x8x128xbf16, #tpu.memory_space<vmem>>, vector<1x8x128xbf16>
    %8 = vector.shape_cast %7 : vector<1x8x128xbf16> to vector<8x128xbf16>
    %cst_7 = arith.constant dense<0.000000e+00> : vector<288x128xf32>
    %9 = tpu.matmul %6, %8, %cst_7 {dimension_numbers = #tpu.dot_dimension_numbers<[1], [0], [0], [1], [0, 0, 1, 1], [], []>} : vector<288x8xbf16>, vector<8x128xbf16>, vector<288x128xf32> -> vector<288x128xf32>
    %10 = arith.addf %5, %9 : vector<288x128xf32>
    %11 = vector.extract_strided_slice %1 {offsets = [2, 0], sizes = [288, 8], strides = [1, 1]} : vector<328x8xbf16> to vector<288x8xbf16>
    %c2 = arith.constant 2 : index
    %c0_8 = arith.constant 0 : index
    %c0_9 = arith.constant 0 : index
    %12 = vector.load %arg2[%c2, %c0_8, %c0_9] : memref<9x8x128xbf16, #tpu.memory_space<vmem>>, vector<1x8x128xbf16>
    %13 = vector.shape_cast %12 : vector<1x8x128xbf16> to vector<8x128xbf16>
    %cst_10 = arith.constant dense<0.000000e+00> : vector<288x128xf32>
    %14 = tpu.matmul %11, %13, %cst_10 {dimension_numbers = #tpu.dot_dimension_numbers<[1], [0], [0], [1], [0, 0, 1, 1], [], []>} : vector<288x8xbf16>, vector<8x128xbf16>, vector<288x128xf32> -> vector<288x128xf32>
    %15 = arith.addf %10, %14 : vector<288x128xf32>
    %16 = vector.extract_strided_slice %1 {offsets = [18, 0], sizes = [288, 8], strides = [1, 1]} : vector<328x8xbf16> to vector<288x8xbf16>
    %c3 = arith.constant 3 : index
    %c0_11 = arith.constant 0 : index
    %c0_12 = arith.constant 0 : index
    %17 = vector.load %arg2[%c3, %c0_11, %c0_12] : memref<9x8x128xbf16, #tpu.memory_space<vmem>>, vector<1x8x128xbf16>
    %18 = vector.shape_cast %17 : vector<1x8x128xbf16> to vector<8x128xbf16>
    %cst_13 = arith.constant dense<0.000000e+00> : vector<288x128xf32>
    %19 = tpu.matmul %16, %18, %cst_13 {dimension_numbers = #tpu.dot_dimension_numbers<[1], [0], [0], [1], [0, 0, 1, 1], [], []>} : vector<288x8xbf16>, vector<8x128xbf16>, vector<288x128xf32> -> vector<288x128xf32>
    %20 = arith.addf %15, %19 : vector<288x128xf32>
    %21 = vector.extract_strided_slice %1 {offsets = [19, 0], sizes = [288, 8], strides = [1, 1]} : vector<328x8xbf16> to vector<288x8xbf16>
    %c4 = arith.constant 4 : index
    %c0_14 = arith.constant 0 : index
    %c0_15 = arith.constant 0 : index
    %22 = vector.load %arg2[%c4, %c0_14, %c0_15] : memref<9x8x128xbf16, #tpu.memory_space<vmem>>, vector<1x8x128xbf16>
    %23 = vector.shape_cast %22 : vector<1x8x128xbf16> to vector<8x128xbf16>
    %cst_16 = arith.constant dense<0.000000e+00> : vector<288x128xf32>
    %24 = tpu.matmul %21, %23, %cst_16 {dimension_numbers = #tpu.dot_dimension_numbers<[1], [0], [0], [1], [0, 0, 1, 1], [], []>} : vector<288x8xbf16>, vector<8x128xbf16>, vector<288x128xf32> -> vector<288x128xf32>
    %25 = arith.addf %20, %24 : vector<288x128xf32>
    %26 = vector.extract_strided_slice %1 {offsets = [20, 0], sizes = [288, 8], strides = [1, 1]} : vector<328x8xbf16> to vector<288x8xbf16>
    %c5 = arith.constant 5 : index
    %c0_17 = arith.constant 0 : index
    %c0_18 = arith.constant 0 : index
    %27 = vector.load %arg2[%c5, %c0_17, %c0_18] : memref<9x8x128xbf16, #tpu.memory_space<vmem>>, vector<1x8x128xbf16>
    %28 = vector.shape_cast %27 : vector<1x8x128xbf16> to vector<8x128xbf16>
    %cst_19 = arith.constant dense<0.000000e+00> : vector<288x128xf32>
    %29 = tpu.matmul %26, %28, %cst_19 {dimension_numbers = #tpu.dot_dimension_numbers<[1], [0], [0], [1], [0, 0, 1, 1], [], []>} : vector<288x8xbf16>, vector<8x128xbf16>, vector<288x128xf32> -> vector<288x128xf32>
    %30 = arith.addf %25, %29 : vector<288x128xf32>
    %31 = vector.extract_strided_slice %1 {offsets = [36, 0], sizes = [288, 8], strides = [1, 1]} : vector<328x8xbf16> to vector<288x8xbf16>
    %c6 = arith.constant 6 : index
    %c0_20 = arith.constant 0 : index
    %c0_21 = arith.constant 0 : index
    %32 = vector.load %arg2[%c6, %c0_20, %c0_21] : memref<9x8x128xbf16, #tpu.memory_space<vmem>>, vector<1x8x128xbf16>
    %33 = vector.shape_cast %32 : vector<1x8x128xbf16> to vector<8x128xbf16>
    %cst_22 = arith.constant dense<0.000000e+00> : vector<288x128xf32>
    %34 = tpu.matmul %31, %33, %cst_22 {dimension_numbers = #tpu.dot_dimension_numbers<[1], [0], [0], [1], [0, 0, 1, 1], [], []>} : vector<288x8xbf16>, vector<8x128xbf16>, vector<288x128xf32> -> vector<288x128xf32>
    %35 = arith.addf %30, %34 : vector<288x128xf32>
    %36 = vector.extract_strided_slice %1 {offsets = [37, 0], sizes = [288, 8], strides = [1, 1]} : vector<328x8xbf16> to vector<288x8xbf16>
    %c7 = arith.constant 7 : index
    %c0_23 = arith.constant 0 : index
    %c0_24 = arith.constant 0 : index
    %37 = vector.load %arg2[%c7, %c0_23, %c0_24] : memref<9x8x128xbf16, #tpu.memory_space<vmem>>, vector<1x8x128xbf16>
    %38 = vector.shape_cast %37 : vector<1x8x128xbf16> to vector<8x128xbf16>
    %cst_25 = arith.constant dense<0.000000e+00> : vector<288x128xf32>
    %39 = tpu.matmul %36, %38, %cst_25 {dimension_numbers = #tpu.dot_dimension_numbers<[1], [0], [0], [1], [0, 0, 1, 1], [], []>} : vector<288x8xbf16>, vector<8x128xbf16>, vector<288x128xf32> -> vector<288x128xf32>
    %40 = arith.addf %35, %39 : vector<288x128xf32>
    %41 = vector.extract_strided_slice %1 {offsets = [38, 0], sizes = [288, 8], strides = [1, 1]} : vector<328x8xbf16> to vector<288x8xbf16>
    %c8 = arith.constant 8 : index
    %c0_26 = arith.constant 0 : index
    %c0_27 = arith.constant 0 : index
    %42 = vector.load %arg2[%c8, %c0_26, %c0_27] : memref<9x8x128xbf16, #tpu.memory_space<vmem>>, vector<1x8x128xbf16>
    %43 = vector.shape_cast %42 : vector<1x8x128xbf16> to vector<8x128xbf16>
    %cst_28 = arith.constant dense<0.000000e+00> : vector<288x128xf32>
    %44 = tpu.matmul %41, %43, %cst_28 {dimension_numbers = #tpu.dot_dimension_numbers<[1], [0], [0], [1], [0, 0, 1, 1], [], []>} : vector<288x8xbf16>, vector<8x128xbf16>, vector<288x128xf32> -> vector<288x128xf32>
    %45 = arith.addf %40, %44 : vector<288x128xf32>
    %c0_29 = arith.constant 0 : index
    %c0_30 = arith.constant 0 : index
    %46 = vector.load %arg3[%c0_29, %c0_30] : memref<288x1xf32, #tpu.memory_space<vmem>>, vector<288x1xf32>
    %47 = vector.broadcast %46 : vector<288x1xf32> to vector<288x128xf32>
    %48 = arith.mulf %45, %47 : vector<288x128xf32>
    %49 = arith.truncf %48 : vector<288x128xf32> to vector<288x128xbf16>
    %c0_31 = arith.constant 0 : index
    %c0_32 = arith.constant 0 : index
    %c0_33 = arith.constant 0 : index
    %50 = vector.load %arg4[%c0_31, %c0_32, %c0_33] : memref<1x288x128xbf16, #tpu.memory_space<vmem>>, vector<1x288x128xbf16>
    %51 = vector.shape_cast %50 : vector<1x288x128xbf16> to vector<288x128xbf16>
    %52 = vector.shape_cast %49 : vector<288x128xbf16> to vector<1x288x128xbf16>
    tpu.vector_store %arg4[%c0_31, %c0_32, %c0_33], %52 {strides = array<i32>} : memref<1x288x128xbf16, #tpu.memory_space<vmem>>, vector<1x288x128xbf16>,
    %cst_34 = arith.constant dense<0.000000e+00> : vector<128xf32>
    %53 = vector.multi_reduction <add>, %48, %cst_34 [0] : vector<288x128xf32> to vector<128xf32>
    %54 = vector.shape_cast %53 : vector<128xf32> to vector<1x128xf32>
    %c0_35 = arith.constant 0 : index
    %c0_36 = arith.constant 0 : index
    %c0_37 = arith.constant 0 : index
    %55 = vector.load %arg5[%c0_35, %c0_36, %c0_37] : memref<1x2x128xf32, #tpu.memory_space<vmem>>, vector<1x1x128xf32>
    %56 = vector.shape_cast %55 : vector<1x1x128xf32> to vector<1x128xf32>
    %57 = vector.shape_cast %54 : vector<1x128xf32> to vector<1x1x128xf32>
    tpu.vector_store %arg5[%c0_35, %c0_36, %c0_37], %57 {strides = array<i32>} : memref<1x2x128xf32, #tpu.memory_space<vmem>>, vector<1x1x128xf32>,
    %58 = arith.mulf %48, %48 : vector<288x128xf32>
    %cst_38 = arith.constant dense<0.000000e+00> : vector<128xf32>
    %59 = vector.multi_reduction <add>, %58, %cst_38 [0] : vector<288x128xf32> to vector<128xf32>
    %60 = vector.shape_cast %59 : vector<128xf32> to vector<1x128xf32>
    %c0_39 = arith.constant 0 : index
    %c1_40 = arith.constant 1 : index
    %c0_41 = arith.constant 0 : index
    %61 = vector.load %arg5[%c0_39, %c1_40, %c0_41] : memref<1x2x128xf32, #tpu.memory_space<vmem>>, vector<1x1x128xf32>
    %62 = vector.shape_cast %61 : vector<1x1x128xf32> to vector<1x128xf32>
    %63 = vector.shape_cast %60 : vector<1x128xf32> to vector<1x1x128xf32>
    tpu.vector_store %arg5[%c0_39, %c1_40, %c0_41], %63 {strides = array<i32>} : memref<1x2x128xf32, #tpu.memory_space<vmem>>, vector<1x1x128xf32>,
    return
  }
  func.func @transform_0(%arg0: i32) -> (i32, i32, i32) {
    %c0_i32 = arith.constant 0 : i32
    %c0_i32_0 = arith.constant 0 : i32
    %c0_i32_1 = arith.constant 0 : i32
    return %arg0, %c0_i32, %c0_i32_0 : i32, i32, i32
  }
  func.func @transform_1(%arg0: i32) -> (i32, i32, i32) {
    %c0_i32 = arith.constant 0 : i32
    %c0_i32_0 = arith.constant 0 : i32
    %c0_i32_1 = arith.constant 0 : i32
    %c0_i32_2 = arith.constant 0 : i32
    return %c0_i32, %c0_i32_0, %c0_i32_1 : i32, i32, i32
  }
  func.func @transform_2(%arg0: i32) -> (i32, i32) {
    %c0_i32 = arith.constant 0 : i32
    %c0_i32_0 = arith.constant 0 : i32
    %c0_i32_1 = arith.constant 0 : i32
    return %c0_i32, %c0_i32_0 : i32, i32
  }
  func.func @transform_3(%arg0: i32) -> (i32, i32, i32) {
    %c0_i32 = arith.constant 0 : i32
    %c0_i32_0 = arith.constant 0 : i32
    %c0_i32_1 = arith.constant 0 : i32
    return %arg0, %c0_i32, %c0_i32_0 : i32, i32, i32
  }
  func.func @transform_4(%arg0: i32) -> (i32, i32, i32) {
    %c0_i32 = arith.constant 0 : i32
    %c0_i32_0 = arith.constant 0 : i32
    %c0_i32_1 = arith.constant 0 : i32
    return %arg0, %c0_i32, %c0_i32_0 : i32, i32, i32
  }
}

module attributes {stable_mosaic.version = 11 : i64} {
  func.func @_bn_relu_kernel(%arg0: i32, %arg1: memref<1x288x128xbf16, #tpu.memory_space<vmem>>, %arg2: memref<1x128xf32, #tpu.memory_space<vmem>>, %arg3: memref<1x128xf32, #tpu.memory_space<vmem>>, %arg4: memref<1x288x128xf32, #tpu.memory_space<vmem>>) attributes {dimension_semantics = [#tpu.dimension_semantics<parallel>], iteration_bounds = array<i64: 2>, scalar_prefetch = 0 : i64, scratch_operands = 0 : i64, tpu.core_type = #tpu.core_type<tc>, window_params = [{transform_indices = @transform_0, window_bounds = array<i64: 1, 288, 128>}, {pipeline_mode = #tpu.pipeline_mode<synchronous>, transform_indices = @transform_1, window_bounds = array<i64: 1, 128>}, {pipeline_mode = #tpu.pipeline_mode<synchronous>, transform_indices = @transform_2, window_bounds = array<i64: 1, 128>}, {transform_indices = @transform_3, window_bounds = array<i64: 1, 288, 128>}]} {
    %c0 = arith.constant 0 : index
    %c0_0 = arith.constant 0 : index
    %c0_1 = arith.constant 0 : index
    %0 = vector.load %arg1[%c0, %c0_0, %c0_1] : memref<1x288x128xbf16, #tpu.memory_space<vmem>>, vector<1x288x128xbf16>
    %1 = vector.shape_cast %0 : vector<1x288x128xbf16> to vector<288x128xbf16>
    %2 = arith.extf %1 : vector<288x128xbf16> to vector<288x128xf32>
    %c0_2 = arith.constant 0 : index
    %c0_3 = arith.constant 0 : index
    %3 = vector.load %arg2[%c0_2, %c0_3] : memref<1x128xf32, #tpu.memory_space<vmem>>, vector<1x128xf32>
    %4 = vector.broadcast %3 : vector<1x128xf32> to vector<288x128xf32>
    %5 = arith.mulf %2, %4 : vector<288x128xf32>
    %c0_4 = arith.constant 0 : index
    %c0_5 = arith.constant 0 : index
    %6 = vector.load %arg3[%c0_4, %c0_5] : memref<1x128xf32, #tpu.memory_space<vmem>>, vector<1x128xf32>
    %7 = vector.broadcast %6 : vector<1x128xf32> to vector<288x128xf32>
    %8 = arith.addf %5, %7 : vector<288x128xf32>
    %cst = arith.constant 0.000000e+00 : f32
    %9 = vector.broadcast %cst : f32 to vector<288x128xf32>
    %10 = arith.maximumf %8, %9 : vector<288x128xf32>
    %c0_6 = arith.constant 0 : index
    %c0_7 = arith.constant 0 : index
    %c0_8 = arith.constant 0 : index
    %11 = vector.load %arg4[%c0_6, %c0_7, %c0_8] : memref<1x288x128xf32, #tpu.memory_space<vmem>>, vector<1x288x128xf32>
    %12 = vector.shape_cast %11 : vector<1x288x128xf32> to vector<288x128xf32>
    %13 = vector.shape_cast %10 : vector<288x128xf32> to vector<1x288x128xf32>
    tpu.vector_store %arg4[%c0_6, %c0_7, %c0_8], %13 {strides = array<i32>} : memref<1x288x128xf32, #tpu.memory_space<vmem>>, vector<1x288x128xf32>,
    return
  }
  func.func @transform_0(%arg0: i32) -> (i32, i32, i32) {
    %c0_i32 = arith.constant 0 : i32
    %c0_i32_0 = arith.constant 0 : i32
    %c0_i32_1 = arith.constant 0 : i32
    return %arg0, %c0_i32, %c0_i32_0 : i32, i32, i32
  }
  func.func @transform_1(%arg0: i32) -> (i32, i32) {
    %c0_i32 = arith.constant 0 : i32
    %c0_i32_0 = arith.constant 0 : i32
    %c0_i32_1 = arith.constant 0 : i32
    return %c0_i32, %c0_i32_0 : i32, i32
  }
  func.func @transform_2(%arg0: i32) -> (i32, i32) {
    %c0_i32 = arith.constant 0 : i32
    %c0_i32_0 = arith.constant 0 : i32
    %c0_i32_1 = arith.constant 0 : i32
    return %c0_i32, %c0_i32_0 : i32, i32
  }
  func.func @transform_3(%arg0: i32) -> (i32, i32, i32) {
    %c0_i32 = arith.constant 0 : i32
    %c0_i32_0 = arith.constant 0 : i32
    %c0_i32_1 = arith.constant 0 : i32
    return %arg0, %c0_i32, %c0_i32_0 : i32, i32, i32
  }
}

</mosaic_0001>

<llo_original>
// kernel: double_conv.5
$region0: #{double_conv.5}
  #allocation0 [shape = 'u32[]', space=smem, size = 0x4, offset = 0x4, fixed_abs, tag = 'smem constant byte address 0x4 - core index']
  #allocation1 [shape = 'u32[144,128]{1,0:T(1,128)}', space=vmem, size = 0x12000, scoped, tag = 'internal scratch']
  %s0 = inlined_call_operand.hbm [shape: bf16[2,288,128], index: 0, kind: input, shape index: {}]
  %s1 = inlined_call_operand.hbm [shape: f32[1,128], index: 1, kind: input, shape index: {}]
  %s2 = inlined_call_operand.hbm [shape: f32[1,128], index: 2, kind: input, shape index: {}]
  %s3 = inlined_call_operand.hbm [shape: f32[2,288,128], index: 3, kind: output, shape index: {}]
  %s4 = sld [smem:[#allocation0]]
  $region57: #{double_conv.5} parent=0
    _
  %s6 = ssub.s32 1, %s4
  %s7 = scalar_select 0, %s6, %s4
  $region1: #{double_conv.5} parent=0
    #allocation2 [shape = 'u8[147456]{0}', space=vmem, size = 0x24000, scoped, tag = 'input window, operand 0']
    #allocation3 [shape = 's32[2]{0}', space=sflag, size = 0x8, scoped, tag = 'scoped memory for double_conv.5']
    #allocation4 [shape = 's32[2]{0}', space=sflag, size = 0x8, scoped, tag = 'scoped memory for double_conv.5']
    #allocation5 [shape = 'u8[512]{0}', space=vmem, size = 0x400, scoped, tag = 'input window, operand 1, single buffered']
    #allocation6 [shape = 's32[1]{0}', space=sflag, size = 0x4, scoped, tag = 'scoped memory for double_conv.5']
    #allocation7 [shape = 'u8[512]{0}', space=vmem, size = 0x400, scoped, tag = 'input window, operand 2, single buffered']
    #allocation8 [shape = 'u8[294912]{0}', space=vmem, size = 0x48000, scoped, tag = 'output window, operand 0']
    %8 = vsyncpa [#allocation3], 0
    %s9 = scalar_lea.sflag [#allocation3], 1
    %10 = vsyncpa %s9, 0
    %11 = vsyncpa [#allocation6], 0
    %12 = vsyncpa [#allocation4], 0
    %s13 = scalar_lea.sflag [#allocation4], 1
    %14 = vsyncpa %s13, 0
    loop: start=0, step=1, limit=4
    $region2: #{double_conv.5} parent=1 // loop_pre_header
      _
    $region3: #{double_conv.5} parent=1 // loop_header
      %s16 = sphi 0, %s20
      %p17 = scmp.ge.s32.totalorder %s16, 4
      %s26 = sphi 0, %s28
      %s29 = sphi 0, %s26
      %s30 = sphi 0, %s29
      %s46 = sphi 0, %s30
      %s50 = sphi 0, %s50
      %s52 = sphi 0, %s50
      %s53 = sphi 0, %s52
      %s67 = sphi 0, %s53
      %s71 = sphi 0, %s71
      %s73 = sphi 0, %s71
      %s74 = sphi 0, %s73
      %s88 = sphi 0, %s74
      %s94 = sphi 0, %s96
      %s97 = sphi 0, %s94
      %s98 = sphi 0, %s97
      %s114 = sphi 0, %s98
    $region4: #{double_conv.5} parent=1 // loop_header_branch
      %19 = sbr.rel (%p17) target = $region8
    $region5: #{double_conv.5} parent=1 // loop_body
      %s21 = ssub.s32 %s16, 1
      %s22 = ssub.s32 %s16, 2
      %s23 = sadd.s32 %s16, 1
      %s24 = ssub.s32 %s16, %s23
      %p25 = scmp.eq.s32.totalorder %s24, 0
      %s27 = sadd.s32 %s26, 1
      %s28 = scalar_select %p25, %s26, %s27
      %p31 = pneg %p25
      %p32 = scmp.eq.s32.totalorder %s16, 1
      %p33 = por %p31, %p32
      %p34 = scmp.ne.s32.totalorder %s26, %s29
      %p35 = scmp.eq.s32.totalorder %s16, 0
      %p36 = por %p34, %p35
      %p37 = scmp.ne.s32.totalorder %s26, %s29
      %p38 = scmp.eq.s32.totalorder %s21, 1
      %p39 = por %p37, %p38
      %p40 = scmp.ne.s32.totalorder %s29, %s30
      %p41 = scmp.eq.s32.totalorder %s21, 0
      %p42 = por %p40, %p41
      %p43 = scmp.ne.s32.totalorder %s29, %s30
      %p44 = scmp.eq.s32.totalorder %s22, 1
      %p45 = por %p43, %p44
      %p47 = scmp.ne.s32.totalorder %s30, %s46
      %p48 = scmp.eq.s32.totalorder %s22, 0
      %p49 = por %p47, %p48
      %s51 = sadd.s32 %s50, 1
      %p54 = scmp.eq.s32.totalorder %s16, 1
      %p55 = scmp.ne.s32.totalorder %s50, %s52
      %p56 = scmp.eq.s32.totalorder %s16, 0
      %p57 = por %p55, %p56
      %p58 = scmp.ne.s32.totalorder %s50, %s52
      %p59 = scmp.eq.s32.totalorder %s21, 1
      %p60 = por %p58, %p59
      %p61 = scmp.ne.s32.totalorder %s52, %s53
      %p62 = scmp.eq.s32.totalorder %s21, 0
      %p63 = por %p61, %p62
      %p64 = scmp.ne.s32.totalorder %s52, %s53
      %p65 = scmp.eq.s32.totalorder %s22, 1
      %p66 = por %p64, %p65
      %p68 = scmp.ne.s32.totalorder %s53, %s67
      %p69 = scmp.eq.s32.totalorder %s22, 0
      %p70 = por %p68, %p69
      %s72 = sadd.s32 %s71, 1
      %p75 = scmp.eq.s32.totalorder %s16, 1
      %p76 = scmp.ne.s32.totalorder %s71, %s73
      %p77 = scmp.eq.s32.totalorder %s16, 0
      %p78 = por %p76, %p77
      %p79 = scmp.ne.s32.totalorder %s71, %s73
      %p80 = scmp.eq.s32.totalorder %s21, 1
      %p81 = por %p79, %p80
      %p82 = scmp.ne.s32.totalorder %s73, %s74
      %p83 = scmp.eq.s32.totalorder %s21, 0
      %p84 = por %p82, %p83
      %p85 = scmp.ne.s32.totalorder %s73, %s74
      %p86 = scmp.eq.s32.totalorder %s22, 1
      %p87 = por %p85, %p86
      %p89 = scmp.ne.s32.totalorder %s74, %s88
      %p90 = scmp.eq.s32.totalorder %s22, 0
      %p91 = por %p89, %p90
      %s92 = ssub.s32 %s16, %s23
      %p93 = scmp.eq.s32.totalorder %s92, 0
      %s95 = sadd.s32 %s94, 1
      %s96 = scalar_select %p93, %s94, %s95
      %p99 = pneg %p93
      %p100 = scmp.eq.s32.totalorder %s16, 1
      %p101 = por %p99, %p100
      %p102 = scmp.ne.s32.totalorder %s94, %s97
      %p103 = scmp.eq.s32.totalorder %s16, 0
      %p104 = por %p102, %p103
      %p105 = scmp.ne.s32.totalorder %s94, %s97
      %p106 = scmp.eq.s32.totalorder %s21, 1
      %p107 = por %p105, %p106
      %p108 = scmp.ne.s32.totalorder %s97, %s98
      %p109 = scmp.eq.s32.totalorder %s21, 0
      %p110 = por %p108, %p109
      %p111 = scmp.ne.s32.totalorder %s97, %s98
      %p112 = scmp.eq.s32.totalorder %s22, 1
      %p113 = por %p111, %p112
      %p115 = scmp.ne.s32.totalorder %s98, %s114
      %p116 = scmp.eq.s32.totalorder %s22, 0
      %p117 = por %p115, %p116
      %p118 = scmp.le.s32.totalorder 1, %s16
      %p119 = scmp.lt.s32.totalorder %s16, 3
      %p120 = pnand %p118, %p119
      %p121 = pneg %p120
      // Predicated region
      $region9: #{double_conv.5} parent=5 // pred_check
        _
      $region10: #{double_conv.5} parent=5 // pred_check_branch
        %123 = sbr.rel (%p120) target = $region12
      $region11: #{double_conv.5} parent=5 // pred_region
        %s124 = ssub.s32 %s16, 1
        // Predicated region
        $region13: #{double_conv.5} parent=11 // pred_check
          %p125 = pneg %p63
        $region14: #{double_conv.5} parent=11 // pred_check_branch
          %127 = sbr.rel (%p125) target = $region16
        $region15: #{double_conv.5} parent=11 // pred_region
          %s129 = ssub.s32 16, 16
          %130 = vsyncadd [#allocation6], %s129
          %s132 = sshll.u32 [#allocation5], 4
          %s133 = int_to_ptr.vmem [resolvable:$true] %s132
          %135 = dma.hbm_to_vmem [thread:$0]  %s1, 16, %s133, [#allocation6]
        $region16: #{double_conv.5} parent=11 // pred_fallthru
          _
        // Predicated region
        $region17: #{double_conv.5} parent=11 // pred_check
          %p136 = pneg %p84
        $region18: #{double_conv.5} parent=11 // pred_check_branch
          %138 = sbr.rel (%p136) target = $region20
        $region19: #{double_conv.5} parent=11 // pred_region
          %s140 = ssub.s32 16, 16
          %141 = vsyncadd [#allocation6], %s140
          %s143 = sshll.u32 [#allocation7], 4
          %s144 = int_to_ptr.vmem [resolvable:$true] %s143
          %146 = dma.hbm_to_vmem [thread:$0]  %s2, 16, %s144, [#allocation6]
        $region20: #{double_conv.5} parent=11 // pred_fallthru
          _
      $region12: #{double_conv.5} parent=5 // pred_fallthru
        _
      %p147 = scmp.lt.s32.totalorder %s16, 2
      // Predicated region
      $region21: #{double_conv.5} parent=5 // pred_check
        %p148 = pneg %p147
      $region22: #{double_conv.5} parent=5 // pred_check_branch
        %150 = sbr.rel (%p148) target = $region24
      $region23: #{double_conv.5} parent=5 // pred_region
        // Predicated region
        $region25: #{double_conv.5} parent=23 // pred_check
          %p151 = pneg %p36
        $region26: #{double_conv.5} parent=23 // pred_check_branch
          %153 = sbr.rel (%p151) target = $region28
        $region27: #{double_conv.5} parent=23 // pred_region
          %s154 = sand.u32 %s26, 1
          %s155 = scalar_lea.sflag [#allocation3], %s154
          %s156 = sand.u32 %s26, 1
          %s157 = smul.addr %s156, 144
          %s158 = scalar_lea.vmem [#allocation2], %s157
          %s160 = ssub.s32 2304, 2304
          %161 = vsyncadd %s155, %s160
          %s162 = smul.addr %s16, 36
          %s163 = smul.addr %s162, 64
          %s164 = scalar_lea.hbm %s0, %s163
          %s165 = sshll.u32 %s158, 4
          %s166 = int_to_ptr.vmem [resolvable:$true] %s165
          %171 = dma.hbm_to_vmem [thread:$0]  %s164, 2304, %s166, %s155, 64, 64, 4
        $region28: #{double_conv.5} parent=23 // pred_fallthru
          _
      $region24: #{double_conv.5} parent=5 // pred_fallthru
        _
      %p172 = scmp.le.s32.totalorder 1, %s16
      %p173 = scmp.lt.s32.totalorder %s16, 3
      %p174 = pnand %p172, %p173
      %p175 = pneg %p174
      // Predicated region
      $region29: #{double_conv.5} parent=5 // pred_check
        _
      $region30: #{double_conv.5} parent=5 // pred_check_branch
        %177 = sbr.rel (%p174) target = $region32
      $region31: #{double_conv.5} parent=5 // pred_region
        %s178 = ssub.s32 %s16, 1
        %s179 = sand.u32 %s29, 1
        %s180 = scalar_lea.sflag [#allocation3], %s179
        %s181 = sand.u32 %s29, 1
        %s182 = smul.addr %s181, 144
        %s183 = scalar_lea.vmem [#allocation2], %s182
        // Predicated region
        $region33: #{double_conv.5} parent=31 // pred_check
          %p184 = pneg %p42
        $region34: #{double_conv.5} parent=31 // pred_check_branch
          %186 = sbr.rel (%p184) target = $region36
        $region35: #{double_conv.5} parent=31 // pred_region
          %187 = dma.done %s180, 2304
        $region36: #{double_conv.5} parent=31 // pred_fallthru
          _
        // Predicated region
        $region37: #{double_conv.5} parent=31 // pred_check
          %p188 = pneg %p63
        $region38: #{double_conv.5} parent=31 // pred_check_branch
          %190 = sbr.rel (%p188) target = $region40
        $region39: #{double_conv.5} parent=31 // pred_region
          %191 = dma.done [#allocation6], 16
        $region40: #{double_conv.5} parent=31 // pred_fallthru
          _
        // Predicated region
        $region41: #{double_conv.5} parent=31 // pred_check
          %p192 = pneg %p84
        $region42: #{double_conv.5} parent=31 // pred_check_branch
          %194 = sbr.rel (%p192) target = $region44
        $region43: #{double_conv.5} parent=31 // pred_region
          %195 = dma.done [#allocation6], 16
        $region44: #{double_conv.5} parent=31 // pred_fallthru
          _
        %s196 = sand.u32 %s29, 1
        %s197 = scalar_lea.sflag [#allocation3], %s196
        %s198 = sand.u32 %s29, 1
        %s199 = smul.addr %s198, 144
        %s200 = scalar_lea.vmem [#allocation2], %s199
        %p201 = pneg %p42
        %p202 = pneg %p39
        %p203 = pneg %p63
        %p204 = pneg %p60
        %p205 = pneg %p84
        %p206 = pneg %p81
        %p207 = pneg %p110
        %p208 = pneg %p107
        %s209 = sand.u32 %s97, 1
        %s210 = scalar_lea.sflag [#allocation4], %s209
        %s211 = sand.u32 %s97, 1
        %s212 = smul.addr %s211, 288
        %s213 = scalar_lea.vmem [#allocation8], %s212
        %v214 = vld [vmem:[%s183] sm:$0xf]
        %v215 = vld [vmem:[%s183 + $0x4] sm:$0xf]
        %v216 = vld [vmem:[%s183 + $0x8] sm:$0xf]
        %v217 = vld [vmem:[%s183 + $0xc] sm:$0xf]
        %v218 = vld [vmem:[%s183 + $0x10] sm:$0xf]
        %v219 = vld [vmem:[%s183 + $0x14] sm:$0xf]
        %v220 = vld [vmem:[%s183 + $0x18] sm:$0xf]
        %v221 = vld [vmem:[%s183 + $0x1c] sm:$0xf]
        %v222 = vld [vmem:[%s183 + $0x20] sm:$0xf]
        %v223 = vld [vmem:[%s183 + $0x24] sm:$0xf]
        %v224 = vld [vmem:[%s183 + $0x28] sm:$0xf]
        %v225 = vld [vmem:[%s183 + $0x2c] sm:$0xf]
        %v226 = vld [vmem:[%s183 + $0x30] sm:$0xf]
        %v227 = vld [vmem:[%s183 + $0x34] sm:$0xf]
        %v228 = vld [vmem:[%s183 + $0x38] sm:$0xf]
        %v229 = vld [vmem:[%s183 + $0x3c] sm:$0xf]
        %v230 = vld [vmem:[%s183 + $0x40] sm:$0xf]
        %v231 = vld [vmem:[%s183 + $0x44] sm:$0xf]
        %v232 = vld [vmem:[%s183 + $0x48] sm:$0xf]
        %v233 = vld [vmem:[%s183 + $0x4c] sm:$0xf]
        %v234 = vld [vmem:[%s183 + $0x50] sm:$0xf]
        %v235 = vld [vmem:[%s183 + $0x54] sm:$0xf]
        %v236 = vld [vmem:[%s183 + $0x58] sm:$0xf]
        %v237 = vld [vmem:[%s183 + $0x5c] sm:$0xf]
        %v238 = vld [vmem:[%s183 + $0x60] sm:$0xf]
        %v239 = vld [vmem:[%s183 + $0x64] sm:$0xf]
        %v240 = vld [vmem:[%s183 + $0x68] sm:$0xf]
        %v241 = vld [vmem:[%s183 + $0x6c] sm:$0xf]
        %v242 = vld [vmem:[%s183 + $0x70] sm:$0xf]
        %v243 = vld [vmem:[%s183 + $0x74] sm:$0xf]
        %v244 = vld [vmem:[%s183 + $0x78] sm:$0xf]
        %v245 = vld [vmem:[%s183 + $0x7c] sm:$0xf]
        %v246 = vld [vmem:[%s183 + $0x80] sm:$0xf]
        %v247 = vld [vmem:[%s183 + $0x84] sm:$0xf]
        %v248 = vld [vmem:[%s183 + $0x88] sm:$0xf]
        %v249 = vld [vmem:[%s183 + $0x8c] sm:$0xf]
        %v250 = vunpack.c.l.bf16 %v214
        %v251 = vunpack.c.l.bf16 %v215
        %v252 = vunpack.c.l.bf16 %v216
        %v253 = vunpack.c.l.bf16 %v217
        %v254 = vunpack.c.l.bf16 %v218
        %v255 = vunpack.c.l.bf16 %v219
        %v256 = vunpack.c.l.bf16 %v220
        %v257 = vunpack.c.l.bf16 %v221
        %v258 = vunpack.c.l.bf16 %v222
        %v259 = vunpack.c.l.bf16 %v223
        %v260 = vunpack.c.l.bf16 %v224
        %v261 = vunpack.c.l.bf16 %v225
        %v262 = vunpack.c.l.bf16 %v226
        %v263 = vunpack.c.l.bf16 %v227
        %v264 = vunpack.c.l.bf16 %v228
        %v265 = vunpack.c.l.bf16 %v229
        %v266 = vunpack.c.l.bf16 %v230
        %v267 = vunpack.c.l.bf16 %v231
        %v268 = vunpack.c.l.bf16 %v232
        %v269 = vunpack.c.l.bf16 %v233
        %v270 = vunpack.c.l.bf16 %v234
        %v271 = vunpack.c.l.bf16 %v235
        %v272 = vunpack.c.l.bf16 %v236
        %v273 = vunpack.c.l.bf16 %v237
        %v274 = vunpack.c.l.bf16 %v238
        %v275 = vunpack.c.l.bf16 %v239
        %v276 = vunpack.c.l.bf16 %v240
        %v277 = vunpack.c.l.bf16 %v241
        %v278 = vunpack.c.l.bf16 %v242
        %v279 = vunpack.c.l.bf16 %v243
        %v280 = vunpack.c.l.bf16 %v244
        %v281 = vunpack.c.l.bf16 %v245
        %v282 = vunpack.c.l.bf16 %v246
        %v283 = vunpack.c.l.bf16 %v247
        %v284 = vunpack.c.l.bf16 %v248
        %v285 = vunpack.c.l.bf16 %v249
        %v286 = vld [vmem:[#allocation5] sm:$0x1]
        %v288 = vlaneseq
        %v289 = vshrl.u32 %v288, 7
        %v290 = vsub.s32 0, %v289
        %v291 = vrot.slane %v286, %v290
        %v293 = vmul.f32 %v250, %v291
        %v294 = vmul.f32 %v251, %v291
        %v295 = vmul.f32 %v252, %v291
        %v296 = vmul.f32 %v253, %v291
        %v297 = vmul.f32 %v254, %v291
        %v298 = vmul.f32 %v255, %v291
        %v299 = vmul.f32 %v256, %v291
        %v300 = vmul.f32 %v257, %v291
        %v301 = vmul.f32 %v258, %v291
        %v302 = vmul.f32 %v259, %v291
        %v303 = vmul.f32 %v260, %v291
        %v304 = vmul.f32 %v261, %v291
        %v305 = vmul.f32 %v262, %v291
        %v306 = vmul.f32 %v263, %v291
        %v307 = vmul.f32 %v264, %v291
        %v308 = vmul.f32 %v265, %v291
        %v309 = vmul.f32 %v266, %v291
        %v310 = vmul.f32 %v267, %v291
        %v311 = vmul.f32 %v268, %v291
        %v312 = vmul.f32 %v269, %v291
        %v313 = vmul.f32 %v270, %v291
        %v314 = vmul.f32 %v271, %v291
        %v315 = vmul.f32 %v272, %v291
        %v316 = vmul.f32 %v273, %v291
        %v317 = vmul.f32 %v274, %v291
        %v318 = vmul.f32 %v275, %v291
        %v319 = vmul.f32 %v276, %v291
        %v320 = vmul.f32 %v277, %v291
        %v321 = vmul.f32 %v278, %v291
        %v322 = vmul.f32 %v279, %v291
        %v323 = vmul.f32 %v280, %v291
        %v324 = vmul.f32 %v281, %v291
        %v325 = vmul.f32 %v282, %v291
        %v326 = vmul.f32 %v283, %v291
        %v327 = vmul.f32 %v284, %v291
        %v328 = vmul.f32 %v285, %v291
        %v329 = vld [vmem:[#allocation7] sm:$0x1]
        %v331 = vlaneseq
        %v332 = vshrl.u32 %v331, 7
        %v333 = vsub.s32 0, %v332
        %v334 = vrot.slane %v329, %v333
        %v336 = vadd.f32 %v293, %v334
        %v337 = vadd.f32 %v294, %v334
        %v338 = vadd.f32 %v295, %v334
        %v339 = vadd.f32 %v296, %v334
        %v340 = vadd.f32 %v297, %v334
        %v341 = vadd.f32 %v298, %v334
        %v342 = vadd.f32 %v299, %v334
        %v343 = vadd.f32 %v300, %v334
        %v344 = vadd.f32 %v301, %v334
        %v345 = vadd.f32 %v302, %v334
        %v346 = vadd.f32 %v303, %v334
        %v347 = vadd.f32 %v304, %v334
        %v348 = vadd.f32 %v305, %v334
        %v349 = vadd.f32 %v306, %v334
        %v350 = vadd.f32 %v307, %v334
        %v351 = vadd.f32 %v308, %v334
        %v352 = vadd.f32 %v309, %v334
        %v353 = vadd.f32 %v310, %v334
        %v354 = vadd.f32 %v311, %v334
        %v355 = vadd.f32 %v312, %v334
        %v356 = vadd.f32 %v313, %v334
        %v357 = vadd.f32 %v314, %v334
        %v358 = vadd.f32 %v315, %v334
        %v359 = vadd.f32 %v316, %v334
        %v360 = vadd.f32 %v317, %v334
        %v361 = vadd.f32 %v318, %v334
        %v362 = vadd.f32 %v319, %v334
        %v363 = vadd.f32 %v320, %v334
        %v364 = vadd.f32 %v321, %v334
        %v365 = vadd.f32 %v322, %v334
        %v366 = vadd.f32 %v323, %v334
        %v367 = vadd.f32 %v324, %v334
        %v368 = vadd.f32 %v325, %v334
        %v369 = vadd.f32 %v326, %v334
        %v370 = vadd.f32 %v327, %v334
        %v371 = vadd.f32 %v328, %v334
        %v372 = vmax.f32 %v336, 0.0
        %v373 = vmax.f32 %v337, 0.0
        %v374 = vmax.f32 %v338, 0.0
        %v375 = vmax.f32 %v339, 0.0
        %v376 = vmax.f32 %v340, 0.0
        %v377 = vmax.f32 %v341, 0.0
        %v378 = vmax.f32 %v342, 0.0
        %v379 = vmax.f32 %v343, 0.0
        %v380 = vmax.f32 %v344, 0.0
        %v381 = vmax.f32 %v345, 0.0
        %v382 = vmax.f32 %v346, 0.0
        %v383 = vmax.f32 %v347, 0.0
        %v384 = vmax.f32 %v348, 0.0
        %v385 = vmax.f32 %v349, 0.0
        %v386 = vmax.f32 %v350, 0.0
        %v387 = vmax.f32 %v351, 0.0
        %v388 = vmax.f32 %v352, 0.0
        %v389 = vmax.f32 %v353, 0.0
        %v390 = vmax.f32 %v354, 0.0
        %v391 = vmax.f32 %v355, 0.0
        %v392 = vmax.f32 %v356, 0.0
        %v393 = vmax.f32 %v357, 0.0
        %v394 = vmax.f32 %v358, 0.0
        %v395 = vmax.f32 %v359, 0.0
        %v396 = vmax.f32 %v360, 0.0
        %v397 = vmax.f32 %v361, 0.0
        %v398 = vmax.f32 %v362, 0.0
        %v399 = vmax.f32 %v363, 0.0
        %v400 = vmax.f32 %v364, 0.0
        %v401 = vmax.f32 %v365, 0.0
        %v402 = vmax.f32 %v366, 0.0
        %v403 = vmax.f32 %v367, 0.0
        %v404 = vmax.f32 %v368, 0.0
        %v405 = vmax.f32 %v369, 0.0
        %v406 = vmax.f32 %v370, 0.0
        %v407 = vmax.f32 %v371, 0.0
        %408 = vst [vmem:[%s213] sm:$0xff] %v372
        %409 = vst [vmem:[%s213 + $0x8] sm:$0xff] %v373
        %410 = vst [vmem:[%s213 + $0x10] sm:$0xff] %v374
        %411 = vst [vmem:[%s213 + $0x18] sm:$0xff] %v375
        %412 = vst [vmem:[%s213 + $0x20] sm:$0xff] %v376
        %413 = vst [vmem:[%s213 + $0x28] sm:$0xff] %v377
        %414 = vst [vmem:[%s213 + $0x30] sm:$0xff] %v378
        %415 = vst [vmem:[%s213 + $0x38] sm:$0xff] %v379
        %416 = vst [vmem:[%s213 + $0x40] sm:$0xff] %v380
        %417 = vst [vmem:[%s213 + $0x48] sm:$0xff] %v381
        %418 = vst [vmem:[%s213 + $0x50] sm:$0xff] %v382
        %419 = vst [vmem:[%s213 + $0x58] sm:$0xff] %v383
        %420 = vst [vmem:[%s213 + $0x60] sm:$0xff] %v384
        %421 = vst [vmem:[%s213 + $0x68] sm:$0xff] %v385
        %422 = vst [vmem:[%s213 + $0x70] sm:$0xff] %v386
        %423 = vst [vmem:[%s213 + $0x78] sm:$0xff] %v387
        %424 = vst [vmem:[%s213 + $0x80] sm:$0xff] %v388
        %425 = vst [vmem:[%s213 + $0x88] sm:$0xff] %v389
        %426 = vst [vmem:[%s213 + $0x90] sm:$0xff] %v390
        %427 = vst [vmem:[%s213 + $0x98] sm:$0xff] %v391
        %428 = vst [vmem:[%s213 + $0xa0] sm:$0xff] %v392
        %429 = vst [vmem:[%s213 + $0xa8] sm:$0xff] %v393
        %430 = vst [vmem:[%s213 + $0xb0] sm:$0xff] %v394
        %431 = vst [vmem:[%s213 + $0xb8] sm:$0xff] %v395
        %432 = vst [vmem:[%s213 + $0xc0] sm:$0xff] %v396
        %433 = vst [vmem:[%s213 + $0xc8] sm:$0xff] %v397
        %434 = vst [vmem:[%s213 + $0xd0] sm:$0xff] %v398
        %435 = vst [vmem:[%s213 + $0xd8] sm:$0xff] %v399
        %436 = vst [vmem:[%s213 + $0xe0] sm:$0xff] %v400
        %437 = vst [vmem:[%s213 + $0xe8] sm:$0xff] %v401
        %438 = vst [vmem:[%s213 + $0xf0] sm:$0xff] %v402
        %439 = vst [vmem:[%s213 + $0xf8] sm:$0xff] %v403
        %440 = vst [vmem:[%s213 + $0x100] sm:$0xff] %v404
        %441 = vst [vmem:[%s213 + $0x108] sm:$0xff] %v405
        %442 = vst [vmem:[%s213 + $0x110] sm:$0xff] %v406
        %443 = vst [vmem:[%s213 + $0x118] sm:$0xff] %v407
        %s444 = sand.u32 %s97, 1
        %s445 = scalar_lea.sflag [#allocation4], %s444
        %s446 = sand.u32 %s97, 1
        %s447 = smul.addr %s446, 288
        %s448 = scalar_lea.vmem [#allocation8], %s447
        // Predicated region
        $region45: #{double_conv.5} parent=31 // pred_check
          %p449 = pneg %p107
        $region46: #{double_conv.5} parent=31 // pred_check_branch
          %451 = sbr.rel (%p449) target = $region48
        $region47: #{double_conv.5} parent=31 // pred_region
          %s453 = ssub.s32 4608, 4608
          %454 = vsyncadd %s445, %s453
          %s455 = smul.addr %s21, 36
          %s456 = smul.addr %s455, 128
          %s457 = scalar_lea.hbm %s3, %s456
          %s458 = sshll.u32 %s448, 4
          %s459 = int_to_ptr.vmem [resolvable:$true] %s458
          %464 = dma.vmem_to_hbm [thread:$0]  %s459, 4608, %s457, %s445, 128, 128, 8
        $region48: #{double_conv.5} parent=31 // pred_fallthru
          _
      $region32: #{double_conv.5} parent=5 // pred_fallthru
        _
      %p465 = scmp.le.s32.totalorder 2, %s16
      // Predicated region
      $region49: #{double_conv.5} parent=5 // pred_check
        %p466 = pneg %p465
      $region50: #{double_conv.5} parent=5 // pred_check_branch
        %468 = sbr.rel (%p466) target = $region52
      $region51: #{double_conv.5} parent=5 // pred_region
        %s469 = ssub.s32 %s16, 2
        // Predicated region
        $region53: #{double_conv.5} parent=51 // pred_check
          %p470 = pneg %p113
        $region54: #{double_conv.5} parent=51 // pred_check_branch
          %472 = sbr.rel (%p470) target = $region56
        $region55: #{double_conv.5} parent=51 // pred_region
          %s473 = sand.u32 %s98, 1
          %s474 = scalar_lea.sflag [#allocation4], %s473
          %s475 = sand.u32 %s98, 1
          %s476 = smul.addr %s475, 288
          %s477 = scalar_lea.vmem [#allocation8], %s476
          %478 = dma.done %s474, 4608
        $region56: #{double_conv.5} parent=51 // pred_fallthru
          _
      $region52: #{double_conv.5} parent=5 // pred_fallthru
        _
    $region6: #{double_conv.5} parent=1 // loop_footer
      %s20 = sadd.s32 1, %s16
    $region7: #{double_conv.5} parent=1 // loop_footer_branch
      %15 = sbr.rel target = $region3
    $region8: #{double_conv.5} parent=1 // loop_exit
      _
    %479 = vsyncpa [#allocation3], 1
    %s480 = scalar_lea.sflag [#allocation3], 1
    %481 = vsyncpa %s480, 1
    %482 = vsyncpa [#allocation6], 1
    %483 = vsyncpa [#allocation4], 1
    %s484 = scalar_lea.sflag [#allocation4], 1
    %485 = vsyncpa %s484, 1

// kernel: double_conv.3
$region0: #{double_conv.3}
  #allocation0 [shape = 'u32[]', space=smem, size = 0x4, offset = 0x4, fixed_abs, tag = 'smem constant byte address 0x4 - core index']
  #allocation1 [shape = 'u32[144,128]{1,0:T(1,128)}', space=vmem, size = 0x12000, scoped, tag = 'internal scratch']
  %s0 = inlined_call_operand.hbm [shape: bf16[2,328,4], index: 0, kind: input, shape index: {}]
  %s1 = inlined_call_operand.hbm [shape: bf16[9,4,128], index: 1, kind: input, shape index: {}]
  %s2 = inlined_call_operand.hbm [shape: f32[288,1], index: 2, kind: input, shape index: {}]
  %s3 = inlined_call_operand.hbm [shape: bf16[2,288,128], index: 3, kind: output, shape index: {0}]
  %s4 = inlined_call_operand.hbm [shape: f32[2,2,128], index: 4, kind: output, shape index: {1}]
  %5 = xla_tuple %s3, %s4
  %s6 = sld [smem:[#allocation0]]
  $region65: #{double_conv.3} parent=0
    _
  %s8 = ssub.s32 1, %s6
  %s9 = scalar_select 0, %s8, %s6
  $region1: #{double_conv.3} parent=0
    #allocation2 [shape = 'u8[167936]{0}', space=vmem, size = 0x29000, scoped, tag = 'input window, operand 0']
    #allocation3 [shape = 's32[2]{0}', space=sflag, size = 0x8, scoped, tag = 'scoped memory for double_conv.3']
    #allocation4 [shape = 's32[2]{0}', space=sflag, size = 0x8, scoped, tag = 'scoped memory for double_conv.3']
    #allocation5 [shape = 'u8[9216]{0}', space=vmem, size = 0x2400, scoped, tag = 'input window, operand 1, single buffered']
    #allocation6 [shape = 's32[1]{0}', space=sflag, size = 0x4, scoped, tag = 'scoped memory for double_conv.3']
    #allocation7 [shape = 'u8[147456]{0}', space=vmem, size = 0x24000, scoped, tag = 'input window, operand 2, single buffered']
    #allocation8 [shape = 'u8[147456]{0}', space=vmem, size = 0x24000, scoped, tag = 'output window, operand 0']
    #allocation9 [shape = 'u8[2048]{0}', space=vmem, size = 0x800, scoped, tag = 'output window, operand 1']
    #allocation10 [shape = 's32[2]{0}', space=sflag, size = 0x8, scoped, tag = 'scoped memory for double_conv.3']
    %10 = vsyncpa [#allocation3], 0
    %s11 = scalar_lea.sflag [#allocation3], 1
    %12 = vsyncpa %s11, 0
    %13 = vsyncpa [#allocation6], 0
    %14 = vsyncpa [#allocation4], 0
    %s15 = scalar_lea.sflag [#allocation4], 1
    %16 = vsyncpa %s15, 0
    %17 = vsyncpa [#allocation10], 0
    %s18 = scalar_lea.sflag [#allocation10], 1
    %19 = vsyncpa %s18, 0
    loop: start=0, step=1, limit=4
    $region2: #{double_conv.3} parent=1 // loop_pre_header
      _
    $region3: #{double_conv.3} parent=1 // loop_header
      %s21 = sphi 0, %s25
      %p22 = scmp.ge.s32.totalorder %s21, 4
      %s31 = sphi 0, %s33
      %s34 = sphi 0, %s31
      %s35 = sphi 0, %s34
      %s51 = sphi 0, %s35
      %s55 = sphi 0, %s55
      %s57 = sphi 0, %s55
      %s58 = sphi 0, %s57
      %s72 = sphi 0, %s58
      %s76 = sphi 0, %s76
      %s78 = sphi 0, %s76
      %s79 = sphi 0, %s78
      %s93 = sphi 0, %s79
      %s99 = sphi 0, %s101
      %s102 = sphi 0, %s99
      %s103 = sphi 0, %s102
      %s119 = sphi 0, %s103
      %s125 = sphi 0, %s127
      %s128 = sphi 0, %s125
      %s129 = sphi 0, %s128
      %s145 = sphi 0, %s129
    $region4: #{double_conv.3} parent=1 // loop_header_branch
      %24 = sbr.rel (%p22) target = $region8
    $region5: #{double_conv.3} parent=1 // loop_body
      %s26 = ssub.s32 %s21, 1
      %s27 = ssub.s32 %s21, 2
      %s28 = sadd.s32 %s21, 1
      %s29 = ssub.s32 %s21, %s28
      %p30 = scmp.eq.s32.totalorder %s29, 0
      %s32 = sadd.s32 %s31, 1
      %s33 = scalar_select %p30, %s31, %s32
      %p36 = pneg %p30
      %p37 = scmp.eq.s32.totalorder %s21, 1
      %p38 = por %p36, %p37
      %p39 = scmp.ne.s32.totalorder %s31, %s34
      %p40 = scmp.eq.s32.totalorder %s21, 0
      %p41 = por %p39, %p40
      %p42 = scmp.ne.s32.totalorder %s31, %s34
      %p43 = scmp.eq.s32.totalorder %s26, 1
      %p44 = por %p42, %p43
      %p45 = scmp.ne.s32.totalorder %s34, %s35
      %p46 = scmp.eq.s32.totalorder %s26, 0
      %p47 = por %p45, %p46
      %p48 = scmp.ne.s32.totalorder %s34, %s35
      %p49 = scmp.eq.s32.totalorder %s27, 1
      %p50 = por %p48, %p49
      %p52 = scmp.ne.s32.totalorder %s35, %s51
      %p53 = scmp.eq.s32.totalorder %s27, 0
      %p54 = por %p52, %p53
      %s56 = sadd.s32 %s55, 1
      %p59 = scmp.eq.s32.totalorder %s21, 1
      %p60 = scmp.ne.s32.totalorder %s55, %s57
      %p61 = scmp.eq.s32.totalorder %s21, 0
      %p62 = por %p60, %p61
      %p63 = scmp.ne.s32.totalorder %s55, %s57
      %p64 = scmp.eq.s32.totalorder %s26, 1
      %p65 = por %p63, %p64
      %p66 = scmp.ne.s32.totalorder %s57, %s58
      %p67 = scmp.eq.s32.totalorder %s26, 0
      %p68 = por %p66, %p67
      %p69 = scmp.ne.s32.totalorder %s57, %s58
      %p70 = scmp.eq.s32.totalorder %s27, 1
      %p71 = por %p69, %p70
      %p73 = scmp.ne.s32.totalorder %s58, %s72
      %p74 = scmp.eq.s32.totalorder %s27, 0
      %p75 = por %p73, %p74
      %s77 = sadd.s32 %s76, 1
      %p80 = scmp.eq.s32.totalorder %s21, 1
      %p81 = scmp.ne.s32.totalorder %s76, %s78
      %p82 = scmp.eq.s32.totalorder %s21, 0
      %p83 = por %p81, %p82
      %p84 = scmp.ne.s32.totalorder %s76, %s78
      %p85 = scmp.eq.s32.totalorder %s26, 1
      %p86 = por %p84, %p85
      %p87 = scmp.ne.s32.totalorder %s78, %s79
      %p88 = scmp.eq.s32.totalorder %s26, 0
      %p89 = por %p87, %p88
      %p90 = scmp.ne.s32.totalorder %s78, %s79
      %p91 = scmp.eq.s32.totalorder %s27, 1
      %p92 = por %p90, %p91
      %p94 = scmp.ne.s32.totalorder %s79, %s93
      %p95 = scmp.eq.s32.totalorder %s27, 0
      %p96 = por %p94, %p95
      %s97 = ssub.s32 %s21, %s28
      %p98 = scmp.eq.s32.totalorder %s97, 0
      %s100 = sadd.s32 %s99, 1
      %s101 = scalar_select %p98, %s99, %s100
      %p104 = pneg %p98
      %p105 = scmp.eq.s32.totalorder %s21, 1
      %p106 = por %p104, %p105
      %p107 = scmp.ne.s32.totalorder %s99, %s102
      %p108 = scmp.eq.s32.totalorder %s21, 0
      %p109 = por %p107, %p108
      %p110 = scmp.ne.s32.totalorder %s99, %s102
      %p111 = scmp.eq.s32.totalorder %s26, 1
      %p112 = por %p110, %p111
      %p113 = scmp.ne.s32.totalorder %s102, %s103
      %p114 = scmp.eq.s32.totalorder %s26, 0
      %p115 = por %p113, %p114
      %p116 = scmp.ne.s32.totalorder %s102, %s103
      %p117 = scmp.eq.s32.totalorder %s27, 1
      %p118 = por %p116, %p117
      %p120 = scmp.ne.s32.totalorder %s103, %s119
      %p121 = scmp.eq.s32.totalorder %s27, 0
      %p122 = por %p120, %p121
      %s123 = ssub.s32 %s21, %s28
      %p124 = scmp.eq.s32.totalorder %s123, 0
      %s126 = sadd.s32 %s125, 1
      %s127 = scalar_select %p124, %s125, %s126
      %p130 = pneg %p124
      %p131 = scmp.eq.s32.totalorder %s21, 1
      %p132 = por %p130, %p131
      %p133 = scmp.ne.s32.totalorder %s125, %s128
      %p134 = scmp.eq.s32.totalorder %s21, 0
      %p135 = por %p133, %p134
      %p136 = scmp.ne.s32.totalorder %s125, %s128
      %p137 = scmp.eq.s32.totalorder %s26, 1
      %p138 = por %p136, %p137
      %p139 = scmp.ne.s32.totalorder %s128, %s129
      %p140 = scmp.eq.s32.totalorder %s26, 0
      %p141 = por %p139, %p140
      %p142 = scmp.ne.s32.totalorder %s128, %s129
      %p143 = scmp.eq.s32.totalorder %s27, 1
      %p144 = por %p142, %p143
      %p146 = scmp.ne.s32.totalorder %s129, %s145
      %p147 = scmp.eq.s32.totalorder %s27, 0
      %p148 = por %p146, %p147
      %p149 = scmp.le.s32.totalorder 1, %s21
      %p150 = scmp.lt.s32.totalorder %s21, 3
      %p151 = pnand %p149, %p150
      %p152 = pneg %p151
      // Predicated region
      $region9: #{double_conv.3} parent=5 // pred_check
        _
      $region10: #{double_conv.3} parent=5 // pred_check_branch
        %154 = sbr.rel (%p151) target = $region12
      $region11: #{double_conv.3} parent=5 // pred_region
        %s155 = ssub.s32 %s21, 1
        // Predicated region
        $region13: #{double_conv.3} parent=11 // pred_check
          %p156 = pneg %p68
        $region14: #{double_conv.3} parent=11 // pred_check_branch
          %158 = sbr.rel (%p156) target = $region16
        $region15: #{double_conv.3} parent=11 // pred_region
          %s160 = ssub.s32 288, 288
          %161 = vsyncadd [#allocation6], %s160
          %s162 = sshll.u32 [#allocation5], 4
          %s163 = int_to_ptr.vmem [resolvable:$true] %s162
          %168 = dma.hbm_to_vmem [thread:$0]  %s1, 288, %s163, [#allocation6], 32, 32, 2
        $region16: #{double_conv.3} parent=11 // pred_fallthru
          _
        // Predicated region
        $region17: #{double_conv.3} parent=11 // pred_check
          %p169 = pneg %p89
        $region18: #{double_conv.3} parent=11 // pred_check_branch
          %171 = sbr.rel (%p169) target = $region20
        $region19: #{double_conv.3} parent=11 // pred_region
          %s173 = ssub.s32 4608, 4608
          %174 = vsyncadd [#allocation6], %s173
          %s175 = sshll.u32 [#allocation7], 4
          %s176 = int_to_ptr.vmem [resolvable:$true] %s175
          %181 = dma.hbm_to_vmem [thread:$0]  %s2, 4608, %s176, [#allocation6], 128, 128, 8
        $region20: #{double_conv.3} parent=11 // pred_fallthru
          _
      $region12: #{double_conv.3} parent=5 // pred_fallthru
        _
      %p182 = scmp.lt.s32.totalorder %s21, 2
      // Predicated region
      $region21: #{double_conv.3} parent=5 // pred_check
        %p183 = pneg %p182
      $region22: #{double_conv.3} parent=5 // pred_check_branch
        %185 = sbr.rel (%p183) target = $region24
      $region23: #{double_conv.3} parent=5 // pred_region
        // Predicated region
        $region25: #{double_conv.3} parent=23 // pred_check
          %p186 = pneg %p41
        $region26: #{double_conv.3} parent=23 // pred_check_branch
          %188 = sbr.rel (%p186) target = $region28
        $region27: #{double_conv.3} parent=23 // pred_region
          %s189 = sand.u32 %s31, 1
          %s190 = scalar_lea.sflag [#allocation3], %s189
          %s191 = sand.u32 %s31, 1
          %s192 = smul.addr %s191, 164
          %s193 = scalar_lea.vmem [#allocation2], %s192
          %s195 = ssub.s32 2624, 2624
          %196 = vsyncadd %s190, %s195
          %s197 = smul.addr %s21, 41
          %s198 = smul.addr %s197, 64
          %s199 = scalar_lea.hbm %s0, %s198
          %s200 = sshll.u32 %s193, 4
          %s201 = int_to_ptr.vmem [resolvable:$true] %s200
          %206 = dma.hbm_to_vmem [thread:$0]  %s199, 2624, %s201, %s190, 64, 64, 4
        $region28: #{double_conv.3} parent=23 // pred_fallthru
          _
      $region24: #{double_conv.3} parent=5 // pred_fallthru
        _
      %p207 = scmp.le.s32.totalorder 1, %s21
      %p208 = scmp.lt.s32.totalorder %s21, 3
      %p209 = pnand %p207, %p208
      %p210 = pneg %p209
      // Predicated region
      $region29: #{double_conv.3} parent=5 // pred_check
        _
      $region30: #{double_conv.3} parent=5 // pred_check_branch
        %212 = sbr.rel (%p209) target = $region32
      $region31: #{double_conv.3} parent=5 // pred_region
        %s213 = ssub.s32 %s21, 1
        %s214 = sand.u32 %s34, 1
        %s215 = scalar_lea.sflag [#allocation3], %s214
        %s216 = sand.u32 %s34, 1
        %s217 = smul.addr %s216, 164
        %s218 = scalar_lea.vmem [#allocation2], %s217
        // Predicated region
        $region33: #{double_conv.3} parent=31 // pred_check
          %p219 = pneg %p47
        $region34: #{double_conv.3} parent=31 // pred_check_branch
          %221 = sbr.rel (%p219) target = $region36
        $region35: #{double_conv.3} parent=31 // pred_region
          %222 = dma.done %s215, 2624
        $region36: #{double_conv.3} parent=31 // pred_fallthru
          _
        // Predicated region
        $region37: #{double_conv.3} parent=31 // pred_check
          %p223 = pneg %p68
        $region38: #{double_conv.3} parent=31 // pred_check_branch
          %225 = sbr.rel (%p223) target = $region40
        $region39: #{double_conv.3} parent=31 // pred_region
          %226 = dma.done [#allocation6], 288
        $region40: #{double_conv.3} parent=31 // pred_fallthru
          _
        // Predicated region
        $region41: #{double_conv.3} parent=31 // pred_check
          %p227 = pneg %p89
        $region42: #{double_conv.3} parent=31 // pred_check_branch
          %229 = sbr.rel (%p227) target = $region44
        $region43: #{double_conv.3} parent=31 // pred_region
          %230 = dma.done [#allocation6], 4608
        $region44: #{double_conv.3} parent=31 // pred_fallthru
          _
        %s231 = sand.u32 %s34, 1
        %s232 = scalar_lea.sflag [#allocation3], %s231
        %s233 = sand.u32 %s34, 1
        %s234 = smul.addr %s233, 164
        %s235 = scalar_lea.vmem [#allocation2], %s234
        %p236 = pneg %p47
        %p237 = pneg %p44
        %p238 = pneg %p68
        %p239 = pneg %p65
        %p240 = pneg %p89
        %p241 = pneg %p86
        %p242 = pneg %p115
        %p243 = pneg %p112
        %s244 = sand.u32 %s102, 1
        %s245 = scalar_lea.sflag [#allocation4], %s244
        %s246 = sand.u32 %s102, 1
        %s247 = smul.addr %s246, 144
        %s248 = scalar_lea.vmem [#allocation8], %s247
        %p249 = pneg %p141
        %p250 = pneg %p138
        %s251 = sand.u32 %s128, 1
        %s252 = scalar_lea.sflag [#allocation10], %s251
        %s253 = sand.u32 %s128, 1
        %s254 = smul.addr %s253, 2
        %s255 = scalar_lea.vmem [#allocation9], %s254
        %v257 = vld [vmem:[%s218] sm:$0xf]
        %v258 = vld [vmem:[%s218 + $0x4] sm:$0xf]
        %v259 = vld [vmem:[%s218 + $0x8] sm:$0xf]
        %v260 = vld [vmem:[%s218 + $0xc] sm:$0xf]
        %v261 = vld [vmem:[%s218 + $0x10] sm:$0xf]
        %v262 = vld [vmem:[%s218 + $0x14] sm:$0xf]
        %v263 = vld [vmem:[%s218 + $0x18] sm:$0xf]
        %v264 = vld [vmem:[%s218 + $0x1c] sm:$0xf]
        %v265 = vld [vmem:[%s218 + $0x20] sm:$0xf]
        %v266 = vld [vmem:[%s218 + $0x24] sm:$0xf]
        %v267 = vld [vmem:[%s218 + $0x28] sm:$0xf]
        %v268 = vld [vmem:[%s218 + $0x2c] sm:$0xf]
        %v269 = vld [vmem:[%s218 + $0x30] sm:$0xf]
        %v270 = vld [vmem:[%s218 + $0x34] sm:$0xf]
        %v271 = vld [vmem:[%s218 + $0x38] sm:$0xf]
        %v272 = vld [vmem:[%s218 + $0x3c] sm:$0xf]
        %v273 = vld [vmem:[%s218 + $0x40] sm:$0xf]
        %v274 = vld [vmem:[%s218 + $0x44] sm:$0xf]
        %v275 = vld [vmem:[%s218 + $0x48] sm:$0xf]
        %v276 = vld [vmem:[%s218 + $0x4c] sm:$0xf]
        %v277 = vld [vmem:[%s218 + $0x50] sm:$0xf]
        %v278 = vld [vmem:[%s218 + $0x54] sm:$0xf]
        %v279 = vld [vmem:[%s218 + $0x58] sm:$0xf]
        %v280 = vld [vmem:[%s218 + $0x5c] sm:$0xf]
        %v281 = vld [vmem:[%s218 + $0x60] sm:$0xf]
        %v282 = vld [vmem:[%s218 + $0x64] sm:$0xf]
        %v283 = vld [vmem:[%s218 + $0x68] sm:$0xf]
        %v284 = vld [vmem:[%s218 + $0x6c] sm:$0xf]
        %v285 = vld [vmem:[%s218 + $0x70] sm:$0xf]
        %v286 = vld [vmem:[%s218 + $0x74] sm:$0xf]
        %v287 = vld [vmem:[%s218 + $0x78] sm:$0xf]
        %v288 = vld [vmem:[%s218 + $0x7c] sm:$0xf]
        %v289 = vld [vmem:[%s218 + $0x80] sm:$0xf]
        %v290 = vld [vmem:[%s218 + $0x84] sm:$0xf]
        %v291 = vld [vmem:[%s218 + $0x88] sm:$0xf]
        %v292 = vld [vmem:[%s218 + $0x8c] sm:$0xf]
        %v293 = vld [vmem:[%s218 + $0x90] sm:$0xf]
        %v294 = vld [vmem:[%s218 + $0x94] sm:$0xf]
        %v295 = vld [vmem:[%s218 + $0x98] sm:$0xf]
        %v296 = vld [vmem:[%s218 + $0x9c] sm:$0xf]
        %v297 = vld [vmem:[%s218 + $0xa0] sm:$0xf]
        %v298 = vld [vmem:[#allocation5] sm:$0x3]
        %s299 = scalar_lea.vmem [#allocation5], 2
        %v300 = vld [vmem:[%s299] sm:$0x3]
        %v338 = vunpack.c.l.b16 %v257
        %v339 = vunpack.c.l.b16 %v258
        %v340 = vunpack.c.l.b16 %v259
        %v341 = vunpack.c.l.b16 %v260
        %v342 = vunpack.c.l.b16 %v261
        %v343 = vunpack.c.l.b16 %v262
        %v344 = vunpack.c.l.b16 %v263
        %v345 = vunpack.c.l.b16 %v264
        %v346 = vunpack.c.l.b16 %v265
        %v347 = vunpack.c.l.b16 %v266
        %v348 = vunpack.c.l.b16 %v267
        %v349 = vunpack.c.l.b16 %v268
        %v350 = vunpack.c.l.b16 %v269
        %v351 = vunpack.c.l.b16 %v270
        %v352 = vunpack.c.l.b16 %v271
        %v353 = vunpack.c.l.b16 %v272
        %v354 = vunpack.c.l.b16 %v273
        %v355 = vunpack.c.l.b16 %v274
        %v356 = vunpack.c.l.b16 %v275
        %v357 = vunpack.c.l.b16 %v276
        %v358 = vunpack.c.l.b16 %v277
        %v359 = vunpack.c.l.b16 %v278
        %v360 = vunpack.c.l.b16 %v279
        %v361 = vunpack.c.l.b16 %v280
        %v362 = vunpack.c.l.b16 %v281
        %v363 = vunpack.c.l.b16 %v282
        %v364 = vunpack.c.l.b16 %v283
        %v365 = vunpack.c.l.b16 %v284
        %v366 = vunpack.c.l.b16 %v285
        %v367 = vunpack.c.l.b16 %v286
        %v368 = vunpack.c.l.b16 %v287
        %v369 = vunpack.c.l.b16 %v288
        %v370 = vunpack.c.l.b16 %v289
        %v371 = vunpack.c.l.b16 %v290
        %v372 = vunpack.c.l.b16 %v291
        %v373 = vunpack.c.l.b16 %v292
        %v374 = vunpack.c.l.b16 %v293
        %v375 = vpack.c.b16 %v339, %v338
        %v376 = vpack.c.b16 %v341, %v340
        %v377 = vpack.c.b16 %v343, %v342
        %v378 = vpack.c.b16 %v345, %v344
        %v379 = vpack.c.b16 %v347, %v346
        %v380 = vpack.c.b16 %v349, %v348
        %v381 = vpack.c.b16 %v351, %v350
        %v382 = vpack.c.b16 %v353, %v352
        %v383 = vpack.c.b16 %v355, %v354
        %v384 = vpack.c.b16 %v357, %v356
        %v385 = vpack.c.b16 %v359, %v358
        %v386 = vpack.c.b16 %v361, %v360
        %v387 = vpack.c.b16 %v363, %v362
        %v388 = vpack.c.b16 %v365, %v364
        %v389 = vpack.c.b16 %v367, %v366
        %v390 = vpack.c.b16 %v369, %v368
        %v391 = vpack.c.b16 %v371, %v370
        %v392 = vpack.c.b16 %v373, %v372
        %v393 = vpack.c.b16 %v374, %v374
        %vm394 = vsmask.f32 7424
        %v396 = vshrl.u32 %v375, 16
        %v398 = vshll.u32 %v375, 16
        %v400 = vrot.slane %v398, 1
        %v401 = vor.u32 %v396, %v400
        %v403 = vshll.u32 %v376, 16
        %v405 = vrot.slane %v403, 1
        %v406 = vsel %vm394, %v401, %v405
        %v407 = vshrl.u32 %v376, 16
        %v409 = vor.u32 %v407, %v405
        %v411 = vshll.u32 %v377, 16
        %v413 = vrot.slane %v411, 1
        %v414 = vsel %vm394, %v409, %v413
        %v415 = vshrl.u32 %v377, 16
        %v417 = vor.u32 %v415, %v413
        %v419 = vshll.u32 %v378, 16
        %v421 = vrot.slane %v419, 1
        %v422 = vsel %vm394, %v417, %v421
        %v423 = vshrl.u32 %v378, 16
        %v425 = vor.u32 %v423, %v421
        %v427 = vshll.u32 %v379, 16
        %v429 = vrot.slane %v427, 1
        %v430 = vsel %vm394, %v425, %v429
        %v431 = vshrl.u32 %v379, 16
        %v433 = vor.u32 %v431, %v429
        %v435 = vshll.u32 %v380, 16
        %v437 = vrot.slane %v435, 1
        %v438 = vsel %vm394, %v433, %v437
        %v439 = vshrl.u32 %v380, 16
        %v441 = vor.u32 %v439, %v437
        %v443 = vshll.u32 %v381, 16
        %v445 = vrot.slane %v443, 1
        %v446 = vsel %vm394, %v441, %v445
        %v447 = vshrl.u32 %v381, 16
        %v449 = vor.u32 %v447, %v445
        %v451 = vshll.u32 %v382, 16
        %v453 = vrot.slane %v451, 1
        %v454 = vsel %vm394, %v449, %v453
        %v455 = vshrl.u32 %v382, 16
        %v457 = vor.u32 %v455, %v453
        %v459 = vshll.u32 %v383, 16
        %v461 = vrot.slane %v459, 1
        %v462 = vsel %vm394, %v457, %v461
        %v463 = vshrl.u32 %v383, 16
        %v465 = vor.u32 %v463, %v461
        %v467 = vshll.u32 %v384, 16
        %v469 = vrot.slane %v467, 1
        %v470 = vsel %vm394, %v465, %v469
        %v471 = vshrl.u32 %v384, 16
        %v473 = vor.u32 %v471, %v469
        %v475 = vshll.u32 %v385, 16
        %v477 = vrot.slane %v475, 1
        %v478 = vsel %vm394, %v473, %v477
        %v479 = vshrl.u32 %v385, 16
        %v481 = vor.u32 %v479, %v477
        %v483 = vshll.u32 %v386, 16
        %v485 = vrot.slane %v483, 1
        %v486 = vsel %vm394, %v481, %v485
        %v487 = vshrl.u32 %v386, 16
        %v489 = vor.u32 %v487, %v485
        %v491 = vshll.u32 %v387, 16
        %v493 = vrot.slane %v491, 1
        %v494 = vsel %vm394, %v489, %v493
        %v495 = vshrl.u32 %v387, 16
        %v497 = vor.u32 %v495, %v493
        %v499 = vshll.u32 %v388, 16
        %v501 = vrot.slane %v499, 1
        %v502 = vsel %vm394, %v497, %v501
        %v503 = vshrl.u32 %v388, 16
        %v505 = vor.u32 %v503, %v501
        %v507 = vshll.u32 %v389, 16
        %v509 = vrot.slane %v507, 1
        %v510 = vsel %vm394, %v505, %v509
        %v511 = vshrl.u32 %v389, 16
        %v513 = vor.u32 %v511, %v509
        %v515 = vshll.u32 %v390, 16
        %v517 = vrot.slane %v515, 1
        %v518 = vsel %vm394, %v513, %v517
        %v519 = vshrl.u32 %v390, 16
        %v521 = vor.u32 %v519, %v517
        %v523 = vshll.u32 %v391, 16
        %v525 = vrot.slane %v523, 1
        %v526 = vsel %vm394, %v521, %v525
        %v527 = vshrl.u32 %v391, 16
        %v529 = vor.u32 %v527, %v525
        %v531 = vshll.u32 %v392, 16
        %v533 = vrot.slane %v531, 1
        %v534 = vsel %vm394, %v529, %v533
        %v535 = vshrl.u32 %v392, 16
        %v537 = vor.u32 %v535, %v533
        %v539 = vshll.u32 %v393, 16
        %v541 = vrot.slane %v539, 1
        %v542 = vsel %vm394, %v537, %v541
        %vm543 = vcmask 31744
        %v545 = vsel %vm543, %v406, 0
        %v548 = vsel %vm543, %v414, 0
        %v551 = vsel %vm543, %v422, 0
        %v554 = vsel %vm543, %v430, 0
        %v557 = vsel %vm543, %v438, 0
        %v560 = vsel %vm543, %v446, 0
        %v563 = vsel %vm543, %v454, 0
        %v566 = vsel %vm543, %v462, 0
        %v569 = vsel %vm543, %v470, 0
        %v572 = vsel %vm543, %v478, 0
        %v575 = vsel %vm543, %v486, 0
        %v578 = vsel %vm543, %v494, 0
        %v581 = vsel %vm543, %v502, 0
        %v584 = vsel %vm543, %v510, 0
        %v587 = vsel %vm543, %v518, 0
        %v590 = vsel %vm543, %v526, 0
        %v593 = vsel %vm543, %v534, 0
        %v596 = vsel %vm543, %v542, 0
        %vm598 = vcmask 1041408
        %v600 = vsel %vm598, %v300, 0
        %602 = vmatprep.subr.bf16.mxu0 0
        %603 = vmatpush1.bf16.msra.mxu0 %v600
        %604 = vmatprep.subr.bf16.mxu0 0
        %605 = vmatpush1.bf16.msra.mxu0 0
        %606 = vmatprep.subr.bf16.mxu0 0
        %607 = vmatpush1.bf16.msra.mxu0 0
        %608 = vmatprep.subr.bf16.mxu0 0
        %609 = vmatpush1.bf16.msra.mxu0 0
        %610 = vmatprep.subr.bf16.mxu0 0
        %611 = vmatpush1.bf16.msra.mxu0 0
        %612 = vmatprep.subr.bf16.mxu0 0
        %613 = vmatpush1.bf16.msra.mxu0 0
        %614 = vmatprep.subr.bf16.mxu0 0
        %615 = vmatpush1.bf16.msra.mxu0 0
        %616 = vmatprep.subr.bf16.mxu0 0
        %617 = vmatpush1.bf16.msra.mxu0 0
        %618 = vmatprep.subr.bf16.mxu0 0
        %619 = vmatpush1.bf16.msra.mxu0 0
        %620 = vmatprep.subr.bf16.mxu0 0
        %621 = vmatpush1.bf16.msra.mxu0 0
        %622 = vmatprep.subr.bf16.mxu0 0
        %623 = vmatpush1.bf16.msra.mxu0 0
        %624 = vmatprep.subr.bf16.mxu0 0
        %625 = vmatpush1.bf16.msra.mxu0 0
        %626 = vmatprep.subr.bf16.mxu0 0
        %627 = vmatpush1.bf16.msra.mxu0 0
        %628 = vmatprep.subr.bf16.mxu0 0
        %629 = vmatpush1.bf16.msra.mxu0 0
        %630 = vmatprep.subr.bf16.mxu0 0
        %631 = vmatpush1.bf16.msra.mxu0 0
        %632 = vmatprep.subr.bf16.mxu0 0
        %633 = vmatpush1.bf16.msra.mxu0 0
        %634 = vmatprep.mubr.bf16.mxu0 0
        %635 = vmatmul.mubr.bf16.gmra.mrb[0].mxu0 %v545
        %v636 = vpop.f32.mrb[0].mxu0
        %v637 = vadd.f32 0.0, %v636
        %v638 = vpop.f32.mrb[0].mxu0
        %v639 = vpop.f32.mrb[0].mxu0
        %v640 = vadd.f32 0.0, %v639
        %v641 = vpop.f32.mrb[0].mxu0
        %642 = vmatprep.mubr.bf16.mxu0 0
        %643 = vmatmul.mubr.bf16.gmra.mrb[0].mxu0 %v548
        %v644 = vpop.f32.mrb[0].mxu0
        %v645 = vadd.f32 0.0, %v644
        %v646 = vpop.f32.mrb[0].mxu0
        %v647 = vpop.f32.mrb[0].mxu0
        %v648 = vadd.f32 0.0, %v647
        %v649 = vpop.f32.mrb[0].mxu0
        %650 = vmatprep.mubr.bf16.mxu0 0
        %651 = vmatmul.mubr.bf16.gmra.mrb[0].mxu0 %v551
        %v652 = vpop.f32.mrb[0].mxu0
        %v653 = vadd.f32 0.0, %v652
        %v654 = vpop.f32.mrb[0].mxu0
        %v655 = vpop.f32.mrb[0].mxu0
        %v656 = vadd.f32 0.0, %v655
        %v657 = vpop.f32.mrb[0].mxu0
        %658 = vmatprep.mubr.bf16.mxu0 0
        %659 = vmatmul.mubr.bf16.gmra.mrb[0].mxu0 %v554
        %v660 = vpop.f32.mrb[0].mxu0
        %v661 = vadd.f32 0.0, %v660
        %v662 = vpop.f32.mrb[0].mxu0
        %v663 = vpop.f32.mrb[0].mxu0
        %v664 = vadd.f32 0.0, %v663
        %v665 = vpop.f32.mrb[0].mxu0
        %666 = vmatprep.mubr.bf16.mxu0 0
        %667 = vmatmul.mubr.bf16.gmra.mrb[0].mxu0 %v557
        %v668 = vpop.f32.mrb[0].mxu0
        %v669 = vadd.f32 0.0, %v668
        %v670 = vpop.f32.mrb[0].mxu0
        %v671 = vpop.f32.mrb[0].mxu0
        %v672 = vadd.f32 0.0, %v671
        %v673 = vpop.f32.mrb[0].mxu0
        %674 = vmatprep.mubr.bf16.mxu0 0
        %675 = vmatmul.mubr.bf16.gmra.mrb[0].mxu0 %v560
        %v676 = vpop.f32.mrb[0].mxu0
        %v677 = vadd.f32 0.0, %v676
        %v678 = vpop.f32.mrb[0].mxu0
        %v679 = vpop.f32.mrb[0].mxu0
        %v680 = vadd.f32 0.0, %v679
        %v681 = vpop.f32.mrb[0].mxu0
        %682 = vmatprep.mubr.bf16.mxu0 0
        %683 = vmatmul.mubr.bf16.gmra.mrb[0].mxu0 %v563
        %v684 = vpop.f32.mrb[0].mxu0
        %v685 = vadd.f32 0.0, %v684
        %v686 = vpop.f32.mrb[0].mxu0
        %v687 = vpop.f32.mrb[0].mxu0
        %v688 = vadd.f32 0.0, %v687
        %v689 = vpop.f32.mrb[0].mxu0
        %690 = vmatprep.mubr.bf16.mxu0 0
        %691 = vmatmul.mubr.bf16.gmra.mrb[0].mxu0 %v566
        %v692 = vpop.f32.mrb[0].mxu0
        %v693 = vadd.f32 0.0, %v692
        %v694 = vpop.f32.mrb[0].mxu0
        %v695 = vpop.f32.mrb[0].mxu0
        %v696 = vadd.f32 0.0, %v695
        %v697 = vpop.f32.mrb[0].mxu0
        %698 = vmatprep.mubr.bf16.mxu0 0
        %699 = vmatmul.mubr.bf16.gmra.mrb[0].mxu0 %v569
        %v700 = vpop.f32.mrb[0].mxu0
        %v701 = vadd.f32 0.0, %v700
        %v702 = vpop.f32.mrb[0].mxu0
        %v703 = vpop.f32.mrb[0].mxu0
        %v704 = vadd.f32 0.0, %v703
        %v705 = vpop.f32.mrb[0].mxu0
        %706 = vmatprep.mubr.bf16.mxu0 0
        %707 = vmatmul.mubr.bf16.gmra.mrb[0].mxu0 %v572
        %v708 = vpop.f32.mrb[0].mxu0
        %v709 = vadd.f32 0.0, %v708
        %v710 = vpop.f32.mrb[0].mxu0
        %v711 = vpop.f32.mrb[0].mxu0
        %v712 = vadd.f32 0.0, %v711
        %v713 = vpop.f32.mrb[0].mxu0
        %714 = vmatprep.mubr.bf16.mxu0 0
        %715 = vmatmul.mubr.bf16.gmra.mrb[0].mxu0 %v575
        %v716 = vpop.f32.mrb[0].mxu0
        %v717 = vadd.f32 0.0, %v716
        %v718 = vpop.f32.mrb[0].mxu0
        %v719 = vpop.f32.mrb[0].mxu0
        %v720 = vadd.f32 0.0, %v719
        %v721 = vpop.f32.mrb[0].mxu0
        %722 = vmatprep.mubr.bf16.mxu0 0
        %723 = vmatmul.mubr.bf16.gmra.mrb[0].mxu0 %v578
        %v724 = vpop.f32.mrb[0].mxu0
        %v725 = vadd.f32 0.0, %v724
        %v726 = vpop.f32.mrb[0].mxu0
        %v727 = vpop.f32.mrb[0].mxu0
        %v728 = vadd.f32 0.0, %v727
        %v729 = vpop.f32.mrb[0].mxu0
        %730 = vmatprep.mubr.bf16.mxu0 0
        %731 = vmatmul.mubr.bf16.gmra.mrb[0].mxu0 %v581
        %v732 = vpop.f32.mrb[0].mxu0
        %v733 = vadd.f32 0.0, %v732
        %v734 = vpop.f32.mrb[0].mxu0
        %v735 = vpop.f32.mrb[0].mxu0
        %v736 = vadd.f32 0.0, %v735
        %v737 = vpop.f32.mrb[0].mxu0
        %738 = vmatprep.mubr.bf16.mxu0 0
        %739 = vmatmul.mubr.bf16.gmra.mrb[0].mxu0 %v584
        %v740 = vpop.f32.mrb[0].mxu0
        %v741 = vadd.f32 0.0, %v740
        %v742 = vpop.f32.mrb[0].mxu0
        %v743 = vpop.f32.mrb[0].mxu0
        %v744 = vadd.f32 0.0, %v743
        %v745 = vpop.f32.mrb[0].mxu0
        %746 = vmatprep.mubr.bf16.mxu0 0
        %747 = vmatmul.mubr.bf16.gmra.mrb[0].mxu0 %v587
        %v748 = vpop.f32.mrb[0].mxu0
        %v749 = vadd.f32 0.0, %v748
        %v750 = vpop.f32.mrb[0].mxu0
        %v751 = vpop.f32.mrb[0].mxu0
        %v752 = vadd.f32 0.0, %v751
        %v753 = vpop.f32.mrb[0].mxu0
        %754 = vmatprep.mubr.bf16.mxu0 0
        %755 = vmatmul.mubr.bf16.gmra.mrb[0].mxu0 %v590
        %v756 = vpop.f32.mrb[0].mxu0
        %v757 = vadd.f32 0.0, %v756
        %v758 = vpop.f32.mrb[0].mxu0
        %v759 = vpop.f32.mrb[0].mxu0
        %v760 = vadd.f32 0.0, %v759
        %v761 = vpop.f32.mrb[0].mxu0
        %762 = vmatprep.mubr.bf16.mxu0 0
        %763 = vmatmul.mubr.bf16.gmra.mrb[0].mxu0 %v593
        %v764 = vpop.f32.mrb[0].mxu0
        %v765 = vadd.f32 0.0, %v764
        %v766 = vpop.f32.mrb[0].mxu0
        %v767 = vpop.f32.mrb[0].mxu0
        %v768 = vadd.f32 0.0, %v767
        %v769 = vpop.f32.mrb[0].mxu0
        %770 = vmatprep.mubr.bf16.mxu0 0
        %771 = vmatmul.mubr.bf16.gmra.mrb[0].mxu0 %v596
        %v772 = vpop.f32.mrb[0].mxu0
        %v773 = vadd.f32 0.0, %v772
        %v774 = vpop.f32.mrb[0].mxu0
        %v775 = vpop.f32.mrb[0].mxu0
        %v776 = vadd.f32 0.0, %v775
        %v777 = vpop.f32.mrb[0].mxu0
        %778 = vdwg.mxu0
        %v779 = vsel %vm543, %v375, 0
        %v781 = vsel %vm543, %v376, 0
        %v783 = vsel %vm543, %v377, 0
        %v785 = vsel %vm543, %v378, 0
        %v787 = vsel %vm543, %v379, 0
        %v789 = vsel %vm543, %v380, 0
        %v791 = vsel %vm543, %v381, 0
        %v793 = vsel %vm543, %v382, 0
        %v795 = vsel %vm543, %v383, 0
        %v797 = vsel %vm543, %v384, 0
        %v799 = vsel %vm543, %v385, 0
        %v801 = vsel %vm543, %v386, 0
        %v803 = vsel %vm543, %v387, 0
        %v805 = vsel %vm543, %v388, 0
        %v807 = vsel %vm543, %v389, 0
        %v809 = vsel %vm543, %v390, 0
        %v811 = vsel %vm543, %v391, 0
        %v813 = vsel %vm543, %v392, 0
        %v816 = vsel %vm598, %v298, 0
        %818 = vmatprep.subr.bf16.mxu0 0
        %819 = vmatpush1.bf16.msra.mxu0 %v816
        %820 = vmatprep.subr.bf16.mxu0 0
        %821 = vmatpush1.bf16.msra.mxu0 0
        %822 = vmatprep.subr.bf16.mxu0 0
        %823 = vmatpush1.bf16.msra.mxu0 0
        %824 = vmatprep.subr.bf16.mxu0 0
        %825 = vmatpush1.bf16.msra.mxu0 0
        %826 = vmatprep.subr.bf16.mxu0 0
        %827 = vmatpush1.bf16.msra.mxu0 0
        %828 = vmatprep.subr.bf16.mxu0 0
        %829 = vmatpush1.bf16.msra.mxu0 0
        %830 = vmatprep.subr.bf16.mxu0 0
        %831 = vmatpush1.bf16.msra.mxu0 0
        %832 = vmatprep.subr.bf16.mxu0 0
        %833 = vmatpush1.bf16.msra.mxu0 0
        %834 = vmatprep.subr.bf16.mxu0 0
        %835 = vmatpush1.bf16.msra.mxu0 0
        %836 = vmatprep.subr.bf16.mxu0 0
        %837 = vmatpush1.bf16.msra.mxu0 0
        %838 = vmatprep.subr.bf16.mxu0 0
        %839 = vmatpush1.bf16.msra.mxu0 0
        %840 = vmatprep.subr.bf16.mxu0 0
        %841 = vmatpush1.bf16.msra.mxu0 0
        %842 = vmatprep.subr.bf16.mxu0 0
        %843 = vmatpush1.bf16.msra.mxu0 0
        %844 = vmatprep.subr.bf16.mxu0 0
        %845 = vmatpush1.bf16.msra.mxu0 0
        %846 = vmatprep.subr.bf16.mxu0 0
        %847 = vmatpush1.bf16.msra.mxu0 0
        %848 = vmatprep.subr.bf16.mxu0 0
        %849 = vmatpush1.bf16.msra.mxu0 0
        %850 = vmatprep.mubr.bf16.mxu0 0
        %851 = vmatmul.mubr.bf16.gmra.mrb[0].mxu0 %v779
        %v852 = vpop.f32.mrb[0].mxu0
        %v853 = vadd.f32 %v637, %v852
        %v854 = vpop.f32.mrb[0].mxu0
        %v855 = vpop.f32.mrb[0].mxu0
        %v856 = vadd.f32 %v640, %v855
        %v857 = vpop.f32.mrb[0].mxu0
        %858 = vmatprep.mubr.bf16.mxu0 0
        %859 = vmatmul.mubr.bf16.gmra.mrb[0].mxu0 %v781
        %v860 = vpop.f32.mrb[0].mxu0
        %v861 = vadd.f32 %v645, %v860
        %v862 = vpop.f32.mrb[0].mxu0
        %v863 = vpop.f32.mrb[0].mxu0
        %v864 = vadd.f32 %v648, %v863
        %v865 = vpop.f32.mrb[0].mxu0
        %866 = vmatprep.mubr.bf16.mxu0 0
        %867 = vmatmul.mubr.bf16.gmra.mrb[0].mxu0 %v783
        %v868 = vpop.f32.mrb[0].mxu0
        %v869 = vadd.f32 %v653, %v868
        %v870 = vpop.f32.mrb[0].mxu0
        %v871 = vpop.f32.mrb[0].mxu0
        %v872 = vadd.f32 %v656, %v871
        %v873 = vpop.f32.mrb[0].mxu0
        %874 = vmatprep.mubr.bf16.mxu0 0
        %875 = vmatmul.mubr.bf16.gmra.mrb[0].mxu0 %v785
        %v876 = vpop.f32.mrb[0].mxu0
        %v877 = vadd.f32 %v661, %v876
        %v878 = vpop.f32.mrb[0].mxu0
        %v879 = vpop.f32.mrb[0].mxu0
        %v880 = vadd.f32 %v664, %v879
        %v881 = vpop.f32.mrb[0].mxu0
        %882 = vmatprep.mubr.bf16.mxu0 0
        %883 = vmatmul.mubr.bf16.gmra.mrb[0].mxu0 %v787
        %v884 = vpop.f32.mrb[0].mxu0
        %v885 = vadd.f32 %v669, %v884
        %v886 = vpop.f32.mrb[0].mxu0
        %v887 = vpop.f32.mrb[0].mxu0
        %v888 = vadd.f32 %v672, %v887
        %v889 = vpop.f32.mrb[0].mxu0
        %890 = vmatprep.mubr.bf16.mxu0 0
        %891 = vmatmul.mubr.bf16.gmra.mrb[0].mxu0 %v789
        %v892 = vpop.f32.mrb[0].mxu0
        %v893 = vadd.f32 %v677, %v892
        %v894 = vpop.f32.mrb[0].mxu0
        %v895 = vpop.f32.mrb[0].mxu0
        %v896 = vadd.f32 %v680, %v895
        %v897 = vpop.f32.mrb[0].mxu0
        %898 = vmatprep.mubr.bf16.mxu0 0
        %899 = vmatmul.mubr.bf16.gmra.mrb[0].mxu0 %v791
        %v900 = vpop.f32.mrb[0].mxu0
        %v901 = vadd.f32 %v685, %v900
        %v902 = vpop.f32.mrb[0].mxu0
        %v903 = vpop.f32.mrb[0].mxu0
        %v904 = vadd.f32 %v688, %v903
        %v905 = vpop.f32.mrb[0].mxu0
        %906 = vmatprep.mubr.bf16.mxu0 0
        %907 = vmatmul.mubr.bf16.gmra.mrb[0].mxu0 %v793
        %v908 = vpop.f32.mrb[0].mxu0
        %v909 = vadd.f32 %v693, %v908
        %v910 = vpop.f32.mrb[0].mxu0
        %v911 = vpop.f32.mrb[0].mxu0
        %v912 = vadd.f32 %v696, %v911
        %v913 = vpop.f32.mrb[0].mxu0
        %914 = vmatprep.mubr.bf16.mxu0 0
        %915 = vmatmul.mubr.bf16.gmra.mrb[0].mxu0 %v795
        %v916 = vpop.f32.mrb[0].mxu0
        %v917 = vadd.f32 %v701, %v916
        %v918 = vpop.f32.mrb[0].mxu0
        %v919 = vpop.f32.mrb[0].mxu0
        %v920 = vadd.f32 %v704, %v919
        %v921 = vpop.f32.mrb[0].mxu0
        %922 = vmatprep.mubr.bf16.mxu0 0
        %923 = vmatmul.mubr.bf16.gmra.mrb[0].mxu0 %v797
        %v924 = vpop.f32.mrb[0].mxu0
        %v925 = vadd.f32 %v709, %v924
        %v926 = vpop.f32.mrb[0].mxu0
        %v927 = vpop.f32.mrb[0].mxu0
        %v928 = vadd.f32 %v712, %v927
        %v929 = vpop.f32.mrb[0].mxu0
        %930 = vmatprep.mubr.bf16.mxu0 0
        %931 = vmatmul.mubr.bf16.gmra.mrb[0].mxu0 %v799
        %v932 = vpop.f32.mrb[0].mxu0
        %v933 = vadd.f32 %v717, %v932
        %v934 = vpop.f32.mrb[0].mxu0
        %v935 = vpop.f32.mrb[0].mxu0
        %v936 = vadd.f32 %v720, %v935
        %v937 = vpop.f32.mrb[0].mxu0
        %938 = vmatprep.mubr.bf16.mxu0 0
        %939 = vmatmul.mubr.bf16.gmra.mrb[0].mxu0 %v801
        %v940 = vpop.f32.mrb[0].mxu0
        %v941 = vadd.f32 %v725, %v940
        %v942 = vpop.f32.mrb[0].mxu0
        %v943 = vpop.f32.mrb[0].mxu0
        %v944 = vadd.f32 %v728, %v943
        %v945 = vpop.f32.mrb[0].mxu0
        %946 = vmatprep.mubr.bf16.mxu0 0
        %947 = vmatmul.mubr.bf16.gmra.mrb[0].mxu0 %v803
        %v948 = vpop.f32.mrb[0].mxu0
        %v949 = vadd.f32 %v733, %v948
        %v950 = vpop.f32.mrb[0].mxu0
        %v951 = vpop.f32.mrb[0].mxu0
        %v952 = vadd.f32 %v736, %v951
        %v953 = vpop.f32.mrb[0].mxu0
        %954 = vmatprep.mubr.bf16.mxu0 0
        %955 = vmatmul.mubr.bf16.gmra.mrb[0].mxu0 %v805
        %v956 = vpop.f32.mrb[0].mxu0
        %v957 = vadd.f32 %v741, %v956
        %v958 = vpop.f32.mrb[0].mxu0
        %v959 = vpop.f32.mrb[0].mxu0
        %v960 = vadd.f32 %v744, %v959
        %v961 = vpop.f32.mrb[0].mxu0
        %962 = vmatprep.mubr.bf16.mxu0 0
        %963 = vmatmul.mubr.bf16.gmra.mrb[0].mxu0 %v807
        %v964 = vpop.f32.mrb[0].mxu0
        %v965 = vadd.f32 %v749, %v964
        %v966 = vpop.f32.mrb[0].mxu0
        %v967 = vpop.f32.mrb[0].mxu0
        %v968 = vadd.f32 %v752, %v967
        %v969 = vpop.f32.mrb[0].mxu0
        %970 = vmatprep.mubr.bf16.mxu0 0
        %971 = vmatmul.mubr.bf16.gmra.mrb[0].mxu0 %v809
        %v972 = vpop.f32.mrb[0].mxu0
        %v973 = vadd.f32 %v757, %v972
        %v974 = vpop.f32.mrb[0].mxu0
        %v975 = vpop.f32.mrb[0].mxu0
        %v976 = vadd.f32 %v760, %v975
        %v977 = vpop.f32.mrb[0].mxu0
        %978 = vmatprep.mubr.bf16.mxu0 0
        %979 = vmatmul.mubr.bf16.gmra.mrb[0].mxu0 %v811
        %v980 = vpop.f32.mrb[0].mxu0
        %v981 = vadd.f32 %v765, %v980
        %v982 = vpop.f32.mrb[0].mxu0
        %v983 = vpop.f32.mrb[0].mxu0
        %v984 = vadd.f32 %v768, %v983
        %v985 = vpop.f32.mrb[0].mxu0
        %986 = vmatprep.mubr.bf16.mxu0 0
        %987 = vmatmul.mubr.bf16.gmra.mrb[0].mxu0 %v813
        %v988 = vpop.f32.mrb[0].mxu0
        %v989 = vadd.f32 %v773, %v988
        %v990 = vpop.f32.mrb[0].mxu0
        %v991 = vpop.f32.mrb[0].mxu0
        %v992 = vadd.f32 %v776, %v991
        %v993 = vpop.f32.mrb[0].mxu0
        %994 = vdwg.mxu0
        %s995 = scalar_lea.vmem [#allocation5], 4
        %v996 = vld [vmem:[%s995] sm:$0x3]
        %vm997 = vcmask 1046528
        %v998 = vrot.slane %v375, 1
        %v999 = vrot.slane %v376, 1
        %v1000 = vsel %vm997, %v998, %v999
        %v1001 = vrot.slane %v377, 1
        %v1002 = vsel %vm997, %v999, %v1001
        %v1003 = vrot.slane %v378, 1
        %v1004 = vsel %vm997, %v1001, %v1003
        %v1005 = vrot.slane %v379, 1
        %v1006 = vsel %vm997, %v1003, %v1005
        %v1007 = vrot.slane %v380, 1
        %v1008 = vsel %vm997, %v1005, %v1007
        %v1009 = vrot.slane %v381, 1
        %v1010 = vsel %vm997, %v1007, %v1009
        %v1011 = vrot.slane %v382, 1
        %v1012 = vsel %vm997, %v1009, %v1011
        %v1013 = vrot.slane %v383, 1
        %v1014 = vsel %vm997, %v1011, %v1013
        %v1015 = vrot.slane %v384, 1
        %v1016 = vsel %vm997, %v1013, %v1015
        %v1017 = vrot.slane %v385, 1
        %v1018 = vsel %vm997, %v1015, %v1017
        %v1019 = vrot.slane %v386, 1
        %v1020 = vsel %vm997, %v1017, %v1019
        %v1021 = vrot.slane %v387, 1
        %v1022 = vsel %vm997, %v1019, %v1021
        %v1023 = vrot.slane %v388, 1
        %v1024 = vsel %vm997, %v1021, %v1023
        %v1025 = vrot.slane %v389, 1
        %v1026 = vsel %vm997, %v1023, %v1025
        %v1027 = vrot.slane %v390, 1
        %v1028 = vsel %vm997, %v1025, %v1027
        %v1029 = vrot.slane %v391, 1
        %v1030 = vsel %vm997, %v1027, %v1029
        %v1031 = vrot.slane %v392, 1
        %v1032 = vsel %vm997, %v1029, %v1031
        %v1033 = vrot.slane %v393, 1
        %v1034 = vsel %vm997, %v1031, %v1033
        %v1036 = vsel %vm543, %v1000, 0
        %v1039 = vsel %vm543, %v1002, 0
        %v1042 = vsel %vm543, %v1004, 0
        %v1045 = vsel %vm543, %v1006, 0
        %v1048 = vsel %vm543, %v1008, 0
        %v1051 = vsel %vm543, %v1010, 0
        %v1054 = vsel %vm543, %v1012, 0
        %v1057 = vsel %vm543, %v1014, 0
        %v1060 = vsel %vm543, %v1016, 0
        %v1063 = vsel %vm543, %v1018, 0
        %v1066 = vsel %vm543, %v1020, 0
        %v1069 = vsel %vm543, %v1022, 0
        %v1072 = vsel %vm543, %v1024, 0
        %v1075 = vsel %vm543, %v1026, 0
        %v1078 = vsel %vm543, %v1028, 0
        %v1081 = vsel %vm543, %v1030, 0
        %v1084 = vsel %vm543, %v1032, 0
        %v1087 = vsel %vm543, %v1034, 0
        %v1090 = vsel %vm598, %v996, 0
        %1092 = vmatprep.subr.bf16.mxu0 0
        %1093 = vmatpush1.bf16.msra.mxu0 %v1090
        %1094 = vmatprep.subr.bf16.mxu0 0
        %1095 = vmatpush1.bf16.msra.mxu0 0
        %1096 = vmatprep.subr.bf16.mxu0 0
        %1097 = vmatpush1.bf16.msra.mxu0 0
        %1098 = vmatprep.subr.bf16.mxu0 0
        %1099 = vmatpush1.bf16.msra.mxu0 0
        %1100 = vmatprep.subr.bf16.mxu0 0
        %1101 = vmatpush1.bf16.msra.mxu0 0
        %1102 = vmatprep.subr.bf16.mxu0 0
        %1103 = vmatpush1.bf16.msra.mxu0 0
        %1104 = vmatprep.subr.bf16.mxu0 0
        %1105 = vmatpush1.bf16.msra.mxu0 0
        %1106 = vmatprep.subr.bf16.mxu0 0
        %1107 = vmatpush1.bf16.msra.mxu0 0
        %1108 = vmatprep.subr.bf16.mxu0 0
        %1109 = vmatpush1.bf16.msra.mxu0 0
        %1110 = vmatprep.subr.bf16.mxu0 0
        %1111 = vmatpush1.bf16.msra.mxu0 0
        %1112 = vmatprep.subr.bf16.mxu0 0
        %1113 = vmatpush1.bf16.msra.mxu0 0
        %1114 = vmatprep.subr.bf16.mxu0 0
        %1115 = vmatpush1.bf16.msra.mxu0 0
        %1116 = vmatprep.subr.bf16.mxu0 0
        %1117 = vmatpush1.bf16.msra.mxu0 0
        %1118 = vmatprep.subr.bf16.mxu0 0
        %1119 = vmatpush1.bf16.msra.mxu0 0
        %1120 = vmatprep.subr.bf16.mxu0 0
        %1121 = vmatpush1.bf16.msra.mxu0 0
        %1122 = vmatprep.subr.bf16.mxu0 0
        %1123 = vmatpush1.bf16.msra.mxu0 0
        %1124 = vmatprep.mubr.bf16.mxu0 0
        %1125 = vmatmul.mubr.bf16.gmra.mrb[0].mxu0 %v1036
        %v1126 = vpop.f32.mrb[0].mxu0
        %v1127 = vadd.f32 0.0, %v1126
        %v1128 = vpop.f32.mrb[0].mxu0
        %v1129 = vpop.f32.mrb[0].mxu0
        %v1130 = vadd.f32 0.0, %v1129
        %v1131 = vpop.f32.mrb[0].mxu0
        %1132 = vmatprep.mubr.bf16.mxu0 0
        %1133 = vmatmul.mubr.bf16.gmra.mrb[0].mxu0 %v1039
        %v1134 = vpop.f32.mrb[0].mxu0
        %v1135 = vadd.f32 0.0, %v1134
        %v1136 = vpop.f32.mrb[0].mxu0
        %v1137 = vpop.f32.mrb[0].mxu0
        %v1138 = vadd.f32 0.0, %v1137
        %v1139 = vpop.f32.mrb[0].mxu0
        %1140 = vmatprep.mubr.bf16.mxu0 0
        %1141 = vmatmul.mubr.bf16.gmra.mrb[0].mxu0 %v1042
        %v1142 = vpop.f32.mrb[0].mxu0
        %v1143 = vadd.f32 0.0, %v1142
        %v1144 = vpop.f32.mrb[0].mxu0
        %v1145 = vpop.f32.mrb[0].mxu0
        %v1146 = vadd.f32 0.0, %v1145
        %v1147 = vpop.f32.mrb[0].mxu0
        %1148 = vmatprep.mubr.bf16.mxu0 0
        %1149 = vmatmul.mubr.bf16.gmra.mrb[0].mxu0 %v1045
        %v1150 = vpop.f32.mrb[0].mxu0
        %v1151 = vadd.f32 0.0, %v1150
        %v1152 = vpop.f32.mrb[0].mxu0
        %v1153 = vpop.f32.mrb[0].mxu0
        %v1154 = vadd.f32 0.0, %v1153
        %v1155 = vpop.f32.mrb[0].mxu0
        %1156 = vmatprep.mubr.bf16.mxu0 0
        %1157 = vmatmul.mubr.bf16.gmra.mrb[0].mxu0 %v1048
        %v1158 = vpop.f32.mrb[0].mxu0
        %v1159 = vadd.f32 0.0, %v1158
        %v1160 = vpop.f32.mrb[0].mxu0
        %v1161 = vpop.f32.mrb[0].mxu0
        %v1162 = vadd.f32 0.0, %v1161
        %v1163 = vpop.f32.mrb[0].mxu0
        %1164 = vmatprep.mubr.bf16.mxu0 0
        %1165 = vmatmul.mubr.bf16.gmra.mrb[0].mxu0 %v1051
        %v1166 = vpop.f32.mrb[0].mxu0
        %v1167 = vadd.f32 0.0, %v1166
        %v1168 = vpop.f32.mrb[0].mxu0
        %v1169 = vpop.f32.mrb[0].mxu0
        %v1170 = vadd.f32 0.0, %v1169
        %v1171 = vpop.f32.mrb[0].mxu0
        %1172 = vmatprep.mubr.bf16.mxu0 0
        %1173 = vmatmul.mubr.bf16.gmra.mrb[0].mxu0 %v1054
        %v1174 = vpop.f32.mrb[0].mxu0
        %v1175 = vadd.f32 0.0, %v1174
        %v1176 = vpop.f32.mrb[0].mxu0
        %v1177 = vpop.f32.mrb[0].mxu0
        %v1178 = vadd.f32 0.0, %v1177
        %v1179 = vpop.f32.mrb[0].mxu0
        %1180 = vmatprep.mubr.bf16.mxu0 0
        %1181 = vmatmul.mubr.bf16.gmra.mrb[0].mxu0 %v1057
        %v1182 = vpop.f32.mrb[0].mxu0
        %v1183 = vadd.f32 0.0, %v1182
        %v1184 = vpop.f32.mrb[0].mxu0
        %v1185 = vpop.f32.mrb[0].mxu0
        %v1186 = vadd.f32 0.0, %v1185
        %v1187 = vpop.f32.mrb[0].mxu0
        %1188 = vmatprep.mubr.bf16.mxu0 0
        %1189 = vmatmul.mubr.bf16.gmra.mrb[0].mxu0 %v1060
        %v1190 = vpop.f32.mrb[0].mxu0
        %v1191 = vadd.f32 0.0, %v1190
        %v1192 = vpop.f32.mrb[0].mxu0
        %v1193 = vpop.f32.mrb[0].mxu0
        %v1194 = vadd.f32 0.0, %v1193
        %v1195 = vpop.f32.mrb[0].mxu0
        %1196 = vmatprep.mubr.bf16.mxu0 0
        %1197 = vmatmul.mubr.bf16.gmra.mrb[0].mxu0 %v1063
        %v1198 = vpop.f32.mrb[0].mxu0
        %v1199 = vadd.f32 0.0, %v1198
        %v1200 = vpop.f32.mrb[0].mxu0
        %v1201 = vpop.f32.mrb[0].mxu0
        %v1202 = vadd.f32 0.0, %v1201
        %v1203 = vpop.f32.mrb[0].mxu0
        %1204 = vmatprep.mubr.bf16.mxu0 0
        %1205 = vmatmul.mubr.bf16.gmra.mrb[0].mxu0 %v1066
        %v1206 = vpop.f32.mrb[0].mxu0
        %v1207 = vadd.f32 0.0, %v1206
        %v1208 = vpop.f32.mrb[0].mxu0
        %v1209 = vpop.f32.mrb[0].mxu0
        %v1210 = vadd.f32 0.0, %v1209
        %v1211 = vpop.f32.mrb[0].mxu0
        %1212 = vmatprep.mubr.bf16.mxu0 0
        %1213 = vmatmul.mubr.bf16.gmra.mrb[0].mxu0 %v1069
        %v1214 = vpop.f32.mrb[0].mxu0
        %v1215 = vadd.f32 0.0, %v1214
        %v1216 = vpop.f32.mrb[0].mxu0
        %v1217 = vpop.f32.mrb[0].mxu0
        %v1218 = vadd.f32 0.0, %v1217
        %v1219 = vpop.f32.mrb[0].mxu0
        %1220 = vmatprep.mubr.bf16.mxu0 0
        %1221 = vmatmul.mubr.bf16.gmra.mrb[0].mxu0 %v1072
        %v1222 = vpop.f32.mrb[0].mxu0
        %v1223 = vadd.f32 0.0, %v1222
        %v1224 = vpop.f32.mrb[0].mxu0
        %v1225 = vpop.f32.mrb[0].mxu0
        %v1226 = vadd.f32 0.0, %v1225
        %v1227 = vpop.f32.mrb[0].mxu0
        %1228 = vmatprep.mubr.bf16.mxu0 0
        %1229 = vmatmul.mubr.bf16.gmra.mrb[0].mxu0 %v1075
        %v1230 = vpop.f32.mrb[0].mxu0
        %v1231 = vadd.f32 0.0, %v1230
        %v1232 = vpop.f32.mrb[0].mxu0
        %v1233 = vpop.f32.mrb[0].mxu0
        %v1234 = vadd.f32 0.0, %v1233
        %v1235 = vpop.f32.mrb[0].mxu0
        %1236 = vmatprep.mubr.bf16.mxu0 0
        %1237 = vmatmul.mubr.bf16.gmra.mrb[0].mxu0 %v1078
        %v1238 = vpop.f32.mrb[0].mxu0
        %v1239 = vadd.f32 0.0, %v1238
        %v1240 = vpop.f32.mrb[0].mxu0
        %v1241 = vpop.f32.mrb[0].mxu0
        %v1242 = vadd.f32 0.0, %v1241
        %v1243 = vpop.f32.mrb[0].mxu0
        %1244 = vmatprep.mubr.bf16.mxu0 0
        %1245 = vmatmul.mubr.bf16.gmra.mrb[0].mxu0 %v1081
        %v1246 = vpop.f32.mrb[0].mxu0
        %v1247 = vadd.f32 0.0, %v1246
        %v1248 = vpop.f32.mrb[0].mxu0
        %v1249 = vpop.f32.mrb[0].mxu0
        %v1250 = vadd.f32 0.0, %v1249
        %v1251 = vpop.f32.mrb[0].mxu0
        %1252 = vmatprep.mubr.bf16.mxu0 0
        %1253 = vmatmul.mubr.bf16.gmra.mrb[0].mxu0 %v1084
        %v1254 = vpop.f32.mrb[0].mxu0
        %v1255 = vadd.f32 0.0, %v1254
        %v1256 = vpop.f32.mrb[0].mxu0
        %v1257 = vpop.f32.mrb[0].mxu0
        %v1258 = vadd.f32 0.0, %v1257
        %v1259 = vpop.f32.mrb[0].mxu0
        %1260 = vmatprep.mubr.bf16.mxu0 0
        %1261 = vmatmul.mubr.bf16.gmra.mrb[0].mxu0 %v1087
        %v1262 = vpop.f32.mrb[0].mxu0
        %v1263 = vadd.f32 0.0, %v1262
        %v1264 = vpop.f32.mrb[0].mxu0
        %v1265 = vpop.f32.mrb[0].mxu0
        %v1266 = vadd.f32 0.0, %v1265
        %v1267 = vpop.f32.mrb[0].mxu0
        %1268 = vdwg.mxu0
        %v1269 = vadd.f32 %v853, %v1127
        %v1270 = vadd.f32 %v856, %v1130
        %v1271 = vadd.f32 %v861, %v1135
        %v1272 = vadd.f32 %v864, %v1138
        %v1273 = vadd.f32 %v869, %v1143
        %v1274 = vadd.f32 %v872, %v1146
        %v1275 = vadd.f32 %v877, %v1151
        %v1276 = vadd.f32 %v880, %v1154
        %v1277 = vadd.f32 %v885, %v1159
        %v1278 = vadd.f32 %v888, %v1162
        %v1279 = vadd.f32 %v893, %v1167
        %v1280 = vadd.f32 %v896, %v1170
        %v1281 = vadd.f32 %v901, %v1175
        %v1282 = vadd.f32 %v904, %v1178
        %v1283 = vadd.f32 %v909, %v1183
        %v1284 = vadd.f32 %v912, %v1186
        %v1285 = vadd.f32 %v917, %v1191
        %v1286 = vadd.f32 %v920, %v1194
        %v1287 = vadd.f32 %v925, %v1199
        %v1288 = vadd.f32 %v928, %v1202
        %v1289 = vadd.f32 %v933, %v1207
        %v1290 = vadd.f32 %v936, %v1210
        %v1291 = vadd.f32 %v941, %v1215
        %v1292 = vadd.f32 %v944, %v1218
        %v1293 = vadd.f32 %v949, %v1223
        %v1294 = vadd.f32 %v952, %v1226
        %v1295 = vadd.f32 %v957, %v1231
        %v1296 = vadd.f32 %v960, %v1234
        %v1297 = vadd.f32 %v965, %v1239
        %v1298 = vadd.f32 %v968, %v1242
        %v1299 = vadd.f32 %v973, %v1247
        %v1300 = vadd.f32 %v976, %v1250
        %v1301 = vadd.f32 %v981, %v1255
        %v1302 = vadd.f32 %v984, %v1258
        %v1303 = vadd.f32 %v989, %v1263
        %v1304 = vadd.f32 %v992, %v1266
        %s1305 = scalar_lea.vmem [#allocation5], 6
        %v1306 = vld [vmem:[%s1305] sm:$0x3]
        %v1309 = vunpack.c.l.b16 %v294
        %v1310 = vunpack.c.l.b16 %v295
        %v1311 = vpack.c.b16 %v1309, %v374
        %v1312 = vpack.c.b16 %v1310, %v1310
        %v1313 = vrot.slane %v1311, 1
        %v1314 = vsel %vm997, %v1031, %v1313
        %v1315 = vrot.slane %v1312, 1
        %v1316 = vsel %vm997, %v1313, %v1315
        %v1318 = vsel %vm543, %v1314, 0
        %v1321 = vsel %vm543, %v1316, 0
        %v1324 = vsel %vm598, %v1306, 0
        %1326 = vmatprep.subr.bf16.mxu0 0
        %1327 = vmatpush1.bf16.msra.mxu0 %v1324
        %1328 = vmatprep.subr.bf16.mxu0 0
        %1329 = vmatpush1.bf16.msra.mxu0 0
        %1330 = vmatprep.subr.bf16.mxu0 0
        %1331 = vmatpush1.bf16.msra.mxu0 0
        %1332 = vmatprep.subr.bf16.mxu0 0
        %1333 = vmatpush1.bf16.msra.mxu0 0
        %1334 = vmatprep.subr.bf16.mxu0 0
        %1335 = vmatpush1.bf16.msra.mxu0 0
        %1336 = vmatprep.subr.bf16.mxu0 0
        %1337 = vmatpush1.bf16.msra.mxu0 0
        %1338 = vmatprep.subr.bf16.mxu0 0
        %1339 = vmatpush1.bf16.msra.mxu0 0
        %1340 = vmatprep.subr.bf16.mxu0 0
        %1341 = vmatpush1.bf16.msra.mxu0 0
        %1342 = vmatprep.subr.bf16.mxu0 0
        %1343 = vmatpush1.bf16.msra.mxu0 0
        %1344 = vmatprep.subr.bf16.mxu0 0
        %1345 = vmatpush1.bf16.msra.mxu0 0
        %1346 = vmatprep.subr.bf16.mxu0 0
        %1347 = vmatpush1.bf16.msra.mxu0 0
        %1348 = vmatprep.subr.bf16.mxu0 0
        %1349 = vmatpush1.bf16.msra.mxu0 0
        %1350 = vmatprep.subr.bf16.mxu0 0
        %1351 = vmatpush1.bf16.msra.mxu0 0
        %1352 = vmatprep.subr.bf16.mxu0 0
        %1353 = vmatpush1.bf16.msra.mxu0 0
        %1354 = vmatprep.subr.bf16.mxu0 0
        %1355 = vmatpush1.bf16.msra.mxu0 0
        %1356 = vmatprep.subr.bf16.mxu0 0
        %1357 = vmatpush1.bf16.msra.mxu0 0
        %1358 = vmatprep.mubr.bf16.mxu0 0
        %1359 = vmatmul.mubr.bf16.gmra.mrb[0].mxu0 %v1039
        %v1360 = vpop.f32.mrb[0].mxu0
        %v1361 = vadd.f32 0.0, %v1360
        %v1362 = vpop.f32.mrb[0].mxu0
        %v1363 = vpop.f32.mrb[0].mxu0
        %v1364 = vadd.f32 0.0, %v1363
        %v1365 = vpop.f32.mrb[0].mxu0
        %1366 = vmatprep.mubr.bf16.mxu0 0
        %1367 = vmatmul.mubr.bf16.gmra.mrb[0].mxu0 %v1042
        %v1368 = vpop.f32.mrb[0].mxu0
        %v1369 = vadd.f32 0.0, %v1368
        %v1370 = vpop.f32.mrb[0].mxu0
        %v1371 = vpop.f32.mrb[0].mxu0
        %v1372 = vadd.f32 0.0, %v1371
        %v1373 = vpop.f32.mrb[0].mxu0
        %1374 = vmatprep.mubr.bf16.mxu0 0
        %1375 = vmatmul.mubr.bf16.gmra.mrb[0].mxu0 %v1045
        %v1376 = vpop.f32.mrb[0].mxu0
        %v1377 = vadd.f32 0.0, %v1376
        %v1378 = vpop.f32.mrb[0].mxu0
        %v1379 = vpop.f32.mrb[0].mxu0
        %v1380 = vadd.f32 0.0, %v1379
        %v1381 = vpop.f32.mrb[0].mxu0
        %1382 = vmatprep.mubr.bf16.mxu0 0
        %1383 = vmatmul.mubr.bf16.gmra.mrb[0].mxu0 %v1048
        %v1384 = vpop.f32.mrb[0].mxu0
        %v1385 = vadd.f32 0.0, %v1384
        %v1386 = vpop.f32.mrb[0].mxu0
        %v1387 = vpop.f32.mrb[0].mxu0
        %v1388 = vadd.f32 0.0, %v1387
        %v1389 = vpop.f32.mrb[0].mxu0
        %1390 = vmatprep.mubr.bf16.mxu0 0
        %1391 = vmatmul.mubr.bf16.gmra.mrb[0].mxu0 %v1051
        %v1392 = vpop.f32.mrb[0].mxu0
        %v1393 = vadd.f32 0.0, %v1392
        %v1394 = vpop.f32.mrb[0].mxu0
        %v1395 = vpop.f32.mrb[0].mxu0
        %v1396 = vadd.f32 0.0, %v1395
        %v1397 = vpop.f32.mrb[0].mxu0
        %1398 = vmatprep.mubr.bf16.mxu0 0
        %1399 = vmatmul.mubr.bf16.gmra.mrb[0].mxu0 %v1054
        %v1400 = vpop.f32.mrb[0].mxu0
        %v1401 = vadd.f32 0.0, %v1400
        %v1402 = vpop.f32.mrb[0].mxu0
        %v1403 = vpop.f32.mrb[0].mxu0
        %v1404 = vadd.f32 0.0, %v1403
        %v1405 = vpop.f32.mrb[0].mxu0
        %1406 = vmatprep.mubr.bf16.mxu0 0
        %1407 = vmatmul.mubr.bf16.gmra.mrb[0].mxu0 %v1057
        %v1408 = vpop.f32.mrb[0].mxu0
        %v1409 = vadd.f32 0.0, %v1408
        %v1410 = vpop.f32.mrb[0].mxu0
        %v1411 = vpop.f32.mrb[0].mxu0
        %v1412 = vadd.f32 0.0, %v1411
        %v1413 = vpop.f32.mrb[0].mxu0
        %1414 = vmatprep.mubr.bf16.mxu0 0
        %1415 = vmatmul.mubr.bf16.gmra.mrb[0].mxu0 %v1060
        %v1416 = vpop.f32.mrb[0].mxu0
        %v1417 = vadd.f32 0.0, %v1416
        %v1418 = vpop.f32.mrb[0].mxu0
        %v1419 = vpop.f32.mrb[0].mxu0
        %v1420 = vadd.f32 0.0, %v1419
        %v1421 = vpop.f32.mrb[0].mxu0
        %1422 = vmatprep.mubr.bf16.mxu0 0
        %1423 = vmatmul.mubr.bf16.gmra.mrb[0].mxu0 %v1063
        %v1424 = vpop.f32.mrb[0].mxu0
        %v1425 = vadd.f32 0.0, %v1424
        %v1426 = vpop.f32.mrb[0].mxu0
        %v1427 = vpop.f32.mrb[0].mxu0
        %v1428 = vadd.f32 0.0, %v1427
        %v1429 = vpop.f32.mrb[0].mxu0
        %1430 = vmatprep.mubr.bf16.mxu0 0
        %1431 = vmatmul.mubr.bf16.gmra.mrb[0].mxu0 %v1066
        %v1432 = vpop.f32.mrb[0].mxu0
        %v1433 = vadd.f32 0.0, %v1432
        %v1434 = vpop.f32.mrb[0].mxu0
        %v1435 = vpop.f32.mrb[0].mxu0
        %v1436 = vadd.f32 0.0, %v1435
        %v1437 = vpop.f32.mrb[0].mxu0
        %1438 = vmatprep.mubr.bf16.mxu0 0
        %1439 = vmatmul.mubr.bf16.gmra.mrb[0].mxu0 %v1069
        %v1440 = vpop.f32.mrb[0].mxu0
        %v1441 = vadd.f32 0.0, %v1440
        %v1442 = vpop.f32.mrb[0].mxu0
        %v1443 = vpop.f32.mrb[0].mxu0
        %v1444 = vadd.f32 0.0, %v1443
        %v1445 = vpop.f32.mrb[0].mxu0
        %1446 = vmatprep.mubr.bf16.mxu0 0
        %1447 = vmatmul.mubr.bf16.gmra.mrb[0].mxu0 %v1072
        %v1448 = vpop.f32.mrb[0].mxu0
        %v1449 = vadd.f32 0.0, %v1448
        %v1450 = vpop.f32.mrb[0].mxu0
        %v1451 = vpop.f32.mrb[0].mxu0
        %v1452 = vadd.f32 0.0, %v1451
        %v1453 = vpop.f32.mrb[0].mxu0
        %1454 = vmatprep.mubr.bf16.mxu0 0
        %1455 = vmatmul.mubr.bf16.gmra.mrb[0].mxu0 %v1075
        %v1456 = vpop.f32.mrb[0].mxu0
        %v1457 = vadd.f32 0.0, %v1456
        %v1458 = vpop.f32.mrb[0].mxu0
        %v1459 = vpop.f32.mrb[0].mxu0
        %v1460 = vadd.f32 0.0, %v1459
        %v1461 = vpop.f32.mrb[0].mxu0
        %1462 = vmatprep.mubr.bf16.mxu0 0
        %1463 = vmatmul.mubr.bf16.gmra.mrb[0].mxu0 %v1078
        %v1464 = vpop.f32.mrb[0].mxu0
        %v1465 = vadd.f32 0.0, %v1464
        %v1466 = vpop.f32.mrb[0].mxu0
        %v1467 = vpop.f32.mrb[0].mxu0
        %v1468 = vadd.f32 0.0, %v1467
        %v1469 = vpop.f32.mrb[0].mxu0
        %1470 = vmatprep.mubr.bf16.mxu0 0
        %1471 = vmatmul.mubr.bf16.gmra.mrb[0].mxu0 %v1081
        %v1472 = vpop.f32.mrb[0].mxu0
        %v1473 = vadd.f32 0.0, %v1472
        %v1474 = vpop.f32.mrb[0].mxu0
        %v1475 = vpop.f32.mrb[0].mxu0
        %v1476 = vadd.f32 0.0, %v1475
        %v1477 = vpop.f32.mrb[0].mxu0
        %1478 = vmatprep.mubr.bf16.mxu0 0
        %1479 = vmatmul.mubr.bf16.gmra.mrb[0].mxu0 %v1084
        %v1480 = vpop.f32.mrb[0].mxu0
        %v1481 = vadd.f32 0.0, %v1480
        %v1482 = vpop.f32.mrb[0].mxu0
        %v1483 = vpop.f32.mrb[0].mxu0
        %v1484 = vadd.f32 0.0, %v1483
        %v1485 = vpop.f32.mrb[0].mxu0
        %1486 = vmatprep.mubr.bf16.mxu0 0
        %1487 = vmatmul.mubr.bf16.gmra.mrb[0].mxu0 %v1318
        %v1488 = vpop.f32.mrb[0].mxu0
        %v1489 = vadd.f32 0.0, %v1488
        %v1490 = vpop.f32.mrb[0].mxu0
        %v1491 = vpop.f32.mrb[0].mxu0
        %v1492 = vadd.f32 0.0, %v1491
        %v1493 = vpop.f32.mrb[0].mxu0
        %1494 = vmatprep.mubr.bf16.mxu0 0
        %1495 = vmatmul.mubr.bf16.gmra.mrb[0].mxu0 %v1321
        %v1496 = vpop.f32.mrb[0].mxu0
        %v1497 = vadd.f32 0.0, %v1496
        %v1498 = vpop.f32.mrb[0].mxu0
        %v1499 = vpop.f32.mrb[0].mxu0
        %v1500 = vadd.f32 0.0, %v1499
        %v1501 = vpop.f32.mrb[0].mxu0
        %1502 = vdwg.mxu0
        %v1503 = vadd.f32 %v1269, %v1361
        %v1504 = vadd.f32 %v1270, %v1364
        %v1505 = vadd.f32 %v1271, %v1369
        %v1506 = vadd.f32 %v1272, %v1372
        %v1507 = vadd.f32 %v1273, %v1377
        %v1508 = vadd.f32 %v1274, %v1380
        %v1509 = vadd.f32 %v1275, %v1385
        %v1510 = vadd.f32 %v1276, %v1388
        %v1511 = vadd.f32 %v1277, %v1393
        %v1512 = vadd.f32 %v1278, %v1396
        %v1513 = vadd.f32 %v1279, %v1401
        %v1514 = vadd.f32 %v1280, %v1404
        %v1515 = vadd.f32 %v1281, %v1409
        %v1516 = vadd.f32 %v1282, %v1412
        %v1517 = vadd.f32 %v1283, %v1417
        %v1518 = vadd.f32 %v1284, %v1420
        %v1519 = vadd.f32 %v1285, %v1425
        %v1520 = vadd.f32 %v1286, %v1428
        %v1521 = vadd.f32 %v1287, %v1433
        %v1522 = vadd.f32 %v1288, %v1436
        %v1523 = vadd.f32 %v1289, %v1441
        %v1524 = vadd.f32 %v1290, %v1444
        %v1525 = vadd.f32 %v1291, %v1449
        %v1526 = vadd.f32 %v1292, %v1452
        %v1527 = vadd.f32 %v1293, %v1457
        %v1528 = vadd.f32 %v1294, %v1460
        %v1529 = vadd.f32 %v1295, %v1465
        %v1530 = vadd.f32 %v1296, %v1468
        %v1531 = vadd.f32 %v1297, %v1473
        %v1532 = vadd.f32 %v1298, %v1476
        %v1533 = vadd.f32 %v1299, %v1481
        %v1534 = vadd.f32 %v1300, %v1484
        %v1535 = vadd.f32 %v1301, %v1489
        %v1536 = vadd.f32 %v1302, %v1492
        %v1537 = vadd.f32 %v1303, %v1497
        %v1538 = vadd.f32 %v1304, %v1500
        %s1539 = scalar_lea.vmem [#allocation5], 8
        %v1540 = vld [vmem:[%s1539] sm:$0x3]
        %vm1541 = vsmask.f32 6400
        %v1542 = vrot.slane %v407, 1
        %v1543 = vrot.slane %v403, 2
        %v1544 = vor.u32 %v1542, %v1543
        %v1545 = vrot.slane %v415, 1
        %v1546 = vrot.slane %v411, 2
        %v1547 = vor.u32 %v1545, %v1546
        %v1548 = vsel %vm1541, %v1544, %v1547
        %v1549 = vrot.slane %v423, 1
        %v1550 = vrot.slane %v419, 2
        %v1551 = vor.u32 %v1549, %v1550
        %v1552 = vsel %vm1541, %v1547, %v1551
        %v1553 = vrot.slane %v431, 1
        %v1554 = vrot.slane %v427, 2
        %v1555 = vor.u32 %v1553, %v1554
        %v1556 = vsel %vm1541, %v1551, %v1555
        %v1557 = vrot.slane %v439, 1
        %v1558 = vrot.slane %v435, 2
        %v1559 = vor.u32 %v1557, %v1558
        %v1560 = vsel %vm1541, %v1555, %v1559
        %v1561 = vrot.slane %v447, 1
        %v1562 = vrot.slane %v443, 2
        %v1563 = vor.u32 %v1561, %v1562
        %v1564 = vsel %vm1541, %v1559, %v1563
        %v1565 = vrot.slane %v455, 1
        %v1566 = vrot.slane %v451, 2
        %v1567 = vor.u32 %v1565, %v1566
        %v1568 = vsel %vm1541, %v1563, %v1567
        %v1569 = vrot.slane %v463, 1
        %v1570 = vrot.slane %v459, 2
        %v1571 = vor.u32 %v1569, %v1570
        %v1572 = vsel %vm1541, %v1567, %v1571
        %v1573 = vrot.slane %v471, 1
        %v1574 = vrot.slane %v467, 2
        %v1575 = vor.u32 %v1573, %v1574
        %v1576 = vsel %vm1541, %v1571, %v1575
        %v1577 = vrot.slane %v479, 1
        %v1578 = vrot.slane %v475, 2
        %v1579 = vor.u32 %v1577, %v1578
        %v1580 = vsel %vm1541, %v1575, %v1579
        %v1581 = vrot.slane %v487, 1
        %v1582 = vrot.slane %v483, 2
        %v1583 = vor.u32 %v1581, %v1582
        %v1584 = vsel %vm1541, %v1579, %v1583
        %v1585 = vrot.slane %v495, 1
        %v1586 = vrot.slane %v491, 2
        %v1587 = vor.u32 %v1585, %v1586
        %v1588 = vsel %vm1541, %v1583, %v1587
        %v1589 = vrot.slane %v503, 1
        %v1590 = vrot.slane %v499, 2
        %v1591 = vor.u32 %v1589, %v1590
        %v1592 = vsel %vm1541, %v1587, %v1591
        %v1593 = vrot.slane %v511, 1
        %v1594 = vrot.slane %v507, 2
        %v1595 = vor.u32 %v1593, %v1594
        %v1596 = vsel %vm1541, %v1591, %v1595
        %v1597 = vrot.slane %v519, 1
        %v1598 = vrot.slane %v515, 2
        %v1599 = vor.u32 %v1597, %v1598
        %v1600 = vsel %vm1541, %v1595, %v1599
        %v1601 = vrot.slane %v527, 1
        %v1602 = vrot.slane %v523, 2
        %v1603 = vor.u32 %v1601, %v1602
        %v1604 = vsel %vm1541, %v1599, %v1603
        %v1605 = vrot.slane %v535, 1
        %v1606 = vrot.slane %v531, 2
        %v1607 = vor.u32 %v1605, %v1606
        %v1608 = vsel %vm1541, %v1603, %v1607
        %v1610 = vshrl.u32 %v1311, 16
        %v1612 = vrot.slane %v1610, 1
        %v1613 = vshll.u32 %v1311, 16
        %v1615 = vrot.slane %v1613, 2
        %v1616 = vor.u32 %v1612, %v1615
        %v1617 = vsel %vm1541, %v1607, %v1616
        %v1619 = vshrl.u32 %v1312, 16
        %v1621 = vrot.slane %v1619, 1
        %v1622 = vshll.u32 %v1312, 16
        %v1624 = vrot.slane %v1622, 2
        %v1625 = vor.u32 %v1621, %v1624
        %v1626 = vsel %vm1541, %v1616, %v1625
        %v1628 = vsel %vm543, %v1548, 0
        %v1631 = vsel %vm543, %v1552, 0
        %v1634 = vsel %vm543, %v1556, 0
        %v1637 = vsel %vm543, %v1560, 0
        %v1640 = vsel %vm543, %v1564, 0
        %v1643 = vsel %vm543, %v1568, 0
        %v1646 = vsel %vm543, %v1572, 0
        %v1649 = vsel %vm543, %v1576, 0
        %v1652 = vsel %vm543, %v1580, 0
        %v1655 = vsel %vm543, %v1584, 0
        %v1658 = vsel %vm543, %v1588, 0
        %v1661 = vsel %vm543, %v1592, 0
        %v1664 = vsel %vm543, %v1596, 0
        %v1667 = vsel %vm543, %v1600, 0
        %v1670 = vsel %vm543, %v1604, 0
        %v1673 = vsel %vm543, %v1608, 0
        %v1676 = vsel %vm543, %v1617, 0
        %v1679 = vsel %vm543, %v1626, 0
        %v1682 = vsel %vm598, %v1540, 0
        %1684 = vmatprep.subr.bf16.mxu0 0
        %1685 = vmatpush1.bf16.msra.mxu0 %v1682
        %1686 = vmatprep.subr.bf16.mxu0 0
        %1687 = vmatpush1.bf16.msra.mxu0 0
        %1688 = vmatprep.subr.bf16.mxu0 0
        %1689 = vmatpush1.bf16.msra.mxu0 0
        %1690 = vmatprep.subr.bf16.mxu0 0
        %1691 = vmatpush1.bf16.msra.mxu0 0
        %1692 = vmatprep.subr.bf16.mxu0 0
        %1693 = vmatpush1.bf16.msra.mxu0 0
        %1694 = vmatprep.subr.bf16.mxu0 0
        %1695 = vmatpush1.bf16.msra.mxu0 0
        %1696 = vmatprep.subr.bf16.mxu0 0
        %1697 = vmatpush1.bf16.msra.mxu0 0
        %1698 = vmatprep.subr.bf16.mxu0 0
        %1699 = vmatpush1.bf16.msra.mxu0 0
        %1700 = vmatprep.subr.bf16.mxu0 0
        %1701 = vmatpush1.bf16.msra.mxu0 0
        %1702 = vmatprep.subr.bf16.mxu0 0
        %1703 = vmatpush1.bf16.msra.mxu0 0
        %1704 = vmatprep.subr.bf16.mxu0 0
        %1705 = vmatpush1.bf16.msra.mxu0 0
        %1706 = vmatprep.subr.bf16.mxu0 0
        %1707 = vmatpush1.bf16.msra.mxu0 0
        %1708 = vmatprep.subr.bf16.mxu0 0
        %1709 = vmatpush1.bf16.msra.mxu0 0
        %1710 = vmatprep.subr.bf16.mxu0 0
        %1711 = vmatpush1.bf16.msra.mxu0 0
        %1712 = vmatprep.subr.bf16.mxu0 0
        %1713 = vmatpush1.bf16.msra.mxu0 0
        %1714 = vmatprep.subr.bf16.mxu0 0
        %1715 = vmatpush1.bf16.msra.mxu0 0
        %1716 = vmatprep.mubr.bf16.mxu0 0
        %1717 = vmatmul.mubr.bf16.gmra.mrb[0].mxu0 %v1628
        %v1718 = vpop.f32.mrb[0].mxu0
        %v1719 = vadd.f32 0.0, %v1718
        %v1720 = vpop.f32.mrb[0].mxu0
        %v1721 = vpop.f32.mrb[0].mxu0
        %v1722 = vadd.f32 0.0, %v1721
        %v1723 = vpop.f32.mrb[0].mxu0
        %1724 = vmatprep.mubr.bf16.mxu0 0
        %1725 = vmatmul.mubr.bf16.gmra.mrb[0].mxu0 %v1631
        %v1726 = vpop.f32.mrb[0].mxu0
        %v1727 = vadd.f32 0.0, %v1726
        %v1728 = vpop.f32.mrb[0].mxu0
        %v1729 = vpop.f32.mrb[0].mxu0
        %v1730 = vadd.f32 0.0, %v1729
        %v1731 = vpop.f32.mrb[0].mxu0
        %1732 = vmatprep.mubr.bf16.mxu0 0
        %1733 = vmatmul.mubr.bf16.gmra.mrb[0].mxu0 %v1634
        %v1734 = vpop.f32.mrb[0].mxu0
        %v1735 = vadd.f32 0.0, %v1734
        %v1736 = vpop.f32.mrb[0].mxu0
        %v1737 = vpop.f32.mrb[0].mxu0
        %v1738 = vadd.f32 0.0, %v1737
        %v1739 = vpop.f32.mrb[0].mxu0
        %1740 = vmatprep.mubr.bf16.mxu0 0
        %1741 = vmatmul.mubr.bf16.gmra.mrb[0].mxu0 %v1637
        %v1742 = vpop.f32.mrb[0].mxu0
        %v1743 = vadd.f32 0.0, %v1742
        %v1744 = vpop.f32.mrb[0].mxu0
        %v1745 = vpop.f32.mrb[0].mxu0
        %v1746 = vadd.f32 0.0, %v1745
        %v1747 = vpop.f32.mrb[0].mxu0
        %1748 = vmatprep.mubr.bf16.mxu0 0
        %1749 = vmatmul.mubr.bf16.gmra.mrb[0].mxu0 %v1640
        %v1750 = vpop.f32.mrb[0].mxu0
        %v1751 = vadd.f32 0.0, %v1750
        %v1752 = vpop.f32.mrb[0].mxu0
        %v1753 = vpop.f32.mrb[0].mxu0
        %v1754 = vadd.f32 0.0, %v1753
        %v1755 = vpop.f32.mrb[0].mxu0
        %1756 = vmatprep.mubr.bf16.mxu0 0
        %1757 = vmatmul.mubr.bf16.gmra.mrb[0].mxu0 %v1643
        %v1758 = vpop.f32.mrb[0].mxu0
        %v1759 = vadd.f32 0.0, %v1758
        %v1760 = vpop.f32.mrb[0].mxu0
        %v1761 = vpop.f32.mrb[0].mxu0
        %v1762 = vadd.f32 0.0, %v1761
        %v1763 = vpop.f32.mrb[0].mxu0
        %1764 = vmatprep.mubr.bf16.mxu0 0
        %1765 = vmatmul.mubr.bf16.gmra.mrb[0].mxu0 %v1646
        %v1766 = vpop.f32.mrb[0].mxu0
        %v1767 = vadd.f32 0.0, %v1766
        %v1768 = vpop.f32.mrb[0].mxu0
        %v1769 = vpop.f32.mrb[0].mxu0
        %v1770 = vadd.f32 0.0, %v1769
        %v1771 = vpop.f32.mrb[0].mxu0
        %1772 = vmatprep.mubr.bf16.mxu0 0
        %1773 = vmatmul.mubr.bf16.gmra.mrb[0].mxu0 %v1649
        %v1774 = vpop.f32.mrb[0].mxu0
        %v1775 = vadd.f32 0.0, %v1774
        %v1776 = vpop.f32.mrb[0].mxu0
        %v1777 = vpop.f32.mrb[0].mxu0
        %v1778 = vadd.f32 0.0, %v1777
        %v1779 = vpop.f32.mrb[0].mxu0
        %1780 = vmatprep.mubr.bf16.mxu0 0
        %1781 = vmatmul.mubr.bf16.gmra.mrb[0].mxu0 %v1652
        %v1782 = vpop.f32.mrb[0].mxu0
        %v1783 = vadd.f32 0.0, %v1782
        %v1784 = vpop.f32.mrb[0].mxu0
        %v1785 = vpop.f32.mrb[0].mxu0
        %v1786 = vadd.f32 0.0, %v1785
        %v1787 = vpop.f32.mrb[0].mxu0
        %1788 = vmatprep.mubr.bf16.mxu0 0
        %1789 = vmatmul.mubr.bf16.gmra.mrb[0].mxu0 %v1655
        %v1790 = vpop.f32.mrb[0].mxu0
        %v1791 = vadd.f32 0.0, %v1790
        %v1792 = vpop.f32.mrb[0].mxu0
        %v1793 = vpop.f32.mrb[0].mxu0
        %v1794 = vadd.f32 0.0, %v1793
        %v1795 = vpop.f32.mrb[0].mxu0
        %1796 = vmatprep.mubr.bf16.mxu0 0
        %1797 = vmatmul.mubr.bf16.gmra.mrb[0].mxu0 %v1658
        %v1798 = vpop.f32.mrb[0].mxu0
        %v1799 = vadd.f32 0.0, %v1798
        %v1800 = vpop.f32.mrb[0].mxu0
        %v1801 = vpop.f32.mrb[0].mxu0
        %v1802 = vadd.f32 0.0, %v1801
        %v1803 = vpop.f32.mrb[0].mxu0
        %1804 = vmatprep.mubr.bf16.mxu0 0
        %1805 = vmatmul.mubr.bf16.gmra.mrb[0].mxu0 %v1661
        %v1806 = vpop.f32.mrb[0].mxu0
        %v1807 = vadd.f32 0.0, %v1806
        %v1808 = vpop.f32.mrb[0].mxu0
        %v1809 = vpop.f32.mrb[0].mxu0
        %v1810 = vadd.f32 0.0, %v1809
        %v1811 = vpop.f32.mrb[0].mxu0
        %1812 = vmatprep.mubr.bf16.mxu0 0
        %1813 = vmatmul.mubr.bf16.gmra.mrb[0].mxu0 %v1664
        %v1814 = vpop.f32.mrb[0].mxu0
        %v1815 = vadd.f32 0.0, %v1814
        %v1816 = vpop.f32.mrb[0].mxu0
        %v1817 = vpop.f32.mrb[0].mxu0
        %v1818 = vadd.f32 0.0, %v1817
        %v1819 = vpop.f32.mrb[0].mxu0
        %1820 = vmatprep.mubr.bf16.mxu0 0
        %1821 = vmatmul.mubr.bf16.gmra.mrb[0].mxu0 %v1667
        %v1822 = vpop.f32.mrb[0].mxu0
        %v1823 = vadd.f32 0.0, %v1822
        %v1824 = vpop.f32.mrb[0].mxu0
        %v1825 = vpop.f32.mrb[0].mxu0
        %v1826 = vadd.f32 0.0, %v1825
        %v1827 = vpop.f32.mrb[0].mxu0
        %1828 = vmatprep.mubr.bf16.mxu0 0
        %1829 = vmatmul.mubr.bf16.gmra.mrb[0].mxu0 %v1670
        %v1830 = vpop.f32.mrb[0].mxu0
        %v1831 = vadd.f32 0.0, %v1830
        %v1832 = vpop.f32.mrb[0].mxu0
        %v1833 = vpop.f32.mrb[0].mxu0
        %v1834 = vadd.f32 0.0, %v1833
        %v1835 = vpop.f32.mrb[0].mxu0
        %1836 = vmatprep.mubr.bf16.mxu0 0
        %1837 = vmatmul.mubr.bf16.gmra.mrb[0].mxu0 %v1673
        %v1838 = vpop.f32.mrb[0].mxu0
        %v1839 = vadd.f32 0.0, %v1838
        %v1840 = vpop.f32.mrb[0].mxu0
        %v1841 = vpop.f32.mrb[0].mxu0
        %v1842 = vadd.f32 0.0, %v1841
        %v1843 = vpop.f32.mrb[0].mxu0
        %1844 = vmatprep.mubr.bf16.mxu0 0
        %1845 = vmatmul.mubr.bf16.gmra.mrb[0].mxu0 %v1676
        %v1846 = vpop.f32.mrb[0].mxu0
        %v1847 = vadd.f32 0.0, %v1846
        %v1848 = vpop.f32.mrb[0].mxu0
        %v1849 = vpop.f32.mrb[0].mxu0
        %v1850 = vadd.f32 0.0, %v1849
        %v1851 = vpop.f32.mrb[0].mxu0
        %1852 = vmatprep.mubr.bf16.mxu0 0
        %1853 = vmatmul.mubr.bf16.gmra.mrb[0].mxu0 %v1679
        %v1854 = vpop.f32.mrb[0].mxu0
        %v1855 = vadd.f32 0.0, %v1854
        %v1856 = vpop.f32.mrb[0].mxu0
        %v1857 = vpop.f32.mrb[0].mxu0
        %v1858 = vadd.f32 0.0, %v1857
        %v1859 = vpop.f32.mrb[0].mxu0
        %1860 = vdwg.mxu0
        %v1861 = vadd.f32 %v1503, %v1719
        %v1862 = vadd.f32 %v1504, %v1722
        %v1863 = vadd.f32 %v1505, %v1727
        %v1864 = vadd.f32 %v1506, %v1730
        %v1865 = vadd.f32 %v1507, %v1735
        %v1866 = vadd.f32 %v1508, %v1738
        %v1867 = vadd.f32 %v1509, %v1743
        %v1868 = vadd.f32 %v1510, %v1746
        %v1869 = vadd.f32 %v1511, %v1751
        %v1870 = vadd.f32 %v1512, %v1754
        %v1871 = vadd.f32 %v1513, %v1759
        %v1872 = vadd.f32 %v1514, %v1762
        %v1873 = vadd.f32 %v1515, %v1767
        %v1874 = vadd.f32 %v1516, %v1770
        %v1875 = vadd.f32 %v1517, %v1775
        %v1876 = vadd.f32 %v1518, %v1778
        %v1877 = vadd.f32 %v1519, %v1783
        %v1878 = vadd.f32 %v1520, %v1786
        %v1879 = vadd.f32 %v1521, %v1791
        %v1880 = vadd.f32 %v1522, %v1794
        %v1881 = vadd.f32 %v1523, %v1799
        %v1882 = vadd.f32 %v1524, %v1802
        %v1883 = vadd.f32 %v1525, %v1807
        %v1884 = vadd.f32 %v1526, %v1810
        %v1885 = vadd.f32 %v1527, %v1815
        %v1886 = vadd.f32 %v1528, %v1818
        %v1887 = vadd.f32 %v1529, %v1823
        %v1888 = vadd.f32 %v1530, %v1826
        %v1889 = vadd.f32 %v1531, %v1831
        %v1890 = vadd.f32 %v1532, %v1834
        %v1891 = vadd.f32 %v1533, %v1839
        %v1892 = vadd.f32 %v1534, %v1842
        %v1893 = vadd.f32 %v1535, %v1847
        %v1894 = vadd.f32 %v1536, %v1850
        %v1895 = vadd.f32 %v1537, %v1855
        %v1896 = vadd.f32 %v1538, %v1858
        %s1897 = scalar_lea.vmem [#allocation5], 10
        %v1898 = vld [vmem:[%s1897] sm:$0x3]
        %vm1899 = vcmask 1045504
        %v1900 = vrot.slane %v376, 2
        %v1901 = vrot.slane %v377, 2
        %v1902 = vsel %vm1899, %v1900, %v1901
        %v1903 = vrot.slane %v378, 2
        %v1904 = vsel %vm1899, %v1901, %v1903
        %v1905 = vrot.slane %v379, 2
        %v1906 = vsel %vm1899, %v1903, %v1905
        %v1907 = vrot.slane %v380, 2
        %v1908 = vsel %vm1899, %v1905, %v1907
        %v1909 = vrot.slane %v381, 2
        %v1910 = vsel %vm1899, %v1907, %v1909
        %v1911 = vrot.slane %v382, 2
        %v1912 = vsel %vm1899, %v1909, %v1911
        %v1913 = vrot.slane %v383, 2
        %v1914 = vsel %vm1899, %v1911, %v1913
        %v1915 = vrot.slane %v384, 2
        %v1916 = vsel %vm1899, %v1913, %v1915
        %v1917 = vrot.slane %v385, 2
        %v1918 = vsel %vm1899, %v1915, %v1917
        %v1919 = vrot.slane %v386, 2
        %v1920 = vsel %vm1899, %v1917, %v1919
        %v1921 = vrot.slane %v387, 2
        %v1922 = vsel %vm1899, %v1919, %v1921
        %v1923 = vrot.slane %v388, 2
        %v1924 = vsel %vm1899, %v1921, %v1923
        %v1925 = vrot.slane %v389, 2
        %v1926 = vsel %vm1899, %v1923, %v1925
        %v1927 = vrot.slane %v390, 2
        %v1928 = vsel %vm1899, %v1925, %v1927
        %v1929 = vrot.slane %v391, 2
        %v1930 = vsel %vm1899, %v1927, %v1929
        %v1931 = vrot.slane %v392, 2
        %v1932 = vsel %vm1899, %v1929, %v1931
        %v1933 = vrot.slane %v1311, 2
        %v1934 = vsel %vm1899, %v1931, %v1933
        %v1935 = vrot.slane %v1312, 2
        %v1936 = vsel %vm1899, %v1933, %v1935
        %v1938 = vsel %vm543, %v1902, 0
        %v1941 = vsel %vm543, %v1904, 0
        %v1944 = vsel %vm543, %v1906, 0
        %v1947 = vsel %vm543, %v1908, 0
        %v1950 = vsel %vm543, %v1910, 0
        %v1953 = vsel %vm543, %v1912, 0
        %v1956 = vsel %vm543, %v1914, 0
        %v1959 = vsel %vm543, %v1916, 0
        %v1962 = vsel %vm543, %v1918, 0
        %v1965 = vsel %vm543, %v1920, 0
        %v1968 = vsel %vm543, %v1922, 0
        %v1971 = vsel %vm543, %v1924, 0
        %v1974 = vsel %vm543, %v1926, 0
        %v1977 = vsel %vm543, %v1928, 0
        %v1980 = vsel %vm543, %v1930, 0
        %v1983 = vsel %vm543, %v1932, 0
        %v1986 = vsel %vm543, %v1934, 0
        %v1989 = vsel %vm543, %v1936, 0
        %v1992 = vsel %vm598, %v1898, 0
        %1994 = vmatprep.subr.bf16.mxu0 0
        %1995 = vmatpush1.bf16.msra.mxu0 %v1992
        %1996 = vmatprep.subr.bf16.mxu0 0
        %1997 = vmatpush1.bf16.msra.mxu0 0
        %1998 = vmatprep.subr.bf16.mxu0 0
        %1999 = vmatpush1.bf16.msra.mxu0 0
        %2000 = vmatprep.subr.bf16.mxu0 0
        %2001 = vmatpush1.bf16.msra.mxu0 0
        %2002 = vmatprep.subr.bf16.mxu0 0
        %2003 = vmatpush1.bf16.msra.mxu0 0
        %2004 = vmatprep.subr.bf16.mxu0 0
        %2005 = vmatpush1.bf16.msra.mxu0 0
        %2006 = vmatprep.subr.bf16.mxu0 0
        %2007 = vmatpush1.bf16.msra.mxu0 0
        %2008 = vmatprep.subr.bf16.mxu0 0
        %2009 = vmatpush1.bf16.msra.mxu0 0
        %2010 = vmatprep.subr.bf16.mxu0 0
        %2011 = vmatpush1.bf16.msra.mxu0 0
        %2012 = vmatprep.subr.bf16.mxu0 0
        %2013 = vmatpush1.bf16.msra.mxu0 0
        %2014 = vmatprep.subr.bf16.mxu0 0
        %2015 = vmatpush1.bf16.msra.mxu0 0
        %2016 = vmatprep.subr.bf16.mxu0 0
        %2017 = vmatpush1.bf16.msra.mxu0 0
        %2018 = vmatprep.subr.bf16.mxu0 0
        %2019 = vmatpush1.bf16.msra.mxu0 0
        %2020 = vmatprep.subr.bf16.mxu0 0
        %2021 = vmatpush1.bf16.msra.mxu0 0
        %2022 = vmatprep.subr.bf16.mxu0 0
        %2023 = vmatpush1.bf16.msra.mxu0 0
        %2024 = vmatprep.subr.bf16.mxu0 0
        %2025 = vmatpush1.bf16.msra.mxu0 0
        %2026 = vmatprep.mubr.bf16.mxu0 0
        %2027 = vmatmul.mubr.bf16.gmra.mrb[0].mxu0 %v1938
        %v2028 = vpop.f32.mrb[0].mxu0
        %v2029 = vadd.f32 0.0, %v2028
        %v2030 = vpop.f32.mrb[0].mxu0
        %v2031 = vpop.f32.mrb[0].mxu0
        %v2032 = vadd.f32 0.0, %v2031
        %v2033 = vpop.f32.mrb[0].mxu0
        %2034 = vmatprep.mubr.bf16.mxu0 0
        %2035 = vmatmul.mubr.bf16.gmra.mrb[0].mxu0 %v1941
        %v2036 = vpop.f32.mrb[0].mxu0
        %v2037 = vadd.f32 0.0, %v2036
        %v2038 = vpop.f32.mrb[0].mxu0
        %v2039 = vpop.f32.mrb[0].mxu0
        %v2040 = vadd.f32 0.0, %v2039
        %v2041 = vpop.f32.mrb[0].mxu0
        %2042 = vmatprep.mubr.bf16.mxu0 0
        %2043 = vmatmul.mubr.bf16.gmra.mrb[0].mxu0 %v1944
        %v2044 = vpop.f32.mrb[0].mxu0
        %v2045 = vadd.f32 0.0, %v2044
        %v2046 = vpop.f32.mrb[0].mxu0
        %v2047 = vpop.f32.mrb[0].mxu0
        %v2048 = vadd.f32 0.0, %v2047
        %v2049 = vpop.f32.mrb[0].mxu0
        %2050 = vmatprep.mubr.bf16.mxu0 0
        %2051 = vmatmul.mubr.bf16.gmra.mrb[0].mxu0 %v1947
        %v2052 = vpop.f32.mrb[0].mxu0
        %v2053 = vadd.f32 0.0, %v2052
        %v2054 = vpop.f32.mrb[0].mxu0
        %v2055 = vpop.f32.mrb[0].mxu0
        %v2056 = vadd.f32 0.0, %v2055
        %v2057 = vpop.f32.mrb[0].mxu0
        %2058 = vmatprep.mubr.bf16.mxu0 0
        %2059 = vmatmul.mubr.bf16.gmra.mrb[0].mxu0 %v1950
        %v2060 = vpop.f32.mrb[0].mxu0
        %v2061 = vadd.f32 0.0, %v2060
        %v2062 = vpop.f32.mrb[0].mxu0
        %v2063 = vpop.f32.mrb[0].mxu0
        %v2064 = vadd.f32 0.0, %v2063
        %v2065 = vpop.f32.mrb[0].mxu0
        %2066 = vmatprep.mubr.bf16.mxu0 0
        %2067 = vmatmul.mubr.bf16.gmra.mrb[0].mxu0 %v1953
        %v2068 = vpop.f32.mrb[0].mxu0
        %v2069 = vadd.f32 0.0, %v2068
        %v2070 = vpop.f32.mrb[0].mxu0
        %v2071 = vpop.f32.mrb[0].mxu0
        %v2072 = vadd.f32 0.0, %v2071
        %v2073 = vpop.f32.mrb[0].mxu0
        %2074 = vmatprep.mubr.bf16.mxu0 0
        %2075 = vmatmul.mubr.bf16.gmra.mrb[0].mxu0 %v1956
        %v2076 = vpop.f32.mrb[0].mxu0
        %v2077 = vadd.f32 0.0, %v2076
        %v2078 = vpop.f32.mrb[0].mxu0
        %v2079 = vpop.f32.mrb[0].mxu0
        %v2080 = vadd.f32 0.0, %v2079
        %v2081 = vpop.f32.mrb[0].mxu0
        %2082 = vmatprep.mubr.bf16.mxu0 0
        %2083 = vmatmul.mubr.bf16.gmra.mrb[0].mxu0 %v1959
        %v2084 = vpop.f32.mrb[0].mxu0
        %v2085 = vadd.f32 0.0, %v2084
        %v2086 = vpop.f32.mrb[0].mxu0
        %v2087 = vpop.f32.mrb[0].mxu0
        %v2088 = vadd.f32 0.0, %v2087
        %v2089 = vpop.f32.mrb[0].mxu0
        %2090 = vmatprep.mubr.bf16.mxu0 0
        %2091 = vmatmul.mubr.bf16.gmra.mrb[0].mxu0 %v1962
        %v2092 = vpop.f32.mrb[0].mxu0
        %v2093 = vadd.f32 0.0, %v2092
        %v2094 = vpop.f32.mrb[0].mxu0
        %v2095 = vpop.f32.mrb[0].mxu0
        %v2096 = vadd.f32 0.0, %v2095
        %v2097 = vpop.f32.mrb[0].mxu0
        %2098 = vmatprep.mubr.bf16.mxu0 0
        %2099 = vmatmul.mubr.bf16.gmra.mrb[0].mxu0 %v1965
        %v2100 = vpop.f32.mrb[0].mxu0
        %v2101 = vadd.f32 0.0, %v2100
        %v2102 = vpop.f32.mrb[0].mxu0
        %v2103 = vpop.f32.mrb[0].mxu0
        %v2104 = vadd.f32 0.0, %v2103
        %v2105 = vpop.f32.mrb[0].mxu0
        %2106 = vmatprep.mubr.bf16.mxu0 0
        %2107 = vmatmul.mubr.bf16.gmra.mrb[0].mxu0 %v1968
        %v2108 = vpop.f32.mrb[0].mxu0
        %v2109 = vadd.f32 0.0, %v2108
        %v2110 = vpop.f32.mrb[0].mxu0
        %v2111 = vpop.f32.mrb[0].mxu0
        %v2112 = vadd.f32 0.0, %v2111
        %v2113 = vpop.f32.mrb[0].mxu0
        %2114 = vmatprep.mubr.bf16.mxu0 0
        %2115 = vmatmul.mubr.bf16.gmra.mrb[0].mxu0 %v1971
        %v2116 = vpop.f32.mrb[0].mxu0
        %v2117 = vadd.f32 0.0, %v2116
        %v2118 = vpop.f32.mrb[0].mxu0
        %v2119 = vpop.f32.mrb[0].mxu0
        %v2120 = vadd.f32 0.0, %v2119
        %v2121 = vpop.f32.mrb[0].mxu0
        %2122 = vmatprep.mubr.bf16.mxu0 0
        %2123 = vmatmul.mubr.bf16.gmra.mrb[0].mxu0 %v1974
        %v2124 = vpop.f32.mrb[0].mxu0
        %v2125 = vadd.f32 0.0, %v2124
        %v2126 = vpop.f32.mrb[0].mxu0
        %v2127 = vpop.f32.mrb[0].mxu0
        %v2128 = vadd.f32 0.0, %v2127
        %v2129 = vpop.f32.mrb[0].mxu0
        %2130 = vmatprep.mubr.bf16.mxu0 0
        %2131 = vmatmul.mubr.bf16.gmra.mrb[0].mxu0 %v1977
        %v2132 = vpop.f32.mrb[0].mxu0
        %v2133 = vadd.f32 0.0, %v2132
        %v2134 = vpop.f32.mrb[0].mxu0
        %v2135 = vpop.f32.mrb[0].mxu0
        %v2136 = vadd.f32 0.0, %v2135
        %v2137 = vpop.f32.mrb[0].mxu0
        %2138 = vmatprep.mubr.bf16.mxu0 0
        %2139 = vmatmul.mubr.bf16.gmra.mrb[0].mxu0 %v1980
        %v2140 = vpop.f32.mrb[0].mxu0
        %v2141 = vadd.f32 0.0, %v2140
        %v2142 = vpop.f32.mrb[0].mxu0
        %v2143 = vpop.f32.mrb[0].mxu0
        %v2144 = vadd.f32 0.0, %v2143
        %v2145 = vpop.f32.mrb[0].mxu0
        %2146 = vmatprep.mubr.bf16.mxu0 0
        %2147 = vmatmul.mubr.bf16.gmra.mrb[0].mxu0 %v1983
        %v2148 = vpop.f32.mrb[0].mxu0
        %v2149 = vadd.f32 0.0, %v2148
        %v2150 = vpop.f32.mrb[0].mxu0
        %v2151 = vpop.f32.mrb[0].mxu0
        %v2152 = vadd.f32 0.0, %v2151
        %v2153 = vpop.f32.mrb[0].mxu0
        %2154 = vmatprep.mubr.bf16.mxu0 0
        %2155 = vmatmul.mubr.bf16.gmra.mrb[0].mxu0 %v1986
        %v2156 = vpop.f32.mrb[0].mxu0
        %v2157 = vadd.f32 0.0, %v2156
        %v2158 = vpop.f32.mrb[0].mxu0
        %v2159 = vpop.f32.mrb[0].mxu0
        %v2160 = vadd.f32 0.0, %v2159
        %v2161 = vpop.f32.mrb[0].mxu0
        %2162 = vmatprep.mubr.bf16.mxu0 0
        %2163 = vmatmul.mubr.bf16.gmra.mrb[0].mxu0 %v1989
        %v2164 = vpop.f32.mrb[0].mxu0
        %v2165 = vadd.f32 0.0, %v2164
        %v2166 = vpop.f32.mrb[0].mxu0
        %v2167 = vpop.f32.mrb[0].mxu0
        %v2168 = vadd.f32 0.0, %v2167
        %v2169 = vpop.f32.mrb[0].mxu0
        %2170 = vdwg.mxu0
        %v2171 = vadd.f32 %v1861, %v2029
        %v2172 = vadd.f32 %v1862, %v2032
        %v2173 = vadd.f32 %v1863, %v2037
        %v2174 = vadd.f32 %v1864, %v2040
        %v2175 = vadd.f32 %v1865, %v2045
        %v2176 = vadd.f32 %v1866, %v2048
        %v2177 = vadd.f32 %v1867, %v2053
        %v2178 = vadd.f32 %v1868, %v2056
        %v2179 = vadd.f32 %v1869, %v2061
        %v2180 = vadd.f32 %v1870, %v2064
        %v2181 = vadd.f32 %v1871, %v2069
        %v2182 = vadd.f32 %v1872, %v2072
        %v2183 = vadd.f32 %v1873, %v2077
        %v2184 = vadd.f32 %v1874, %v2080
        %v2185 = vadd.f32 %v1875, %v2085
        %v2186 = vadd.f32 %v1876, %v2088
        %v2187 = vadd.f32 %v1877, %v2093
        %v2188 = vadd.f32 %v1878, %v2096
        %v2189 = vadd.f32 %v1879, %v2101
        %v2190 = vadd.f32 %v1880, %v2104
        %v2191 = vadd.f32 %v1881, %v2109
        %v2192 = vadd.f32 %v1882, %v2112
        %v2193 = vadd.f32 %v1883, %v2117
        %v2194 = vadd.f32 %v1884, %v2120
        %v2195 = vadd.f32 %v1885, %v2125
        %v2196 = vadd.f32 %v1886, %v2128
        %v2197 = vadd.f32 %v1887, %v2133
        %v2198 = vadd.f32 %v1888, %v2136
        %v2199 = vadd.f32 %v1889, %v2141
        %v2200 = vadd.f32 %v1890, %v2144
        %v2201 = vadd.f32 %v1891, %v2149
        %v2202 = vadd.f32 %v1892, %v2152
        %v2203 = vadd.f32 %v1893, %v2157
        %v2204 = vadd.f32 %v1894, %v2160
        %v2205 = vadd.f32 %v1895, %v2165
        %v2206 = vadd.f32 %v1896, %v2168
        %s2207 = scalar_lea.vmem [#allocation5], 12
        %v2208 = vld [vmem:[%s2207] sm:$0x3]
        %v2211 = vunpack.c.l.b16 %v296
        %v2212 = vunpack.c.l.b16 %v297
        %v2213 = vpack.c.b16 %v2211, %v1310
        %v2214 = vpack.c.b16 %v2212, %v2212
        %v2215 = vrot.slane %v2213, 2
        %v2216 = vsel %vm1899, %v1933, %v2215
        %v2217 = vrot.slane %v2214, 2
        %v2218 = vsel %vm1899, %v2215, %v2217
        %v2220 = vsel %vm543, %v2216, 0
        %v2223 = vsel %vm543, %v2218, 0
        %v2226 = vsel %vm598, %v2208, 0
        %2228 = vmatprep.subr.bf16.mxu0 0
        %2229 = vmatpush1.bf16.msra.mxu0 %v2226
        %2230 = vmatprep.subr.bf16.mxu0 0
        %2231 = vmatpush1.bf16.msra.mxu0 0
        %2232 = vmatprep.subr.bf16.mxu0 0
        %2233 = vmatpush1.bf16.msra.mxu0 0
        %2234 = vmatprep.subr.bf16.mxu0 0
        %2235 = vmatpush1.bf16.msra.mxu0 0
        %2236 = vmatprep.subr.bf16.mxu0 0
        %2237 = vmatpush1.bf16.msra.mxu0 0
        %2238 = vmatprep.subr.bf16.mxu0 0
        %2239 = vmatpush1.bf16.msra.mxu0 0
        %2240 = vmatprep.subr.bf16.mxu0 0
        %2241 = vmatpush1.bf16.msra.mxu0 0
        %2242 = vmatprep.subr.bf16.mxu0 0
        %2243 = vmatpush1.bf16.msra.mxu0 0
        %2244 = vmatprep.subr.bf16.mxu0 0
        %2245 = vmatpush1.bf16.msra.mxu0 0
        %2246 = vmatprep.subr.bf16.mxu0 0
        %2247 = vmatpush1.bf16.msra.mxu0 0
        %2248 = vmatprep.subr.bf16.mxu0 0
        %2249 = vmatpush1.bf16.msra.mxu0 0
        %2250 = vmatprep.subr.bf16.mxu0 0
        %2251 = vmatpush1.bf16.msra.mxu0 0
        %2252 = vmatprep.subr.bf16.mxu0 0
        %2253 = vmatpush1.bf16.msra.mxu0 0
        %2254 = vmatprep.subr.bf16.mxu0 0
        %2255 = vmatpush1.bf16.msra.mxu0 0
        %2256 = vmatprep.subr.bf16.mxu0 0
        %2257 = vmatpush1.bf16.msra.mxu0 0
        %2258 = vmatprep.subr.bf16.mxu0 0
        %2259 = vmatpush1.bf16.msra.mxu0 0
        %2260 = vmatprep.mubr.bf16.mxu0 0
        %2261 = vmatmul.mubr.bf16.gmra.mrb[0].mxu0 %v1941
        %v2262 = vpop.f32.mrb[0].mxu0
        %v2263 = vadd.f32 0.0, %v2262
        %v2264 = vpop.f32.mrb[0].mxu0
        %v2265 = vpop.f32.mrb[0].mxu0
        %v2266 = vadd.f32 0.0, %v2265
        %v2267 = vpop.f32.mrb[0].mxu0
        %2268 = vmatprep.mubr.bf16.mxu0 0
        %2269 = vmatmul.mubr.bf16.gmra.mrb[0].mxu0 %v1944
        %v2270 = vpop.f32.mrb[0].mxu0
        %v2271 = vadd.f32 0.0, %v2270
        %v2272 = vpop.f32.mrb[0].mxu0
        %v2273 = vpop.f32.mrb[0].mxu0
        %v2274 = vadd.f32 0.0, %v2273
        %v2275 = vpop.f32.mrb[0].mxu0
        %2276 = vmatprep.mubr.bf16.mxu0 0
        %2277 = vmatmul.mubr.bf16.gmra.mrb[0].mxu0 %v1947
        %v2278 = vpop.f32.mrb[0].mxu0
        %v2279 = vadd.f32 0.0, %v2278
        %v2280 = vpop.f32.mrb[0].mxu0
        %v2281 = vpop.f32.mrb[0].mxu0
        %v2282 = vadd.f32 0.0, %v2281
        %v2283 = vpop.f32.mrb[0].mxu0
        %2284 = vmatprep.mubr.bf16.mxu0 0
        %2285 = vmatmul.mubr.bf16.gmra.mrb[0].mxu0 %v1950
        %v2286 = vpop.f32.mrb[0].mxu0
        %v2287 = vadd.f32 0.0, %v2286
        %v2288 = vpop.f32.mrb[0].mxu0
        %v2289 = vpop.f32.mrb[0].mxu0
        %v2290 = vadd.f32 0.0, %v2289
        %v2291 = vpop.f32.mrb[0].mxu0
        %2292 = vmatprep.mubr.bf16.mxu0 0
        %2293 = vmatmul.mubr.bf16.gmra.mrb[0].mxu0 %v1953
        %v2294 = vpop.f32.mrb[0].mxu0
        %v2295 = vadd.f32 0.0, %v2294
        %v2296 = vpop.f32.mrb[0].mxu0
        %v2297 = vpop.f32.mrb[0].mxu0
        %v2298 = vadd.f32 0.0, %v2297
        %v2299 = vpop.f32.mrb[0].mxu0
        %2300 = vmatprep.mubr.bf16.mxu0 0
        %2301 = vmatmul.mubr.bf16.gmra.mrb[0].mxu0 %v1956
        %v2302 = vpop.f32.mrb[0].mxu0
        %v2303 = vadd.f32 0.0, %v2302
        %v2304 = vpop.f32.mrb[0].mxu0
        %v2305 = vpop.f32.mrb[0].mxu0
        %v2306 = vadd.f32 0.0, %v2305
        %v2307 = vpop.f32.mrb[0].mxu0
        %2308 = vmatprep.mubr.bf16.mxu0 0
        %2309 = vmatmul.mubr.bf16.gmra.mrb[0].mxu0 %v1959
        %v2310 = vpop.f32.mrb[0].mxu0
        %v2311 = vadd.f32 0.0, %v2310
        %v2312 = vpop.f32.mrb[0].mxu0
        %v2313 = vpop.f32.mrb[0].mxu0
        %v2314 = vadd.f32 0.0, %v2313
        %v2315 = vpop.f32.mrb[0].mxu0
        %2316 = vmatprep.mubr.bf16.mxu0 0
        %2317 = vmatmul.mubr.bf16.gmra.mrb[0].mxu0 %v1962
        %v2318 = vpop.f32.mrb[0].mxu0
        %v2319 = vadd.f32 0.0, %v2318
        %v2320 = vpop.f32.mrb[0].mxu0
        %v2321 = vpop.f32.mrb[0].mxu0
        %v2322 = vadd.f32 0.0, %v2321
        %v2323 = vpop.f32.mrb[0].mxu0
        %2324 = vmatprep.mubr.bf16.mxu0 0
        %2325 = vmatmul.mubr.bf16.gmra.mrb[0].mxu0 %v1965
        %v2326 = vpop.f32.mrb[0].mxu0
        %v2327 = vadd.f32 0.0, %v2326
        %v2328 = vpop.f32.mrb[0].mxu0
        %v2329 = vpop.f32.mrb[0].mxu0
        %v2330 = vadd.f32 0.0, %v2329
        %v2331 = vpop.f32.mrb[0].mxu0
        %2332 = vmatprep.mubr.bf16.mxu0 0
        %2333 = vmatmul.mubr.bf16.gmra.mrb[0].mxu0 %v1968
        %v2334 = vpop.f32.mrb[0].mxu0
        %v2335 = vadd.f32 0.0, %v2334
        %v2336 = vpop.f32.mrb[0].mxu0
        %v2337 = vpop.f32.mrb[0].mxu0
        %v2338 = vadd.f32 0.0, %v2337
        %v2339 = vpop.f32.mrb[0].mxu0
        %2340 = vmatprep.mubr.bf16.mxu0 0
        %2341 = vmatmul.mubr.bf16.gmra.mrb[0].mxu0 %v1971
        %v2342 = vpop.f32.mrb[0].mxu0
        %v2343 = vadd.f32 0.0, %v2342
        %v2344 = vpop.f32.mrb[0].mxu0
        %v2345 = vpop.f32.mrb[0].mxu0
        %v2346 = vadd.f32 0.0, %v2345
        %v2347 = vpop.f32.mrb[0].mxu0
        %2348 = vmatprep.mubr.bf16.mxu0 0
        %2349 = vmatmul.mubr.bf16.gmra.mrb[0].mxu0 %v1974
        %v2350 = vpop.f32.mrb[0].mxu0
        %v2351 = vadd.f32 0.0, %v2350
        %v2352 = vpop.f32.mrb[0].mxu0
        %v2353 = vpop.f32.mrb[0].mxu0
        %v2354 = vadd.f32 0.0, %v2353
        %v2355 = vpop.f32.mrb[0].mxu0
        %2356 = vmatprep.mubr.bf16.mxu0 0
        %2357 = vmatmul.mubr.bf16.gmra.mrb[0].mxu0 %v1977
        %v2358 = vpop.f32.mrb[0].mxu0
        %v2359 = vadd.f32 0.0, %v2358
        %v2360 = vpop.f32.mrb[0].mxu0
        %v2361 = vpop.f32.mrb[0].mxu0
        %v2362 = vadd.f32 0.0, %v2361
        %v2363 = vpop.f32.mrb[0].mxu0
        %2364 = vmatprep.mubr.bf16.mxu0 0
        %2365 = vmatmul.mubr.bf16.gmra.mrb[0].mxu0 %v1980
        %v2366 = vpop.f32.mrb[0].mxu0
        %v2367 = vadd.f32 0.0, %v2366
        %v2368 = vpop.f32.mrb[0].mxu0
        %v2369 = vpop.f32.mrb[0].mxu0
        %v2370 = vadd.f32 0.0, %v2369
        %v2371 = vpop.f32.mrb[0].mxu0
        %2372 = vmatprep.mubr.bf16.mxu0 0
        %2373 = vmatmul.mubr.bf16.gmra.mrb[0].mxu0 %v1983
        %v2374 = vpop.f32.mrb[0].mxu0
        %v2375 = vadd.f32 0.0, %v2374
        %v2376 = vpop.f32.mrb[0].mxu0
        %v2377 = vpop.f32.mrb[0].mxu0
        %v2378 = vadd.f32 0.0, %v2377
        %v2379 = vpop.f32.mrb[0].mxu0
        %2380 = vmatprep.mubr.bf16.mxu0 0
        %2381 = vmatmul.mubr.bf16.gmra.mrb[0].mxu0 %v1986
        %v2382 = vpop.f32.mrb[0].mxu0
        %v2383 = vadd.f32 0.0, %v2382
        %v2384 = vpop.f32.mrb[0].mxu0
        %v2385 = vpop.f32.mrb[0].mxu0
        %v2386 = vadd.f32 0.0, %v2385
        %v2387 = vpop.f32.mrb[0].mxu0
        %2388 = vmatprep.mubr.bf16.mxu0 0
        %2389 = vmatmul.mubr.bf16.gmra.mrb[0].mxu0 %v2220
        %v2390 = vpop.f32.mrb[0].mxu0
        %v2391 = vadd.f32 0.0, %v2390
        %v2392 = vpop.f32.mrb[0].mxu0
        %v2393 = vpop.f32.mrb[0].mxu0
        %v2394 = vadd.f32 0.0, %v2393
        %v2395 = vpop.f32.mrb[0].mxu0
        %2396 = vmatprep.mubr.bf16.mxu0 0
        %2397 = vmatmul.mubr.bf16.gmra.mrb[0].mxu0 %v2223
        %v2398 = vpop.f32.mrb[0].mxu0
        %v2399 = vadd.f32 0.0, %v2398
        %v2400 = vpop.f32.mrb[0].mxu0
        %v2401 = vpop.f32.mrb[0].mxu0
        %v2402 = vadd.f32 0.0, %v2401
        %v2403 = vpop.f32.mrb[0].mxu0
        %2404 = vdwg.mxu0
        %v2405 = vadd.f32 %v2171, %v2263
        %v2406 = vadd.f32 %v2172, %v2266
        %v2407 = vadd.f32 %v2173, %v2271
        %v2408 = vadd.f32 %v2174, %v2274
        %v2409 = vadd.f32 %v2175, %v2279
        %v2410 = vadd.f32 %v2176, %v2282
        %v2411 = vadd.f32 %v2177, %v2287
        %v2412 = vadd.f32 %v2178, %v2290
        %v2413 = vadd.f32 %v2179, %v2295
        %v2414 = vadd.f32 %v2180, %v2298
        %v2415 = vadd.f32 %v2181, %v2303
        %v2416 = vadd.f32 %v2182, %v2306
        %v2417 = vadd.f32 %v2183, %v2311
        %v2418 = vadd.f32 %v2184, %v2314
        %v2419 = vadd.f32 %v2185, %v2319
        %v2420 = vadd.f32 %v2186, %v2322
        %v2421 = vadd.f32 %v2187, %v2327
        %v2422 = vadd.f32 %v2188, %v2330
        %v2423 = vadd.f32 %v2189, %v2335
        %v2424 = vadd.f32 %v2190, %v2338
        %v2425 = vadd.f32 %v2191, %v2343
        %v2426 = vadd.f32 %v2192, %v2346
        %v2427 = vadd.f32 %v2193, %v2351
        %v2428 = vadd.f32 %v2194, %v2354
        %v2429 = vadd.f32 %v2195, %v2359
        %v2430 = vadd.f32 %v2196, %v2362
        %v2431 = vadd.f32 %v2197, %v2367
        %v2432 = vadd.f32 %v2198, %v2370
        %v2433 = vadd.f32 %v2199, %v2375
        %v2434 = vadd.f32 %v2200, %v2378
        %v2435 = vadd.f32 %v2201, %v2383
        %v2436 = vadd.f32 %v2202, %v2386
        %v2437 = vadd.f32 %v2203, %v2391
        %v2438 = vadd.f32 %v2204, %v2394
        %v2439 = vadd.f32 %v2205, %v2399
        %v2440 = vadd.f32 %v2206, %v2402
        %s2441 = scalar_lea.vmem [#allocation5], 14
        %v2442 = vld [vmem:[%s2441] sm:$0x3]
        %vm2443 = vsmask.f32 5376
        %v2444 = vrot.slane %v415, 2
        %v2445 = vrot.slane %v411, 3
        %v2446 = vor.u32 %v2444, %v2445
        %v2447 = vrot.slane %v423, 2
        %v2448 = vrot.slane %v419, 3
        %v2449 = vor.u32 %v2447, %v2448
        %v2450 = vsel %vm2443, %v2446, %v2449
        %v2451 = vrot.slane %v431, 2
        %v2452 = vrot.slane %v427, 3
        %v2453 = vor.u32 %v2451, %v2452
        %v2454 = vsel %vm2443, %v2449, %v2453
        %v2455 = vrot.slane %v439, 2
        %v2456 = vrot.slane %v435, 3
        %v2457 = vor.u32 %v2455, %v2456
        %v2458 = vsel %vm2443, %v2453, %v2457
        %v2459 = vrot.slane %v447, 2
        %v2460 = vrot.slane %v443, 3
        %v2461 = vor.u32 %v2459, %v2460
        %v2462 = vsel %vm2443, %v2457, %v2461
        %v2463 = vrot.slane %v455, 2
        %v2464 = vrot.slane %v451, 3
        %v2465 = vor.u32 %v2463, %v2464
        %v2466 = vsel %vm2443, %v2461, %v2465
        %v2467 = vrot.slane %v463, 2
        %v2468 = vrot.slane %v459, 3
        %v2469 = vor.u32 %v2467, %v2468
        %v2470 = vsel %vm2443, %v2465, %v2469
        %v2471 = vrot.slane %v471, 2
        %v2472 = vrot.slane %v467, 3
        %v2473 = vor.u32 %v2471, %v2472
        %v2474 = vsel %vm2443, %v2469, %v2473
        %v2475 = vrot.slane %v479, 2
        %v2476 = vrot.slane %v475, 3
        %v2477 = vor.u32 %v2475, %v2476
        %v2478 = vsel %vm2443, %v2473, %v2477
        %v2479 = vrot.slane %v487, 2
        %v2480 = vrot.slane %v483, 3
        %v2481 = vor.u32 %v2479, %v2480
        %v2482 = vsel %vm2443, %v2477, %v2481
        %v2483 = vrot.slane %v495, 2
        %v2484 = vrot.slane %v491, 3
        %v2485 = vor.u32 %v2483, %v2484
        %v2486 = vsel %vm2443, %v2481, %v2485
        %v2487 = vrot.slane %v503, 2
        %v2488 = vrot.slane %v499, 3
        %v2489 = vor.u32 %v2487, %v2488
        %v2490 = vsel %vm2443, %v2485, %v2489
        %v2491 = vrot.slane %v511, 2
        %v2492 = vrot.slane %v507, 3
        %v2493 = vor.u32 %v2491, %v2492
        %v2494 = vsel %vm2443, %v2489, %v2493
        %v2495 = vrot.slane %v519, 2
        %v2496 = vrot.slane %v515, 3
        %v2497 = vor.u32 %v2495, %v2496
        %v2498 = vsel %vm2443, %v2493, %v2497
        %v2499 = vrot.slane %v527, 2
        %v2500 = vrot.slane %v523, 3
        %v2501 = vor.u32 %v2499, %v2500
        %v2502 = vsel %vm2443, %v2497, %v2501
        %v2503 = vrot.slane %v535, 2
        %v2504 = vrot.slane %v531, 3
        %v2505 = vor.u32 %v2503, %v2504
        %v2506 = vsel %vm2443, %v2501, %v2505
        %v2507 = vrot.slane %v1610, 2
        %v2508 = vrot.slane %v1613, 3
        %v2509 = vor.u32 %v2507, %v2508
        %v2510 = vsel %vm2443, %v2505, %v2509
        %v2512 = vshrl.u32 %v2213, 16
        %v2514 = vrot.slane %v2512, 2
        %v2515 = vshll.u32 %v2213, 16
        %v2517 = vrot.slane %v2515, 3
        %v2518 = vor.u32 %v2514, %v2517
        %v2519 = vsel %vm2443, %v2509, %v2518
        %v2521 = vshrl.u32 %v2214, 16
        %v2523 = vrot.slane %v2521, 2
        %v2524 = vshll.u32 %v2214, 16
        %v2526 = vrot.slane %v2524, 3
        %v2527 = vor.u32 %v2523, %v2526
        %v2528 = vsel %vm2443, %v2518, %v2527
        %v2530 = vsel %vm543, %v2450, 0
        %v2533 = vsel %vm543, %v2454, 0
        %v2536 = vsel %vm543, %v2458, 0
        %v2539 = vsel %vm543, %v2462, 0
        %v2542 = vsel %vm543, %v2466, 0
        %v2545 = vsel %vm543, %v2470, 0
        %v2548 = vsel %vm543, %v2474, 0
        %v2551 = vsel %vm543, %v2478, 0
        %v2554 = vsel %vm543, %v2482, 0
        %v2557 = vsel %vm543, %v2486, 0
        %v2560 = vsel %vm543, %v2490, 0
        %v2563 = vsel %vm543, %v2494, 0
        %v2566 = vsel %vm543, %v2498, 0
        %v2569 = vsel %vm543, %v2502, 0
        %v2572 = vsel %vm543, %v2506, 0
        %v2575 = vsel %vm543, %v2510, 0
        %v2578 = vsel %vm543, %v2519, 0
        %v2581 = vsel %vm543, %v2528, 0
        %v2584 = vsel %vm598, %v2442, 0
        %2586 = vmatprep.subr.bf16.mxu0 0
        %2587 = vmatpush1.bf16.msra.mxu0 %v2584
        %2588 = vmatprep.subr.bf16.mxu0 0
        %2589 = vmatpush1.bf16.msra.mxu0 0
        %2590 = vmatprep.subr.bf16.mxu0 0
        %2591 = vmatpush1.bf16.msra.mxu0 0
        %2592 = vmatprep.subr.bf16.mxu0 0
        %2593 = vmatpush1.bf16.msra.mxu0 0
        %2594 = vmatprep.subr.bf16.mxu0 0
        %2595 = vmatpush1.bf16.msra.mxu0 0
        %2596 = vmatprep.subr.bf16.mxu0 0
        %2597 = vmatpush1.bf16.msra.mxu0 0
        %2598 = vmatprep.subr.bf16.mxu0 0
        %2599 = vmatpush1.bf16.msra.mxu0 0
        %2600 = vmatprep.subr.bf16.mxu0 0
        %2601 = vmatpush1.bf16.msra.mxu0 0
        %2602 = vmatprep.subr.bf16.mxu0 0
        %2603 = vmatpush1.bf16.msra.mxu0 0
        %2604 = vmatprep.subr.bf16.mxu0 0
        %2605 = vmatpush1.bf16.msra.mxu0 0
        %2606 = vmatprep.subr.bf16.mxu0 0
        %2607 = vmatpush1.bf16.msra.mxu0 0
        %2608 = vmatprep.subr.bf16.mxu0 0
        %2609 = vmatpush1.bf16.msra.mxu0 0
        %2610 = vmatprep.subr.bf16.mxu0 0
        %2611 = vmatpush1.bf16.msra.mxu0 0
        %2612 = vmatprep.subr.bf16.mxu0 0
        %2613 = vmatpush1.bf16.msra.mxu0 0
        %2614 = vmatprep.subr.bf16.mxu0 0
        %2615 = vmatpush1.bf16.msra.mxu0 0
        %2616 = vmatprep.subr.bf16.mxu0 0
        %2617 = vmatpush1.bf16.msra.mxu0 0
        %2618 = vmatprep.mubr.bf16.mxu0 0
        %2619 = vmatmul.mubr.bf16.gmra.mrb[0].mxu0 %v2530
        %v2620 = vpop.f32.mrb[0].mxu0
        %v2621 = vadd.f32 0.0, %v2620
        %v2622 = vpop.f32.mrb[0].mxu0
        %v2623 = vpop.f32.mrb[0].mxu0
        %v2624 = vadd.f32 0.0, %v2623
        %v2625 = vpop.f32.mrb[0].mxu0
        %2626 = vmatprep.mubr.bf16.mxu0 0
        %2627 = vmatmul.mubr.bf16.gmra.mrb[0].mxu0 %v2533
        %v2628 = vpop.f32.mrb[0].mxu0
        %v2629 = vadd.f32 0.0, %v2628
        %v2630 = vpop.f32.mrb[0].mxu0
        %v2631 = vpop.f32.mrb[0].mxu0
        %v2632 = vadd.f32 0.0, %v2631
        %v2633 = vpop.f32.mrb[0].mxu0
        %2634 = vmatprep.mubr.bf16.mxu0 0
        %2635 = vmatmul.mubr.bf16.gmra.mrb[0].mxu0 %v2536
        %v2636 = vpop.f32.mrb[0].mxu0
        %v2637 = vadd.f32 0.0, %v2636
        %v2638 = vpop.f32.mrb[0].mxu0
        %v2639 = vpop.f32.mrb[0].mxu0
        %v2640 = vadd.f32 0.0, %v2639
        %v2641 = vpop.f32.mrb[0].mxu0
        %2642 = vmatprep.mubr.bf16.mxu0 0
        %2643 = vmatmul.mubr.bf16.gmra.mrb[0].mxu0 %v2539
        %v2644 = vpop.f32.mrb[0].mxu0
        %v2645 = vadd.f32 0.0, %v2644
        %v2646 = vpop.f32.mrb[0].mxu0
        %v2647 = vpop.f32.mrb[0].mxu0
        %v2648 = vadd.f32 0.0, %v2647
        %v2649 = vpop.f32.mrb[0].mxu0
        %2650 = vmatprep.mubr.bf16.mxu0 0
        %2651 = vmatmul.mubr.bf16.gmra.mrb[0].mxu0 %v2542
        %v2652 = vpop.f32.mrb[0].mxu0
        %v2653 = vadd.f32 0.0, %v2652
        %v2654 = vpop.f32.mrb[0].mxu0
        %v2655 = vpop.f32.mrb[0].mxu0
        %v2656 = vadd.f32 0.0, %v2655
        %v2657 = vpop.f32.mrb[0].mxu0
        %2658 = vmatprep.mubr.bf16.mxu0 0
        %2659 = vmatmul.mubr.bf16.gmra.mrb[0].mxu0 %v2545
        %v2660 = vpop.f32.mrb[0].mxu0
        %v2661 = vadd.f32 0.0, %v2660
        %v2662 = vpop.f32.mrb[0].mxu0
        %v2663 = vpop.f32.mrb[0].mxu0
        %v2664 = vadd.f32 0.0, %v2663
        %v2665 = vpop.f32.mrb[0].mxu0
        %2666 = vmatprep.mubr.bf16.mxu0 0
        %2667 = vmatmul.mubr.bf16.gmra.mrb[0].mxu0 %v2548
        %v2668 = vpop.f32.mrb[0].mxu0
        %v2669 = vadd.f32 0.0, %v2668
        %v2670 = vpop.f32.mrb[0].mxu0
        %v2671 = vpop.f32.mrb[0].mxu0
        %v2672 = vadd.f32 0.0, %v2671
        %v2673 = vpop.f32.mrb[0].mxu0
        %2674 = vmatprep.mubr.bf16.mxu0 0
        %2675 = vmatmul.mubr.bf16.gmra.mrb[0].mxu0 %v2551
        %v2676 = vpop.f32.mrb[0].mxu0
        %v2677 = vadd.f32 0.0, %v2676
        %v2678 = vpop.f32.mrb[0].mxu0
        %v2679 = vpop.f32.mrb[0].mxu0
        %v2680 = vadd.f32 0.0, %v2679
        %v2681 = vpop.f32.mrb[0].mxu0
        %2682 = vmatprep.mubr.bf16.mxu0 0
        %2683 = vmatmul.mubr.bf16.gmra.mrb[0].mxu0 %v2554
        %v2684 = vpop.f32.mrb[0].mxu0
        %v2685 = vadd.f32 0.0, %v2684
        %v2686 = vpop.f32.mrb[0].mxu0
        %v2687 = vpop.f32.mrb[0].mxu0
        %v2688 = vadd.f32 0.0, %v2687
        %v2689 = vpop.f32.mrb[0].mxu0
        %2690 = vmatprep.mubr.bf16.mxu0 0
        %2691 = vmatmul.mubr.bf16.gmra.mrb[0].mxu0 %v2557
        %v2692 = vpop.f32.mrb[0].mxu0
        %v2693 = vadd.f32 0.0, %v2692
        %v2694 = vpop.f32.mrb[0].mxu0
        %v2695 = vpop.f32.mrb[0].mxu0
        %v2696 = vadd.f32 0.0, %v2695
        %v2697 = vpop.f32.mrb[0].mxu0
        %2698 = vmatprep.mubr.bf16.mxu0 0
        %2699 = vmatmul.mubr.bf16.gmra.mrb[0].mxu0 %v2560
        %v2700 = vpop.f32.mrb[0].mxu0
        %v2701 = vadd.f32 0.0, %v2700
        %v2702 = vpop.f32.mrb[0].mxu0
        %v2703 = vpop.f32.mrb[0].mxu0
        %v2704 = vadd.f32 0.0, %v2703
        %v2705 = vpop.f32.mrb[0].mxu0
        %2706 = vmatprep.mubr.bf16.mxu0 0
        %2707 = vmatmul.mubr.bf16.gmra.mrb[0].mxu0 %v2563
        %v2708 = vpop.f32.mrb[0].mxu0
        %v2709 = vadd.f32 0.0, %v2708
        %v2710 = vpop.f32.mrb[0].mxu0
        %v2711 = vpop.f32.mrb[0].mxu0
        %v2712 = vadd.f32 0.0, %v2711
        %v2713 = vpop.f32.mrb[0].mxu0
        %2714 = vmatprep.mubr.bf16.mxu0 0
        %2715 = vmatmul.mubr.bf16.gmra.mrb[0].mxu0 %v2566
        %v2716 = vpop.f32.mrb[0].mxu0
        %v2717 = vadd.f32 0.0, %v2716
        %v2718 = vpop.f32.mrb[0].mxu0
        %v2719 = vpop.f32.mrb[0].mxu0
        %v2720 = vadd.f32 0.0, %v2719
        %v2721 = vpop.f32.mrb[0].mxu0
        %2722 = vmatprep.mubr.bf16.mxu0 0
        %2723 = vmatmul.mubr.bf16.gmra.mrb[0].mxu0 %v2569
        %v2724 = vpop.f32.mrb[0].mxu0
        %v2725 = vadd.f32 0.0, %v2724
        %v2726 = vpop.f32.mrb[0].mxu0
        %v2727 = vpop.f32.mrb[0].mxu0
        %v2728 = vadd.f32 0.0, %v2727
        %v2729 = vpop.f32.mrb[0].mxu0
        %2730 = vmatprep.mubr.bf16.mxu0 0
        %2731 = vmatmul.mubr.bf16.gmra.mrb[0].mxu0 %v2572
        %v2732 = vpop.f32.mrb[0].mxu0
        %v2733 = vadd.f32 0.0, %v2732
        %v2734 = vpop.f32.mrb[0].mxu0
        %v2735 = vpop.f32.mrb[0].mxu0
        %v2736 = vadd.f32 0.0, %v2735
        %v2737 = vpop.f32.mrb[0].mxu0
        %2738 = vmatprep.mubr.bf16.mxu0 0
        %2739 = vmatmul.mubr.bf16.gmra.mrb[0].mxu0 %v2575
        %v2740 = vpop.f32.mrb[0].mxu0
        %v2741 = vadd.f32 0.0, %v2740
        %v2742 = vpop.f32.mrb[0].mxu0
        %v2743 = vpop.f32.mrb[0].mxu0
        %v2744 = vadd.f32 0.0, %v2743
        %v2745 = vpop.f32.mrb[0].mxu0
        %2746 = vmatprep.mubr.bf16.mxu0 0
        %2747 = vmatmul.mubr.bf16.gmra.mrb[0].mxu0 %v2578
        %v2748 = vpop.f32.mrb[0].mxu0
        %v2749 = vadd.f32 0.0, %v2748
        %v2750 = vpop.f32.mrb[0].mxu0
        %v2751 = vpop.f32.mrb[0].mxu0
        %v2752 = vadd.f32 0.0, %v2751
        %v2753 = vpop.f32.mrb[0].mxu0
        %2754 = vmatprep.mubr.bf16.mxu0 0
        %2755 = vmatmul.mubr.bf16.gmra.mrb[0].mxu0 %v2581
        %v2756 = vpop.f32.mrb[0].mxu0
        %v2757 = vadd.f32 0.0, %v2756
        %v2758 = vpop.f32.mrb[0].mxu0
        %v2759 = vpop.f32.mrb[0].mxu0
        %v2760 = vadd.f32 0.0, %v2759
        %v2761 = vpop.f32.mrb[0].mxu0
        %2762 = vdwg.mxu0
        %v2763 = vadd.f32 %v2405, %v2621
        %v2764 = vadd.f32 %v2406, %v2624
        %v2765 = vadd.f32 %v2407, %v2629
        %v2766 = vadd.f32 %v2408, %v2632
        %v2767 = vadd.f32 %v2409, %v2637
        %v2768 = vadd.f32 %v2410, %v2640
        %v2769 = vadd.f32 %v2411, %v2645
        %v2770 = vadd.f32 %v2412, %v2648
        %v2771 = vadd.f32 %v2413, %v2653
        %v2772 = vadd.f32 %v2414, %v2656
        %v2773 = vadd.f32 %v2415, %v2661
        %v2774 = vadd.f32 %v2416, %v2664
        %v2775 = vadd.f32 %v2417, %v2669
        %v2776 = vadd.f32 %v2418, %v2672
        %v2777 = vadd.f32 %v2419, %v2677
        %v2778 = vadd.f32 %v2420, %v2680
        %v2779 = vadd.f32 %v2421, %v2685
        %v2780 = vadd.f32 %v2422, %v2688
        %v2781 = vadd.f32 %v2423, %v2693
        %v2782 = vadd.f32 %v2424, %v2696
        %v2783 = vadd.f32 %v2425, %v2701
        %v2784 = vadd.f32 %v2426, %v2704
        %v2785 = vadd.f32 %v2427, %v2709
        %v2786 = vadd.f32 %v2428, %v2712
        %v2787 = vadd.f32 %v2429, %v2717
        %v2788 = vadd.f32 %v2430, %v2720
        %v2789 = vadd.f32 %v2431, %v2725
        %v2790 = vadd.f32 %v2432, %v2728
        %v2791 = vadd.f32 %v2433, %v2733
        %v2792 = vadd.f32 %v2434, %v2736
        %v2793 = vadd.f32 %v2435, %v2741
        %v2794 = vadd.f32 %v2436, %v2744
        %v2795 = vadd.f32 %v2437, %v2749
        %v2796 = vadd.f32 %v2438, %v2752
        %v2797 = vadd.f32 %v2439, %v2757
        %v2798 = vadd.f32 %v2440, %v2760
        %s2799 = scalar_lea.vmem [#allocation5], 16
        %v2800 = vld [vmem:[%s2799] sm:$0x3]
        %vm2801 = vcmask 1044480
        %v2802 = vrot.slane %v377, 3
        %v2803 = vrot.slane %v378, 3
        %v2804 = vsel %vm2801, %v2802, %v2803
        %v2805 = vrot.slane %v379, 3
        %v2806 = vsel %vm2801, %v2803, %v2805
        %v2807 = vrot.slane %v380, 3
        %v2808 = vsel %vm2801, %v2805, %v2807
        %v2809 = vrot.slane %v381, 3
        %v2810 = vsel %vm2801, %v2807, %v2809
        %v2811 = vrot.slane %v382, 3
        %v2812 = vsel %vm2801, %v2809, %v2811
        %v2813 = vrot.slane %v383, 3
        %v2814 = vsel %vm2801, %v2811, %v2813
        %v2815 = vrot.slane %v384, 3
        %v2816 = vsel %vm2801, %v2813, %v2815
        %v2817 = vrot.slane %v385, 3
        %v2818 = vsel %vm2801, %v2815, %v2817
        %v2819 = vrot.slane %v386, 3
        %v2820 = vsel %vm2801, %v2817, %v2819
        %v2821 = vrot.slane %v387, 3
        %v2822 = vsel %vm2801, %v2819, %v2821
        %v2823 = vrot.slane %v388, 3
        %v2824 = vsel %vm2801, %v2821, %v2823
        %v2825 = vrot.slane %v389, 3
        %v2826 = vsel %vm2801, %v2823, %v2825
        %v2827 = vrot.slane %v390, 3
        %v2828 = vsel %vm2801, %v2825, %v2827
        %v2829 = vrot.slane %v391, 3
        %v2830 = vsel %vm2801, %v2827, %v2829
        %v2831 = vrot.slane %v392, 3
        %v2832 = vsel %vm2801, %v2829, %v2831
        %v2833 = vrot.slane %v1311, 3
        %v2834 = vsel %vm2801, %v2831, %v2833
        %v2835 = vrot.slane %v2213, 3
        %v2836 = vsel %vm2801, %v2833, %v2835
        %v2837 = vrot.slane %v2214, 3
        %v2838 = vsel %vm2801, %v2835, %v2837
        %v2840 = vsel %vm543, %v2804, 0
        %v2843 = vsel %vm543, %v2806, 0
        %v2846 = vsel %vm543, %v2808, 0
        %v2849 = vsel %vm543, %v2810, 0
        %v2852 = vsel %vm543, %v2812, 0
        %v2855 = vsel %vm543, %v2814, 0
        %v2858 = vsel %vm543, %v2816, 0
        %v2861 = vsel %vm543, %v2818, 0
        %v2864 = vsel %vm543, %v2820, 0
        %v2867 = vsel %vm543, %v2822, 0
        %v2870 = vsel %vm543, %v2824, 0
        %v2873 = vsel %vm543, %v2826, 0
        %v2876 = vsel %vm543, %v2828, 0
        %v2879 = vsel %vm543, %v2830, 0
        %v2882 = vsel %vm543, %v2832, 0
        %v2885 = vsel %vm543, %v2834, 0
        %v2888 = vsel %vm543, %v2836, 0
        %v2891 = vsel %vm543, %v2838, 0
        %v2894 = vsel %vm598, %v2800, 0
        %2896 = vmatprep.subr.bf16.mxu0 0
        %2897 = vmatpush1.bf16.msra.mxu0 %v2894
        %2898 = vmatprep.subr.bf16.mxu0 0
        %2899 = vmatpush1.bf16.msra.mxu0 0
        %2900 = vmatprep.subr.bf16.mxu0 0
        %2901 = vmatpush1.bf16.msra.mxu0 0
        %2902 = vmatprep.subr.bf16.mxu0 0
        %2903 = vmatpush1.bf16.msra.mxu0 0
        %2904 = vmatprep.subr.bf16.mxu0 0
        %2905 = vmatpush1.bf16.msra.mxu0 0
        %2906 = vmatprep.subr.bf16.mxu0 0
        %2907 = vmatpush1.bf16.msra.mxu0 0
        %2908 = vmatprep.subr.bf16.mxu0 0
        %2909 = vmatpush1.bf16.msra.mxu0 0
        %2910 = vmatprep.subr.bf16.mxu0 0
        %2911 = vmatpush1.bf16.msra.mxu0 0
        %2912 = vmatprep.subr.bf16.mxu0 0
        %2913 = vmatpush1.bf16.msra.mxu0 0
        %2914 = vmatprep.subr.bf16.mxu0 0
        %2915 = vmatpush1.bf16.msra.mxu0 0
        %2916 = vmatprep.subr.bf16.mxu0 0
        %2917 = vmatpush1.bf16.msra.mxu0 0
        %2918 = vmatprep.subr.bf16.mxu0 0
        %2919 = vmatpush1.bf16.msra.mxu0 0
        %2920 = vmatprep.subr.bf16.mxu0 0
        %2921 = vmatpush1.bf16.msra.mxu0 0
        %2922 = vmatprep.subr.bf16.mxu0 0
        %2923 = vmatpush1.bf16.msra.mxu0 0
        %2924 = vmatprep.subr.bf16.mxu0 0
        %2925 = vmatpush1.bf16.msra.mxu0 0
        %2926 = vmatprep.subr.bf16.mxu0 0
        %2927 = vmatpush1.bf16.msra.mxu0 0
        %2928 = vmatprep.mubr.bf16.mxu0 0
        %2929 = vmatmul.mubr.bf16.gmra.mrb[0].mxu0 %v2840
        %v2930 = vpop.f32.mrb[0].mxu0
        %v2931 = vadd.f32 0.0, %v2930
        %v2932 = vpop.f32.mrb[0].mxu0
        %v2933 = vpop.f32.mrb[0].mxu0
        %v2934 = vadd.f32 0.0, %v2933
        %v2935 = vpop.f32.mrb[0].mxu0
        %2936 = vmatprep.mubr.bf16.mxu0 0
        %2937 = vmatmul.mubr.bf16.gmra.mrb[0].mxu0 %v2843
        %v2938 = vpop.f32.mrb[0].mxu0
        %v2939 = vadd.f32 0.0, %v2938
        %v2940 = vpop.f32.mrb[0].mxu0
        %v2941 = vpop.f32.mrb[0].mxu0
        %v2942 = vadd.f32 0.0, %v2941
        %v2943 = vpop.f32.mrb[0].mxu0
        %2944 = vmatprep.mubr.bf16.mxu0 0
        %2945 = vmatmul.mubr.bf16.gmra.mrb[0].mxu0 %v2846
        %v2946 = vpop.f32.mrb[0].mxu0
        %v2947 = vadd.f32 0.0, %v2946
        %v2948 = vpop.f32.mrb[0].mxu0
        %v2949 = vpop.f32.mrb[0].mxu0
        %v2950 = vadd.f32 0.0, %v2949
        %v2951 = vpop.f32.mrb[0].mxu0
        %2952 = vmatprep.mubr.bf16.mxu0 0
        %2953 = vmatmul.mubr.bf16.gmra.mrb[0].mxu0 %v2849
        %v2954 = vpop.f32.mrb[0].mxu0
        %v2955 = vadd.f32 0.0, %v2954
        %v2956 = vpop.f32.mrb[0].mxu0
        %v2957 = vpop.f32.mrb[0].mxu0
        %v2958 = vadd.f32 0.0, %v2957
        %v2959 = vpop.f32.mrb[0].mxu0
        %2960 = vmatprep.mubr.bf16.mxu0 0
        %2961 = vmatmul.mubr.bf16.gmra.mrb[0].mxu0 %v2852
        %v2962 = vpop.f32.mrb[0].mxu0
        %v2963 = vadd.f32 0.0, %v2962
        %v2964 = vpop.f32.mrb[0].mxu0
        %v2965 = vpop.f32.mrb[0].mxu0
        %v2966 = vadd.f32 0.0, %v2965
        %v2967 = vpop.f32.mrb[0].mxu0
        %2968 = vmatprep.mubr.bf16.mxu0 0
        %2969 = vmatmul.mubr.bf16.gmra.mrb[0].mxu0 %v2855
        %v2970 = vpop.f32.mrb[0].mxu0
        %v2971 = vadd.f32 0.0, %v2970
        %v2972 = vpop.f32.mrb[0].mxu0
        %v2973 = vpop.f32.mrb[0].mxu0
        %v2974 = vadd.f32 0.0, %v2973
        %v2975 = vpop.f32.mrb[0].mxu0
        %2976 = vmatprep.mubr.bf16.mxu0 0
        %2977 = vmatmul.mubr.bf16.gmra.mrb[0].mxu0 %v2858
        %v2978 = vpop.f32.mrb[0].mxu0
        %v2979 = vadd.f32 0.0, %v2978
        %v2980 = vpop.f32.mrb[0].mxu0
        %v2981 = vpop.f32.mrb[0].mxu0
        %v2982 = vadd.f32 0.0, %v2981
        %v2983 = vpop.f32.mrb[0].mxu0
        %2984 = vmatprep.mubr.bf16.mxu0 0
        %2985 = vmatmul.mubr.bf16.gmra.mrb[0].mxu0 %v2861
        %v2986 = vpop.f32.mrb[0].mxu0
        %v2987 = vadd.f32 0.0, %v2986
        %v2988 = vpop.f32.mrb[0].mxu0
        %v2989 = vpop.f32.mrb[0].mxu0
        %v2990 = vadd.f32 0.0, %v2989
        %v2991 = vpop.f32.mrb[0].mxu0
        %2992 = vmatprep.mubr.bf16.mxu0 0
        %2993 = vmatmul.mubr.bf16.gmra.mrb[0].mxu0 %v2864
        %v2994 = vpop.f32.mrb[0].mxu0
        %v2995 = vadd.f32 0.0, %v2994
        %v2996 = vpop.f32.mrb[0].mxu0
        %v2997 = vpop.f32.mrb[0].mxu0
        %v2998 = vadd.f32 0.0, %v2997
        %v2999 = vpop.f32.mrb[0].mxu0
        %3000 = vmatprep.mubr.bf16.mxu0 0
        %3001 = vmatmul.mubr.bf16.gmra.mrb[0].mxu0 %v2867
        %v3002 = vpop.f32.mrb[0].mxu0
        %v3003 = vadd.f32 0.0, %v3002
        %v3004 = vpop.f32.mrb[0].mxu0
        %v3005 = vpop.f32.mrb[0].mxu0
        %v3006 = vadd.f32 0.0, %v3005
        %v3007 = vpop.f32.mrb[0].mxu0
        %3008 = vmatprep.mubr.bf16.mxu0 0
        %3009 = vmatmul.mubr.bf16.gmra.mrb[0].mxu0 %v2870
        %v3010 = vpop.f32.mrb[0].mxu0
        %v3011 = vadd.f32 0.0, %v3010
        %v3012 = vpop.f32.mrb[0].mxu0
        %v3013 = vpop.f32.mrb[0].mxu0
        %v3014 = vadd.f32 0.0, %v3013
        %v3015 = vpop.f32.mrb[0].mxu0
        %3016 = vmatprep.mubr.bf16.mxu0 0
        %3017 = vmatmul.mubr.bf16.gmra.mrb[0].mxu0 %v2873
        %v3018 = vpop.f32.mrb[0].mxu0
        %v3019 = vadd.f32 0.0, %v3018
        %v3020 = vpop.f32.mrb[0].mxu0
        %v3021 = vpop.f32.mrb[0].mxu0
        %v3022 = vadd.f32 0.0, %v3021
        %v3023 = vpop.f32.mrb[0].mxu0
        %3024 = vmatprep.mubr.bf16.mxu0 0
        %3025 = vmatmul.mubr.bf16.gmra.mrb[0].mxu0 %v2876
        %v3026 = vpop.f32.mrb[0].mxu0
        %v3027 = vadd.f32 0.0, %v3026
        %v3028 = vpop.f32.mrb[0].mxu0
        %v3029 = vpop.f32.mrb[0].mxu0
        %v3030 = vadd.f32 0.0, %v3029
        %v3031 = vpop.f32.mrb[0].mxu0
        %3032 = vmatprep.mubr.bf16.mxu0 0
        %3033 = vmatmul.mubr.bf16.gmra.mrb[0].mxu0 %v2879
        %v3034 = vpop.f32.mrb[0].mxu0
        %v3035 = vadd.f32 0.0, %v3034
        %v3036 = vpop.f32.mrb[0].mxu0
        %v3037 = vpop.f32.mrb[0].mxu0
        %v3038 = vadd.f32 0.0, %v3037
        %v3039 = vpop.f32.mrb[0].mxu0
        %3040 = vmatprep.mubr.bf16.mxu0 0
        %3041 = vmatmul.mubr.bf16.gmra.mrb[0].mxu0 %v2882
        %v3042 = vpop.f32.mrb[0].mxu0
        %v3043 = vadd.f32 0.0, %v3042
        %v3044 = vpop.f32.mrb[0].mxu0
        %v3045 = vpop.f32.mrb[0].mxu0
        %v3046 = vadd.f32 0.0, %v3045
        %v3047 = vpop.f32.mrb[0].mxu0
        %3048 = vmatprep.mubr.bf16.mxu0 0
        %3049 = vmatmul.mubr.bf16.gmra.mrb[0].mxu0 %v2885
        %v3050 = vpop.f32.mrb[0].mxu0
        %v3051 = vadd.f32 0.0, %v3050
        %v3052 = vpop.f32.mrb[0].mxu0
        %v3053 = vpop.f32.mrb[0].mxu0
        %v3054 = vadd.f32 0.0, %v3053
        %v3055 = vpop.f32.mrb[0].mxu0
        %3056 = vmatprep.mubr.bf16.mxu0 0
        %3057 = vmatmul.mubr.bf16.gmra.mrb[0].mxu0 %v2888
        %v3058 = vpop.f32.mrb[0].mxu0
        %v3059 = vadd.f32 0.0, %v3058
        %v3060 = vpop.f32.mrb[0].mxu0
        %v3061 = vpop.f32.mrb[0].mxu0
        %v3062 = vadd.f32 0.0, %v3061
        %v3063 = vpop.f32.mrb[0].mxu0
        %3064 = vmatprep.mubr.bf16.mxu0 0
        %3065 = vmatmul.mubr.bf16.gmra.mrb[0].mxu0 %v2891
        %v3066 = vpop.f32.mrb[0].mxu0
        %v3067 = vadd.f32 0.0, %v3066
        %v3068 = vpop.f32.mrb[0].mxu0
        %v3069 = vpop.f32.mrb[0].mxu0
        %v3070 = vadd.f32 0.0, %v3069
        %v3071 = vpop.f32.mrb[0].mxu0
        %3072 = vdwg.mxu0
        %v3073 = vadd.f32 %v2763, %v2931
        %v3074 = vadd.f32 %v2764, %v2934
        %v3075 = vadd.f32 %v2765, %v2939
        %v3076 = vadd.f32 %v2766, %v2942
        %v3077 = vadd.f32 %v2767, %v2947
        %v3078 = vadd.f32 %v2768, %v2950
        %v3079 = vadd.f32 %v2769, %v2955
        %v3080 = vadd.f32 %v2770, %v2958
        %v3081 = vadd.f32 %v2771, %v2963
        %v3082 = vadd.f32 %v2772, %v2966
        %v3083 = vadd.f32 %v2773, %v2971
        %v3084 = vadd.f32 %v2774, %v2974
        %v3085 = vadd.f32 %v2775, %v2979
        %v3086 = vadd.f32 %v2776, %v2982
        %v3087 = vadd.f32 %v2777, %v2987
        %v3088 = vadd.f32 %v2778, %v2990
        %v3089 = vadd.f32 %v2779, %v2995
        %v3090 = vadd.f32 %v2780, %v2998
        %v3091 = vadd.f32 %v2781, %v3003
        %v3092 = vadd.f32 %v2782, %v3006
        %v3093 = vadd.f32 %v2783, %v3011
        %v3094 = vadd.f32 %v2784, %v3014
        %v3095 = vadd.f32 %v2785, %v3019
        %v3096 = vadd.f32 %v2786, %v3022
        %v3097 = vadd.f32 %v2787, %v3027
        %v3098 = vadd.f32 %v2788, %v3030
        %v3099 = vadd.f32 %v2789, %v3035
        %v3100 = vadd.f32 %v2790, %v3038
        %v3101 = vadd.f32 %v2791, %v3043
        %v3102 = vadd.f32 %v2792, %v3046
        %v3103 = vadd.f32 %v2793, %v3051
        %v3104 = vadd.f32 %v2794, %v3054
        %v3105 = vadd.f32 %v2795, %v3059
        %v3106 = vadd.f32 %v2796, %v3062
        %v3107 = vadd.f32 %v2797, %v3067
        %v3108 = vadd.f32 %v2798, %v3070
        %v3109 = vld [vmem:[#allocation7] sm:$0xff]
        %v3110 = vld [vmem:[#allocation7 + $0x8] sm:$0xff]
        %v3111 = vld [vmem:[#allocation7 + $0x10] sm:$0xff]
        %v3112 = vld [vmem:[#allocation7 + $0x18] sm:$0xff]
        %v3113 = vld [vmem:[#allocation7 + $0x20] sm:$0xff]
        %v3114 = vld [vmem:[#allocation7 + $0x28] sm:$0xff]
        %v3115 = vld [vmem:[#allocation7 + $0x30] sm:$0xff]
        %v3116 = vld [vmem:[#allocation7 + $0x38] sm:$0xff]
        %v3117 = vld [vmem:[#allocation7 + $0x40] sm:$0xff]
        %v3118 = vld [vmem:[#allocation7 + $0x48] sm:$0xff]
        %v3119 = vld [vmem:[#allocation7 + $0x50] sm:$0xff]
        %v3120 = vld [vmem:[#allocation7 + $0x58] sm:$0xff]
        %v3121 = vld [vmem:[#allocation7 + $0x60] sm:$0xff]
        %v3122 = vld [vmem:[#allocation7 + $0x68] sm:$0xff]
        %v3123 = vld [vmem:[#allocation7 + $0x70] sm:$0xff]
        %v3124 = vld [vmem:[#allocation7 + $0x78] sm:$0xff]
        %v3125 = vld [vmem:[#allocation7 + $0x80] sm:$0xff]
        %v3126 = vld [vmem:[#allocation7 + $0x88] sm:$0xff]
        %v3127 = vld [vmem:[#allocation7 + $0x90] sm:$0xff]
        %v3128 = vld [vmem:[#allocation7 + $0x98] sm:$0xff]
        %v3129 = vld [vmem:[#allocation7 + $0xa0] sm:$0xff]
        %v3130 = vld [vmem:[#allocation7 + $0xa8] sm:$0xff]
        %v3131 = vld [vmem:[#allocation7 + $0xb0] sm:$0xff]
        %v3132 = vld [vmem:[#allocation7 + $0xb8] sm:$0xff]
        %v3133 = vld [vmem:[#allocation7 + $0xc0] sm:$0xff]
        %v3134 = vld [vmem:[#allocation7 + $0xc8] sm:$0xff]
        %v3135 = vld [vmem:[#allocation7 + $0xd0] sm:$0xff]
        %v3136 = vld [vmem:[#allocation7 + $0xd8] sm:$0xff]
        %v3137 = vld [vmem:[#allocation7 + $0xe0] sm:$0xff]
        %v3138 = vld [vmem:[#allocation7 + $0xe8] sm:$0xff]
        %v3139 = vld [vmem:[#allocation7 + $0xf0] sm:$0xff]
        %v3140 = vld [vmem:[#allocation7 + $0xf8] sm:$0xff]
        %v3141 = vld [vmem:[#allocation7 + $0x100] sm:$0xff]
        %v3142 = vld [vmem:[#allocation7 + $0x108] sm:$0xff]
        %v3143 = vld [vmem:[#allocation7 + $0x110] sm:$0xff]
        %v3144 = vld [vmem:[#allocation7 + $0x118] sm:$0xff]
        %3146 = vset.pattern.permute.xlu0 0
        %3147 = vperm.xlu0 %3146, %v3109
        %v3148 = vpop.permute.xlu0 %3147
        %3151 = vset.pattern.permute.xlu0 0
        %3152 = vperm.xlu0 %3151, %v3110
        %v3153 = vpop.permute.xlu0 %3152
        %3156 = vset.pattern.permute.xlu0 0
        %3157 = vperm.xlu0 %3156, %v3111
        %v3158 = vpop.permute.xlu0 %3157
        %3161 = vset.pattern.permute.xlu0 0
        %3162 = vperm.xlu0 %3161, %v3112
        %v3163 = vpop.permute.xlu0 %3162
        %3166 = vset.pattern.permute.xlu0 0
        %3167 = vperm.xlu0 %3166, %v3113
        %v3168 = vpop.permute.xlu0 %3167
        %3171 = vset.pattern.permute.xlu0 0
        %3172 = vperm.xlu0 %3171, %v3114
        %v3173 = vpop.permute.xlu0 %3172
        %3176 = vset.pattern.permute.xlu0 0
        %3177 = vperm.xlu0 %3176, %v3115
        %v3178 = vpop.permute.xlu0 %3177
        %3181 = vset.pattern.permute.xlu0 0
        %3182 = vperm.xlu0 %3181, %v3116
        %v3183 = vpop.permute.xlu0 %3182
        %3186 = vset.pattern.permute.xlu0 0
        %3187 = vperm.xlu0 %3186, %v3117
        %v3188 = vpop.permute.xlu0 %3187
        %3191 = vset.pattern.permute.xlu0 0
        %3192 = vperm.xlu0 %3191, %v3118
        %v3193 = vpop.permute.xlu0 %3192
        %3196 = vset.pattern.permute.xlu0 0
        %3197 = vperm.xlu0 %3196, %v3119
        %v3198 = vpop.permute.xlu0 %3197
        %3201 = vset.pattern.permute.xlu0 0
        %3202 = vperm.xlu0 %3201, %v3120
        %v3203 = vpop.permute.xlu0 %3202
        %3206 = vset.pattern.permute.xlu0 0
        %3207 = vperm.xlu0 %3206, %v3121
        %v3208 = vpop.permute.xlu0 %3207
        %3211 = vset.pattern.permute.xlu0 0
        %3212 = vperm.xlu0 %3211, %v3122
        %v3213 = vpop.permute.xlu0 %3212
        %3216 = vset.pattern.permute.xlu0 0
        %3217 = vperm.xlu0 %3216, %v3123
        %v3218 = vpop.permute.xlu0 %3217
        %3221 = vset.pattern.permute.xlu0 0
        %3222 = vperm.xlu0 %3221, %v3124
        %v3223 = vpop.permute.xlu0 %3222
        %3226 = vset.pattern.permute.xlu0 0
        %3227 = vperm.xlu0 %3226, %v3125
        %v3228 = vpop.permute.xlu0 %3227
        %3231 = vset.pattern.permute.xlu0 0
        %3232 = vperm.xlu0 %3231, %v3126
        %v3233 = vpop.permute.xlu0 %3232
        %3236 = vset.pattern.permute.xlu0 0
        %3237 = vperm.xlu0 %3236, %v3127
        %v3238 = vpop.permute.xlu0 %3237
        %3241 = vset.pattern.permute.xlu0 0
        %3242 = vperm.xlu0 %3241, %v3128
        %v3243 = vpop.permute.xlu0 %3242
        %3246 = vset.pattern.permute.xlu0 0
        %3247 = vperm.xlu0 %3246, %v3129
        %v3248 = vpop.permute.xlu0 %3247
        %3251 = vset.pattern.permute.xlu0 0
        %3252 = vperm.xlu0 %3251, %v3130
        %v3253 = vpop.permute.xlu0 %3252
        %3256 = vset.pattern.permute.xlu0 0
        %3257 = vperm.xlu0 %3256, %v3131
        %v3258 = vpop.permute.xlu0 %3257
        %3261 = vset.pattern.permute.xlu0 0
        %3262 = vperm.xlu0 %3261, %v3132
        %v3263 = vpop.permute.xlu0 %3262
        %3266 = vset.pattern.permute.xlu0 0
        %3267 = vperm.xlu0 %3266, %v3133
        %v3268 = vpop.permute.xlu0 %3267
        %3271 = vset.pattern.permute.xlu0 0
        %3272 = vperm.xlu0 %3271, %v3134
        %v3273 = vpop.permute.xlu0 %3272
        %3276 = vset.pattern.permute.xlu0 0
        %3277 = vperm.xlu0 %3276, %v3135
        %v3278 = vpop.permute.xlu0 %3277
        %3281 = vset.pattern.permute.xlu0 0
        %3282 = vperm.xlu0 %3281, %v3136
        %v3283 = vpop.permute.xlu0 %3282
        %3286 = vset.pattern.permute.xlu0 0
        %3287 = vperm.xlu0 %3286, %v3137
        %v3288 = vpop.permute.xlu0 %3287
        %3291 = vset.pattern.permute.xlu0 0
        %3292 = vperm.xlu0 %3291, %v3138
        %v3293 = vpop.permute.xlu0 %3292
        %3296 = vset.pattern.permute.xlu0 0
        %3297 = vperm.xlu0 %3296, %v3139
        %v3298 = vpop.permute.xlu0 %3297
        %3301 = vset.pattern.permute.xlu0 0
        %3302 = vperm.xlu0 %3301, %v3140
        %v3303 = vpop.permute.xlu0 %3302
        %3306 = vset.pattern.permute.xlu0 0
        %3307 = vperm.xlu0 %3306, %v3141
        %v3308 = vpop.permute.xlu0 %3307
        %3311 = vset.pattern.permute.xlu0 0
        %3312 = vperm.xlu0 %3311, %v3142
        %v3313 = vpop.permute.xlu0 %3312
        %3316 = vset.pattern.permute.xlu0 0
        %3317 = vperm.xlu0 %3316, %v3143
        %v3318 = vpop.permute.xlu0 %3317
        %3321 = vset.pattern.permute.xlu0 0
        %3322 = vperm.xlu0 %3321, %v3144
        %v3323 = vpop.permute.xlu0 %3322
        %v3325 = vmul.f32 %v3073, %v3148
        %v3326 = vmul.f32 %v3074, %v3153
        %v3327 = vmul.f32 %v3075, %v3158
        %v3328 = vmul.f32 %v3076, %v3163
        %v3329 = vmul.f32 %v3077, %v3168
        %v3330 = vmul.f32 %v3078, %v3173
        %v3331 = vmul.f32 %v3079, %v3178
        %v3332 = vmul.f32 %v3080, %v3183
        %v3333 = vmul.f32 %v3081, %v3188
        %v3334 = vmul.f32 %v3082, %v3193
        %v3335 = vmul.f32 %v3083, %v3198
        %v3336 = vmul.f32 %v3084, %v3203
        %v3337 = vmul.f32 %v3085, %v3208
        %v3338 = vmul.f32 %v3086, %v3213
        %v3339 = vmul.f32 %v3087, %v3218
        %v3340 = vmul.f32 %v3088, %v3223
        %v3341 = vmul.f32 %v3089, %v3228
        %v3342 = vmul.f32 %v3090, %v3233
        %v3343 = vmul.f32 %v3091, %v3238
        %v3344 = vmul.f32 %v3092, %v3243
        %v3345 = vmul.f32 %v3093, %v3248
        %v3346 = vmul.f32 %v3094, %v3253
        %v3347 = vmul.f32 %v3095, %v3258
        %v3348 = vmul.f32 %v3096, %v3263
        %v3349 = vmul.f32 %v3097, %v3268
        %v3350 = vmul.f32 %v3098, %v3273
        %v3351 = vmul.f32 %v3099, %v3278
        %v3352 = vmul.f32 %v3100, %v3283
        %v3353 = vmul.f32 %v3101, %v3288
        %v3354 = vmul.f32 %v3102, %v3293
        %v3355 = vmul.f32 %v3103, %v3298
        %v3356 = vmul.f32 %v3104, %v3303
        %v3357 = vmul.f32 %v3105, %v3308
        %v3358 = vmul.f32 %v3106, %v3313
        %v3359 = vmul.f32 %v3107, %v3318
        %v3360 = vmul.f32 %v3108, %v3323
        %v3361 = vpack.c.bf16 %v3326, %v3325
        %v3362 = vpack.c.bf16 %v3328, %v3327
        %v3363 = vpack.c.bf16 %v3330, %v3329
        %v3364 = vpack.c.bf16 %v3332, %v3331
        %v3365 = vpack.c.bf16 %v3334, %v3333
        %v3366 = vpack.c.bf16 %v3336, %v3335
        %v3367 = vpack.c.bf16 %v3338, %v3337
        %v3368 = vpack.c.bf16 %v3340, %v3339
        %v3369 = vpack.c.bf16 %v3342, %v3341
        %v3370 = vpack.c.bf16 %v3344, %v3343
        %v3371 = vpack.c.bf16 %v3346, %v3345
        %v3372 = vpack.c.bf16 %v3348, %v3347
        %v3373 = vpack.c.bf16 %v3350, %v3349
        %v3374 = vpack.c.bf16 %v3352, %v3351
        %v3375 = vpack.c.bf16 %v3354, %v3353
        %v3376 = vpack.c.bf16 %v3356, %v3355
        %v3377 = vpack.c.bf16 %v3358, %v3357
        %v3378 = vpack.c.bf16 %v3360, %v3359
        %v3397 = vunpack.c.l.b16 %v3361
        %v3398 = vunpack.c.h.b16 %v3361
        %v3399 = vunpack.c.l.b16 %v3362
        %v3400 = vunpack.c.h.b16 %v3362
        %v3401 = vunpack.c.l.b16 %v3363
        %v3402 = vunpack.c.h.b16 %v3363
        %v3403 = vunpack.c.l.b16 %v3364
        %v3404 = vunpack.c.h.b16 %v3364
        %v3405 = vunpack.c.l.b16 %v3365
        %v3406 = vunpack.c.h.b16 %v3365
        %v3407 = vunpack.c.l.b16 %v3366
        %v3408 = vunpack.c.h.b16 %v3366
        %v3409 = vunpack.c.l.b16 %v3367
        %v3410 = vunpack.c.h.b16 %v3367
        %v3411 = vunpack.c.l.b16 %v3368
        %v3412 = vunpack.c.h.b16 %v3368
        %v3413 = vunpack.c.l.b16 %v3369
        %v3414 = vunpack.c.h.b16 %v3369
        %v3415 = vunpack.c.l.b16 %v3370
        %v3416 = vunpack.c.h.b16 %v3370
        %v3417 = vunpack.c.l.b16 %v3371
        %v3418 = vunpack.c.h.b16 %v3371
        %v3419 = vunpack.c.l.b16 %v3372
        %v3420 = vunpack.c.h.b16 %v3372
        %v3421 = vunpack.c.l.b16 %v3373
        %v3422 = vunpack.c.h.b16 %v3373
        %v3423 = vunpack.c.l.b16 %v3374
        %v3424 = vunpack.c.h.b16 %v3374
        %v3425 = vunpack.c.l.b16 %v3375
        %v3426 = vunpack.c.h.b16 %v3375
        %v3427 = vunpack.c.l.b16 %v3376
        %v3428 = vunpack.c.h.b16 %v3376
        %v3429 = vunpack.c.l.b16 %v3377
        %v3430 = vunpack.c.h.b16 %v3377
        %v3431 = vunpack.c.l.b16 %v3378
        %v3432 = vunpack.c.h.b16 %v3378
        %v3433 = vpack.c.b16 %v3397, %v3397
        %v3434 = vpack.c.b16 %v3398, %v3398
        %v3435 = vpack.c.b16 %v3399, %v3399
        %v3436 = vpack.c.b16 %v3400, %v3400
        %v3437 = vpack.c.b16 %v3401, %v3401
        %v3438 = vpack.c.b16 %v3402, %v3402
        %v3439 = vpack.c.b16 %v3403, %v3403
        %v3440 = vpack.c.b16 %v3404, %v3404
        %v3441 = vpack.c.b16 %v3405, %v3405
        %v3442 = vpack.c.b16 %v3406, %v3406
        %v3443 = vpack.c.b16 %v3407, %v3407
        %v3444 = vpack.c.b16 %v3408, %v3408
        %v3445 = vpack.c.b16 %v3409, %v3409
        %v3446 = vpack.c.b16 %v3410, %v3410
        %v3447 = vpack.c.b16 %v3411, %v3411
        %v3448 = vpack.c.b16 %v3412, %v3412
        %v3449 = vpack.c.b16 %v3413, %v3413
        %v3450 = vpack.c.b16 %v3414, %v3414
        %v3451 = vpack.c.b16 %v3415, %v3415
        %v3452 = vpack.c.b16 %v3416, %v3416
        %v3453 = vpack.c.b16 %v3417, %v3417
        %v3454 = vpack.c.b16 %v3418, %v3418
        %v3455 = vpack.c.b16 %v3419, %v3419
        %v3456 = vpack.c.b16 %v3420, %v3420
        %v3457 = vpack.c.b16 %v3421, %v3421
        %v3458 = vpack.c.b16 %v3422, %v3422
        %v3459 = vpack.c.b16 %v3423, %v3423
        %v3460 = vpack.c.b16 %v3424, %v3424
        %v3461 = vpack.c.b16 %v3425, %v3425
        %v3462 = vpack.c.b16 %v3426, %v3426
        %v3463 = vpack.c.b16 %v3427, %v3427
        %v3464 = vpack.c.b16 %v3428, %v3428
        %v3465 = vpack.c.b16 %v3429, %v3429
        %v3466 = vpack.c.b16 %v3430, %v3430
        %v3467 = vpack.c.b16 %v3431, %v3431
        %v3468 = vpack.c.b16 %v3432, %v3432
        %3505 = vst [vmem:[%s248] sm:$0xf] %v3433
        %3506 = vst [vmem:[%s248 + $0x4] sm:$0xf] %v3434
        %3507 = vst [vmem:[%s248 + $0x8] sm:$0xf] %v3435
        %3508 = vst [vmem:[%s248 + $0xc] sm:$0xf] %v3436
        %3509 = vst [vmem:[%s248 + $0x10] sm:$0xf] %v3437
        %3510 = vst [vmem:[%s248 + $0x14] sm:$0xf] %v3438
        %3511 = vst [vmem:[%s248 + $0x18] sm:$0xf] %v3439
        %3512 = vst [vmem:[%s248 + $0x1c] sm:$0xf] %v3440
        %3513 = vst [vmem:[%s248 + $0x20] sm:$0xf] %v3441
        %3514 = vst [vmem:[%s248 + $0x24] sm:$0xf] %v3442
        %3515 = vst [vmem:[%s248 + $0x28] sm:$0xf] %v3443
        %3516 = vst [vmem:[%s248 + $0x2c] sm:$0xf] %v3444
        %3517 = vst [vmem:[%s248 + $0x30] sm:$0xf] %v3445
        %3518 = vst [vmem:[%s248 + $0x34] sm:$0xf] %v3446
        %3519 = vst [vmem:[%s248 + $0x38] sm:$0xf] %v3447
        %3520 = vst [vmem:[%s248 + $0x3c] sm:$0xf] %v3448
        %3521 = vst [vmem:[%s248 + $0x40] sm:$0xf] %v3449
        %3522 = vst [vmem:[%s248 + $0x44] sm:$0xf] %v3450
        %3523 = vst [vmem:[%s248 + $0x48] sm:$0xf] %v3451
        %3524 = vst [vmem:[%s248 + $0x4c] sm:$0xf] %v3452
        %3525 = vst [vmem:[%s248 + $0x50] sm:$0xf] %v3453
        %3526 = vst [vmem:[%s248 + $0x54] sm:$0xf] %v3454
        %3527 = vst [vmem:[%s248 + $0x58] sm:$0xf] %v3455
        %3528 = vst [vmem:[%s248 + $0x5c] sm:$0xf] %v3456
        %3529 = vst [vmem:[%s248 + $0x60] sm:$0xf] %v3457
        %3530 = vst [vmem:[%s248 + $0x64] sm:$0xf] %v3458
        %3531 = vst [vmem:[%s248 + $0x68] sm:$0xf] %v3459
        %3532 = vst [vmem:[%s248 + $0x6c] sm:$0xf] %v3460
        %3533 = vst [vmem:[%s248 + $0x70] sm:$0xf] %v3461
        %3534 = vst [vmem:[%s248 + $0x74] sm:$0xf] %v3462
        %3535 = vst [vmem:[%s248 + $0x78] sm:$0xf] %v3463
        %3536 = vst [vmem:[%s248 + $0x7c] sm:$0xf] %v3464
        %3537 = vst [vmem:[%s248 + $0x80] sm:$0xf] %v3465
        %3538 = vst [vmem:[%s248 + $0x84] sm:$0xf] %v3466
        %3539 = vst [vmem:[%s248 + $0x88] sm:$0xf] %v3467
        %3540 = vst [vmem:[%s248 + $0x8c] sm:$0xf] %v3468
        %v3541 = vadd.f32 %v3325, %v3326
        %v3542 = vadd.f32 %v3541, %v3327
        %v3543 = vadd.f32 %v3542, %v3328
        %v3544 = vadd.f32 %v3543, %v3329
        %v3545 = vadd.f32 %v3544, %v3330
        %v3546 = vadd.f32 %v3545, %v3331
        %v3547 = vadd.f32 %v3546, %v3332
        %v3548 = vadd.f32 %v3547, %v3333
        %v3549 = vadd.f32 %v3548, %v3334
        %v3550 = vadd.f32 %v3549, %v3335
        %v3551 = vadd.f32 %v3550, %v3336
        %v3552 = vadd.f32 %v3551, %v3337
        %v3553 = vadd.f32 %v3552, %v3338
        %v3554 = vadd.f32 %v3553, %v3339
        %v3555 = vadd.f32 %v3554, %v3340
        %v3556 = vadd.f32 %v3555, %v3341
        %v3557 = vadd.f32 %v3556, %v3342
        %v3558 = vadd.f32 %v3557, %v3343
        %v3559 = vadd.f32 %v3558, %v3344
        %v3560 = vadd.f32 %v3559, %v3345
        %v3561 = vadd.f32 %v3560, %v3346
        %v3562 = vadd.f32 %v3561, %v3347
        %v3563 = vadd.f32 %v3562, %v3348
        %v3564 = vadd.f32 %v3563, %v3349
        %v3565 = vadd.f32 %v3564, %v3350
        %v3566 = vadd.f32 %v3565, %v3351
        %v3567 = vadd.f32 %v3566, %v3352
        %v3568 = vadd.f32 %v3567, %v3353
        %v3569 = vadd.f32 %v3568, %v3354
        %v3570 = vadd.f32 %v3569, %v3355
        %v3571 = vadd.f32 %v3570, %v3356
        %v3572 = vadd.f32 %v3571, %v3357
        %v3573 = vadd.f32 %v3572, %v3358
        %v3574 = vadd.f32 %v3573, %v3359
        %v3575 = vadd.f32 %v3574, %v3360
        %v3576 = vrot.slane %v3575, 4
        %v3577 = vadd.f32 %v3575, %v3576
        %v3578 = vrot.slane %v3577, 2
        %v3579 = vadd.f32 %v3577, %v3578
        %v3580 = vrot.slane %v3579, 1
        %v3581 = vadd.f32 %v3579, %v3580
        %3582 = vst [vmem:[%s255] sm:$0x1] %v3581
        %v3583 = vmul.f32 %v3325, %v3325
        %v3584 = vmul.f32 %v3326, %v3326
        %v3585 = vmul.f32 %v3327, %v3327
        %v3586 = vmul.f32 %v3328, %v3328
        %v3587 = vmul.f32 %v3329, %v3329
        %v3588 = vmul.f32 %v3330, %v3330
        %v3589 = vmul.f32 %v3331, %v3331
        %v3590 = vmul.f32 %v3332, %v3332
        %v3591 = vmul.f32 %v3333, %v3333
        %v3592 = vmul.f32 %v3334, %v3334
        %v3593 = vmul.f32 %v3335, %v3335
        %v3594 = vmul.f32 %v3336, %v3336
        %v3595 = vmul.f32 %v3337, %v3337
        %v3596 = vmul.f32 %v3338, %v3338
        %v3597 = vmul.f32 %v3339, %v3339
        %v3598 = vmul.f32 %v3340, %v3340
        %v3599 = vmul.f32 %v3341, %v3341
        %v3600 = vmul.f32 %v3342, %v3342
        %v3601 = vmul.f32 %v3343, %v3343
        %v3602 = vmul.f32 %v3344, %v3344
        %v3603 = vmul.f32 %v3345, %v3345
        %v3604 = vmul.f32 %v3346, %v3346
        %v3605 = vmul.f32 %v3347, %v3347
        %v3606 = vmul.f32 %v3348, %v3348
        %v3607 = vmul.f32 %v3349, %v3349
        %v3608 = vmul.f32 %v3350, %v3350
        %v3609 = vmul.f32 %v3351, %v3351
        %v3610 = vmul.f32 %v3352, %v3352
        %v3611 = vmul.f32 %v3353, %v3353
        %v3612 = vmul.f32 %v3354, %v3354
        %v3613 = vmul.f32 %v3355, %v3355
        %v3614 = vmul.f32 %v3356, %v3356
        %v3615 = vmul.f32 %v3357, %v3357
        %v3616 = vmul.f32 %v3358, %v3358
        %v3617 = vmul.f32 %v3359, %v3359
        %v3618 = vmul.f32 %v3360, %v3360
        %v3619 = vadd.f32 %v3583, %v3584
        %v3620 = vadd.f32 %v3619, %v3585
        %v3621 = vadd.f32 %v3620, %v3586
        %v3622 = vadd.f32 %v3621, %v3587
        %v3623 = vadd.f32 %v3622, %v3588
        %v3624 = vadd.f32 %v3623, %v3589
        %v3625 = vadd.f32 %v3624, %v3590
        %v3626 = vadd.f32 %v3625, %v3591
        %v3627 = vadd.f32 %v3626, %v3592
        %v3628 = vadd.f32 %v3627, %v3593
        %v3629 = vadd.f32 %v3628, %v3594
        %v3630 = vadd.f32 %v3629, %v3595
        %v3631 = vadd.f32 %v3630, %v3596
        %v3632 = vadd.f32 %v3631, %v3597
        %v3633 = vadd.f32 %v3632, %v3598
        %v3634 = vadd.f32 %v3633, %v3599
        %v3635 = vadd.f32 %v3634, %v3600
        %v3636 = vadd.f32 %v3635, %v3601
        %v3637 = vadd.f32 %v3636, %v3602
        %v3638 = vadd.f32 %v3637, %v3603
        %v3639 = vadd.f32 %v3638, %v3604
        %v3640 = vadd.f32 %v3639, %v3605
        %v3641 = vadd.f32 %v3640, %v3606
        %v3642 = vadd.f32 %v3641, %v3607
        %v3643 = vadd.f32 %v3642, %v3608
        %v3644 = vadd.f32 %v3643, %v3609
        %v3645 = vadd.f32 %v3644, %v3610
        %v3646 = vadd.f32 %v3645, %v3611
        %v3647 = vadd.f32 %v3646, %v3612
        %v3648 = vadd.f32 %v3647, %v3613
        %v3649 = vadd.f32 %v3648, %v3614
        %v3650 = vadd.f32 %v3649, %v3615
        %v3651 = vadd.f32 %v3650, %v3616
        %v3652 = vadd.f32 %v3651, %v3617
        %v3653 = vadd.f32 %v3652, %v3618
        %v3654 = vrot.slane %v3653, 4
        %v3655 = vadd.f32 %v3653, %v3654
        %v3656 = vrot.slane %v3655, 2
        %v3657 = vadd.f32 %v3655, %v3656
        %v3658 = vrot.slane %v3657, 1
        %v3659 = vadd.f32 %v3657, %v3658
        %3660 = vst [vmem:[%s255 + $0x1] sm:$0x1] %v3659
        %s3661 = sand.u32 %s102, 1
        %s3662 = scalar_lea.sflag [#allocation4], %s3661
        %s3663 = sand.u32 %s102, 1
        %s3664 = smul.addr %s3663, 144
        %s3665 = scalar_lea.vmem [#allocation8], %s3664
        %s3666 = sand.u32 %s128, 1
        %s3667 = scalar_lea.sflag [#allocation10], %s3666
        %s3668 = sand.u32 %s128, 1
        %s3669 = smul.addr %s3668, 2
        %s3670 = scalar_lea.vmem [#allocation9], %s3669
        // Predicated region
        $region45: #{double_conv.3} parent=31 // pred_check
          %p3671 = pneg %p112
        $region46: #{double_conv.3} parent=31 // pred_check_branch
          %3673 = sbr.rel (%p3671) target = $region48
        $region47: #{double_conv.3} parent=31 // pred_region
          %s3675 = ssub.s32 2304, 2304
          %3676 = vsyncadd %s3662, %s3675
          %s3677 = smul.addr %s26, 36
          %s3678 = smul.addr %s3677, 64
          %s3679 = scalar_lea.hbm %s3, %s3678
          %s3680 = sshll.u32 %s3665, 4
          %s3681 = int_to_ptr.vmem [resolvable:$true] %s3680
          %3686 = dma.vmem_to_hbm [thread:$0]  %s3681, 2304, %s3679, %s3662, 64, 64, 4
        $region48: #{double_conv.3} parent=31 // pred_fallthru
          _
        // Predicated region
        $region49: #{double_conv.3} parent=31 // pred_check
          %p3687 = pneg %p138
        $region50: #{double_conv.3} parent=31 // pred_check_branch
          %3689 = sbr.rel (%p3687) target = $region52
        $region51: #{double_conv.3} parent=31 // pred_region
          %s3691 = ssub.s32 32, 32
          %3692 = vsyncadd %s3667, %s3691
          %s3693 = smul.addr %s26, 32
          %s3694 = scalar_lea.hbm %s4, %s3693
          %s3696 = sshll.u32 %s3670, 4
          %s3697 = int_to_ptr.vmem [resolvable:$true] %s3696
          %3699 = dma.vmem_to_hbm [thread:$0]  %s3697, 32, %s3694, %s3667
        $region52: #{double_conv.3} parent=31 // pred_fallthru
          _
      $region32: #{double_conv.3} parent=5 // pred_fallthru
        _
      %p3700 = scmp.le.s32.totalorder 2, %s21
      // Predicated region
      $region53: #{double_conv.3} parent=5 // pred_check
        %p3701 = pneg %p3700
      $region54: #{double_conv.3} parent=5 // pred_check_branch
        %3703 = sbr.rel (%p3701) target = $region56
      $region55: #{double_conv.3} parent=5 // pred_region
        %s3704 = ssub.s32 %s21, 2
        // Predicated region
        $region57: #{double_conv.3} parent=55 // pred_check
          %p3705 = pneg %p118
        $region58: #{double_conv.3} parent=55 // pred_check_branch
          %3707 = sbr.rel (%p3705) target = $region60
        $region59: #{double_conv.3} parent=55 // pred_region
          %s3708 = sand.u32 %s103, 1
          %s3709 = scalar_lea.sflag [#allocation4], %s3708
          %s3710 = sand.u32 %s103, 1
          %s3711 = smul.addr %s3710, 144
          %s3712 = scalar_lea.vmem [#allocation8], %s3711
          %3713 = dma.done %s3709, 2304
        $region60: #{double_conv.3} parent=55 // pred_fallthru
          _
        // Predicated region
        $region61: #{double_conv.3} parent=55 // pred_check
          %p3714 = pneg %p144
        $region62: #{double_conv.3} parent=55 // pred_check_branch
          %3716 = sbr.rel (%p3714) target = $region64
        $region63: #{double_conv.3} parent=55 // pred_region
          %s3717 = sand.u32 %s129, 1
          %s3718 = scalar_lea.sflag [#allocation10], %s3717
          %s3719 = sand.u32 %s129, 1
          %s3720 = smul.addr %s3719, 2
          %s3721 = scalar_lea.vmem [#allocation9], %s3720
          %3722 = dma.done %s3718, 32
        $region64: #{double_conv.3} parent=55 // pred_fallthru
          _
      $region56: #{double_conv.3} parent=5 // pred_fallthru
        _
    $region6: #{double_conv.3} parent=1 // loop_footer
      %s25 = sadd.s32 1, %s21
    $region7: #{double_conv.3} parent=1 // loop_footer_branch
      %20 = sbr.rel target = $region3
    $region8: #{double_conv.3} parent=1 // loop_exit
      _
    %3723 = vsyncpa [#allocation3], 1
    %s3724 = scalar_lea.sflag [#allocation3], 1
    %3725 = vsyncpa %s3724, 1
    %3726 = vsyncpa [#allocation6], 1
    %3727 = vsyncpa [#allocation4], 1
    %s3728 = scalar_lea.sflag [#allocation4], 1
    %3729 = vsyncpa %s3728, 1
    %3730 = vsyncpa [#allocation10], 1
    %s3731 = scalar_lea.sflag [#allocation10], 1
    %3732 = vsyncpa %s3731, 1

// kernel: double_conv.4
$region0: #{double_conv.4}
  #allocation0 [shape = 'u32[]', space=smem, size = 0x4, offset = 0x4, fixed_abs, tag = 'smem constant byte address 0x4 - core index']
  #allocation1 [shape = 'u32[144,128]{1,0:T(1,128)}', space=vmem, size = 0x12000, scoped, tag = 'internal scratch']
  %s0 = inlined_call_operand.hbm [shape: bf16[2,328,8], index: 0, kind: input, shape index: {}]
  %s1 = inlined_call_operand.hbm [shape: bf16[9,8,128], index: 1, kind: input, shape index: {}]
  %s2 = inlined_call_operand.hbm [shape: f32[288,1], index: 2, kind: input, shape index: {}]
  %s3 = inlined_call_operand.hbm [shape: bf16[2,288,128], index: 3, kind: output, shape index: {0}]
  %s4 = inlined_call_operand.hbm [shape: f32[2,2,128], index: 4, kind: output, shape index: {1}]
  %5 = xla_tuple %s3, %s4
  %s6 = sld [smem:[#allocation0]]
  $region65: #{double_conv.4} parent=0
    _
  %s8 = ssub.s32 1, %s6
  %s9 = scalar_select 0, %s8, %s6
  $region1: #{double_conv.4} parent=0
    #allocation2 [shape = 'u8[167936]{0}', space=vmem, size = 0x29000, scoped, tag = 'input window, operand 0']
    #allocation3 [shape = 's32[2]{0}', space=sflag, size = 0x8, scoped, tag = 'scoped memory for double_conv.4']
    #allocation4 [shape = 's32[2]{0}', space=sflag, size = 0x8, scoped, tag = 'scoped memory for double_conv.4']
    #allocation5 [shape = 'u8[18432]{0}', space=vmem, size = 0x4800, scoped, tag = 'input window, operand 1, single buffered']
    #allocation6 [shape = 's32[1]{0}', space=sflag, size = 0x4, scoped, tag = 'scoped memory for double_conv.4']
    #allocation7 [shape = 'u8[147456]{0}', space=vmem, size = 0x24000, scoped, tag = 'input window, operand 2, single buffered']
    #allocation8 [shape = 'u8[147456]{0}', space=vmem, size = 0x24000, scoped, tag = 'output window, operand 0']
    #allocation9 [shape = 'u8[2048]{0}', space=vmem, size = 0x800, scoped, tag = 'output window, operand 1']
    #allocation10 [shape = 's32[2]{0}', space=sflag, size = 0x8, scoped, tag = 'scoped memory for double_conv.4']
    %10 = vsyncpa [#allocation3], 0
    %s11 = scalar_lea.sflag [#allocation3], 1
    %12 = vsyncpa %s11, 0
    %13 = vsyncpa [#allocation6], 0
    %14 = vsyncpa [#allocation4], 0
    %s15 = scalar_lea.sflag [#allocation4], 1
    %16 = vsyncpa %s15, 0
    %17 = vsyncpa [#allocation10], 0
    %s18 = scalar_lea.sflag [#allocation10], 1
    %19 = vsyncpa %s18, 0
    loop: start=0, step=1, limit=4
    $region2: #{double_conv.4} parent=1 // loop_pre_header
      _
    $region3: #{double_conv.4} parent=1 // loop_header
      %s21 = sphi 0, %s25
      %p22 = scmp.ge.s32.totalorder %s21, 4
      %s31 = sphi 0, %s33
      %s34 = sphi 0, %s31
      %s35 = sphi 0, %s34
      %s51 = sphi 0, %s35
      %s55 = sphi 0, %s55
      %s57 = sphi 0, %s55
      %s58 = sphi 0, %s57
      %s72 = sphi 0, %s58
      %s76 = sphi 0, %s76
      %s78 = sphi 0, %s76
      %s79 = sphi 0, %s78
      %s93 = sphi 0, %s79
      %s99 = sphi 0, %s101
      %s102 = sphi 0, %s99
      %s103 = sphi 0, %s102
      %s119 = sphi 0, %s103
      %s125 = sphi 0, %s127
      %s128 = sphi 0, %s125
      %s129 = sphi 0, %s128
      %s145 = sphi 0, %s129
    $region4: #{double_conv.4} parent=1 // loop_header_branch
      %24 = sbr.rel (%p22) target = $region8
    $region5: #{double_conv.4} parent=1 // loop_body
      %s26 = ssub.s32 %s21, 1
      %s27 = ssub.s32 %s21, 2
      %s28 = sadd.s32 %s21, 1
      %s29 = ssub.s32 %s21, %s28
      %p30 = scmp.eq.s32.totalorder %s29, 0
      %s32 = sadd.s32 %s31, 1
      %s33 = scalar_select %p30, %s31, %s32
      %p36 = pneg %p30
      %p37 = scmp.eq.s32.totalorder %s21, 1
      %p38 = por %p36, %p37
      %p39 = scmp.ne.s32.totalorder %s31, %s34
      %p40 = scmp.eq.s32.totalorder %s21, 0
      %p41 = por %p39, %p40
      %p42 = scmp.ne.s32.totalorder %s31, %s34
      %p43 = scmp.eq.s32.totalorder %s26, 1
      %p44 = por %p42, %p43
      %p45 = scmp.ne.s32.totalorder %s34, %s35
      %p46 = scmp.eq.s32.totalorder %s26, 0
      %p47 = por %p45, %p46
      %p48 = scmp.ne.s32.totalorder %s34, %s35
      %p49 = scmp.eq.s32.totalorder %s27, 1
      %p50 = por %p48, %p49
      %p52 = scmp.ne.s32.totalorder %s35, %s51
      %p53 = scmp.eq.s32.totalorder %s27, 0
      %p54 = por %p52, %p53
      %s56 = sadd.s32 %s55, 1
      %p59 = scmp.eq.s32.totalorder %s21, 1
      %p60 = scmp.ne.s32.totalorder %s55, %s57
      %p61 = scmp.eq.s32.totalorder %s21, 0
      %p62 = por %p60, %p61
      %p63 = scmp.ne.s32.totalorder %s55, %s57
      %p64 = scmp.eq.s32.totalorder %s26, 1
      %p65 = por %p63, %p64
      %p66 = scmp.ne.s32.totalorder %s57, %s58
      %p67 = scmp.eq.s32.totalorder %s26, 0
      %p68 = por %p66, %p67
      %p69 = scmp.ne.s32.totalorder %s57, %s58
      %p70 = scmp.eq.s32.totalorder %s27, 1
      %p71 = por %p69, %p70
      %p73 = scmp.ne.s32.totalorder %s58, %s72
      %p74 = scmp.eq.s32.totalorder %s27, 0
      %p75 = por %p73, %p74
      %s77 = sadd.s32 %s76, 1
      %p80 = scmp.eq.s32.totalorder %s21, 1
      %p81 = scmp.ne.s32.totalorder %s76, %s78
      %p82 = scmp.eq.s32.totalorder %s21, 0
      %p83 = por %p81, %p82
      %p84 = scmp.ne.s32.totalorder %s76, %s78
      %p85 = scmp.eq.s32.totalorder %s26, 1
      %p86 = por %p84, %p85
      %p87 = scmp.ne.s32.totalorder %s78, %s79
      %p88 = scmp.eq.s32.totalorder %s26, 0
      %p89 = por %p87, %p88
      %p90 = scmp.ne.s32.totalorder %s78, %s79
      %p91 = scmp.eq.s32.totalorder %s27, 1
      %p92 = por %p90, %p91
      %p94 = scmp.ne.s32.totalorder %s79, %s93
      %p95 = scmp.eq.s32.totalorder %s27, 0
      %p96 = por %p94, %p95
      %s97 = ssub.s32 %s21, %s28
      %p98 = scmp.eq.s32.totalorder %s97, 0
      %s100 = sadd.s32 %s99, 1
      %s101 = scalar_select %p98, %s99, %s100
      %p104 = pneg %p98
      %p105 = scmp.eq.s32.totalorder %s21, 1
      %p106 = por %p104, %p105
      %p107 = scmp.ne.s32.totalorder %s99, %s102
      %p108 = scmp.eq.s32.totalorder %s21, 0
      %p109 = por %p107, %p108
      %p110 = scmp.ne.s32.totalorder %s99, %s102
      %p111 = scmp.eq.s32.totalorder %s26, 1
      %p112 = por %p110, %p111
      %p113 = scmp.ne.s32.totalorder %s102, %s103
      %p114 = scmp.eq.s32.totalorder %s26, 0
      %p115 = por %p113, %p114
      %p116 = scmp.ne.s32.totalorder %s102, %s103
      %p117 = scmp.eq.s32.totalorder %s27, 1
      %p118 = por %p116, %p117
      %p120 = scmp.ne.s32.totalorder %s103, %s119
      %p121 = scmp.eq.s32.totalorder %s27, 0
      %p122 = por %p120, %p121
      %s123 = ssub.s32 %s21, %s28
      %p124 = scmp.eq.s32.totalorder %s123, 0
      %s126 = sadd.s32 %s125, 1
      %s127 = scalar_select %p124, %s125, %s126
      %p130 = pneg %p124
      %p131 = scmp.eq.s32.totalorder %s21, 1
      %p132 = por %p130, %p131
      %p133 = scmp.ne.s32.totalorder %s125, %s128
      %p134 = scmp.eq.s32.totalorder %s21, 0
      %p135 = por %p133, %p134
      %p136 = scmp.ne.s32.totalorder %s125, %s128
      %p137 = scmp.eq.s32.totalorder %s26, 1
      %p138 = por %p136, %p137
      %p139 = scmp.ne.s32.totalorder %s128, %s129
      %p140 = scmp.eq.s32.totalorder %s26, 0
      %p141 = por %p139, %p140
      %p142 = scmp.ne.s32.totalorder %s128, %s129
      %p143 = scmp.eq.s32.totalorder %s27, 1
      %p144 = por %p142, %p143
      %p146 = scmp.ne.s32.totalorder %s129, %s145
      %p147 = scmp.eq.s32.totalorder %s27, 0
      %p148 = por %p146, %p147
      %p149 = scmp.le.s32.totalorder 1, %s21
      %p150 = scmp.lt.s32.totalorder %s21, 3
      %p151 = pnand %p149, %p150
      %p152 = pneg %p151
      // Predicated region
      $region9: #{double_conv.4} parent=5 // pred_check
        _
      $region10: #{double_conv.4} parent=5 // pred_check_branch
        %154 = sbr.rel (%p151) target = $region12
      $region11: #{double_conv.4} parent=5 // pred_region
        %s155 = ssub.s32 %s21, 1
        // Predicated region
        $region13: #{double_conv.4} parent=11 // pred_check
          %p156 = pneg %p68
        $region14: #{double_conv.4} parent=11 // pred_check_branch
          %158 = sbr.rel (%p156) target = $region16
        $region15: #{double_conv.4} parent=11 // pred_region
          %s160 = ssub.s32 576, 576
          %161 = vsyncadd [#allocation6], %s160
          %s162 = sshll.u32 [#allocation5], 4
          %s163 = int_to_ptr.vmem [resolvable:$true] %s162
          %168 = dma.hbm_to_vmem [thread:$0]  %s1, 576, %s163, [#allocation6], 64, 64, 4
        $region16: #{double_conv.4} parent=11 // pred_fallthru
          _
        // Predicated region
        $region17: #{double_conv.4} parent=11 // pred_check
          %p169 = pneg %p89
        $region18: #{double_conv.4} parent=11 // pred_check_branch
          %171 = sbr.rel (%p169) target = $region20
        $region19: #{double_conv.4} parent=11 // pred_region
          %s173 = ssub.s32 4608, 4608
          %174 = vsyncadd [#allocation6], %s173
          %s175 = sshll.u32 [#allocation7], 4
          %s176 = int_to_ptr.vmem [resolvable:$true] %s175
          %181 = dma.hbm_to_vmem [thread:$0]  %s2, 4608, %s176, [#allocation6], 128, 128, 8
        $region20: #{double_conv.4} parent=11 // pred_fallthru
          _
      $region12: #{double_conv.4} parent=5 // pred_fallthru
        _
      %p182 = scmp.lt.s32.totalorder %s21, 2
      // Predicated region
      $region21: #{double_conv.4} parent=5 // pred_check
        %p183 = pneg %p182
      $region22: #{double_conv.4} parent=5 // pred_check_branch
        %185 = sbr.rel (%p183) target = $region24
      $region23: #{double_conv.4} parent=5 // pred_region
        // Predicated region
        $region25: #{double_conv.4} parent=23 // pred_check
          %p186 = pneg %p41
        $region26: #{double_conv.4} parent=23 // pred_check_branch
          %188 = sbr.rel (%p186) target = $region28
        $region27: #{double_conv.4} parent=23 // pred_region
          %s189 = sand.u32 %s31, 1
          %s190 = scalar_lea.sflag [#allocation3], %s189
          %s191 = sand.u32 %s31, 1
          %s192 = smul.addr %s191, 164
          %s193 = scalar_lea.vmem [#allocation2], %s192
          %s195 = ssub.s32 2624, 2624
          %196 = vsyncadd %s190, %s195
          %s197 = smul.addr %s21, 41
          %s198 = smul.addr %s197, 64
          %s199 = scalar_lea.hbm %s0, %s198
          %s200 = sshll.u32 %s193, 4
          %s201 = int_to_ptr.vmem [resolvable:$true] %s200
          %206 = dma.hbm_to_vmem [thread:$0]  %s199, 2624, %s201, %s190, 64, 64, 4
        $region28: #{double_conv.4} parent=23 // pred_fallthru
          _
      $region24: #{double_conv.4} parent=5 // pred_fallthru
        _
      %p207 = scmp.le.s32.totalorder 1, %s21
      %p208 = scmp.lt.s32.totalorder %s21, 3
      %p209 = pnand %p207, %p208
      %p210 = pneg %p209
      // Predicated region
      $region29: #{double_conv.4} parent=5 // pred_check
        _
      $region30: #{double_conv.4} parent=5 // pred_check_branch
        %212 = sbr.rel (%p209) target = $region32
      $region31: #{double_conv.4} parent=5 // pred_region
        %s213 = ssub.s32 %s21, 1
        %s214 = sand.u32 %s34, 1
        %s215 = scalar_lea.sflag [#allocation3], %s214
        %s216 = sand.u32 %s34, 1
        %s217 = smul.addr %s216, 164
        %s218 = scalar_lea.vmem [#allocation2], %s217
        // Predicated region
        $region33: #{double_conv.4} parent=31 // pred_check
          %p219 = pneg %p47
        $region34: #{double_conv.4} parent=31 // pred_check_branch
          %221 = sbr.rel (%p219) target = $region36
        $region35: #{double_conv.4} parent=31 // pred_region
          %222 = dma.done %s215, 2624
        $region36: #{double_conv.4} parent=31 // pred_fallthru
          _
        // Predicated region
        $region37: #{double_conv.4} parent=31 // pred_check
          %p223 = pneg %p68
        $region38: #{double_conv.4} parent=31 // pred_check_branch
          %225 = sbr.rel (%p223) target = $region40
        $region39: #{double_conv.4} parent=31 // pred_region
          %226 = dma.done [#allocation6], 576
        $region40: #{double_conv.4} parent=31 // pred_fallthru
          _
        // Predicated region
        $region41: #{double_conv.4} parent=31 // pred_check
          %p227 = pneg %p89
        $region42: #{double_conv.4} parent=31 // pred_check_branch
          %229 = sbr.rel (%p227) target = $region44
        $region43: #{double_conv.4} parent=31 // pred_region
          %230 = dma.done [#allocation6], 4608
        $region44: #{double_conv.4} parent=31 // pred_fallthru
          _
        %s231 = sand.u32 %s34, 1
        %s232 = scalar_lea.sflag [#allocation3], %s231
        %s233 = sand.u32 %s34, 1
        %s234 = smul.addr %s233, 164
        %s235 = scalar_lea.vmem [#allocation2], %s234
        %p236 = pneg %p47
        %p237 = pneg %p44
        %p238 = pneg %p68
        %p239 = pneg %p65
        %p240 = pneg %p89
        %p241 = pneg %p86
        %p242 = pneg %p115
        %p243 = pneg %p112
        %s244 = sand.u32 %s102, 1
        %s245 = scalar_lea.sflag [#allocation4], %s244
        %s246 = sand.u32 %s102, 1
        %s247 = smul.addr %s246, 144
        %s248 = scalar_lea.vmem [#allocation8], %s247
        %p249 = pneg %p141
        %p250 = pneg %p138
        %s251 = sand.u32 %s128, 1
        %s252 = scalar_lea.sflag [#allocation10], %s251
        %s253 = sand.u32 %s128, 1
        %s254 = smul.addr %s253, 2
        %s255 = scalar_lea.vmem [#allocation9], %s254
        %v257 = vld [vmem:[%s218] sm:$0xf]
        %v258 = vld [vmem:[%s218 + $0x4] sm:$0xf]
        %v259 = vld [vmem:[%s218 + $0x8] sm:$0xf]
        %v260 = vld [vmem:[%s218 + $0xc] sm:$0xf]
        %v261 = vld [vmem:[%s218 + $0x10] sm:$0xf]
        %v262 = vld [vmem:[%s218 + $0x14] sm:$0xf]
        %v263 = vld [vmem:[%s218 + $0x18] sm:$0xf]
        %v264 = vld [vmem:[%s218 + $0x1c] sm:$0xf]
        %v265 = vld [vmem:[%s218 + $0x20] sm:$0xf]
        %v266 = vld [vmem:[%s218 + $0x24] sm:$0xf]
        %v267 = vld [vmem:[%s218 + $0x28] sm:$0xf]
        %v268 = vld [vmem:[%s218 + $0x2c] sm:$0xf]
        %v269 = vld [vmem:[%s218 + $0x30] sm:$0xf]
        %v270 = vld [vmem:[%s218 + $0x34] sm:$0xf]
        %v271 = vld [vmem:[%s218 + $0x38] sm:$0xf]
        %v272 = vld [vmem:[%s218 + $0x3c] sm:$0xf]
        %v273 = vld [vmem:[%s218 + $0x40] sm:$0xf]
        %v274 = vld [vmem:[%s218 + $0x44] sm:$0xf]
        %v275 = vld [vmem:[%s218 + $0x48] sm:$0xf]
        %v276 = vld [vmem:[%s218 + $0x4c] sm:$0xf]
        %v277 = vld [vmem:[%s218 + $0x50] sm:$0xf]
        %v278 = vld [vmem:[%s218 + $0x54] sm:$0xf]
        %v279 = vld [vmem:[%s218 + $0x58] sm:$0xf]
        %v280 = vld [vmem:[%s218 + $0x5c] sm:$0xf]
        %v281 = vld [vmem:[%s218 + $0x60] sm:$0xf]
        %v282 = vld [vmem:[%s218 + $0x64] sm:$0xf]
        %v283 = vld [vmem:[%s218 + $0x68] sm:$0xf]
        %v284 = vld [vmem:[%s218 + $0x6c] sm:$0xf]
        %v285 = vld [vmem:[%s218 + $0x70] sm:$0xf]
        %v286 = vld [vmem:[%s218 + $0x74] sm:$0xf]
        %v287 = vld [vmem:[%s218 + $0x78] sm:$0xf]
        %v288 = vld [vmem:[%s218 + $0x7c] sm:$0xf]
        %v289 = vld [vmem:[%s218 + $0x80] sm:$0xf]
        %v290 = vld [vmem:[%s218 + $0x84] sm:$0xf]
        %v291 = vld [vmem:[%s218 + $0x88] sm:$0xf]
        %v292 = vld [vmem:[%s218 + $0x8c] sm:$0xf]
        %v293 = vld [vmem:[%s218 + $0x90] sm:$0xf]
        %v294 = vld [vmem:[%s218 + $0x94] sm:$0xf]
        %v295 = vld [vmem:[%s218 + $0x98] sm:$0xf]
        %v296 = vld [vmem:[%s218 + $0x9c] sm:$0xf]
        %v297 = vld [vmem:[%s218 + $0xa0] sm:$0xf]
        %v298 = vld [vmem:[#allocation5] sm:$0xf]
        %s299 = scalar_lea.vmem [#allocation5], 4
        %v300 = vld [vmem:[%s299] sm:$0xf]
        %v338 = vunpack.c.l.b16 %v257
        %v339 = vunpack.c.l.b16 %v258
        %v340 = vunpack.c.l.b16 %v259
        %v341 = vunpack.c.l.b16 %v260
        %v342 = vunpack.c.l.b16 %v261
        %v343 = vunpack.c.l.b16 %v262
        %v344 = vunpack.c.l.b16 %v263
        %v345 = vunpack.c.l.b16 %v264
        %v346 = vunpack.c.l.b16 %v265
        %v347 = vunpack.c.l.b16 %v266
        %v348 = vunpack.c.l.b16 %v267
        %v349 = vunpack.c.l.b16 %v268
        %v350 = vunpack.c.l.b16 %v269
        %v351 = vunpack.c.l.b16 %v270
        %v352 = vunpack.c.l.b16 %v271
        %v353 = vunpack.c.l.b16 %v272
        %v354 = vunpack.c.l.b16 %v273
        %v355 = vunpack.c.l.b16 %v274
        %v356 = vunpack.c.l.b16 %v275
        %v357 = vunpack.c.l.b16 %v276
        %v358 = vunpack.c.l.b16 %v277
        %v359 = vunpack.c.l.b16 %v278
        %v360 = vunpack.c.l.b16 %v279
        %v361 = vunpack.c.l.b16 %v280
        %v362 = vunpack.c.l.b16 %v281
        %v363 = vunpack.c.l.b16 %v282
        %v364 = vunpack.c.l.b16 %v283
        %v365 = vunpack.c.l.b16 %v284
        %v366 = vunpack.c.l.b16 %v285
        %v367 = vunpack.c.l.b16 %v286
        %v368 = vunpack.c.l.b16 %v287
        %v369 = vunpack.c.l.b16 %v288
        %v370 = vunpack.c.l.b16 %v289
        %v371 = vunpack.c.l.b16 %v290
        %v372 = vunpack.c.l.b16 %v291
        %v373 = vunpack.c.l.b16 %v292
        %v374 = vunpack.c.l.b16 %v293
        %v375 = vpack.c.b16 %v339, %v338
        %v376 = vpack.c.b16 %v341, %v340
        %v377 = vpack.c.b16 %v343, %v342
        %v378 = vpack.c.b16 %v345, %v344
        %v379 = vpack.c.b16 %v347, %v346
        %v380 = vpack.c.b16 %v349, %v348
        %v381 = vpack.c.b16 %v351, %v350
        %v382 = vpack.c.b16 %v353, %v352
        %v383 = vpack.c.b16 %v355, %v354
        %v384 = vpack.c.b16 %v357, %v356
        %v385 = vpack.c.b16 %v359, %v358
        %v386 = vpack.c.b16 %v361, %v360
        %v387 = vpack.c.b16 %v363, %v362
        %v388 = vpack.c.b16 %v365, %v364
        %v389 = vpack.c.b16 %v367, %v366
        %v390 = vpack.c.b16 %v369, %v368
        %v391 = vpack.c.b16 %v371, %v370
        %v392 = vpack.c.b16 %v373, %v372
        %v393 = vpack.c.b16 %v374, %v374
        %vm394 = vsmask.f32 7424
        %v396 = vshrl.u32 %v375, 16
        %v398 = vshll.u32 %v375, 16
        %v400 = vrot.slane %v398, 1
        %v401 = vor.u32 %v396, %v400
        %v403 = vshll.u32 %v376, 16
        %v405 = vrot.slane %v403, 1
        %v406 = vsel %vm394, %v401, %v405
        %v407 = vshrl.u32 %v376, 16
        %v409 = vor.u32 %v407, %v405
        %v411 = vshll.u32 %v377, 16
        %v413 = vrot.slane %v411, 1
        %v414 = vsel %vm394, %v409, %v413
        %v415 = vshrl.u32 %v377, 16
        %v417 = vor.u32 %v415, %v413
        %v419 = vshll.u32 %v378, 16
        %v421 = vrot.slane %v419, 1
        %v422 = vsel %vm394, %v417, %v421
        %v423 = vshrl.u32 %v378, 16
        %v425 = vor.u32 %v423, %v421
        %v427 = vshll.u32 %v379, 16
        %v429 = vrot.slane %v427, 1
        %v430 = vsel %vm394, %v425, %v429
        %v431 = vshrl.u32 %v379, 16
        %v433 = vor.u32 %v431, %v429
        %v435 = vshll.u32 %v380, 16
        %v437 = vrot.slane %v435, 1
        %v438 = vsel %vm394, %v433, %v437
        %v439 = vshrl.u32 %v380, 16
        %v441 = vor.u32 %v439, %v437
        %v443 = vshll.u32 %v381, 16
        %v445 = vrot.slane %v443, 1
        %v446 = vsel %vm394, %v441, %v445
        %v447 = vshrl.u32 %v381, 16
        %v449 = vor.u32 %v447, %v445
        %v451 = vshll.u32 %v382, 16
        %v453 = vrot.slane %v451, 1
        %v454 = vsel %vm394, %v449, %v453
        %v455 = vshrl.u32 %v382, 16
        %v457 = vor.u32 %v455, %v453
        %v459 = vshll.u32 %v383, 16
        %v461 = vrot.slane %v459, 1
        %v462 = vsel %vm394, %v457, %v461
        %v463 = vshrl.u32 %v383, 16
        %v465 = vor.u32 %v463, %v461
        %v467 = vshll.u32 %v384, 16
        %v469 = vrot.slane %v467, 1
        %v470 = vsel %vm394, %v465, %v469
        %v471 = vshrl.u32 %v384, 16
        %v473 = vor.u32 %v471, %v469
        %v475 = vshll.u32 %v385, 16
        %v477 = vrot.slane %v475, 1
        %v478 = vsel %vm394, %v473, %v477
        %v479 = vshrl.u32 %v385, 16
        %v481 = vor.u32 %v479, %v477
        %v483 = vshll.u32 %v386, 16
        %v485 = vrot.slane %v483, 1
        %v486 = vsel %vm394, %v481, %v485
        %v487 = vshrl.u32 %v386, 16
        %v489 = vor.u32 %v487, %v485
        %v491 = vshll.u32 %v387, 16
        %v493 = vrot.slane %v491, 1
        %v494 = vsel %vm394, %v489, %v493
        %v495 = vshrl.u32 %v387, 16
        %v497 = vor.u32 %v495, %v493
        %v499 = vshll.u32 %v388, 16
        %v501 = vrot.slane %v499, 1
        %v502 = vsel %vm394, %v497, %v501
        %v503 = vshrl.u32 %v388, 16
        %v505 = vor.u32 %v503, %v501
        %v507 = vshll.u32 %v389, 16
        %v509 = vrot.slane %v507, 1
        %v510 = vsel %vm394, %v505, %v509
        %v511 = vshrl.u32 %v389, 16
        %v513 = vor.u32 %v511, %v509
        %v515 = vshll.u32 %v390, 16
        %v517 = vrot.slane %v515, 1
        %v518 = vsel %vm394, %v513, %v517
        %v519 = vshrl.u32 %v390, 16
        %v521 = vor.u32 %v519, %v517
        %v523 = vshll.u32 %v391, 16
        %v525 = vrot.slane %v523, 1
        %v526 = vsel %vm394, %v521, %v525
        %v527 = vshrl.u32 %v391, 16
        %v529 = vor.u32 %v527, %v525
        %v531 = vshll.u32 %v392, 16
        %v533 = vrot.slane %v531, 1
        %v534 = vsel %vm394, %v529, %v533
        %v535 = vshrl.u32 %v392, 16
        %v537 = vor.u32 %v535, %v533
        %v539 = vshll.u32 %v393, 16
        %v541 = vrot.slane %v539, 1
        %v542 = vsel %vm394, %v537, %v541
        %vm543 = vcmask 64512
        %v545 = vsel %vm543, %v406, 0
        %v548 = vsel %vm543, %v414, 0
        %v551 = vsel %vm543, %v422, 0
        %v554 = vsel %vm543, %v430, 0
        %v557 = vsel %vm543, %v438, 0
        %v560 = vsel %vm543, %v446, 0
        %v563 = vsel %vm543, %v454, 0
        %v566 = vsel %vm543, %v462, 0
        %v569 = vsel %vm543, %v470, 0
        %v572 = vsel %vm543, %v478, 0
        %v575 = vsel %vm543, %v486, 0
        %v578 = vsel %vm543, %v494, 0
        %v581 = vsel %vm543, %v502, 0
        %v584 = vsel %vm543, %v510, 0
        %v587 = vsel %vm543, %v518, 0
        %v590 = vsel %vm543, %v526, 0
        %v593 = vsel %vm543, %v534, 0
        %v596 = vsel %vm543, %v542, 0
        %vm598 = vcmask 1043456
        %v600 = vsel %vm598, %v300, 0
        %602 = vmatprep.subr.bf16.mxu0 0
        %603 = vmatpush1.bf16.msra.mxu0 %v600
        %604 = vmatprep.subr.bf16.mxu0 0
        %605 = vmatpush1.bf16.msra.mxu0 0
        %606 = vmatprep.subr.bf16.mxu0 0
        %607 = vmatpush1.bf16.msra.mxu0 0
        %608 = vmatprep.subr.bf16.mxu0 0
        %609 = vmatpush1.bf16.msra.mxu0 0
        %610 = vmatprep.subr.bf16.mxu0 0
        %611 = vmatpush1.bf16.msra.mxu0 0
        %612 = vmatprep.subr.bf16.mxu0 0
        %613 = vmatpush1.bf16.msra.mxu0 0
        %614 = vmatprep.subr.bf16.mxu0 0
        %615 = vmatpush1.bf16.msra.mxu0 0
        %616 = vmatprep.subr.bf16.mxu0 0
        %617 = vmatpush1.bf16.msra.mxu0 0
        %618 = vmatprep.subr.bf16.mxu0 0
        %619 = vmatpush1.bf16.msra.mxu0 0
        %620 = vmatprep.subr.bf16.mxu0 0
        %621 = vmatpush1.bf16.msra.mxu0 0
        %622 = vmatprep.subr.bf16.mxu0 0
        %623 = vmatpush1.bf16.msra.mxu0 0
        %624 = vmatprep.subr.bf16.mxu0 0
        %625 = vmatpush1.bf16.msra.mxu0 0
        %626 = vmatprep.subr.bf16.mxu0 0
        %627 = vmatpush1.bf16.msra.mxu0 0
        %628 = vmatprep.subr.bf16.mxu0 0
        %629 = vmatpush1.bf16.msra.mxu0 0
        %630 = vmatprep.subr.bf16.mxu0 0
        %631 = vmatpush1.bf16.msra.mxu0 0
        %632 = vmatprep.subr.bf16.mxu0 0
        %633 = vmatpush1.bf16.msra.mxu0 0
        %634 = vmatprep.mubr.bf16.mxu0 0
        %635 = vmatmul.mubr.bf16.gmra.mrb[0].mxu0 %v545
        %v636 = vpop.f32.mrb[0].mxu0
        %v637 = vadd.f32 0.0, %v636
        %v638 = vpop.f32.mrb[0].mxu0
        %v639 = vpop.f32.mrb[0].mxu0
        %v640 = vadd.f32 0.0, %v639
        %v641 = vpop.f32.mrb[0].mxu0
        %642 = vmatprep.mubr.bf16.mxu0 0
        %643 = vmatmul.mubr.bf16.gmra.mrb[0].mxu0 %v548
        %v644 = vpop.f32.mrb[0].mxu0
        %v645 = vadd.f32 0.0, %v644
        %v646 = vpop.f32.mrb[0].mxu0
        %v647 = vpop.f32.mrb[0].mxu0
        %v648 = vadd.f32 0.0, %v647
        %v649 = vpop.f32.mrb[0].mxu0
        %650 = vmatprep.mubr.bf16.mxu0 0
        %651 = vmatmul.mubr.bf16.gmra.mrb[0].mxu0 %v551
        %v652 = vpop.f32.mrb[0].mxu0
        %v653 = vadd.f32 0.0, %v652
        %v654 = vpop.f32.mrb[0].mxu0
        %v655 = vpop.f32.mrb[0].mxu0
        %v656 = vadd.f32 0.0, %v655
        %v657 = vpop.f32.mrb[0].mxu0
        %658 = vmatprep.mubr.bf16.mxu0 0
        %659 = vmatmul.mubr.bf16.gmra.mrb[0].mxu0 %v554
        %v660 = vpop.f32.mrb[0].mxu0
        %v661 = vadd.f32 0.0, %v660
        %v662 = vpop.f32.mrb[0].mxu0
        %v663 = vpop.f32.mrb[0].mxu0
        %v664 = vadd.f32 0.0, %v663
        %v665 = vpop.f32.mrb[0].mxu0
        %666 = vmatprep.mubr.bf16.mxu0 0
        %667 = vmatmul.mubr.bf16.gmra.mrb[0].mxu0 %v557
        %v668 = vpop.f32.mrb[0].mxu0
        %v669 = vadd.f32 0.0, %v668
        %v670 = vpop.f32.mrb[0].mxu0
        %v671 = vpop.f32.mrb[0].mxu0
        %v672 = vadd.f32 0.0, %v671
        %v673 = vpop.f32.mrb[0].mxu0
        %674 = vmatprep.mubr.bf16.mxu0 0
        %675 = vmatmul.mubr.bf16.gmra.mrb[0].mxu0 %v560
        %v676 = vpop.f32.mrb[0].mxu0
        %v677 = vadd.f32 0.0, %v676
        %v678 = vpop.f32.mrb[0].mxu0
        %v679 = vpop.f32.mrb[0].mxu0
        %v680 = vadd.f32 0.0, %v679
        %v681 = vpop.f32.mrb[0].mxu0
        %682 = vmatprep.mubr.bf16.mxu0 0
        %683 = vmatmul.mubr.bf16.gmra.mrb[0].mxu0 %v563
        %v684 = vpop.f32.mrb[0].mxu0
        %v685 = vadd.f32 0.0, %v684
        %v686 = vpop.f32.mrb[0].mxu0
        %v687 = vpop.f32.mrb[0].mxu0
        %v688 = vadd.f32 0.0, %v687
        %v689 = vpop.f32.mrb[0].mxu0
        %690 = vmatprep.mubr.bf16.mxu0 0
        %691 = vmatmul.mubr.bf16.gmra.mrb[0].mxu0 %v566
        %v692 = vpop.f32.mrb[0].mxu0
        %v693 = vadd.f32 0.0, %v692
        %v694 = vpop.f32.mrb[0].mxu0
        %v695 = vpop.f32.mrb[0].mxu0
        %v696 = vadd.f32 0.0, %v695
        %v697 = vpop.f32.mrb[0].mxu0
        %698 = vmatprep.mubr.bf16.mxu0 0
        %699 = vmatmul.mubr.bf16.gmra.mrb[0].mxu0 %v569
        %v700 = vpop.f32.mrb[0].mxu0
        %v701 = vadd.f32 0.0, %v700
        %v702 = vpop.f32.mrb[0].mxu0
        %v703 = vpop.f32.mrb[0].mxu0
        %v704 = vadd.f32 0.0, %v703
        %v705 = vpop.f32.mrb[0].mxu0
        %706 = vmatprep.mubr.bf16.mxu0 0
        %707 = vmatmul.mubr.bf16.gmra.mrb[0].mxu0 %v572
        %v708 = vpop.f32.mrb[0].mxu0
        %v709 = vadd.f32 0.0, %v708
        %v710 = vpop.f32.mrb[0].mxu0
        %v711 = vpop.f32.mrb[0].mxu0
        %v712 = vadd.f32 0.0, %v711
        %v713 = vpop.f32.mrb[0].mxu0
        %714 = vmatprep.mubr.bf16.mxu0 0
        %715 = vmatmul.mubr.bf16.gmra.mrb[0].mxu0 %v575
        %v716 = vpop.f32.mrb[0].mxu0
        %v717 = vadd.f32 0.0, %v716
        %v718 = vpop.f32.mrb[0].mxu0
        %v719 = vpop.f32.mrb[0].mxu0
        %v720 = vadd.f32 0.0, %v719
        %v721 = vpop.f32.mrb[0].mxu0
        %722 = vmatprep.mubr.bf16.mxu0 0
        %723 = vmatmul.mubr.bf16.gmra.mrb[0].mxu0 %v578
        %v724 = vpop.f32.mrb[0].mxu0
        %v725 = vadd.f32 0.0, %v724
        %v726 = vpop.f32.mrb[0].mxu0
        %v727 = vpop.f32.mrb[0].mxu0
        %v728 = vadd.f32 0.0, %v727
        %v729 = vpop.f32.mrb[0].mxu0
        %730 = vmatprep.mubr.bf16.mxu0 0
        %731 = vmatmul.mubr.bf16.gmra.mrb[0].mxu0 %v581
        %v732 = vpop.f32.mrb[0].mxu0
        %v733 = vadd.f32 0.0, %v732
        %v734 = vpop.f32.mrb[0].mxu0
        %v735 = vpop.f32.mrb[0].mxu0
        %v736 = vadd.f32 0.0, %v735
        %v737 = vpop.f32.mrb[0].mxu0
        %738 = vmatprep.mubr.bf16.mxu0 0
        %739 = vmatmul.mubr.bf16.gmra.mrb[0].mxu0 %v584
        %v740 = vpop.f32.mrb[0].mxu0
        %v741 = vadd.f32 0.0, %v740
        %v742 = vpop.f32.mrb[0].mxu0
        %v743 = vpop.f32.mrb[0].mxu0
        %v744 = vadd.f32 0.0, %v743
        %v745 = vpop.f32.mrb[0].mxu0
        %746 = vmatprep.mubr.bf16.mxu0 0
        %747 = vmatmul.mubr.bf16.gmra.mrb[0].mxu0 %v587
        %v748 = vpop.f32.mrb[0].mxu0
        %v749 = vadd.f32 0.0, %v748
        %v750 = vpop.f32.mrb[0].mxu0
        %v751 = vpop.f32.mrb[0].mxu0
        %v752 = vadd.f32 0.0, %v751
        %v753 = vpop.f32.mrb[0].mxu0
        %754 = vmatprep.mubr.bf16.mxu0 0
        %755 = vmatmul.mubr.bf16.gmra.mrb[0].mxu0 %v590
        %v756 = vpop.f32.mrb[0].mxu0
        %v757 = vadd.f32 0.0, %v756
        %v758 = vpop.f32.mrb[0].mxu0
        %v759 = vpop.f32.mrb[0].mxu0
        %v760 = vadd.f32 0.0, %v759
        %v761 = vpop.f32.mrb[0].mxu0
        %762 = vmatprep.mubr.bf16.mxu0 0
        %763 = vmatmul.mubr.bf16.gmra.mrb[0].mxu0 %v593
        %v764 = vpop.f32.mrb[0].mxu0
        %v765 = vadd.f32 0.0, %v764
        %v766 = vpop.f32.mrb[0].mxu0
        %v767 = vpop.f32.mrb[0].mxu0
        %v768 = vadd.f32 0.0, %v767
        %v769 = vpop.f32.mrb[0].mxu0
        %770 = vmatprep.mubr.bf16.mxu0 0
        %771 = vmatmul.mubr.bf16.gmra.mrb[0].mxu0 %v596
        %v772 = vpop.f32.mrb[0].mxu0
        %v773 = vadd.f32 0.0, %v772
        %v774 = vpop.f32.mrb[0].mxu0
        %v775 = vpop.f32.mrb[0].mxu0
        %v776 = vadd.f32 0.0, %v775
        %v777 = vpop.f32.mrb[0].mxu0
        %778 = vdwg.mxu0
        %v779 = vsel %vm543, %v375, 0
        %v781 = vsel %vm543, %v376, 0
        %v783 = vsel %vm543, %v377, 0
        %v785 = vsel %vm543, %v378, 0
        %v787 = vsel %vm543, %v379, 0
        %v789 = vsel %vm543, %v380, 0
        %v791 = vsel %vm543, %v381, 0
        %v793 = vsel %vm543, %v382, 0
        %v795 = vsel %vm543, %v383, 0
        %v797 = vsel %vm543, %v384, 0
        %v799 = vsel %vm543, %v385, 0
        %v801 = vsel %vm543, %v386, 0
        %v803 = vsel %vm543, %v387, 0
        %v805 = vsel %vm543, %v388, 0
        %v807 = vsel %vm543, %v389, 0
        %v809 = vsel %vm543, %v390, 0
        %v811 = vsel %vm543, %v391, 0
        %v813 = vsel %vm543, %v392, 0
        %v816 = vsel %vm598, %v298, 0
        %818 = vmatprep.subr.bf16.mxu0 0
        %819 = vmatpush1.bf16.msra.mxu0 %v816
        %820 = vmatprep.subr.bf16.mxu0 0
        %821 = vmatpush1.bf16.msra.mxu0 0
        %822 = vmatprep.subr.bf16.mxu0 0
        %823 = vmatpush1.bf16.msra.mxu0 0
        %824 = vmatprep.subr.bf16.mxu0 0
        %825 = vmatpush1.bf16.msra.mxu0 0
        %826 = vmatprep.subr.bf16.mxu0 0
        %827 = vmatpush1.bf16.msra.mxu0 0
        %828 = vmatprep.subr.bf16.mxu0 0
        %829 = vmatpush1.bf16.msra.mxu0 0
        %830 = vmatprep.subr.bf16.mxu0 0
        %831 = vmatpush1.bf16.msra.mxu0 0
        %832 = vmatprep.subr.bf16.mxu0 0
        %833 = vmatpush1.bf16.msra.mxu0 0
        %834 = vmatprep.subr.bf16.mxu0 0
        %835 = vmatpush1.bf16.msra.mxu0 0
        %836 = vmatprep.subr.bf16.mxu0 0
        %837 = vmatpush1.bf16.msra.mxu0 0
        %838 = vmatprep.subr.bf16.mxu0 0
        %839 = vmatpush1.bf16.msra.mxu0 0
        %840 = vmatprep.subr.bf16.mxu0 0
        %841 = vmatpush1.bf16.msra.mxu0 0
        %842 = vmatprep.subr.bf16.mxu0 0
        %843 = vmatpush1.bf16.msra.mxu0 0
        %844 = vmatprep.subr.bf16.mxu0 0
        %845 = vmatpush1.bf16.msra.mxu0 0
        %846 = vmatprep.subr.bf16.mxu0 0
        %847 = vmatpush1.bf16.msra.mxu0 0
        %848 = vmatprep.subr.bf16.mxu0 0
        %849 = vmatpush1.bf16.msra.mxu0 0
        %850 = vmatprep.mubr.bf16.mxu0 0
        %851 = vmatmul.mubr.bf16.gmra.mrb[0].mxu0 %v779
        %v852 = vpop.f32.mrb[0].mxu0
        %v853 = vadd.f32 %v637, %v852
        %v854 = vpop.f32.mrb[0].mxu0
        %v855 = vpop.f32.mrb[0].mxu0
        %v856 = vadd.f32 %v640, %v855
        %v857 = vpop.f32.mrb[0].mxu0
        %858 = vmatprep.mubr.bf16.mxu0 0
        %859 = vmatmul.mubr.bf16.gmra.mrb[0].mxu0 %v781
        %v860 = vpop.f32.mrb[0].mxu0
        %v861 = vadd.f32 %v645, %v860
        %v862 = vpop.f32.mrb[0].mxu0
        %v863 = vpop.f32.mrb[0].mxu0
        %v864 = vadd.f32 %v648, %v863
        %v865 = vpop.f32.mrb[0].mxu0
        %866 = vmatprep.mubr.bf16.mxu0 0
        %867 = vmatmul.mubr.bf16.gmra.mrb[0].mxu0 %v783
        %v868 = vpop.f32.mrb[0].mxu0
        %v869 = vadd.f32 %v653, %v868
        %v870 = vpop.f32.mrb[0].mxu0
        %v871 = vpop.f32.mrb[0].mxu0
        %v872 = vadd.f32 %v656, %v871
        %v873 = vpop.f32.mrb[0].mxu0
        %874 = vmatprep.mubr.bf16.mxu0 0
        %875 = vmatmul.mubr.bf16.gmra.mrb[0].mxu0 %v785
        %v876 = vpop.f32.mrb[0].mxu0
        %v877 = vadd.f32 %v661, %v876
        %v878 = vpop.f32.mrb[0].mxu0
        %v879 = vpop.f32.mrb[0].mxu0
        %v880 = vadd.f32 %v664, %v879
        %v881 = vpop.f32.mrb[0].mxu0
        %882 = vmatprep.mubr.bf16.mxu0 0
        %883 = vmatmul.mubr.bf16.gmra.mrb[0].mxu0 %v787
        %v884 = vpop.f32.mrb[0].mxu0
        %v885 = vadd.f32 %v669, %v884
        %v886 = vpop.f32.mrb[0].mxu0
        %v887 = vpop.f32.mrb[0].mxu0
        %v888 = vadd.f32 %v672, %v887
        %v889 = vpop.f32.mrb[0].mxu0
        %890 = vmatprep.mubr.bf16.mxu0 0
        %891 = vmatmul.mubr.bf16.gmra.mrb[0].mxu0 %v789
        %v892 = vpop.f32.mrb[0].mxu0
        %v893 = vadd.f32 %v677, %v892
        %v894 = vpop.f32.mrb[0].mxu0
        %v895 = vpop.f32.mrb[0].mxu0
        %v896 = vadd.f32 %v680, %v895
        %v897 = vpop.f32.mrb[0].mxu0
        %898 = vmatprep.mubr.bf16.mxu0 0
        %899 = vmatmul.mubr.bf16.gmra.mrb[0].mxu0 %v791
        %v900 = vpop.f32.mrb[0].mxu0
        %v901 = vadd.f32 %v685, %v900
        %v902 = vpop.f32.mrb[0].mxu0
        %v903 = vpop.f32.mrb[0].mxu0
        %v904 = vadd.f32 %v688, %v903
        %v905 = vpop.f32.mrb[0].mxu0
        %906 = vmatprep.mubr.bf16.mxu0 0
        %907 = vmatmul.mubr.bf16.gmra.mrb[0].mxu0 %v793
        %v908 = vpop.f32.mrb[0].mxu0
        %v909 = vadd.f32 %v693, %v908
        %v910 = vpop.f32.mrb[0].mxu0
        %v911 = vpop.f32.mrb[0].mxu0
        %v912 = vadd.f32 %v696, %v911
        %v913 = vpop.f32.mrb[0].mxu0
        %914 = vmatprep.mubr.bf16.mxu0 0
        %915 = vmatmul.mubr.bf16.gmra.mrb[0].mxu0 %v795
        %v916 = vpop.f32.mrb[0].mxu0
        %v917 = vadd.f32 %v701, %v916
        %v918 = vpop.f32.mrb[0].mxu0
        %v919 = vpop.f32.mrb[0].mxu0
        %v920 = vadd.f32 %v704, %v919
        %v921 = vpop.f32.mrb[0].mxu0
        %922 = vmatprep.mubr.bf16.mxu0 0
        %923 = vmatmul.mubr.bf16.gmra.mrb[0].mxu0 %v797
        %v924 = vpop.f32.mrb[0].mxu0
        %v925 = vadd.f32 %v709, %v924
        %v926 = vpop.f32.mrb[0].mxu0
        %v927 = vpop.f32.mrb[0].mxu0
        %v928 = vadd.f32 %v712, %v927
        %v929 = vpop.f32.mrb[0].mxu0
        %930 = vmatprep.mubr.bf16.mxu0 0
        %931 = vmatmul.mubr.bf16.gmra.mrb[0].mxu0 %v799
        %v932 = vpop.f32.mrb[0].mxu0
        %v933 = vadd.f32 %v717, %v932
        %v934 = vpop.f32.mrb[0].mxu0
        %v935 = vpop.f32.mrb[0].mxu0
        %v936 = vadd.f32 %v720, %v935
        %v937 = vpop.f32.mrb[0].mxu0
        %938 = vmatprep.mubr.bf16.mxu0 0
        %939 = vmatmul.mubr.bf16.gmra.mrb[0].mxu0 %v801
        %v940 = vpop.f32.mrb[0].mxu0
        %v941 = vadd.f32 %v725, %v940
        %v942 = vpop.f32.mrb[0].mxu0
        %v943 = vpop.f32.mrb[0].mxu0
        %v944 = vadd.f32 %v728, %v943
        %v945 = vpop.f32.mrb[0].mxu0
        %946 = vmatprep.mubr.bf16.mxu0 0
        %947 = vmatmul.mubr.bf16.gmra.mrb[0].mxu0 %v803
        %v948 = vpop.f32.mrb[0].mxu0
        %v949 = vadd.f32 %v733, %v948
        %v950 = vpop.f32.mrb[0].mxu0
        %v951 = vpop.f32.mrb[0].mxu0
        %v952 = vadd.f32 %v736, %v951
        %v953 = vpop.f32.mrb[0].mxu0
        %954 = vmatprep.mubr.bf16.mxu0 0
        %955 = vmatmul.mubr.bf16.gmra.mrb[0].mxu0 %v805
        %v956 = vpop.f32.mrb[0].mxu0
        %v957 = vadd.f32 %v741, %v956
        %v958 = vpop.f32.mrb[0].mxu0
        %v959 = vpop.f32.mrb[0].mxu0
        %v960 = vadd.f32 %v744, %v959
        %v961 = vpop.f32.mrb[0].mxu0
        %962 = vmatprep.mubr.bf16.mxu0 0
        %963 = vmatmul.mubr.bf16.gmra.mrb[0].mxu0 %v807
        %v964 = vpop.f32.mrb[0].mxu0
        %v965 = vadd.f32 %v749, %v964
        %v966 = vpop.f32.mrb[0].mxu0
        %v967 = vpop.f32.mrb[0].mxu0
        %v968 = vadd.f32 %v752, %v967
        %v969 = vpop.f32.mrb[0].mxu0
        %970 = vmatprep.mubr.bf16.mxu0 0
        %971 = vmatmul.mubr.bf16.gmra.mrb[0].mxu0 %v809
        %v972 = vpop.f32.mrb[0].mxu0
        %v973 = vadd.f32 %v757, %v972
        %v974 = vpop.f32.mrb[0].mxu0
        %v975 = vpop.f32.mrb[0].mxu0
        %v976 = vadd.f32 %v760, %v975
        %v977 = vpop.f32.mrb[0].mxu0
        %978 = vmatprep.mubr.bf16.mxu0 0
        %979 = vmatmul.mubr.bf16.gmra.mrb[0].mxu0 %v811
        %v980 = vpop.f32.mrb[0].mxu0
        %v981 = vadd.f32 %v765, %v980
        %v982 = vpop.f32.mrb[0].mxu0
        %v983 = vpop.f32.mrb[0].mxu0
        %v984 = vadd.f32 %v768, %v983
        %v985 = vpop.f32.mrb[0].mxu0
        %986 = vmatprep.mubr.bf16.mxu0 0
        %987 = vmatmul.mubr.bf16.gmra.mrb[0].mxu0 %v813
        %v988 = vpop.f32.mrb[0].mxu0
        %v989 = vadd.f32 %v773, %v988
        %v990 = vpop.f32.mrb[0].mxu0
        %v991 = vpop.f32.mrb[0].mxu0
        %v992 = vadd.f32 %v776, %v991
        %v993 = vpop.f32.mrb[0].mxu0
        %994 = vdwg.mxu0
        %s995 = scalar_lea.vmem [#allocation5], 8
        %v996 = vld [vmem:[%s995] sm:$0xf]
        %vm997 = vcmask 1046528
        %v998 = vrot.slane %v375, 1
        %v999 = vrot.slane %v376, 1
        %v1000 = vsel %vm997, %v998, %v999
        %v1001 = vrot.slane %v377, 1
        %v1002 = vsel %vm997, %v999, %v1001
        %v1003 = vrot.slane %v378, 1
        %v1004 = vsel %vm997, %v1001, %v1003
        %v1005 = vrot.slane %v379, 1
        %v1006 = vsel %vm997, %v1003, %v1005
        %v1007 = vrot.slane %v380, 1
        %v1008 = vsel %vm997, %v1005, %v1007
        %v1009 = vrot.slane %v381, 1
        %v1010 = vsel %vm997, %v1007, %v1009
        %v1011 = vrot.slane %v382, 1
        %v1012 = vsel %vm997, %v1009, %v1011
        %v1013 = vrot.slane %v383, 1
        %v1014 = vsel %vm997, %v1011, %v1013
        %v1015 = vrot.slane %v384, 1
        %v1016 = vsel %vm997, %v1013, %v1015
        %v1017 = vrot.slane %v385, 1
        %v1018 = vsel %vm997, %v1015, %v1017
        %v1019 = vrot.slane %v386, 1
        %v1020 = vsel %vm997, %v1017, %v1019
        %v1021 = vrot.slane %v387, 1
        %v1022 = vsel %vm997, %v1019, %v1021
        %v1023 = vrot.slane %v388, 1
        %v1024 = vsel %vm997, %v1021, %v1023
        %v1025 = vrot.slane %v389, 1
        %v1026 = vsel %vm997, %v1023, %v1025
        %v1027 = vrot.slane %v390, 1
        %v1028 = vsel %vm997, %v1025, %v1027
        %v1029 = vrot.slane %v391, 1
        %v1030 = vsel %vm997, %v1027, %v1029
        %v1031 = vrot.slane %v392, 1
        %v1032 = vsel %vm997, %v1029, %v1031
        %v1033 = vrot.slane %v393, 1
        %v1034 = vsel %vm997, %v1031, %v1033
        %v1036 = vsel %vm543, %v1000, 0
        %v1039 = vsel %vm543, %v1002, 0
        %v1042 = vsel %vm543, %v1004, 0
        %v1045 = vsel %vm543, %v1006, 0
        %v1048 = vsel %vm543, %v1008, 0
        %v1051 = vsel %vm543, %v1010, 0
        %v1054 = vsel %vm543, %v1012, 0
        %v1057 = vsel %vm543, %v1014, 0
        %v1060 = vsel %vm543, %v1016, 0
        %v1063 = vsel %vm543, %v1018, 0
        %v1066 = vsel %vm543, %v1020, 0
        %v1069 = vsel %vm543, %v1022, 0
        %v1072 = vsel %vm543, %v1024, 0
        %v1075 = vsel %vm543, %v1026, 0
        %v1078 = vsel %vm543, %v1028, 0
        %v1081 = vsel %vm543, %v1030, 0
        %v1084 = vsel %vm543, %v1032, 0
        %v1087 = vsel %vm543, %v1034, 0
        %v1090 = vsel %vm598, %v996, 0
        %1092 = vmatprep.subr.bf16.mxu0 0
        %1093 = vmatpush1.bf16.msra.mxu0 %v1090
        %1094 = vmatprep.subr.bf16.mxu0 0
        %1095 = vmatpush1.bf16.msra.mxu0 0
        %1096 = vmatprep.subr.bf16.mxu0 0
        %1097 = vmatpush1.bf16.msra.mxu0 0
        %1098 = vmatprep.subr.bf16.mxu0 0
        %1099 = vmatpush1.bf16.msra.mxu0 0
        %1100 = vmatprep.subr.bf16.mxu0 0
        %1101 = vmatpush1.bf16.msra.mxu0 0
        %1102 = vmatprep.subr.bf16.mxu0 0
        %1103 = vmatpush1.bf16.msra.mxu0 0
        %1104 = vmatprep.subr.bf16.mxu0 0
        %1105 = vmatpush1.bf16.msra.mxu0 0
        %1106 = vmatprep.subr.bf16.mxu0 0
        %1107 = vmatpush1.bf16.msra.mxu0 0
        %1108 = vmatprep.subr.bf16.mxu0 0
        %1109 = vmatpush1.bf16.msra.mxu0 0
        %1110 = vmatprep.subr.bf16.mxu0 0
        %1111 = vmatpush1.bf16.msra.mxu0 0
        %1112 = vmatprep.subr.bf16.mxu0 0
        %1113 = vmatpush1.bf16.msra.mxu0 0
        %1114 = vmatprep.subr.bf16.mxu0 0
        %1115 = vmatpush1.bf16.msra.mxu0 0
        %1116 = vmatprep.subr.bf16.mxu0 0
        %1117 = vmatpush1.bf16.msra.mxu0 0
        %1118 = vmatprep.subr.bf16.mxu0 0
        %1119 = vmatpush1.bf16.msra.mxu0 0
        %1120 = vmatprep.subr.bf16.mxu0 0
        %1121 = vmatpush1.bf16.msra.mxu0 0
        %1122 = vmatprep.subr.bf16.mxu0 0
        %1123 = vmatpush1.bf16.msra.mxu0 0
        %1124 = vmatprep.mubr.bf16.mxu0 0
        %1125 = vmatmul.mubr.bf16.gmra.mrb[0].mxu0 %v1036
        %v1126 = vpop.f32.mrb[0].mxu0
        %v1127 = vadd.f32 0.0, %v1126
        %v1128 = vpop.f32.mrb[0].mxu0
        %v1129 = vpop.f32.mrb[0].mxu0
        %v1130 = vadd.f32 0.0, %v1129
        %v1131 = vpop.f32.mrb[0].mxu0
        %1132 = vmatprep.mubr.bf16.mxu0 0
        %1133 = vmatmul.mubr.bf16.gmra.mrb[0].mxu0 %v1039
        %v1134 = vpop.f32.mrb[0].mxu0
        %v1135 = vadd.f32 0.0, %v1134
        %v1136 = vpop.f32.mrb[0].mxu0
        %v1137 = vpop.f32.mrb[0].mxu0
        %v1138 = vadd.f32 0.0, %v1137
        %v1139 = vpop.f32.mrb[0].mxu0
        %1140 = vmatprep.mubr.bf16.mxu0 0
        %1141 = vmatmul.mubr.bf16.gmra.mrb[0].mxu0 %v1042
        %v1142 = vpop.f32.mrb[0].mxu0
        %v1143 = vadd.f32 0.0, %v1142
        %v1144 = vpop.f32.mrb[0].mxu0
        %v1145 = vpop.f32.mrb[0].mxu0
        %v1146 = vadd.f32 0.0, %v1145
        %v1147 = vpop.f32.mrb[0].mxu0
        %1148 = vmatprep.mubr.bf16.mxu0 0
        %1149 = vmatmul.mubr.bf16.gmra.mrb[0].mxu0 %v1045
        %v1150 = vpop.f32.mrb[0].mxu0
        %v1151 = vadd.f32 0.0, %v1150
        %v1152 = vpop.f32.mrb[0].mxu0
        %v1153 = vpop.f32.mrb[0].mxu0
        %v1154 = vadd.f32 0.0, %v1153
        %v1155 = vpop.f32.mrb[0].mxu0
        %1156 = vmatprep.mubr.bf16.mxu0 0
        %1157 = vmatmul.mubr.bf16.gmra.mrb[0].mxu0 %v1048
        %v1158 = vpop.f32.mrb[0].mxu0
        %v1159 = vadd.f32 0.0, %v1158
        %v1160 = vpop.f32.mrb[0].mxu0
        %v1161 = vpop.f32.mrb[0].mxu0
        %v1162 = vadd.f32 0.0, %v1161
        %v1163 = vpop.f32.mrb[0].mxu0
        %1164 = vmatprep.mubr.bf16.mxu0 0
        %1165 = vmatmul.mubr.bf16.gmra.mrb[0].mxu0 %v1051
        %v1166 = vpop.f32.mrb[0].mxu0
        %v1167 = vadd.f32 0.0, %v1166
        %v1168 = vpop.f32.mrb[0].mxu0
        %v1169 = vpop.f32.mrb[0].mxu0
        %v1170 = vadd.f32 0.0, %v1169
        %v1171 = vpop.f32.mrb[0].mxu0
        %1172 = vmatprep.mubr.bf16.mxu0 0
        %1173 = vmatmul.mubr.bf16.gmra.mrb[0].mxu0 %v1054
        %v1174 = vpop.f32.mrb[0].mxu0
        %v1175 = vadd.f32 0.0, %v1174
        %v1176 = vpop.f32.mrb[0].mxu0
        %v1177 = vpop.f32.mrb[0].mxu0
        %v1178 = vadd.f32 0.0, %v1177
        %v1179 = vpop.f32.mrb[0].mxu0
        %1180 = vmatprep.mubr.bf16.mxu0 0
        %1181 = vmatmul.mubr.bf16.gmra.mrb[0].mxu0 %v1057
        %v1182 = vpop.f32.mrb[0].mxu0
        %v1183 = vadd.f32 0.0, %v1182
        %v1184 = vpop.f32.mrb[0].mxu0
        %v1185 = vpop.f32.mrb[0].mxu0
        %v1186 = vadd.f32 0.0, %v1185
        %v1187 = vpop.f32.mrb[0].mxu0
        %1188 = vmatprep.mubr.bf16.mxu0 0
        %1189 = vmatmul.mubr.bf16.gmra.mrb[0].mxu0 %v1060
        %v1190 = vpop.f32.mrb[0].mxu0
        %v1191 = vadd.f32 0.0, %v1190
        %v1192 = vpop.f32.mrb[0].mxu0
        %v1193 = vpop.f32.mrb[0].mxu0
        %v1194 = vadd.f32 0.0, %v1193
        %v1195 = vpop.f32.mrb[0].mxu0
        %1196 = vmatprep.mubr.bf16.mxu0 0
        %1197 = vmatmul.mubr.bf16.gmra.mrb[0].mxu0 %v1063
        %v1198 = vpop.f32.mrb[0].mxu0
        %v1199 = vadd.f32 0.0, %v1198
        %v1200 = vpop.f32.mrb[0].mxu0
        %v1201 = vpop.f32.mrb[0].mxu0
        %v1202 = vadd.f32 0.0, %v1201
        %v1203 = vpop.f32.mrb[0].mxu0
        %1204 = vmatprep.mubr.bf16.mxu0 0
        %1205 = vmatmul.mubr.bf16.gmra.mrb[0].mxu0 %v1066
        %v1206 = vpop.f32.mrb[0].mxu0
        %v1207 = vadd.f32 0.0, %v1206
        %v1208 = vpop.f32.mrb[0].mxu0
        %v1209 = vpop.f32.mrb[0].mxu0
        %v1210 = vadd.f32 0.0, %v1209
        %v1211 = vpop.f32.mrb[0].mxu0
        %1212 = vmatprep.mubr.bf16.mxu0 0
        %1213 = vmatmul.mubr.bf16.gmra.mrb[0].mxu0 %v1069
        %v1214 = vpop.f32.mrb[0].mxu0
        %v1215 = vadd.f32 0.0, %v1214
        %v1216 = vpop.f32.mrb[0].mxu0
        %v1217 = vpop.f32.mrb[0].mxu0
        %v1218 = vadd.f32 0.0, %v1217
        %v1219 = vpop.f32.mrb[0].mxu0
        %1220 = vmatprep.mubr.bf16.mxu0 0
        %1221 = vmatmul.mubr.bf16.gmra.mrb[0].mxu0 %v1072
        %v1222 = vpop.f32.mrb[0].mxu0
        %v1223 = vadd.f32 0.0, %v1222
        %v1224 = vpop.f32.mrb[0].mxu0
        %v1225 = vpop.f32.mrb[0].mxu0
        %v1226 = vadd.f32 0.0, %v1225
        %v1227 = vpop.f32.mrb[0].mxu0
        %1228 = vmatprep.mubr.bf16.mxu0 0
        %1229 = vmatmul.mubr.bf16.gmra.mrb[0].mxu0 %v1075
        %v1230 = vpop.f32.mrb[0].mxu0
        %v1231 = vadd.f32 0.0, %v1230
        %v1232 = vpop.f32.mrb[0].mxu0
        %v1233 = vpop.f32.mrb[0].mxu0
        %v1234 = vadd.f32 0.0, %v1233
        %v1235 = vpop.f32.mrb[0].mxu0
        %1236 = vmatprep.mubr.bf16.mxu0 0
        %1237 = vmatmul.mubr.bf16.gmra.mrb[0].mxu0 %v1078
        %v1238 = vpop.f32.mrb[0].mxu0
        %v1239 = vadd.f32 0.0, %v1238
        %v1240 = vpop.f32.mrb[0].mxu0
        %v1241 = vpop.f32.mrb[0].mxu0
        %v1242 = vadd.f32 0.0, %v1241
        %v1243 = vpop.f32.mrb[0].mxu0
        %1244 = vmatprep.mubr.bf16.mxu0 0
        %1245 = vmatmul.mubr.bf16.gmra.mrb[0].mxu0 %v1081
        %v1246 = vpop.f32.mrb[0].mxu0
        %v1247 = vadd.f32 0.0, %v1246
        %v1248 = vpop.f32.mrb[0].mxu0
        %v1249 = vpop.f32.mrb[0].mxu0
        %v1250 = vadd.f32 0.0, %v1249
        %v1251 = vpop.f32.mrb[0].mxu0
        %1252 = vmatprep.mubr.bf16.mxu0 0
        %1253 = vmatmul.mubr.bf16.gmra.mrb[0].mxu0 %v1084
        %v1254 = vpop.f32.mrb[0].mxu0
        %v1255 = vadd.f32 0.0, %v1254
        %v1256 = vpop.f32.mrb[0].mxu0
        %v1257 = vpop.f32.mrb[0].mxu0
        %v1258 = vadd.f32 0.0, %v1257
        %v1259 = vpop.f32.mrb[0].mxu0
        %1260 = vmatprep.mubr.bf16.mxu0 0
        %1261 = vmatmul.mubr.bf16.gmra.mrb[0].mxu0 %v1087
        %v1262 = vpop.f32.mrb[0].mxu0
        %v1263 = vadd.f32 0.0, %v1262
        %v1264 = vpop.f32.mrb[0].mxu0
        %v1265 = vpop.f32.mrb[0].mxu0
        %v1266 = vadd.f32 0.0, %v1265
        %v1267 = vpop.f32.mrb[0].mxu0
        %1268 = vdwg.mxu0
        %v1269 = vadd.f32 %v853, %v1127
        %v1270 = vadd.f32 %v856, %v1130
        %v1271 = vadd.f32 %v861, %v1135
        %v1272 = vadd.f32 %v864, %v1138
        %v1273 = vadd.f32 %v869, %v1143
        %v1274 = vadd.f32 %v872, %v1146
        %v1275 = vadd.f32 %v877, %v1151
        %v1276 = vadd.f32 %v880, %v1154
        %v1277 = vadd.f32 %v885, %v1159
        %v1278 = vadd.f32 %v888, %v1162
        %v1279 = vadd.f32 %v893, %v1167
        %v1280 = vadd.f32 %v896, %v1170
        %v1281 = vadd.f32 %v901, %v1175
        %v1282 = vadd.f32 %v904, %v1178
        %v1283 = vadd.f32 %v909, %v1183
        %v1284 = vadd.f32 %v912, %v1186
        %v1285 = vadd.f32 %v917, %v1191
        %v1286 = vadd.f32 %v920, %v1194
        %v1287 = vadd.f32 %v925, %v1199
        %v1288 = vadd.f32 %v928, %v1202
        %v1289 = vadd.f32 %v933, %v1207
        %v1290 = vadd.f32 %v936, %v1210
        %v1291 = vadd.f32 %v941, %v1215
        %v1292 = vadd.f32 %v944, %v1218
        %v1293 = vadd.f32 %v949, %v1223
        %v1294 = vadd.f32 %v952, %v1226
        %v1295 = vadd.f32 %v957, %v1231
        %v1296 = vadd.f32 %v960, %v1234
        %v1297 = vadd.f32 %v965, %v1239
        %v1298 = vadd.f32 %v968, %v1242
        %v1299 = vadd.f32 %v973, %v1247
        %v1300 = vadd.f32 %v976, %v1250
        %v1301 = vadd.f32 %v981, %v1255
        %v1302 = vadd.f32 %v984, %v1258
        %v1303 = vadd.f32 %v989, %v1263
        %v1304 = vadd.f32 %v992, %v1266
        %s1305 = scalar_lea.vmem [#allocation5], 12
        %v1306 = vld [vmem:[%s1305] sm:$0xf]
        %v1309 = vunpack.c.l.b16 %v294
        %v1310 = vunpack.c.l.b16 %v295
        %v1311 = vpack.c.b16 %v1309, %v374
        %v1312 = vpack.c.b16 %v1310, %v1310
        %v1313 = vrot.slane %v1311, 1
        %v1314 = vsel %vm997, %v1031, %v1313
        %v1315 = vrot.slane %v1312, 1
        %v1316 = vsel %vm997, %v1313, %v1315
        %v1318 = vsel %vm543, %v1314, 0
        %v1321 = vsel %vm543, %v1316, 0
        %v1324 = vsel %vm598, %v1306, 0
        %1326 = vmatprep.subr.bf16.mxu0 0
        %1327 = vmatpush1.bf16.msra.mxu0 %v1324
        %1328 = vmatprep.subr.bf16.mxu0 0
        %1329 = vmatpush1.bf16.msra.mxu0 0
        %1330 = vmatprep.subr.bf16.mxu0 0
        %1331 = vmatpush1.bf16.msra.mxu0 0
        %1332 = vmatprep.subr.bf16.mxu0 0
        %1333 = vmatpush1.bf16.msra.mxu0 0
        %1334 = vmatprep.subr.bf16.mxu0 0
        %1335 = vmatpush1.bf16.msra.mxu0 0
        %1336 = vmatprep.subr.bf16.mxu0 0
        %1337 = vmatpush1.bf16.msra.mxu0 0
        %1338 = vmatprep.subr.bf16.mxu0 0
        %1339 = vmatpush1.bf16.msra.mxu0 0
        %1340 = vmatprep.subr.bf16.mxu0 0
        %1341 = vmatpush1.bf16.msra.mxu0 0
        %1342 = vmatprep.subr.bf16.mxu0 0
        %1343 = vmatpush1.bf16.msra.mxu0 0
        %1344 = vmatprep.subr.bf16.mxu0 0
        %1345 = vmatpush1.bf16.msra.mxu0 0
        %1346 = vmatprep.subr.bf16.mxu0 0
        %1347 = vmatpush1.bf16.msra.mxu0 0
        %1348 = vmatprep.subr.bf16.mxu0 0
        %1349 = vmatpush1.bf16.msra.mxu0 0
        %1350 = vmatprep.subr.bf16.mxu0 0
        %1351 = vmatpush1.bf16.msra.mxu0 0
        %1352 = vmatprep.subr.bf16.mxu0 0
        %1353 = vmatpush1.bf16.msra.mxu0 0
        %1354 = vmatprep.subr.bf16.mxu0 0
        %1355 = vmatpush1.bf16.msra.mxu0 0
        %1356 = vmatprep.subr.bf16.mxu0 0
        %1357 = vmatpush1.bf16.msra.mxu0 0
        %1358 = vmatprep.mubr.bf16.mxu0 0
        %1359 = vmatmul.mubr.bf16.gmra.mrb[0].mxu0 %v1039
        %v1360 = vpop.f32.mrb[0].mxu0
        %v1361 = vadd.f32 0.0, %v1360
        %v1362 = vpop.f32.mrb[0].mxu0
        %v1363 = vpop.f32.mrb[0].mxu0
        %v1364 = vadd.f32 0.0, %v1363
        %v1365 = vpop.f32.mrb[0].mxu0
        %1366 = vmatprep.mubr.bf16.mxu0 0
        %1367 = vmatmul.mubr.bf16.gmra.mrb[0].mxu0 %v1042
        %v1368 = vpop.f32.mrb[0].mxu0
        %v1369 = vadd.f32 0.0, %v1368
        %v1370 = vpop.f32.mrb[0].mxu0
        %v1371 = vpop.f32.mrb[0].mxu0
        %v1372 = vadd.f32 0.0, %v1371
        %v1373 = vpop.f32.mrb[0].mxu0
        %1374 = vmatprep.mubr.bf16.mxu0 0
        %1375 = vmatmul.mubr.bf16.gmra.mrb[0].mxu0 %v1045
        %v1376 = vpop.f32.mrb[0].mxu0
        %v1377 = vadd.f32 0.0, %v1376
        %v1378 = vpop.f32.mrb[0].mxu0
        %v1379 = vpop.f32.mrb[0].mxu0
        %v1380 = vadd.f32 0.0, %v1379
        %v1381 = vpop.f32.mrb[0].mxu0
        %1382 = vmatprep.mubr.bf16.mxu0 0
        %1383 = vmatmul.mubr.bf16.gmra.mrb[0].mxu0 %v1048
        %v1384 = vpop.f32.mrb[0].mxu0
        %v1385 = vadd.f32 0.0, %v1384
        %v1386 = vpop.f32.mrb[0].mxu0
        %v1387 = vpop.f32.mrb[0].mxu0
        %v1388 = vadd.f32 0.0, %v1387
        %v1389 = vpop.f32.mrb[0].mxu0
        %1390 = vmatprep.mubr.bf16.mxu0 0
        %1391 = vmatmul.mubr.bf16.gmra.mrb[0].mxu0 %v1051
        %v1392 = vpop.f32.mrb[0].mxu0
        %v1393 = vadd.f32 0.0, %v1392
        %v1394 = vpop.f32.mrb[0].mxu0
        %v1395 = vpop.f32.mrb[0].mxu0
        %v1396 = vadd.f32 0.0, %v1395
        %v1397 = vpop.f32.mrb[0].mxu0
        %1398 = vmatprep.mubr.bf16.mxu0 0
        %1399 = vmatmul.mubr.bf16.gmra.mrb[0].mxu0 %v1054
        %v1400 = vpop.f32.mrb[0].mxu0
        %v1401 = vadd.f32 0.0, %v1400
        %v1402 = vpop.f32.mrb[0].mxu0
        %v1403 = vpop.f32.mrb[0].mxu0
        %v1404 = vadd.f32 0.0, %v1403
        %v1405 = vpop.f32.mrb[0].mxu0
        %1406 = vmatprep.mubr.bf16.mxu0 0
        %1407 = vmatmul.mubr.bf16.gmra.mrb[0].mxu0 %v1057
        %v1408 = vpop.f32.mrb[0].mxu0
        %v1409 = vadd.f32 0.0, %v1408
        %v1410 = vpop.f32.mrb[0].mxu0
        %v1411 = vpop.f32.mrb[0].mxu0
        %v1412 = vadd.f32 0.0, %v1411
        %v1413 = vpop.f32.mrb[0].mxu0
        %1414 = vmatprep.mubr.bf16.mxu0 0
        %1415 = vmatmul.mubr.bf16.gmra.mrb[0].mxu0 %v1060
        %v1416 = vpop.f32.mrb[0].mxu0
        %v1417 = vadd.f32 0.0, %v1416
        %v1418 = vpop.f32.mrb[0].mxu0
        %v1419 = vpop.f32.mrb[0].mxu0
        %v1420 = vadd.f32 0.0, %v1419
        %v1421 = vpop.f32.mrb[0].mxu0
        %1422 = vmatprep.mubr.bf16.mxu0 0
        %1423 = vmatmul.mubr.bf16.gmra.mrb[0].mxu0 %v1063
        %v1424 = vpop.f32.mrb[0].mxu0
        %v1425 = vadd.f32 0.0, %v1424
        %v1426 = vpop.f32.mrb[0].mxu0
        %v1427 = vpop.f32.mrb[0].mxu0
        %v1428 = vadd.f32 0.0, %v1427
        %v1429 = vpop.f32.mrb[0].mxu0
        %1430 = vmatprep.mubr.bf16.mxu0 0
        %1431 = vmatmul.mubr.bf16.gmra.mrb[0].mxu0 %v1066
        %v1432 = vpop.f32.mrb[0].mxu0
        %v1433 = vadd.f32 0.0, %v1432
        %v1434 = vpop.f32.mrb[0].mxu0
        %v1435 = vpop.f32.mrb[0].mxu0
        %v1436 = vadd.f32 0.0, %v1435
        %v1437 = vpop.f32.mrb[0].mxu0
        %1438 = vmatprep.mubr.bf16.mxu0 0
        %1439 = vmatmul.mubr.bf16.gmra.mrb[0].mxu0 %v1069
        %v1440 = vpop.f32.mrb[0].mxu0
        %v1441 = vadd.f32 0.0, %v1440
        %v1442 = vpop.f32.mrb[0].mxu0
        %v1443 = vpop.f32.mrb[0].mxu0
        %v1444 = vadd.f32 0.0, %v1443
        %v1445 = vpop.f32.mrb[0].mxu0
        %1446 = vmatprep.mubr.bf16.mxu0 0
        %1447 = vmatmul.mubr.bf16.gmra.mrb[0].mxu0 %v1072
        %v1448 = vpop.f32.mrb[0].mxu0
        %v1449 = vadd.f32 0.0, %v1448
        %v1450 = vpop.f32.mrb[0].mxu0
        %v1451 = vpop.f32.mrb[0].mxu0
        %v1452 = vadd.f32 0.0, %v1451
        %v1453 = vpop.f32.mrb[0].mxu0
        %1454 = vmatprep.mubr.bf16.mxu0 0
        %1455 = vmatmul.mubr.bf16.gmra.mrb[0].mxu0 %v1075
        %v1456 = vpop.f32.mrb[0].mxu0
        %v1457 = vadd.f32 0.0, %v1456
        %v1458 = vpop.f32.mrb[0].mxu0
        %v1459 = vpop.f32.mrb[0].mxu0
        %v1460 = vadd.f32 0.0, %v1459
        %v1461 = vpop.f32.mrb[0].mxu0
        %1462 = vmatprep.mubr.bf16.mxu0 0
        %1463 = vmatmul.mubr.bf16.gmra.mrb[0].mxu0 %v1078
        %v1464 = vpop.f32.mrb[0].mxu0
        %v1465 = vadd.f32 0.0, %v1464
        %v1466 = vpop.f32.mrb[0].mxu0
        %v1467 = vpop.f32.mrb[0].mxu0
        %v1468 = vadd.f32 0.0, %v1467
        %v1469 = vpop.f32.mrb[0].mxu0
        %1470 = vmatprep.mubr.bf16.mxu0 0
        %1471 = vmatmul.mubr.bf16.gmra.mrb[0].mxu0 %v1081
        %v1472 = vpop.f32.mrb[0].mxu0
        %v1473 = vadd.f32 0.0, %v1472
        %v1474 = vpop.f32.mrb[0].mxu0
        %v1475 = vpop.f32.mrb[0].mxu0
        %v1476 = vadd.f32 0.0, %v1475
        %v1477 = vpop.f32.mrb[0].mxu0
        %1478 = vmatprep.mubr.bf16.mxu0 0
        %1479 = vmatmul.mubr.bf16.gmra.mrb[0].mxu0 %v1084
        %v1480 = vpop.f32.mrb[0].mxu0
        %v1481 = vadd.f32 0.0, %v1480
        %v1482 = vpop.f32.mrb[0].mxu0
        %v1483 = vpop.f32.mrb[0].mxu0
        %v1484 = vadd.f32 0.0, %v1483
        %v1485 = vpop.f32.mrb[0].mxu0
        %1486 = vmatprep.mubr.bf16.mxu0 0
        %1487 = vmatmul.mubr.bf16.gmra.mrb[0].mxu0 %v1318
        %v1488 = vpop.f32.mrb[0].mxu0
        %v1489 = vadd.f32 0.0, %v1488
        %v1490 = vpop.f32.mrb[0].mxu0
        %v1491 = vpop.f32.mrb[0].mxu0
        %v1492 = vadd.f32 0.0, %v1491
        %v1493 = vpop.f32.mrb[0].mxu0
        %1494 = vmatprep.mubr.bf16.mxu0 0
        %1495 = vmatmul.mubr.bf16.gmra.mrb[0].mxu0 %v1321
        %v1496 = vpop.f32.mrb[0].mxu0
        %v1497 = vadd.f32 0.0, %v1496
        %v1498 = vpop.f32.mrb[0].mxu0
        %v1499 = vpop.f32.mrb[0].mxu0
        %v1500 = vadd.f32 0.0, %v1499
        %v1501 = vpop.f32.mrb[0].mxu0
        %1502 = vdwg.mxu0
        %v1503 = vadd.f32 %v1269, %v1361
        %v1504 = vadd.f32 %v1270, %v1364
        %v1505 = vadd.f32 %v1271, %v1369
        %v1506 = vadd.f32 %v1272, %v1372
        %v1507 = vadd.f32 %v1273, %v1377
        %v1508 = vadd.f32 %v1274, %v1380
        %v1509 = vadd.f32 %v1275, %v1385
        %v1510 = vadd.f32 %v1276, %v1388
        %v1511 = vadd.f32 %v1277, %v1393
        %v1512 = vadd.f32 %v1278, %v1396
        %v1513 = vadd.f32 %v1279, %v1401
        %v1514 = vadd.f32 %v1280, %v1404
        %v1515 = vadd.f32 %v1281, %v1409
        %v1516 = vadd.f32 %v1282, %v1412
        %v1517 = vadd.f32 %v1283, %v1417
        %v1518 = vadd.f32 %v1284, %v1420
        %v1519 = vadd.f32 %v1285, %v1425
        %v1520 = vadd.f32 %v1286, %v1428
        %v1521 = vadd.f32 %v1287, %v1433
        %v1522 = vadd.f32 %v1288, %v1436
        %v1523 = vadd.f32 %v1289, %v1441
        %v1524 = vadd.f32 %v1290, %v1444
        %v1525 = vadd.f32 %v1291, %v1449
        %v1526 = vadd.f32 %v1292, %v1452
        %v1527 = vadd.f32 %v1293, %v1457
        %v1528 = vadd.f32 %v1294, %v1460
        %v1529 = vadd.f32 %v1295, %v1465
        %v1530 = vadd.f32 %v1296, %v1468
        %v1531 = vadd.f32 %v1297, %v1473
        %v1532 = vadd.f32 %v1298, %v1476
        %v1533 = vadd.f32 %v1299, %v1481
        %v1534 = vadd.f32 %v1300, %v1484
        %v1535 = vadd.f32 %v1301, %v1489
        %v1536 = vadd.f32 %v1302, %v1492
        %v1537 = vadd.f32 %v1303, %v1497
        %v1538 = vadd.f32 %v1304, %v1500
        %s1539 = scalar_lea.vmem [#allocation5], 16
        %v1540 = vld [vmem:[%s1539] sm:$0xf]
        %vm1541 = vsmask.f32 6400
        %v1542 = vrot.slane %v407, 1
        %v1543 = vrot.slane %v403, 2
        %v1544 = vor.u32 %v1542, %v1543
        %v1545 = vrot.slane %v415, 1
        %v1546 = vrot.slane %v411, 2
        %v1547 = vor.u32 %v1545, %v1546
        %v1548 = vsel %vm1541, %v1544, %v1547
        %v1549 = vrot.slane %v423, 1
        %v1550 = vrot.slane %v419, 2
        %v1551 = vor.u32 %v1549, %v1550
        %v1552 = vsel %vm1541, %v1547, %v1551
        %v1553 = vrot.slane %v431, 1
        %v1554 = vrot.slane %v427, 2
        %v1555 = vor.u32 %v1553, %v1554
        %v1556 = vsel %vm1541, %v1551, %v1555
        %v1557 = vrot.slane %v439, 1
        %v1558 = vrot.slane %v435, 2
        %v1559 = vor.u32 %v1557, %v1558
        %v1560 = vsel %vm1541, %v1555, %v1559
        %v1561 = vrot.slane %v447, 1
        %v1562 = vrot.slane %v443, 2
        %v1563 = vor.u32 %v1561, %v1562
        %v1564 = vsel %vm1541, %v1559, %v1563
        %v1565 = vrot.slane %v455, 1
        %v1566 = vrot.slane %v451, 2
        %v1567 = vor.u32 %v1565, %v1566
        %v1568 = vsel %vm1541, %v1563, %v1567
        %v1569 = vrot.slane %v463, 1
        %v1570 = vrot.slane %v459, 2
        %v1571 = vor.u32 %v1569, %v1570
        %v1572 = vsel %vm1541, %v1567, %v1571
        %v1573 = vrot.slane %v471, 1
        %v1574 = vrot.slane %v467, 2
        %v1575 = vor.u32 %v1573, %v1574
        %v1576 = vsel %vm1541, %v1571, %v1575
        %v1577 = vrot.slane %v479, 1
        %v1578 = vrot.slane %v475, 2
        %v1579 = vor.u32 %v1577, %v1578
        %v1580 = vsel %vm1541, %v1575, %v1579
        %v1581 = vrot.slane %v487, 1
        %v1582 = vrot.slane %v483, 2
        %v1583 = vor.u32 %v1581, %v1582
        %v1584 = vsel %vm1541, %v1579, %v1583
        %v1585 = vrot.slane %v495, 1
        %v1586 = vrot.slane %v491, 2
        %v1587 = vor.u32 %v1585, %v1586
        %v1588 = vsel %vm1541, %v1583, %v1587
        %v1589 = vrot.slane %v503, 1
        %v1590 = vrot.slane %v499, 2
        %v1591 = vor.u32 %v1589, %v1590
        %v1592 = vsel %vm1541, %v1587, %v1591
        %v1593 = vrot.slane %v511, 1
        %v1594 = vrot.slane %v507, 2
        %v1595 = vor.u32 %v1593, %v1594
        %v1596 = vsel %vm1541, %v1591, %v1595
        %v1597 = vrot.slane %v519, 1
        %v1598 = vrot.slane %v515, 2
        %v1599 = vor.u32 %v1597, %v1598
        %v1600 = vsel %vm1541, %v1595, %v1599
        %v1601 = vrot.slane %v527, 1
        %v1602 = vrot.slane %v523, 2
        %v1603 = vor.u32 %v1601, %v1602
        %v1604 = vsel %vm1541, %v1599, %v1603
        %v1605 = vrot.slane %v535, 1
        %v1606 = vrot.slane %v531, 2
        %v1607 = vor.u32 %v1605, %v1606
        %v1608 = vsel %vm1541, %v1603, %v1607
        %v1610 = vshrl.u32 %v1311, 16
        %v1612 = vrot.slane %v1610, 1
        %v1613 = vshll.u32 %v1311, 16
        %v1615 = vrot.slane %v1613, 2
        %v1616 = vor.u32 %v1612, %v1615
        %v1617 = vsel %vm1541, %v1607, %v1616
        %v1619 = vshrl.u32 %v1312, 16
        %v1621 = vrot.slane %v1619, 1
        %v1622 = vshll.u32 %v1312, 16
        %v1624 = vrot.slane %v1622, 2
        %v1625 = vor.u32 %v1621, %v1624
        %v1626 = vsel %vm1541, %v1616, %v1625
        %v1628 = vsel %vm543, %v1548, 0
        %v1631 = vsel %vm543, %v1552, 0
        %v1634 = vsel %vm543, %v1556, 0
        %v1637 = vsel %vm543, %v1560, 0
        %v1640 = vsel %vm543, %v1564, 0
        %v1643 = vsel %vm543, %v1568, 0
        %v1646 = vsel %vm543, %v1572, 0
        %v1649 = vsel %vm543, %v1576, 0
        %v1652 = vsel %vm543, %v1580, 0
        %v1655 = vsel %vm543, %v1584, 0
        %v1658 = vsel %vm543, %v1588, 0
        %v1661 = vsel %vm543, %v1592, 0
        %v1664 = vsel %vm543, %v1596, 0
        %v1667 = vsel %vm543, %v1600, 0
        %v1670 = vsel %vm543, %v1604, 0
        %v1673 = vsel %vm543, %v1608, 0
        %v1676 = vsel %vm543, %v1617, 0
        %v1679 = vsel %vm543, %v1626, 0
        %v1682 = vsel %vm598, %v1540, 0
        %1684 = vmatprep.subr.bf16.mxu0 0
        %1685 = vmatpush1.bf16.msra.mxu0 %v1682
        %1686 = vmatprep.subr.bf16.mxu0 0
        %1687 = vmatpush1.bf16.msra.mxu0 0
        %1688 = vmatprep.subr.bf16.mxu0 0
        %1689 = vmatpush1.bf16.msra.mxu0 0
        %1690 = vmatprep.subr.bf16.mxu0 0
        %1691 = vmatpush1.bf16.msra.mxu0 0
        %1692 = vmatprep.subr.bf16.mxu0 0
        %1693 = vmatpush1.bf16.msra.mxu0 0
        %1694 = vmatprep.subr.bf16.mxu0 0
        %1695 = vmatpush1.bf16.msra.mxu0 0
        %1696 = vmatprep.subr.bf16.mxu0 0
        %1697 = vmatpush1.bf16.msra.mxu0 0
        %1698 = vmatprep.subr.bf16.mxu0 0
        %1699 = vmatpush1.bf16.msra.mxu0 0
        %1700 = vmatprep.subr.bf16.mxu0 0
        %1701 = vmatpush1.bf16.msra.mxu0 0
        %1702 = vmatprep.subr.bf16.mxu0 0
        %1703 = vmatpush1.bf16.msra.mxu0 0
        %1704 = vmatprep.subr.bf16.mxu0 0
        %1705 = vmatpush1.bf16.msra.mxu0 0
        %1706 = vmatprep.subr.bf16.mxu0 0
        %1707 = vmatpush1.bf16.msra.mxu0 0
        %1708 = vmatprep.subr.bf16.mxu0 0
        %1709 = vmatpush1.bf16.msra.mxu0 0
        %1710 = vmatprep.subr.bf16.mxu0 0
        %1711 = vmatpush1.bf16.msra.mxu0 0
        %1712 = vmatprep.subr.bf16.mxu0 0
        %1713 = vmatpush1.bf16.msra.mxu0 0
        %1714 = vmatprep.subr.bf16.mxu0 0
        %1715 = vmatpush1.bf16.msra.mxu0 0
        %1716 = vmatprep.mubr.bf16.mxu0 0
        %1717 = vmatmul.mubr.bf16.gmra.mrb[0].mxu0 %v1628
        %v1718 = vpop.f32.mrb[0].mxu0
        %v1719 = vadd.f32 0.0, %v1718
        %v1720 = vpop.f32.mrb[0].mxu0
        %v1721 = vpop.f32.mrb[0].mxu0
        %v1722 = vadd.f32 0.0, %v1721
        %v1723 = vpop.f32.mrb[0].mxu0
        %1724 = vmatprep.mubr.bf16.mxu0 0
        %1725 = vmatmul.mubr.bf16.gmra.mrb[0].mxu0 %v1631
        %v1726 = vpop.f32.mrb[0].mxu0
        %v1727 = vadd.f32 0.0, %v1726
        %v1728 = vpop.f32.mrb[0].mxu0
        %v1729 = vpop.f32.mrb[0].mxu0
        %v1730 = vadd.f32 0.0, %v1729
        %v1731 = vpop.f32.mrb[0].mxu0
        %1732 = vmatprep.mubr.bf16.mxu0 0
        %1733 = vmatmul.mubr.bf16.gmra.mrb[0].mxu0 %v1634
        %v1734 = vpop.f32.mrb[0].mxu0
        %v1735 = vadd.f32 0.0, %v1734
        %v1736 = vpop.f32.mrb[0].mxu0
        %v1737 = vpop.f32.mrb[0].mxu0
        %v1738 = vadd.f32 0.0, %v1737
        %v1739 = vpop.f32.mrb[0].mxu0
        %1740 = vmatprep.mubr.bf16.mxu0 0
        %1741 = vmatmul.mubr.bf16.gmra.mrb[0].mxu0 %v1637
        %v1742 = vpop.f32.mrb[0].mxu0
        %v1743 = vadd.f32 0.0, %v1742
        %v1744 = vpop.f32.mrb[0].mxu0
        %v1745 = vpop.f32.mrb[0].mxu0
        %v1746 = vadd.f32 0.0, %v1745
        %v1747 = vpop.f32.mrb[0].mxu0
        %1748 = vmatprep.mubr.bf16.mxu0 0
        %1749 = vmatmul.mubr.bf16.gmra.mrb[0].mxu0 %v1640
        %v1750 = vpop.f32.mrb[0].mxu0
        %v1751 = vadd.f32 0.0, %v1750
        %v1752 = vpop.f32.mrb[0].mxu0
        %v1753 = vpop.f32.mrb[0].mxu0
        %v1754 = vadd.f32 0.0, %v1753
        %v1755 = vpop.f32.mrb[0].mxu0
        %1756 = vmatprep.mubr.bf16.mxu0 0
        %1757 = vmatmul.mubr.bf16.gmra.mrb[0].mxu0 %v1643
        %v1758 = vpop.f32.mrb[0].mxu0
        %v1759 = vadd.f32 0.0, %v1758
        %v1760 = vpop.f32.mrb[0].mxu0
        %v1761 = vpop.f32.mrb[0].mxu0
        %v1762 = vadd.f32 0.0, %v1761
        %v1763 = vpop.f32.mrb[0].mxu0
        %1764 = vmatprep.mubr.bf16.mxu0 0
        %1765 = vmatmul.mubr.bf16.gmra.mrb[0].mxu0 %v1646
        %v1766 = vpop.f32.mrb[0].mxu0
        %v1767 = vadd.f32 0.0, %v1766
        %v1768 = vpop.f32.mrb[0].mxu0
        %v1769 = vpop.f32.mrb[0].mxu0
        %v1770 = vadd.f32 0.0, %v1769
        %v1771 = vpop.f32.mrb[0].mxu0
        %1772 = vmatprep.mubr.bf16.mxu0 0
        %1773 = vmatmul.mubr.bf16.gmra.mrb[0].mxu0 %v1649
        %v1774 = vpop.f32.mrb[0].mxu0
        %v1775 = vadd.f32 0.0, %v1774
        %v1776 = vpop.f32.mrb[0].mxu0
        %v1777 = vpop.f32.mrb[0].mxu0
        %v1778 = vadd.f32 0.0, %v1777
        %v1779 = vpop.f32.mrb[0].mxu0
        %1780 = vmatprep.mubr.bf16.mxu0 0
        %1781 = vmatmul.mubr.bf16.gmra.mrb[0].mxu0 %v1652
        %v1782 = vpop.f32.mrb[0].mxu0
        %v1783 = vadd.f32 0.0, %v1782
        %v1784 = vpop.f32.mrb[0].mxu0
        %v1785 = vpop.f32.mrb[0].mxu0
        %v1786 = vadd.f32 0.0, %v1785
        %v1787 = vpop.f32.mrb[0].mxu0
        %1788 = vmatprep.mubr.bf16.mxu0 0
        %1789 = vmatmul.mubr.bf16.gmra.mrb[0].mxu0 %v1655
        %v1790 = vpop.f32.mrb[0].mxu0
        %v1791 = vadd.f32 0.0, %v1790
        %v1792 = vpop.f32.mrb[0].mxu0
        %v1793 = vpop.f32.mrb[0].mxu0
        %v1794 = vadd.f32 0.0, %v1793
        %v1795 = vpop.f32.mrb[0].mxu0
        %1796 = vmatprep.mubr.bf16.mxu0 0
        %1797 = vmatmul.mubr.bf16.gmra.mrb[0].mxu0 %v1658
        %v1798 = vpop.f32.mrb[0].mxu0
        %v1799 = vadd.f32 0.0, %v1798
        %v1800 = vpop.f32.mrb[0].mxu0
        %v1801 = vpop.f32.mrb[0].mxu0
        %v1802 = vadd.f32 0.0, %v1801
        %v1803 = vpop.f32.mrb[0].mxu0
        %1804 = vmatprep.mubr.bf16.mxu0 0
        %1805 = vmatmul.mubr.bf16.gmra.mrb[0].mxu0 %v1661
        %v1806 = vpop.f32.mrb[0].mxu0
        %v1807 = vadd.f32 0.0, %v1806
        %v1808 = vpop.f32.mrb[0].mxu0
        %v1809 = vpop.f32.mrb[0].mxu0
        %v1810 = vadd.f32 0.0, %v1809
        %v1811 = vpop.f32.mrb[0].mxu0
        %1812 = vmatprep.mubr.bf16.mxu0 0
        %1813 = vmatmul.mubr.bf16.gmra.mrb[0].mxu0 %v1664
        %v1814 = vpop.f32.mrb[0].mxu0
        %v1815 = vadd.f32 0.0, %v1814
        %v1816 = vpop.f32.mrb[0].mxu0
        %v1817 = vpop.f32.mrb[0].mxu0
        %v1818 = vadd.f32 0.0, %v1817
        %v1819 = vpop.f32.mrb[0].mxu0
        %1820 = vmatprep.mubr.bf16.mxu0 0
        %1821 = vmatmul.mubr.bf16.gmra.mrb[0].mxu0 %v1667
        %v1822 = vpop.f32.mrb[0].mxu0
        %v1823 = vadd.f32 0.0, %v1822
        %v1824 = vpop.f32.mrb[0].mxu0
        %v1825 = vpop.f32.mrb[0].mxu0
        %v1826 = vadd.f32 0.0, %v1825
        %v1827 = vpop.f32.mrb[0].mxu0
        %1828 = vmatprep.mubr.bf16.mxu0 0
        %1829 = vmatmul.mubr.bf16.gmra.mrb[0].mxu0 %v1670
        %v1830 = vpop.f32.mrb[0].mxu0
        %v1831 = vadd.f32 0.0, %v1830
        %v1832 = vpop.f32.mrb[0].mxu0
        %v1833 = vpop.f32.mrb[0].mxu0
        %v1834 = vadd.f32 0.0, %v1833
        %v1835 = vpop.f32.mrb[0].mxu0
        %1836 = vmatprep.mubr.bf16.mxu0 0
        %1837 = vmatmul.mubr.bf16.gmra.mrb[0].mxu0 %v1673
        %v1838 = vpop.f32.mrb[0].mxu0
        %v1839 = vadd.f32 0.0, %v1838
        %v1840 = vpop.f32.mrb[0].mxu0
        %v1841 = vpop.f32.mrb[0].mxu0
        %v1842 = vadd.f32 0.0, %v1841
        %v1843 = vpop.f32.mrb[0].mxu0
        %1844 = vmatprep.mubr.bf16.mxu0 0
        %1845 = vmatmul.mubr.bf16.gmra.mrb[0].mxu0 %v1676
        %v1846 = vpop.f32.mrb[0].mxu0
        %v1847 = vadd.f32 0.0, %v1846
        %v1848 = vpop.f32.mrb[0].mxu0
        %v1849 = vpop.f32.mrb[0].mxu0
        %v1850 = vadd.f32 0.0, %v1849
        %v1851 = vpop.f32.mrb[0].mxu0
        %1852 = vmatprep.mubr.bf16.mxu0 0
        %1853 = vmatmul.mubr.bf16.gmra.mrb[0].mxu0 %v1679
        %v1854 = vpop.f32.mrb[0].mxu0
        %v1855 = vadd.f32 0.0, %v1854
        %v1856 = vpop.f32.mrb[0].mxu0
        %v1857 = vpop.f32.mrb[0].mxu0
        %v1858 = vadd.f32 0.0, %v1857
        %v1859 = vpop.f32.mrb[0].mxu0
        %1860 = vdwg.mxu0
        %v1861 = vadd.f32 %v1503, %v1719
        %v1862 = vadd.f32 %v1504, %v1722
        %v1863 = vadd.f32 %v1505, %v1727
        %v1864 = vadd.f32 %v1506, %v1730
        %v1865 = vadd.f32 %v1507, %v1735
        %v1866 = vadd.f32 %v1508, %v1738
        %v1867 = vadd.f32 %v1509, %v1743
        %v1868 = vadd.f32 %v1510, %v1746
        %v1869 = vadd.f32 %v1511, %v1751
        %v1870 = vadd.f32 %v1512, %v1754
        %v1871 = vadd.f32 %v1513, %v1759
        %v1872 = vadd.f32 %v1514, %v1762
        %v1873 = vadd.f32 %v1515, %v1767
        %v1874 = vadd.f32 %v1516, %v1770
        %v1875 = vadd.f32 %v1517, %v1775
        %v1876 = vadd.f32 %v1518, %v1778
        %v1877 = vadd.f32 %v1519, %v1783
        %v1878 = vadd.f32 %v1520, %v1786
        %v1879 = vadd.f32 %v1521, %v1791
        %v1880 = vadd.f32 %v1522, %v1794
        %v1881 = vadd.f32 %v1523, %v1799
        %v1882 = vadd.f32 %v1524, %v1802
        %v1883 = vadd.f32 %v1525, %v1807
        %v1884 = vadd.f32 %v1526, %v1810
        %v1885 = vadd.f32 %v1527, %v1815
        %v1886 = vadd.f32 %v1528, %v1818
        %v1887 = vadd.f32 %v1529, %v1823
        %v1888 = vadd.f32 %v1530, %v1826
        %v1889 = vadd.f32 %v1531, %v1831
        %v1890 = vadd.f32 %v1532, %v1834
        %v1891 = vadd.f32 %v1533, %v1839
        %v1892 = vadd.f32 %v1534, %v1842
        %v1893 = vadd.f32 %v1535, %v1847
        %v1894 = vadd.f32 %v1536, %v1850
        %v1895 = vadd.f32 %v1537, %v1855
        %v1896 = vadd.f32 %v1538, %v1858
        %s1897 = scalar_lea.vmem [#allocation5], 20
        %v1898 = vld [vmem:[%s1897] sm:$0xf]
        %vm1899 = vcmask 1045504
        %v1900 = vrot.slane %v376, 2
        %v1901 = vrot.slane %v377, 2
        %v1902 = vsel %vm1899, %v1900, %v1901
        %v1903 = vrot.slane %v378, 2
        %v1904 = vsel %vm1899, %v1901, %v1903
        %v1905 = vrot.slane %v379, 2
        %v1906 = vsel %vm1899, %v1903, %v1905
        %v1907 = vrot.slane %v380, 2
        %v1908 = vsel %vm1899, %v1905, %v1907
        %v1909 = vrot.slane %v381, 2
        %v1910 = vsel %vm1899, %v1907, %v1909
        %v1911 = vrot.slane %v382, 2
        %v1912 = vsel %vm1899, %v1909, %v1911
        %v1913 = vrot.slane %v383, 2
        %v1914 = vsel %vm1899, %v1911, %v1913
        %v1915 = vrot.slane %v384, 2
        %v1916 = vsel %vm1899, %v1913, %v1915
        %v1917 = vrot.slane %v385, 2
        %v1918 = vsel %vm1899, %v1915, %v1917
        %v1919 = vrot.slane %v386, 2
        %v1920 = vsel %vm1899, %v1917, %v1919
        %v1921 = vrot.slane %v387, 2
        %v1922 = vsel %vm1899, %v1919, %v1921
        %v1923 = vrot.slane %v388, 2
        %v1924 = vsel %vm1899, %v1921, %v1923
        %v1925 = vrot.slane %v389, 2
        %v1926 = vsel %vm1899, %v1923, %v1925
        %v1927 = vrot.slane %v390, 2
        %v1928 = vsel %vm1899, %v1925, %v1927
        %v1929 = vrot.slane %v391, 2
        %v1930 = vsel %vm1899, %v1927, %v1929
        %v1931 = vrot.slane %v392, 2
        %v1932 = vsel %vm1899, %v1929, %v1931
        %v1933 = vrot.slane %v1311, 2
        %v1934 = vsel %vm1899, %v1931, %v1933
        %v1935 = vrot.slane %v1312, 2
        %v1936 = vsel %vm1899, %v1933, %v1935
        %v1938 = vsel %vm543, %v1902, 0
        %v1941 = vsel %vm543, %v1904, 0
        %v1944 = vsel %vm543, %v1906, 0
        %v1947 = vsel %vm543, %v1908, 0
        %v1950 = vsel %vm543, %v1910, 0
        %v1953 = vsel %vm543, %v1912, 0
        %v1956 = vsel %vm543, %v1914, 0
        %v1959 = vsel %vm543, %v1916, 0
        %v1962 = vsel %vm543, %v1918, 0
        %v1965 = vsel %vm543, %v1920, 0
        %v1968 = vsel %vm543, %v1922, 0
        %v1971 = vsel %vm543, %v1924, 0
        %v1974 = vsel %vm543, %v1926, 0
        %v1977 = vsel %vm543, %v1928, 0
        %v1980 = vsel %vm543, %v1930, 0
        %v1983 = vsel %vm543, %v1932, 0
        %v1986 = vsel %vm543, %v1934, 0
        %v1989 = vsel %vm543, %v1936, 0
        %v1992 = vsel %vm598, %v1898, 0
        %1994 = vmatprep.subr.bf16.mxu0 0
        %1995 = vmatpush1.bf16.msra.mxu0 %v1992
        %1996 = vmatprep.subr.bf16.mxu0 0
        %1997 = vmatpush1.bf16.msra.mxu0 0
        %1998 = vmatprep.subr.bf16.mxu0 0
        %1999 = vmatpush1.bf16.msra.mxu0 0
        %2000 = vmatprep.subr.bf16.mxu0 0
        %2001 = vmatpush1.bf16.msra.mxu0 0
        %2002 = vmatprep.subr.bf16.mxu0 0
        %2003 = vmatpush1.bf16.msra.mxu0 0
        %2004 = vmatprep.subr.bf16.mxu0 0
        %2005 = vmatpush1.bf16.msra.mxu0 0
        %2006 = vmatprep.subr.bf16.mxu0 0
        %2007 = vmatpush1.bf16.msra.mxu0 0
        %2008 = vmatprep.subr.bf16.mxu0 0
        %2009 = vmatpush1.bf16.msra.mxu0 0
        %2010 = vmatprep.subr.bf16.mxu0 0
        %2011 = vmatpush1.bf16.msra.mxu0 0
        %2012 = vmatprep.subr.bf16.mxu0 0
        %2013 = vmatpush1.bf16.msra.mxu0 0
        %2014 = vmatprep.subr.bf16.mxu0 0
        %2015 = vmatpush1.bf16.msra.mxu0 0
        %2016 = vmatprep.subr.bf16.mxu0 0
        %2017 = vmatpush1.bf16.msra.mxu0 0
        %2018 = vmatprep.subr.bf16.mxu0 0
        %2019 = vmatpush1.bf16.msra.mxu0 0
        %2020 = vmatprep.subr.bf16.mxu0 0
        %2021 = vmatpush1.bf16.msra.mxu0 0
        %2022 = vmatprep.subr.bf16.mxu0 0
        %2023 = vmatpush1.bf16.msra.mxu0 0
        %2024 = vmatprep.subr.bf16.mxu0 0
        %2025 = vmatpush1.bf16.msra.mxu0 0
        %2026 = vmatprep.mubr.bf16.mxu0 0
        %2027 = vmatmul.mubr.bf16.gmra.mrb[0].mxu0 %v1938
        %v2028 = vpop.f32.mrb[0].mxu0
        %v2029 = vadd.f32 0.0, %v2028
        %v2030 = vpop.f32.mrb[0].mxu0
        %v2031 = vpop.f32.mrb[0].mxu0
        %v2032 = vadd.f32 0.0, %v2031
        %v2033 = vpop.f32.mrb[0].mxu0
        %2034 = vmatprep.mubr.bf16.mxu0 0
        %2035 = vmatmul.mubr.bf16.gmra.mrb[0].mxu0 %v1941
        %v2036 = vpop.f32.mrb[0].mxu0
        %v2037 = vadd.f32 0.0, %v2036
        %v2038 = vpop.f32.mrb[0].mxu0
        %v2039 = vpop.f32.mrb[0].mxu0
        %v2040 = vadd.f32 0.0, %v2039
        %v2041 = vpop.f32.mrb[0].mxu0
        %2042 = vmatprep.mubr.bf16.mxu0 0
        %2043 = vmatmul.mubr.bf16.gmra.mrb[0].mxu0 %v1944
        %v2044 = vpop.f32.mrb[0].mxu0
        %v2045 = vadd.f32 0.0, %v2044
        %v2046 = vpop.f32.mrb[0].mxu0
        %v2047 = vpop.f32.mrb[0].mxu0
        %v2048 = vadd.f32 0.0, %v2047
        %v2049 = vpop.f32.mrb[0].mxu0
        %2050 = vmatprep.mubr.bf16.mxu0 0
        %2051 = vmatmul.mubr.bf16.gmra.mrb[0].mxu0 %v1947
        %v2052 = vpop.f32.mrb[0].mxu0
        %v2053 = vadd.f32 0.0, %v2052
        %v2054 = vpop.f32.mrb[0].mxu0
        %v2055 = vpop.f32.mrb[0].mxu0
        %v2056 = vadd.f32 0.0, %v2055
        %v2057 = vpop.f32.mrb[0].mxu0
        %2058 = vmatprep.mubr.bf16.mxu0 0
        %2059 = vmatmul.mubr.bf16.gmra.mrb[0].mxu0 %v1950
        %v2060 = vpop.f32.mrb[0].mxu0
        %v2061 = vadd.f32 0.0, %v2060
        %v2062 = vpop.f32.mrb[0].mxu0
        %v2063 = vpop.f32.mrb[0].mxu0
        %v2064 = vadd.f32 0.0, %v2063
        %v2065 = vpop.f32.mrb[0].mxu0
        %2066 = vmatprep.mubr.bf16.mxu0 0
        %2067 = vmatmul.mubr.bf16.gmra.mrb[0].mxu0 %v1953
        %v2068 = vpop.f32.mrb[0].mxu0
        %v2069 = vadd.f32 0.0, %v2068
        %v2070 = vpop.f32.mrb[0].mxu0
        %v2071 = vpop.f32.mrb[0].mxu0
        %v2072 = vadd.f32 0.0, %v2071
        %v2073 = vpop.f32.mrb[0].mxu0
        %2074 = vmatprep.mubr.bf16.mxu0 0
        %2075 = vmatmul.mubr.bf16.gmra.mrb[0].mxu0 %v1956
        %v2076 = vpop.f32.mrb[0].mxu0
        %v2077 = vadd.f32 0.0, %v2076
        %v2078 = vpop.f32.mrb[0].mxu0
        %v2079 = vpop.f32.mrb[0].mxu0
        %v2080 = vadd.f32 0.0, %v2079
        %v2081 = vpop.f32.mrb[0].mxu0
        %2082 = vmatprep.mubr.bf16.mxu0 0
        %2083 = vmatmul.mubr.bf16.gmra.mrb[0].mxu0 %v1959
        %v2084 = vpop.f32.mrb[0].mxu0
        %v2085 = vadd.f32 0.0, %v2084
        %v2086 = vpop.f32.mrb[0].mxu0
        %v2087 = vpop.f32.mrb[0].mxu0
        %v2088 = vadd.f32 0.0, %v2087
        %v2089 = vpop.f32.mrb[0].mxu0
        %2090 = vmatprep.mubr.bf16.mxu0 0
        %2091 = vmatmul.mubr.bf16.gmra.mrb[0].mxu0 %v1962
        %v2092 = vpop.f32.mrb[0].mxu0
        %v2093 = vadd.f32 0.0, %v2092
        %v2094 = vpop.f32.mrb[0].mxu0
        %v2095 = vpop.f32.mrb[0].mxu0
        %v2096 = vadd.f32 0.0, %v2095
        %v2097 = vpop.f32.mrb[0].mxu0
        %2098 = vmatprep.mubr.bf16.mxu0 0
        %2099 = vmatmul.mubr.bf16.gmra.mrb[0].mxu0 %v1965
        %v2100 = vpop.f32.mrb[0].mxu0
        %v2101 = vadd.f32 0.0, %v2100
        %v2102 = vpop.f32.mrb[0].mxu0
        %v2103 = vpop.f32.mrb[0].mxu0
        %v2104 = vadd.f32 0.0, %v2103
        %v2105 = vpop.f32.mrb[0].mxu0
        %2106 = vmatprep.mubr.bf16.mxu0 0
        %2107 = vmatmul.mubr.bf16.gmra.mrb[0].mxu0 %v1968
        %v2108 = vpop.f32.mrb[0].mxu0
        %v2109 = vadd.f32 0.0, %v2108
        %v2110 = vpop.f32.mrb[0].mxu0
        %v2111 = vpop.f32.mrb[0].mxu0
        %v2112 = vadd.f32 0.0, %v2111
        %v2113 = vpop.f32.mrb[0].mxu0
        %2114 = vmatprep.mubr.bf16.mxu0 0
        %2115 = vmatmul.mubr.bf16.gmra.mrb[0].mxu0 %v1971
        %v2116 = vpop.f32.mrb[0].mxu0
        %v2117 = vadd.f32 0.0, %v2116
        %v2118 = vpop.f32.mrb[0].mxu0
        %v2119 = vpop.f32.mrb[0].mxu0
        %v2120 = vadd.f32 0.0, %v2119
        %v2121 = vpop.f32.mrb[0].mxu0
        %2122 = vmatprep.mubr.bf16.mxu0 0
        %2123 = vmatmul.mubr.bf16.gmra.mrb[0].mxu0 %v1974
        %v2124 = vpop.f32.mrb[0].mxu0
        %v2125 = vadd.f32 0.0, %v2124
        %v2126 = vpop.f32.mrb[0].mxu0
        %v2127 = vpop.f32.mrb[0].mxu0
        %v2128 = vadd.f32 0.0, %v2127
        %v2129 = vpop.f32.mrb[0].mxu0
        %2130 = vmatprep.mubr.bf16.mxu0 0
        %2131 = vmatmul.mubr.bf16.gmra.mrb[0].mxu0 %v1977
        %v2132 = vpop.f32.mrb[0].mxu0
        %v2133 = vadd.f32 0.0, %v2132
        %v2134 = vpop.f32.mrb[0].mxu0
        %v2135 = vpop.f32.mrb[0].mxu0
        %v2136 = vadd.f32 0.0, %v2135
        %v2137 = vpop.f32.mrb[0].mxu0
        %2138 = vmatprep.mubr.bf16.mxu0 0
        %2139 = vmatmul.mubr.bf16.gmra.mrb[0].mxu0 %v1980
        %v2140 = vpop.f32.mrb[0].mxu0
        %v2141 = vadd.f32 0.0, %v2140
        %v2142 = vpop.f32.mrb[0].mxu0
        %v2143 = vpop.f32.mrb[0].mxu0
        %v2144 = vadd.f32 0.0, %v2143
        %v2145 = vpop.f32.mrb[0].mxu0
        %2146 = vmatprep.mubr.bf16.mxu0 0
        %2147 = vmatmul.mubr.bf16.gmra.mrb[0].mxu0 %v1983
        %v2148 = vpop.f32.mrb[0].mxu0
        %v2149 = vadd.f32 0.0, %v2148
        %v2150 = vpop.f32.mrb[0].mxu0
        %v2151 = vpop.f32.mrb[0].mxu0
        %v2152 = vadd.f32 0.0, %v2151
        %v2153 = vpop.f32.mrb[0].mxu0
        %2154 = vmatprep.mubr.bf16.mxu0 0
        %2155 = vmatmul.mubr.bf16.gmra.mrb[0].mxu0 %v1986
        %v2156 = vpop.f32.mrb[0].mxu0
        %v2157 = vadd.f32 0.0, %v2156
        %v2158 = vpop.f32.mrb[0].mxu0
        %v2159 = vpop.f32.mrb[0].mxu0
        %v2160 = vadd.f32 0.0, %v2159
        %v2161 = vpop.f32.mrb[0].mxu0
        %2162 = vmatprep.mubr.bf16.mxu0 0
        %2163 = vmatmul.mubr.bf16.gmra.mrb[0].mxu0 %v1989
        %v2164 = vpop.f32.mrb[0].mxu0
        %v2165 = vadd.f32 0.0, %v2164
        %v2166 = vpop.f32.mrb[0].mxu0
        %v2167 = vpop.f32.mrb[0].mxu0
        %v2168 = vadd.f32 0.0, %v2167
        %v2169 = vpop.f32.mrb[0].mxu0
        %2170 = vdwg.mxu0
        %v2171 = vadd.f32 %v1861, %v2029
        %v2172 = vadd.f32 %v1862, %v2032
        %v2173 = vadd.f32 %v1863, %v2037
        %v2174 = vadd.f32 %v1864, %v2040
        %v2175 = vadd.f32 %v1865, %v2045
        %v2176 = vadd.f32 %v1866, %v2048
        %v2177 = vadd.f32 %v1867, %v2053
        %v2178 = vadd.f32 %v1868, %v2056
        %v2179 = vadd.f32 %v1869, %v2061
        %v2180 = vadd.f32 %v1870, %v2064
        %v2181 = vadd.f32 %v1871, %v2069
        %v2182 = vadd.f32 %v1872, %v2072
        %v2183 = vadd.f32 %v1873, %v2077
        %v2184 = vadd.f32 %v1874, %v2080
        %v2185 = vadd.f32 %v1875, %v2085
        %v2186 = vadd.f32 %v1876, %v2088
        %v2187 = vadd.f32 %v1877, %v2093
        %v2188 = vadd.f32 %v1878, %v2096
        %v2189 = vadd.f32 %v1879, %v2101
        %v2190 = vadd.f32 %v1880, %v2104
        %v2191 = vadd.f32 %v1881, %v2109
        %v2192 = vadd.f32 %v1882, %v2112
        %v2193 = vadd.f32 %v1883, %v2117
        %v2194 = vadd.f32 %v1884, %v2120
        %v2195 = vadd.f32 %v1885, %v2125
        %v2196 = vadd.f32 %v1886, %v2128
        %v2197 = vadd.f32 %v1887, %v2133
        %v2198 = vadd.f32 %v1888, %v2136
        %v2199 = vadd.f32 %v1889, %v2141
        %v2200 = vadd.f32 %v1890, %v2144
        %v2201 = vadd.f32 %v1891, %v2149
        %v2202 = vadd.f32 %v1892, %v2152
        %v2203 = vadd.f32 %v1893, %v2157
        %v2204 = vadd.f32 %v1894, %v2160
        %v2205 = vadd.f32 %v1895, %v2165
        %v2206 = vadd.f32 %v1896, %v2168
        %s2207 = scalar_lea.vmem [#allocation5], 24
        %v2208 = vld [vmem:[%s2207] sm:$0xf]
        %v2211 = vunpack.c.l.b16 %v296
        %v2212 = vunpack.c.l.b16 %v297
        %v2213 = vpack.c.b16 %v2211, %v1310
        %v2214 = vpack.c.b16 %v2212, %v2212
        %v2215 = vrot.slane %v2213, 2
        %v2216 = vsel %vm1899, %v1933, %v2215
        %v2217 = vrot.slane %v2214, 2
        %v2218 = vsel %vm1899, %v2215, %v2217
        %v2220 = vsel %vm543, %v2216, 0
        %v2223 = vsel %vm543, %v2218, 0
        %v2226 = vsel %vm598, %v2208, 0
        %2228 = vmatprep.subr.bf16.mxu0 0
        %2229 = vmatpush1.bf16.msra.mxu0 %v2226
        %2230 = vmatprep.subr.bf16.mxu0 0
        %2231 = vmatpush1.bf16.msra.mxu0 0
        %2232 = vmatprep.subr.bf16.mxu0 0
        %2233 = vmatpush1.bf16.msra.mxu0 0
        %2234 = vmatprep.subr.bf16.mxu0 0
        %2235 = vmatpush1.bf16.msra.mxu0 0
        %2236 = vmatprep.subr.bf16.mxu0 0
        %2237 = vmatpush1.bf16.msra.mxu0 0
        %2238 = vmatprep.subr.bf16.mxu0 0
        %2239 = vmatpush1.bf16.msra.mxu0 0
        %2240 = vmatprep.subr.bf16.mxu0 0
        %2241 = vmatpush1.bf16.msra.mxu0 0
        %2242 = vmatprep.subr.bf16.mxu0 0
        %2243 = vmatpush1.bf16.msra.mxu0 0
        %2244 = vmatprep.subr.bf16.mxu0 0
        %2245 = vmatpush1.bf16.msra.mxu0 0
        %2246 = vmatprep.subr.bf16.mxu0 0
        %2247 = vmatpush1.bf16.msra.mxu0 0
        %2248 = vmatprep.subr.bf16.mxu0 0
        %2249 = vmatpush1.bf16.msra.mxu0 0
        %2250 = vmatprep.subr.bf16.mxu0 0
        %2251 = vmatpush1.bf16.msra.mxu0 0
        %2252 = vmatprep.subr.bf16.mxu0 0
        %2253 = vmatpush1.bf16.msra.mxu0 0
        %2254 = vmatprep.subr.bf16.mxu0 0
        %2255 = vmatpush1.bf16.msra.mxu0 0
        %2256 = vmatprep.subr.bf16.mxu0 0
        %2257 = vmatpush1.bf16.msra.mxu0 0
        %2258 = vmatprep.subr.bf16.mxu0 0
        %2259 = vmatpush1.bf16.msra.mxu0 0
        %2260 = vmatprep.mubr.bf16.mxu0 0
        %2261 = vmatmul.mubr.bf16.gmra.mrb[0].mxu0 %v1941
        %v2262 = vpop.f32.mrb[0].mxu0
        %v2263 = vadd.f32 0.0, %v2262
        %v2264 = vpop.f32.mrb[0].mxu0
        %v2265 = vpop.f32.mrb[0].mxu0
        %v2266 = vadd.f32 0.0, %v2265
        %v2267 = vpop.f32.mrb[0].mxu0
        %2268 = vmatprep.mubr.bf16.mxu0 0
        %2269 = vmatmul.mubr.bf16.gmra.mrb[0].mxu0 %v1944
        %v2270 = vpop.f32.mrb[0].mxu0
        %v2271 = vadd.f32 0.0, %v2270
        %v2272 = vpop.f32.mrb[0].mxu0
        %v2273 = vpop.f32.mrb[0].mxu0
        %v2274 = vadd.f32 0.0, %v2273
        %v2275 = vpop.f32.mrb[0].mxu0
        %2276 = vmatprep.mubr.bf16.mxu0 0
        %2277 = vmatmul.mubr.bf16.gmra.mrb[0].mxu0 %v1947
        %v2278 = vpop.f32.mrb[0].mxu0
        %v2279 = vadd.f32 0.0, %v2278
        %v2280 = vpop.f32.mrb[0].mxu0
        %v2281 = vpop.f32.mrb[0].mxu0
        %v2282 = vadd.f32 0.0, %v2281
        %v2283 = vpop.f32.mrb[0].mxu0
        %2284 = vmatprep.mubr.bf16.mxu0 0
        %2285 = vmatmul.mubr.bf16.gmra.mrb[0].mxu0 %v1950
        %v2286 = vpop.f32.mrb[0].mxu0
        %v2287 = vadd.f32 0.0, %v2286
        %v2288 = vpop.f32.mrb[0].mxu0
        %v2289 = vpop.f32.mrb[0].mxu0
        %v2290 = vadd.f32 0.0, %v2289
        %v2291 = vpop.f32.mrb[0].mxu0
        %2292 = vmatprep.mubr.bf16.mxu0 0
        %2293 = vmatmul.mubr.bf16.gmra.mrb[0].mxu0 %v1953
        %v2294 = vpop.f32.mrb[0].mxu0
        %v2295 = vadd.f32 0.0, %v2294
        %v2296 = vpop.f32.mrb[0].mxu0
        %v2297 = vpop.f32.mrb[0].mxu0
        %v2298 = vadd.f32 0.0, %v2297
        %v2299 = vpop.f32.mrb[0].mxu0
        %2300 = vmatprep.mubr.bf16.mxu0 0
        %2301 = vmatmul.mubr.bf16.gmra.mrb[0].mxu0 %v1956
        %v2302 = vpop.f32.mrb[0].mxu0
        %v2303 = vadd.f32 0.0, %v2302
        %v2304 = vpop.f32.mrb[0].mxu0
        %v2305 = vpop.f32.mrb[0].mxu0
        %v2306 = vadd.f32 0.0, %v2305
        %v2307 = vpop.f32.mrb[0].mxu0
        %2308 = vmatprep.mubr.bf16.mxu0 0
        %2309 = vmatmul.mubr.bf16.gmra.mrb[0].mxu0 %v1959
        %v2310 = vpop.f32.mrb[0].mxu0
        %v2311 = vadd.f32 0.0, %v2310
        %v2312 = vpop.f32.mrb[0].mxu0
        %v2313 = vpop.f32.mrb[0].mxu0
        %v2314 = vadd.f32 0.0, %v2313
        %v2315 = vpop.f32.mrb[0].mxu0
        %2316 = vmatprep.mubr.bf16.mxu0 0
        %2317 = vmatmul.mubr.bf16.gmra.mrb[0].mxu0 %v1962
        %v2318 = vpop.f32.mrb[0].mxu0
        %v2319 = vadd.f32 0.0, %v2318
        %v2320 = vpop.f32.mrb[0].mxu0
        %v2321 = vpop.f32.mrb[0].mxu0
        %v2322 = vadd.f32 0.0, %v2321
        %v2323 = vpop.f32.mrb[0].mxu0
        %2324 = vmatprep.mubr.bf16.mxu0 0
        %2325 = vmatmul.mubr.bf16.gmra.mrb[0].mxu0 %v1965
        %v2326 = vpop.f32.mrb[0].mxu0
        %v2327 = vadd.f32 0.0, %v2326
        %v2328 = vpop.f32.mrb[0].mxu0
        %v2329 = vpop.f32.mrb[0].mxu0
        %v2330 = vadd.f32 0.0, %v2329
        %v2331 = vpop.f32.mrb[0].mxu0
        %2332 = vmatprep.mubr.bf16.mxu0 0
        %2333 = vmatmul.mubr.bf16.gmra.mrb[0].mxu0 %v1968
        %v2334 = vpop.f32.mrb[0].mxu0
        %v2335 = vadd.f32 0.0, %v2334
        %v2336 = vpop.f32.mrb[0].mxu0
        %v2337 = vpop.f32.mrb[0].mxu0
        %v2338 = vadd.f32 0.0, %v2337
        %v2339 = vpop.f32.mrb[0].mxu0
        %2340 = vmatprep.mubr.bf16.mxu0 0
        %2341 = vmatmul.mubr.bf16.gmra.mrb[0].mxu0 %v1971
        %v2342 = vpop.f32.mrb[0].mxu0
        %v2343 = vadd.f32 0.0, %v2342
        %v2344 = vpop.f32.mrb[0].mxu0
        %v2345 = vpop.f32.mrb[0].mxu0
        %v2346 = vadd.f32 0.0, %v2345
        %v2347 = vpop.f32.mrb[0].mxu0
        %2348 = vmatprep.mubr.bf16.mxu0 0
        %2349 = vmatmul.mubr.bf16.gmra.mrb[0].mxu0 %v1974
        %v2350 = vpop.f32.mrb[0].mxu0
        %v2351 = vadd.f32 0.0, %v2350
        %v2352 = vpop.f32.mrb[0].mxu0
        %v2353 = vpop.f32.mrb[0].mxu0
        %v2354 = vadd.f32 0.0, %v2353
        %v2355 = vpop.f32.mrb[0].mxu0
        %2356 = vmatprep.mubr.bf16.mxu0 0
        %2357 = vmatmul.mubr.bf16.gmra.mrb[0].mxu0 %v1977
        %v2358 = vpop.f32.mrb[0].mxu0
        %v2359 = vadd.f32 0.0, %v2358
        %v2360 = vpop.f32.mrb[0].mxu0
        %v2361 = vpop.f32.mrb[0].mxu0
        %v2362 = vadd.f32 0.0, %v2361
        %v2363 = vpop.f32.mrb[0].mxu0
        %2364 = vmatprep.mubr.bf16.mxu0 0
        %2365 = vmatmul.mubr.bf16.gmra.mrb[0].mxu0 %v1980
        %v2366 = vpop.f32.mrb[0].mxu0
        %v2367 = vadd.f32 0.0, %v2366
        %v2368 = vpop.f32.mrb[0].mxu0
        %v2369 = vpop.f32.mrb[0].mxu0
        %v2370 = vadd.f32 0.0, %v2369
        %v2371 = vpop.f32.mrb[0].mxu0
        %2372 = vmatprep.mubr.bf16.mxu0 0
        %2373 = vmatmul.mubr.bf16.gmra.mrb[0].mxu0 %v1983
        %v2374 = vpop.f32.mrb[0].mxu0
        %v2375 = vadd.f32 0.0, %v2374
        %v2376 = vpop.f32.mrb[0].mxu0
        %v2377 = vpop.f32.mrb[0].mxu0
        %v2378 = vadd.f32 0.0, %v2377
        %v2379 = vpop.f32.mrb[0].mxu0
        %2380 = vmatprep.mubr.bf16.mxu0 0
        %2381 = vmatmul.mubr.bf16.gmra.mrb[0].mxu0 %v1986
        %v2382 = vpop.f32.mrb[0].mxu0
        %v2383 = vadd.f32 0.0, %v2382
        %v2384 = vpop.f32.mrb[0].mxu0
        %v2385 = vpop.f32.mrb[0].mxu0
        %v2386 = vadd.f32 0.0, %v2385
        %v2387 = vpop.f32.mrb[0].mxu0
        %2388 = vmatprep.mubr.bf16.mxu0 0
        %2389 = vmatmul.mubr.bf16.gmra.mrb[0].mxu0 %v2220
        %v2390 = vpop.f32.mrb[0].mxu0
        %v2391 = vadd.f32 0.0, %v2390
        %v2392 = vpop.f32.mrb[0].mxu0
        %v2393 = vpop.f32.mrb[0].mxu0
        %v2394 = vadd.f32 0.0, %v2393
        %v2395 = vpop.f32.mrb[0].mxu0
        %2396 = vmatprep.mubr.bf16.mxu0 0
        %2397 = vmatmul.mubr.bf16.gmra.mrb[0].mxu0 %v2223
        %v2398 = vpop.f32.mrb[0].mxu0
        %v2399 = vadd.f32 0.0, %v2398
        %v2400 = vpop.f32.mrb[0].mxu0
        %v2401 = vpop.f32.mrb[0].mxu0
        %v2402 = vadd.f32 0.0, %v2401
        %v2403 = vpop.f32.mrb[0].mxu0
        %2404 = vdwg.mxu0
        %v2405 = vadd.f32 %v2171, %v2263
        %v2406 = vadd.f32 %v2172, %v2266
        %v2407 = vadd.f32 %v2173, %v2271
        %v2408 = vadd.f32 %v2174, %v2274
        %v2409 = vadd.f32 %v2175, %v2279
        %v2410 = vadd.f32 %v2176, %v2282
        %v2411 = vadd.f32 %v2177, %v2287
        %v2412 = vadd.f32 %v2178, %v2290
        %v2413 = vadd.f32 %v2179, %v2295
        %v2414 = vadd.f32 %v2180, %v2298
        %v2415 = vadd.f32 %v2181, %v2303
        %v2416 = vadd.f32 %v2182, %v2306
        %v2417 = vadd.f32 %v2183, %v2311
        %v2418 = vadd.f32 %v2184, %v2314
        %v2419 = vadd.f32 %v2185, %v2319
        %v2420 = vadd.f32 %v2186, %v2322
        %v2421 = vadd.f32 %v2187, %v2327
        %v2422 = vadd.f32 %v2188, %v2330
        %v2423 = vadd.f32 %v2189, %v2335
        %v2424 = vadd.f32 %v2190, %v2338
        %v2425 = vadd.f32 %v2191, %v2343
        %v2426 = vadd.f32 %v2192, %v2346
        %v2427 = vadd.f32 %v2193, %v2351
        %v2428 = vadd.f32 %v2194, %v2354
        %v2429 = vadd.f32 %v2195, %v2359
        %v2430 = vadd.f32 %v2196, %v2362
        %v2431 = vadd.f32 %v2197, %v2367
        %v2432 = vadd.f32 %v2198, %v2370
        %v2433 = vadd.f32 %v2199, %v2375
        %v2434 = vadd.f32 %v2200, %v2378
        %v2435 = vadd.f32 %v2201, %v2383
        %v2436 = vadd.f32 %v2202, %v2386
        %v2437 = vadd.f32 %v2203, %v2391
        %v2438 = vadd.f32 %v2204, %v2394
        %v2439 = vadd.f32 %v2205, %v2399
        %v2440 = vadd.f32 %v2206, %v2402
        %s2441 = scalar_lea.vmem [#allocation5], 28
        %v2442 = vld [vmem:[%s2441] sm:$0xf]
        %vm2443 = vsmask.f32 5376
        %v2444 = vrot.slane %v415, 2
        %v2445 = vrot.slane %v411, 3
        %v2446 = vor.u32 %v2444, %v2445
        %v2447 = vrot.slane %v423, 2
        %v2448 = vrot.slane %v419, 3
        %v2449 = vor.u32 %v2447, %v2448
        %v2450 = vsel %vm2443, %v2446, %v2449
        %v2451 = vrot.slane %v431, 2
        %v2452 = vrot.slane %v427, 3
        %v2453 = vor.u32 %v2451, %v2452
        %v2454 = vsel %vm2443, %v2449, %v2453
        %v2455 = vrot.slane %v439, 2
        %v2456 = vrot.slane %v435, 3
        %v2457 = vor.u32 %v2455, %v2456
        %v2458 = vsel %vm2443, %v2453, %v2457
        %v2459 = vrot.slane %v447, 2
        %v2460 = vrot.slane %v443, 3
        %v2461 = vor.u32 %v2459, %v2460
        %v2462 = vsel %vm2443, %v2457, %v2461
        %v2463 = vrot.slane %v455, 2
        %v2464 = vrot.slane %v451, 3
        %v2465 = vor.u32 %v2463, %v2464
        %v2466 = vsel %vm2443, %v2461, %v2465
        %v2467 = vrot.slane %v463, 2
        %v2468 = vrot.slane %v459, 3
        %v2469 = vor.u32 %v2467, %v2468
        %v2470 = vsel %vm2443, %v2465, %v2469
        %v2471 = vrot.slane %v471, 2
        %v2472 = vrot.slane %v467, 3
        %v2473 = vor.u32 %v2471, %v2472
        %v2474 = vsel %vm2443, %v2469, %v2473
        %v2475 = vrot.slane %v479, 2
        %v2476 = vrot.slane %v475, 3
        %v2477 = vor.u32 %v2475, %v2476
        %v2478 = vsel %vm2443, %v2473, %v2477
        %v2479 = vrot.slane %v487, 2
        %v2480 = vrot.slane %v483, 3
        %v2481 = vor.u32 %v2479, %v2480
        %v2482 = vsel %vm2443, %v2477, %v2481
        %v2483 = vrot.slane %v495, 2
        %v2484 = vrot.slane %v491, 3
        %v2485 = vor.u32 %v2483, %v2484
        %v2486 = vsel %vm2443, %v2481, %v2485
        %v2487 = vrot.slane %v503, 2
        %v2488 = vrot.slane %v499, 3
        %v2489 = vor.u32 %v2487, %v2488
        %v2490 = vsel %vm2443, %v2485, %v2489
        %v2491 = vrot.slane %v511, 2
        %v2492 = vrot.slane %v507, 3
        %v2493 = vor.u32 %v2491, %v2492
        %v2494 = vsel %vm2443, %v2489, %v2493
        %v2495 = vrot.slane %v519, 2
        %v2496 = vrot.slane %v515, 3
        %v2497 = vor.u32 %v2495, %v2496
        %v2498 = vsel %vm2443, %v2493, %v2497
        %v2499 = vrot.slane %v527, 2
        %v2500 = vrot.slane %v523, 3
        %v2501 = vor.u32 %v2499, %v2500
        %v2502 = vsel %vm2443, %v2497, %v2501
        %v2503 = vrot.slane %v535, 2
        %v2504 = vrot.slane %v531, 3
        %v2505 = vor.u32 %v2503, %v2504
        %v2506 = vsel %vm2443, %v2501, %v2505
        %v2507 = vrot.slane %v1610, 2
        %v2508 = vrot.slane %v1613, 3
        %v2509 = vor.u32 %v2507, %v2508
        %v2510 = vsel %vm2443, %v2505, %v2509
        %v2512 = vshrl.u32 %v2213, 16
        %v2514 = vrot.slane %v2512, 2
        %v2515 = vshll.u32 %v2213, 16
        %v2517 = vrot.slane %v2515, 3
        %v2518 = vor.u32 %v2514, %v2517
        %v2519 = vsel %vm2443, %v2509, %v2518
        %v2521 = vshrl.u32 %v2214, 16
        %v2523 = vrot.slane %v2521, 2
        %v2524 = vshll.u32 %v2214, 16
        %v2526 = vrot.slane %v2524, 3
        %v2527 = vor.u32 %v2523, %v2526
        %v2528 = vsel %vm2443, %v2518, %v2527
        %v2530 = vsel %vm543, %v2450, 0
        %v2533 = vsel %vm543, %v2454, 0
        %v2536 = vsel %vm543, %v2458, 0
        %v2539 = vsel %vm543, %v2462, 0
        %v2542 = vsel %vm543, %v2466, 0
        %v2545 = vsel %vm543, %v2470, 0
        %v2548 = vsel %vm543, %v2474, 0
        %v2551 = vsel %vm543, %v2478, 0
        %v2554 = vsel %vm543, %v2482, 0
        %v2557 = vsel %vm543, %v2486, 0
        %v2560 = vsel %vm543, %v2490, 0
        %v2563 = vsel %vm543, %v2494, 0
        %v2566 = vsel %vm543, %v2498, 0
        %v2569 = vsel %vm543, %v2502, 0
        %v2572 = vsel %vm543, %v2506, 0
        %v2575 = vsel %vm543, %v2510, 0
        %v2578 = vsel %vm543, %v2519, 0
        %v2581 = vsel %vm543, %v2528, 0
        %v2584 = vsel %vm598, %v2442, 0
        %2586 = vmatprep.subr.bf16.mxu0 0
        %2587 = vmatpush1.bf16.msra.mxu0 %v2584
        %2588 = vmatprep.subr.bf16.mxu0 0
        %2589 = vmatpush1.bf16.msra.mxu0 0
        %2590 = vmatprep.subr.bf16.mxu0 0
        %2591 = vmatpush1.bf16.msra.mxu0 0
        %2592 = vmatprep.subr.bf16.mxu0 0
        %2593 = vmatpush1.bf16.msra.mxu0 0
        %2594 = vmatprep.subr.bf16.mxu0 0
        %2595 = vmatpush1.bf16.msra.mxu0 0
        %2596 = vmatprep.subr.bf16.mxu0 0
        %2597 = vmatpush1.bf16.msra.mxu0 0
        %2598 = vmatprep.subr.bf16.mxu0 0
        %2599 = vmatpush1.bf16.msra.mxu0 0
        %2600 = vmatprep.subr.bf16.mxu0 0
        %2601 = vmatpush1.bf16.msra.mxu0 0
        %2602 = vmatprep.subr.bf16.mxu0 0
        %2603 = vmatpush1.bf16.msra.mxu0 0
        %2604 = vmatprep.subr.bf16.mxu0 0
        %2605 = vmatpush1.bf16.msra.mxu0 0
        %2606 = vmatprep.subr.bf16.mxu0 0
        %2607 = vmatpush1.bf16.msra.mxu0 0
        %2608 = vmatprep.subr.bf16.mxu0 0
        %2609 = vmatpush1.bf16.msra.mxu0 0
        %2610 = vmatprep.subr.bf16.mxu0 0
        %2611 = vmatpush1.bf16.msra.mxu0 0
        %2612 = vmatprep.subr.bf16.mxu0 0
        %2613 = vmatpush1.bf16.msra.mxu0 0
        %2614 = vmatprep.subr.bf16.mxu0 0
        %2615 = vmatpush1.bf16.msra.mxu0 0
        %2616 = vmatprep.subr.bf16.mxu0 0
        %2617 = vmatpush1.bf16.msra.mxu0 0
        %2618 = vmatprep.mubr.bf16.mxu0 0
        %2619 = vmatmul.mubr.bf16.gmra.mrb[0].mxu0 %v2530
        %v2620 = vpop.f32.mrb[0].mxu0
        %v2621 = vadd.f32 0.0, %v2620
        %v2622 = vpop.f32.mrb[0].mxu0
        %v2623 = vpop.f32.mrb[0].mxu0
        %v2624 = vadd.f32 0.0, %v2623
        %v2625 = vpop.f32.mrb[0].mxu0
        %2626 = vmatprep.mubr.bf16.mxu0 0
        %2627 = vmatmul.mubr.bf16.gmra.mrb[0].mxu0 %v2533
        %v2628 = vpop.f32.mrb[0].mxu0
        %v2629 = vadd.f32 0.0, %v2628
        %v2630 = vpop.f32.mrb[0].mxu0
        %v2631 = vpop.f32.mrb[0].mxu0
        %v2632 = vadd.f32 0.0, %v2631
        %v2633 = vpop.f32.mrb[0].mxu0
        %2634 = vmatprep.mubr.bf16.mxu0 0
        %2635 = vmatmul.mubr.bf16.gmra.mrb[0].mxu0 %v2536
        %v2636 = vpop.f32.mrb[0].mxu0
        %v2637 = vadd.f32 0.0, %v2636
        %v2638 = vpop.f32.mrb[0].mxu0
        %v2639 = vpop.f32.mrb[0].mxu0
        %v2640 = vadd.f32 0.0, %v2639
        %v2641 = vpop.f32.mrb[0].mxu0
        %2642 = vmatprep.mubr.bf16.mxu0 0
        %2643 = vmatmul.mubr.bf16.gmra.mrb[0].mxu0 %v2539
        %v2644 = vpop.f32.mrb[0].mxu0
        %v2645 = vadd.f32 0.0, %v2644
        %v2646 = vpop.f32.mrb[0].mxu0
        %v2647 = vpop.f32.mrb[0].mxu0
        %v2648 = vadd.f32 0.0, %v2647
        %v2649 = vpop.f32.mrb[0].mxu0
        %2650 = vmatprep.mubr.bf16.mxu0 0
        %2651 = vmatmul.mubr.bf16.gmra.mrb[0].mxu0 %v2542
        %v2652 = vpop.f32.mrb[0].mxu0
        %v2653 = vadd.f32 0.0, %v2652
        %v2654 = vpop.f32.mrb[0].mxu0
        %v2655 = vpop.f32.mrb[0].mxu0
        %v2656 = vadd.f32 0.0, %v2655
        %v2657 = vpop.f32.mrb[0].mxu0
        %2658 = vmatprep.mubr.bf16.mxu0 0
        %2659 = vmatmul.mubr.bf16.gmra.mrb[0].mxu0 %v2545
        %v2660 = vpop.f32.mrb[0].mxu0
        %v2661 = vadd.f32 0.0, %v2660
        %v2662 = vpop.f32.mrb[0].mxu0
        %v2663 = vpop.f32.mrb[0].mxu0
        %v2664 = vadd.f32 0.0, %v2663
        %v2665 = vpop.f32.mrb[0].mxu0
        %2666 = vmatprep.mubr.bf16.mxu0 0
        %2667 = vmatmul.mubr.bf16.gmra.mrb[0].mxu0 %v2548
        %v2668 = vpop.f32.mrb[0].mxu0
        %v2669 = vadd.f32 0.0, %v2668
        %v2670 = vpop.f32.mrb[0].mxu0
        %v2671 = vpop.f32.mrb[0].mxu0
        %v2672 = vadd.f32 0.0, %v2671
        %v2673 = vpop.f32.mrb[0].mxu0
        %2674 = vmatprep.mubr.bf16.mxu0 0
        %2675 = vmatmul.mubr.bf16.gmra.mrb[0].mxu0 %v2551
        %v2676 = vpop.f32.mrb[0].mxu0
        %v2677 = vadd.f32 0.0, %v2676
        %v2678 = vpop.f32.mrb[0].mxu0
        %v2679 = vpop.f32.mrb[0].mxu0
        %v2680 = vadd.f32 0.0, %v2679
        %v2681 = vpop.f32.mrb[0].mxu0
        %2682 = vmatprep.mubr.bf16.mxu0 0
        %2683 = vmatmul.mubr.bf16.gmra.mrb[0].mxu0 %v2554
        %v2684 = vpop.f32.mrb[0].mxu0
        %v2685 = vadd.f32 0.0, %v2684
        %v2686 = vpop.f32.mrb[0].mxu0
        %v2687 = vpop.f32.mrb[0].mxu0
        %v2688 = vadd.f32 0.0, %v2687
        %v2689 = vpop.f32.mrb[0].mxu0
        %2690 = vmatprep.mubr.bf16.mxu0 0
        %2691 = vmatmul.mubr.bf16.gmra.mrb[0].mxu0 %v2557
        %v2692 = vpop.f32.mrb[0].mxu0
        %v2693 = vadd.f32 0.0, %v2692
        %v2694 = vpop.f32.mrb[0].mxu0
        %v2695 = vpop.f32.mrb[0].mxu0
        %v2696 = vadd.f32 0.0, %v2695
        %v2697 = vpop.f32.mrb[0].mxu0
        %2698 = vmatprep.mubr.bf16.mxu0 0
        %2699 = vmatmul.mubr.bf16.gmra.mrb[0].mxu0 %v2560
        %v2700 = vpop.f32.mrb[0].mxu0
        %v2701 = vadd.f32 0.0, %v2700
        %v2702 = vpop.f32.mrb[0].mxu0
        %v2703 = vpop.f32.mrb[0].mxu0
        %v2704 = vadd.f32 0.0, %v2703
        %v2705 = vpop.f32.mrb[0].mxu0
        %2706 = vmatprep.mubr.bf16.mxu0 0
        %2707 = vmatmul.mubr.bf16.gmra.mrb[0].mxu0 %v2563
        %v2708 = vpop.f32.mrb[0].mxu0
        %v2709 = vadd.f32 0.0, %v2708
        %v2710 = vpop.f32.mrb[0].mxu0
        %v2711 = vpop.f32.mrb[0].mxu0
        %v2712 = vadd.f32 0.0, %v2711
        %v2713 = vpop.f32.mrb[0].mxu0
        %2714 = vmatprep.mubr.bf16.mxu0 0
        %2715 = vmatmul.mubr.bf16.gmra.mrb[0].mxu0 %v2566
        %v2716 = vpop.f32.mrb[0].mxu0
        %v2717 = vadd.f32 0.0, %v2716
        %v2718 = vpop.f32.mrb[0].mxu0
        %v2719 = vpop.f32.mrb[0].mxu0
        %v2720 = vadd.f32 0.0, %v2719
        %v2721 = vpop.f32.mrb[0].mxu0
        %2722 = vmatprep.mubr.bf16.mxu0 0
        %2723 = vmatmul.mubr.bf16.gmra.mrb[0].mxu0 %v2569
        %v2724 = vpop.f32.mrb[0].mxu0
        %v2725 = vadd.f32 0.0, %v2724
        %v2726 = vpop.f32.mrb[0].mxu0
        %v2727 = vpop.f32.mrb[0].mxu0
        %v2728 = vadd.f32 0.0, %v2727
        %v2729 = vpop.f32.mrb[0].mxu0
        %2730 = vmatprep.mubr.bf16.mxu0 0
        %2731 = vmatmul.mubr.bf16.gmra.mrb[0].mxu0 %v2572
        %v2732 = vpop.f32.mrb[0].mxu0
        %v2733 = vadd.f32 0.0, %v2732
        %v2734 = vpop.f32.mrb[0].mxu0
        %v2735 = vpop.f32.mrb[0].mxu0
        %v2736 = vadd.f32 0.0, %v2735
        %v2737 = vpop.f32.mrb[0].mxu0
        %2738 = vmatprep.mubr.bf16.mxu0 0
        %2739 = vmatmul.mubr.bf16.gmra.mrb[0].mxu0 %v2575
        %v2740 = vpop.f32.mrb[0].mxu0
        %v2741 = vadd.f32 0.0, %v2740
        %v2742 = vpop.f32.mrb[0].mxu0
        %v2743 = vpop.f32.mrb[0].mxu0
        %v2744 = vadd.f32 0.0, %v2743
        %v2745 = vpop.f32.mrb[0].mxu0
        %2746 = vmatprep.mubr.bf16.mxu0 0
        %2747 = vmatmul.mubr.bf16.gmra.mrb[0].mxu0 %v2578
        %v2748 = vpop.f32.mrb[0].mxu0
        %v2749 = vadd.f32 0.0, %v2748
        %v2750 = vpop.f32.mrb[0].mxu0
        %v2751 = vpop.f32.mrb[0].mxu0
        %v2752 = vadd.f32 0.0, %v2751
        %v2753 = vpop.f32.mrb[0].mxu0
        %2754 = vmatprep.mubr.bf16.mxu0 0
        %2755 = vmatmul.mubr.bf16.gmra.mrb[0].mxu0 %v2581
        %v2756 = vpop.f32.mrb[0].mxu0
        %v2757 = vadd.f32 0.0, %v2756
        %v2758 = vpop.f32.mrb[0].mxu0
        %v2759 = vpop.f32.mrb[0].mxu0
        %v2760 = vadd.f32 0.0, %v2759
        %v2761 = vpop.f32.mrb[0].mxu0
        %2762 = vdwg.mxu0
        %v2763 = vadd.f32 %v2405, %v2621
        %v2764 = vadd.f32 %v2406, %v2624
        %v2765 = vadd.f32 %v2407, %v2629
        %v2766 = vadd.f32 %v2408, %v2632
        %v2767 = vadd.f32 %v2409, %v2637
        %v2768 = vadd.f32 %v2410, %v2640
        %v2769 = vadd.f32 %v2411, %v2645
        %v2770 = vadd.f32 %v2412, %v2648
        %v2771 = vadd.f32 %v2413, %v2653
        %v2772 = vadd.f32 %v2414, %v2656
        %v2773 = vadd.f32 %v2415, %v2661
        %v2774 = vadd.f32 %v2416, %v2664
        %v2775 = vadd.f32 %v2417, %v2669
        %v2776 = vadd.f32 %v2418, %v2672
        %v2777 = vadd.f32 %v2419, %v2677
        %v2778 = vadd.f32 %v2420, %v2680
        %v2779 = vadd.f32 %v2421, %v2685
        %v2780 = vadd.f32 %v2422, %v2688
        %v2781 = vadd.f32 %v2423, %v2693
        %v2782 = vadd.f32 %v2424, %v2696
        %v2783 = vadd.f32 %v2425, %v2701
        %v2784 = vadd.f32 %v2426, %v2704
        %v2785 = vadd.f32 %v2427, %v2709
        %v2786 = vadd.f32 %v2428, %v2712
        %v2787 = vadd.f32 %v2429, %v2717
        %v2788 = vadd.f32 %v2430, %v2720
        %v2789 = vadd.f32 %v2431, %v2725
        %v2790 = vadd.f32 %v2432, %v2728
        %v2791 = vadd.f32 %v2433, %v2733
        %v2792 = vadd.f32 %v2434, %v2736
        %v2793 = vadd.f32 %v2435, %v2741
        %v2794 = vadd.f32 %v2436, %v2744
        %v2795 = vadd.f32 %v2437, %v2749
        %v2796 = vadd.f32 %v2438, %v2752
        %v2797 = vadd.f32 %v2439, %v2757
        %v2798 = vadd.f32 %v2440, %v2760
        %s2799 = scalar_lea.vmem [#allocation5], 32
        %v2800 = vld [vmem:[%s2799] sm:$0xf]
        %vm2801 = vcmask 1044480
        %v2802 = vrot.slane %v377, 3
        %v2803 = vrot.slane %v378, 3
        %v2804 = vsel %vm2801, %v2802, %v2803
        %v2805 = vrot.slane %v379, 3
        %v2806 = vsel %vm2801, %v2803, %v2805
        %v2807 = vrot.slane %v380, 3
        %v2808 = vsel %vm2801, %v2805, %v2807
        %v2809 = vrot.slane %v381, 3
        %v2810 = vsel %vm2801, %v2807, %v2809
        %v2811 = vrot.slane %v382, 3
        %v2812 = vsel %vm2801, %v2809, %v2811
        %v2813 = vrot.slane %v383, 3
        %v2814 = vsel %vm2801, %v2811, %v2813
        %v2815 = vrot.slane %v384, 3
        %v2816 = vsel %vm2801, %v2813, %v2815
        %v2817 = vrot.slane %v385, 3
        %v2818 = vsel %vm2801, %v2815, %v2817
        %v2819 = vrot.slane %v386, 3
        %v2820 = vsel %vm2801, %v2817, %v2819
        %v2821 = vrot.slane %v387, 3
        %v2822 = vsel %vm2801, %v2819, %v2821
        %v2823 = vrot.slane %v388, 3
        %v2824 = vsel %vm2801, %v2821, %v2823
        %v2825 = vrot.slane %v389, 3
        %v2826 = vsel %vm2801, %v2823, %v2825
        %v2827 = vrot.slane %v390, 3
        %v2828 = vsel %vm2801, %v2825, %v2827
        %v2829 = vrot.slane %v391, 3
        %v2830 = vsel %vm2801, %v2827, %v2829
        %v2831 = vrot.slane %v392, 3
        %v2832 = vsel %vm2801, %v2829, %v2831
        %v2833 = vrot.slane %v1311, 3
        %v2834 = vsel %vm2801, %v2831, %v2833
        %v2835 = vrot.slane %v2213, 3
        %v2836 = vsel %vm2801, %v2833, %v2835
        %v2837 = vrot.slane %v2214, 3
        %v2838 = vsel %vm2801, %v2835, %v2837
        %v2840 = vsel %vm543, %v2804, 0
        %v2843 = vsel %vm543, %v2806, 0
        %v2846 = vsel %vm543, %v2808, 0
        %v2849 = vsel %vm543, %v2810, 0
        %v2852 = vsel %vm543, %v2812, 0
        %v2855 = vsel %vm543, %v2814, 0
        %v2858 = vsel %vm543, %v2816, 0
        %v2861 = vsel %vm543, %v2818, 0
        %v2864 = vsel %vm543, %v2820, 0
        %v2867 = vsel %vm543, %v2822, 0
        %v2870 = vsel %vm543, %v2824, 0
        %v2873 = vsel %vm543, %v2826, 0
        %v2876 = vsel %vm543, %v2828, 0
        %v2879 = vsel %vm543, %v2830, 0
        %v2882 = vsel %vm543, %v2832, 0
        %v2885 = vsel %vm543, %v2834, 0
        %v2888 = vsel %vm543, %v2836, 0
        %v2891 = vsel %vm543, %v2838, 0
        %v2894 = vsel %vm598, %v2800, 0
        %2896 = vmatprep.subr.bf16.mxu0 0
        %2897 = vmatpush1.bf16.msra.mxu0 %v2894
        %2898 = vmatprep.subr.bf16.mxu0 0
        %2899 = vmatpush1.bf16.msra.mxu0 0
        %2900 = vmatprep.subr.bf16.mxu0 0
        %2901 = vmatpush1.bf16.msra.mxu0 0
        %2902 = vmatprep.subr.bf16.mxu0 0
        %2903 = vmatpush1.bf16.msra.mxu0 0
        %2904 = vmatprep.subr.bf16.mxu0 0
        %2905 = vmatpush1.bf16.msra.mxu0 0
        %2906 = vmatprep.subr.bf16.mxu0 0
        %2907 = vmatpush1.bf16.msra.mxu0 0
        %2908 = vmatprep.subr.bf16.mxu0 0
        %2909 = vmatpush1.bf16.msra.mxu0 0
        %2910 = vmatprep.subr.bf16.mxu0 0
        %2911 = vmatpush1.bf16.msra.mxu0 0
        %2912 = vmatprep.subr.bf16.mxu0 0
        %2913 = vmatpush1.bf16.msra.mxu0 0
        %2914 = vmatprep.subr.bf16.mxu0 0
        %2915 = vmatpush1.bf16.msra.mxu0 0
        %2916 = vmatprep.subr.bf16.mxu0 0
        %2917 = vmatpush1.bf16.msra.mxu0 0
        %2918 = vmatprep.subr.bf16.mxu0 0
        %2919 = vmatpush1.bf16.msra.mxu0 0
        %2920 = vmatprep.subr.bf16.mxu0 0
        %2921 = vmatpush1.bf16.msra.mxu0 0
        %2922 = vmatprep.subr.bf16.mxu0 0
        %2923 = vmatpush1.bf16.msra.mxu0 0
        %2924 = vmatprep.subr.bf16.mxu0 0
        %2925 = vmatpush1.bf16.msra.mxu0 0
        %2926 = vmatprep.subr.bf16.mxu0 0
        %2927 = vmatpush1.bf16.msra.mxu0 0
        %2928 = vmatprep.mubr.bf16.mxu0 0
        %2929 = vmatmul.mubr.bf16.gmra.mrb[0].mxu0 %v2840
        %v2930 = vpop.f32.mrb[0].mxu0
        %v2931 = vadd.f32 0.0, %v2930
        %v2932 = vpop.f32.mrb[0].mxu0
        %v2933 = vpop.f32.mrb[0].mxu0
        %v2934 = vadd.f32 0.0, %v2933
        %v2935 = vpop.f32.mrb[0].mxu0
        %2936 = vmatprep.mubr.bf16.mxu0 0
        %2937 = vmatmul.mubr.bf16.gmra.mrb[0].mxu0 %v2843
        %v2938 = vpop.f32.mrb[0].mxu0
        %v2939 = vadd.f32 0.0, %v2938
        %v2940 = vpop.f32.mrb[0].mxu0
        %v2941 = vpop.f32.mrb[0].mxu0
        %v2942 = vadd.f32 0.0, %v2941
        %v2943 = vpop.f32.mrb[0].mxu0
        %2944 = vmatprep.mubr.bf16.mxu0 0
        %2945 = vmatmul.mubr.bf16.gmra.mrb[0].mxu0 %v2846
        %v2946 = vpop.f32.mrb[0].mxu0
        %v2947 = vadd.f32 0.0, %v2946
        %v2948 = vpop.f32.mrb[0].mxu0
        %v2949 = vpop.f32.mrb[0].mxu0
        %v2950 = vadd.f32 0.0, %v2949
        %v2951 = vpop.f32.mrb[0].mxu0
        %2952 = vmatprep.mubr.bf16.mxu0 0
        %2953 = vmatmul.mubr.bf16.gmra.mrb[0].mxu0 %v2849
        %v2954 = vpop.f32.mrb[0].mxu0
        %v2955 = vadd.f32 0.0, %v2954
        %v2956 = vpop.f32.mrb[0].mxu0
        %v2957 = vpop.f32.mrb[0].mxu0
        %v2958 = vadd.f32 0.0, %v2957
        %v2959 = vpop.f32.mrb[0].mxu0
        %2960 = vmatprep.mubr.bf16.mxu0 0
        %2961 = vmatmul.mubr.bf16.gmra.mrb[0].mxu0 %v2852
        %v2962 = vpop.f32.mrb[0].mxu0
        %v2963 = vadd.f32 0.0, %v2962
        %v2964 = vpop.f32.mrb[0].mxu0
        %v2965 = vpop.f32.mrb[0].mxu0
        %v2966 = vadd.f32 0.0, %v2965
        %v2967 = vpop.f32.mrb[0].mxu0
        %2968 = vmatprep.mubr.bf16.mxu0 0
        %2969 = vmatmul.mubr.bf16.gmra.mrb[0].mxu0 %v2855
        %v2970 = vpop.f32.mrb[0].mxu0
        %v2971 = vadd.f32 0.0, %v2970
        %v2972 = vpop.f32.mrb[0].mxu0
        %v2973 = vpop.f32.mrb[0].mxu0
        %v2974 = vadd.f32 0.0, %v2973
        %v2975 = vpop.f32.mrb[0].mxu0
        %2976 = vmatprep.mubr.bf16.mxu0 0
        %2977 = vmatmul.mubr.bf16.gmra.mrb[0].mxu0 %v2858
        %v2978 = vpop.f32.mrb[0].mxu0
        %v2979 = vadd.f32 0.0, %v2978
        %v2980 = vpop.f32.mrb[0].mxu0
        %v2981 = vpop.f32.mrb[0].mxu0
        %v2982 = vadd.f32 0.0, %v2981
        %v2983 = vpop.f32.mrb[0].mxu0
        %2984 = vmatprep.mubr.bf16.mxu0 0
        %2985 = vmatmul.mubr.bf16.gmra.mrb[0].mxu0 %v2861
        %v2986 = vpop.f32.mrb[0].mxu0
        %v2987 = vadd.f32 0.0, %v2986
        %v2988 = vpop.f32.mrb[0].mxu0
        %v2989 = vpop.f32.mrb[0].mxu0
        %v2990 = vadd.f32 0.0, %v2989
        %v2991 = vpop.f32.mrb[0].mxu0
        %2992 = vmatprep.mubr.bf16.mxu0 0
        %2993 = vmatmul.mubr.bf16.gmra.mrb[0].mxu0 %v2864
        %v2994 = vpop.f32.mrb[0].mxu0
        %v2995 = vadd.f32 0.0, %v2994
        %v2996 = vpop.f32.mrb[0].mxu0
        %v2997 = vpop.f32.mrb[0].mxu0
        %v2998 = vadd.f32 0.0, %v2997
        %v2999 = vpop.f32.mrb[0].mxu0
        %3000 = vmatprep.mubr.bf16.mxu0 0
        %3001 = vmatmul.mubr.bf16.gmra.mrb[0].mxu0 %v2867
        %v3002 = vpop.f32.mrb[0].mxu0
        %v3003 = vadd.f32 0.0, %v3002
        %v3004 = vpop.f32.mrb[0].mxu0
        %v3005 = vpop.f32.mrb[0].mxu0
        %v3006 = vadd.f32 0.0, %v3005
        %v3007 = vpop.f32.mrb[0].mxu0
        %3008 = vmatprep.mubr.bf16.mxu0 0
        %3009 = vmatmul.mubr.bf16.gmra.mrb[0].mxu0 %v2870
        %v3010 = vpop.f32.mrb[0].mxu0
        %v3011 = vadd.f32 0.0, %v3010
        %v3012 = vpop.f32.mrb[0].mxu0
        %v3013 = vpop.f32.mrb[0].mxu0
        %v3014 = vadd.f32 0.0, %v3013
        %v3015 = vpop.f32.mrb[0].mxu0
        %3016 = vmatprep.mubr.bf16.mxu0 0
        %3017 = vmatmul.mubr.bf16.gmra.mrb[0].mxu0 %v2873
        %v3018 = vpop.f32.mrb[0].mxu0
        %v3019 = vadd.f32 0.0, %v3018
        %v3020 = vpop.f32.mrb[0].mxu0
        %v3021 = vpop.f32.mrb[0].mxu0
        %v3022 = vadd.f32 0.0, %v3021
        %v3023 = vpop.f32.mrb[0].mxu0
        %3024 = vmatprep.mubr.bf16.mxu0 0
        %3025 = vmatmul.mubr.bf16.gmra.mrb[0].mxu0 %v2876
        %v3026 = vpop.f32.mrb[0].mxu0
        %v3027 = vadd.f32 0.0, %v3026
        %v3028 = vpop.f32.mrb[0].mxu0
        %v3029 = vpop.f32.mrb[0].mxu0
        %v3030 = vadd.f32 0.0, %v3029
        %v3031 = vpop.f32.mrb[0].mxu0
        %3032 = vmatprep.mubr.bf16.mxu0 0
        %3033 = vmatmul.mubr.bf16.gmra.mrb[0].mxu0 %v2879
        %v3034 = vpop.f32.mrb[0].mxu0
        %v3035 = vadd.f32 0.0, %v3034
        %v3036 = vpop.f32.mrb[0].mxu0
        %v3037 = vpop.f32.mrb[0].mxu0
        %v3038 = vadd.f32 0.0, %v3037
        %v3039 = vpop.f32.mrb[0].mxu0
        %3040 = vmatprep.mubr.bf16.mxu0 0
        %3041 = vmatmul.mubr.bf16.gmra.mrb[0].mxu0 %v2882
        %v3042 = vpop.f32.mrb[0].mxu0
        %v3043 = vadd.f32 0.0, %v3042
        %v3044 = vpop.f32.mrb[0].mxu0
        %v3045 = vpop.f32.mrb[0].mxu0
        %v3046 = vadd.f32 0.0, %v3045
        %v3047 = vpop.f32.mrb[0].mxu0
        %3048 = vmatprep.mubr.bf16.mxu0 0
        %3049 = vmatmul.mubr.bf16.gmra.mrb[0].mxu0 %v2885
        %v3050 = vpop.f32.mrb[0].mxu0
        %v3051 = vadd.f32 0.0, %v3050
        %v3052 = vpop.f32.mrb[0].mxu0
        %v3053 = vpop.f32.mrb[0].mxu0
        %v3054 = vadd.f32 0.0, %v3053
        %v3055 = vpop.f32.mrb[0].mxu0
        %3056 = vmatprep.mubr.bf16.mxu0 0
        %3057 = vmatmul.mubr.bf16.gmra.mrb[0].mxu0 %v2888
        %v3058 = vpop.f32.mrb[0].mxu0
        %v3059 = vadd.f32 0.0, %v3058
        %v3060 = vpop.f32.mrb[0].mxu0
        %v3061 = vpop.f32.mrb[0].mxu0
        %v3062 = vadd.f32 0.0, %v3061
        %v3063 = vpop.f32.mrb[0].mxu0
        %3064 = vmatprep.mubr.bf16.mxu0 0
        %3065 = vmatmul.mubr.bf16.gmra.mrb[0].mxu0 %v2891
        %v3066 = vpop.f32.mrb[0].mxu0
        %v3067 = vadd.f32 0.0, %v3066
        %v3068 = vpop.f32.mrb[0].mxu0
        %v3069 = vpop.f32.mrb[0].mxu0
        %v3070 = vadd.f32 0.0, %v3069
        %v3071 = vpop.f32.mrb[0].mxu0
        %3072 = vdwg.mxu0
        %v3073 = vadd.f32 %v2763, %v2931
        %v3074 = vadd.f32 %v2764, %v2934
        %v3075 = vadd.f32 %v2765, %v2939
        %v3076 = vadd.f32 %v2766, %v2942
        %v3077 = vadd.f32 %v2767, %v2947
        %v3078 = vadd.f32 %v2768, %v2950
        %v3079 = vadd.f32 %v2769, %v2955
        %v3080 = vadd.f32 %v2770, %v2958
        %v3081 = vadd.f32 %v2771, %v2963
        %v3082 = vadd.f32 %v2772, %v2966
        %v3083 = vadd.f32 %v2773, %v2971
        %v3084 = vadd.f32 %v2774, %v2974
        %v3085 = vadd.f32 %v2775, %v2979
        %v3086 = vadd.f32 %v2776, %v2982
        %v3087 = vadd.f32 %v2777, %v2987
        %v3088 = vadd.f32 %v2778, %v2990
        %v3089 = vadd.f32 %v2779, %v2995
        %v3090 = vadd.f32 %v2780, %v2998
        %v3091 = vadd.f32 %v2781, %v3003
        %v3092 = vadd.f32 %v2782, %v3006
        %v3093 = vadd.f32 %v2783, %v3011
        %v3094 = vadd.f32 %v2784, %v3014
        %v3095 = vadd.f32 %v2785, %v3019
        %v3096 = vadd.f32 %v2786, %v3022
        %v3097 = vadd.f32 %v2787, %v3027
        %v3098 = vadd.f32 %v2788, %v3030
        %v3099 = vadd.f32 %v2789, %v3035
        %v3100 = vadd.f32 %v2790, %v3038
        %v3101 = vadd.f32 %v2791, %v3043
        %v3102 = vadd.f32 %v2792, %v3046
        %v3103 = vadd.f32 %v2793, %v3051
        %v3104 = vadd.f32 %v2794, %v3054
        %v3105 = vadd.f32 %v2795, %v3059
        %v3106 = vadd.f32 %v2796, %v3062
        %v3107 = vadd.f32 %v2797, %v3067
        %v3108 = vadd.f32 %v2798, %v3070
        %v3109 = vld [vmem:[#allocation7] sm:$0xff]
        %v3110 = vld [vmem:[#allocation7 + $0x8] sm:$0xff]
        %v3111 = vld [vmem:[#allocation7 + $0x10] sm:$0xff]
        %v3112 = vld [vmem:[#allocation7 + $0x18] sm:$0xff]
        %v3113 = vld [vmem:[#allocation7 + $0x20] sm:$0xff]
        %v3114 = vld [vmem:[#allocation7 + $0x28] sm:$0xff]
        %v3115 = vld [vmem:[#allocation7 + $0x30] sm:$0xff]
        %v3116 = vld [vmem:[#allocation7 + $0x38] sm:$0xff]
        %v3117 = vld [vmem:[#allocation7 + $0x40] sm:$0xff]
        %v3118 = vld [vmem:[#allocation7 + $0x48] sm:$0xff]
        %v3119 = vld [vmem:[#allocation7 + $0x50] sm:$0xff]
        %v3120 = vld [vmem:[#allocation7 + $0x58] sm:$0xff]
        %v3121 = vld [vmem:[#allocation7 + $0x60] sm:$0xff]
        %v3122 = vld [vmem:[#allocation7 + $0x68] sm:$0xff]
        %v3123 = vld [vmem:[#allocation7 + $0x70] sm:$0xff]
        %v3124 = vld [vmem:[#allocation7 + $0x78] sm:$0xff]
        %v3125 = vld [vmem:[#allocation7 + $0x80] sm:$0xff]
        %v3126 = vld [vmem:[#allocation7 + $0x88] sm:$0xff]
        %v3127 = vld [vmem:[#allocation7 + $0x90] sm:$0xff]
        %v3128 = vld [vmem:[#allocation7 + $0x98] sm:$0xff]
        %v3129 = vld [vmem:[#allocation7 + $0xa0] sm:$0xff]
        %v3130 = vld [vmem:[#allocation7 + $0xa8] sm:$0xff]
        %v3131 = vld [vmem:[#allocation7 + $0xb0] sm:$0xff]
        %v3132 = vld [vmem:[#allocation7 + $0xb8] sm:$0xff]
        %v3133 = vld [vmem:[#allocation7 + $0xc0] sm:$0xff]
        %v3134 = vld [vmem:[#allocation7 + $0xc8] sm:$0xff]
        %v3135 = vld [vmem:[#allocation7 + $0xd0] sm:$0xff]
        %v3136 = vld [vmem:[#allocation7 + $0xd8] sm:$0xff]
        %v3137 = vld [vmem:[#allocation7 + $0xe0] sm:$0xff]
        %v3138 = vld [vmem:[#allocation7 + $0xe8] sm:$0xff]
        %v3139 = vld [vmem:[#allocation7 + $0xf0] sm:$0xff]
        %v3140 = vld [vmem:[#allocation7 + $0xf8] sm:$0xff]
        %v3141 = vld [vmem:[#allocation7 + $0x100] sm:$0xff]
        %v3142 = vld [vmem:[#allocation7 + $0x108] sm:$0xff]
        %v3143 = vld [vmem:[#allocation7 + $0x110] sm:$0xff]
        %v3144 = vld [vmem:[#allocation7 + $0x118] sm:$0xff]
        %3146 = vset.pattern.permute.xlu0 0
        %3147 = vperm.xlu0 %3146, %v3109
        %v3148 = vpop.permute.xlu0 %3147
        %3151 = vset.pattern.permute.xlu0 0
        %3152 = vperm.xlu0 %3151, %v3110
        %v3153 = vpop.permute.xlu0 %3152
        %3156 = vset.pattern.permute.xlu0 0
        %3157 = vperm.xlu0 %3156, %v3111
        %v3158 = vpop.permute.xlu0 %3157
        %3161 = vset.pattern.permute.xlu0 0
        %3162 = vperm.xlu0 %3161, %v3112
        %v3163 = vpop.permute.xlu0 %3162
        %3166 = vset.pattern.permute.xlu0 0
        %3167 = vperm.xlu0 %3166, %v3113
        %v3168 = vpop.permute.xlu0 %3167
        %3171 = vset.pattern.permute.xlu0 0
        %3172 = vperm.xlu0 %3171, %v3114
        %v3173 = vpop.permute.xlu0 %3172
        %3176 = vset.pattern.permute.xlu0 0
        %3177 = vperm.xlu0 %3176, %v3115
        %v3178 = vpop.permute.xlu0 %3177
        %3181 = vset.pattern.permute.xlu0 0
        %3182 = vperm.xlu0 %3181, %v3116
        %v3183 = vpop.permute.xlu0 %3182
        %3186 = vset.pattern.permute.xlu0 0
        %3187 = vperm.xlu0 %3186, %v3117
        %v3188 = vpop.permute.xlu0 %3187
        %3191 = vset.pattern.permute.xlu0 0
        %3192 = vperm.xlu0 %3191, %v3118
        %v3193 = vpop.permute.xlu0 %3192
        %3196 = vset.pattern.permute.xlu0 0
        %3197 = vperm.xlu0 %3196, %v3119
        %v3198 = vpop.permute.xlu0 %3197
        %3201 = vset.pattern.permute.xlu0 0
        %3202 = vperm.xlu0 %3201, %v3120
        %v3203 = vpop.permute.xlu0 %3202
        %3206 = vset.pattern.permute.xlu0 0
        %3207 = vperm.xlu0 %3206, %v3121
        %v3208 = vpop.permute.xlu0 %3207
        %3211 = vset.pattern.permute.xlu0 0
        %3212 = vperm.xlu0 %3211, %v3122
        %v3213 = vpop.permute.xlu0 %3212
        %3216 = vset.pattern.permute.xlu0 0
        %3217 = vperm.xlu0 %3216, %v3123
        %v3218 = vpop.permute.xlu0 %3217
        %3221 = vset.pattern.permute.xlu0 0
        %3222 = vperm.xlu0 %3221, %v3124
        %v3223 = vpop.permute.xlu0 %3222
        %3226 = vset.pattern.permute.xlu0 0
        %3227 = vperm.xlu0 %3226, %v3125
        %v3228 = vpop.permute.xlu0 %3227
        %3231 = vset.pattern.permute.xlu0 0
        %3232 = vperm.xlu0 %3231, %v3126
        %v3233 = vpop.permute.xlu0 %3232
        %3236 = vset.pattern.permute.xlu0 0
        %3237 = vperm.xlu0 %3236, %v3127
        %v3238 = vpop.permute.xlu0 %3237
        %3241 = vset.pattern.permute.xlu0 0
        %3242 = vperm.xlu0 %3241, %v3128
        %v3243 = vpop.permute.xlu0 %3242
        %3246 = vset.pattern.permute.xlu0 0
        %3247 = vperm.xlu0 %3246, %v3129
        %v3248 = vpop.permute.xlu0 %3247
        %3251 = vset.pattern.permute.xlu0 0
        %3252 = vperm.xlu0 %3251, %v3130
        %v3253 = vpop.permute.xlu0 %3252
        %3256 = vset.pattern.permute.xlu0 0
        %3257 = vperm.xlu0 %3256, %v3131
        %v3258 = vpop.permute.xlu0 %3257
        %3261 = vset.pattern.permute.xlu0 0
        %3262 = vperm.xlu0 %3261, %v3132
        %v3263 = vpop.permute.xlu0 %3262
        %3266 = vset.pattern.permute.xlu0 0
        %3267 = vperm.xlu0 %3266, %v3133
        %v3268 = vpop.permute.xlu0 %3267
        %3271 = vset.pattern.permute.xlu0 0
        %3272 = vperm.xlu0 %3271, %v3134
        %v3273 = vpop.permute.xlu0 %3272
        %3276 = vset.pattern.permute.xlu0 0
        %3277 = vperm.xlu0 %3276, %v3135
        %v3278 = vpop.permute.xlu0 %3277
        %3281 = vset.pattern.permute.xlu0 0
        %3282 = vperm.xlu0 %3281, %v3136
        %v3283 = vpop.permute.xlu0 %3282
        %3286 = vset.pattern.permute.xlu0 0
        %3287 = vperm.xlu0 %3286, %v3137
        %v3288 = vpop.permute.xlu0 %3287
        %3291 = vset.pattern.permute.xlu0 0
        %3292 = vperm.xlu0 %3291, %v3138
        %v3293 = vpop.permute.xlu0 %3292
        %3296 = vset.pattern.permute.xlu0 0
        %3297 = vperm.xlu0 %3296, %v3139
        %v3298 = vpop.permute.xlu0 %3297
        %3301 = vset.pattern.permute.xlu0 0
        %3302 = vperm.xlu0 %3301, %v3140
        %v3303 = vpop.permute.xlu0 %3302
        %3306 = vset.pattern.permute.xlu0 0
        %3307 = vperm.xlu0 %3306, %v3141
        %v3308 = vpop.permute.xlu0 %3307
        %3311 = vset.pattern.permute.xlu0 0
        %3312 = vperm.xlu0 %3311, %v3142
        %v3313 = vpop.permute.xlu0 %3312
        %3316 = vset.pattern.permute.xlu0 0
        %3317 = vperm.xlu0 %3316, %v3143
        %v3318 = vpop.permute.xlu0 %3317
        %3321 = vset.pattern.permute.xlu0 0
        %3322 = vperm.xlu0 %3321, %v3144
        %v3323 = vpop.permute.xlu0 %3322
        %v3325 = vmul.f32 %v3073, %v3148
        %v3326 = vmul.f32 %v3074, %v3153
        %v3327 = vmul.f32 %v3075, %v3158
        %v3328 = vmul.f32 %v3076, %v3163
        %v3329 = vmul.f32 %v3077, %v3168
        %v3330 = vmul.f32 %v3078, %v3173
        %v3331 = vmul.f32 %v3079, %v3178
        %v3332 = vmul.f32 %v3080, %v3183
        %v3333 = vmul.f32 %v3081, %v3188
        %v3334 = vmul.f32 %v3082, %v3193
        %v3335 = vmul.f32 %v3083, %v3198
        %v3336 = vmul.f32 %v3084, %v3203
        %v3337 = vmul.f32 %v3085, %v3208
        %v3338 = vmul.f32 %v3086, %v3213
        %v3339 = vmul.f32 %v3087, %v3218
        %v3340 = vmul.f32 %v3088, %v3223
        %v3341 = vmul.f32 %v3089, %v3228
        %v3342 = vmul.f32 %v3090, %v3233
        %v3343 = vmul.f32 %v3091, %v3238
        %v3344 = vmul.f32 %v3092, %v3243
        %v3345 = vmul.f32 %v3093, %v3248
        %v3346 = vmul.f32 %v3094, %v3253
        %v3347 = vmul.f32 %v3095, %v3258
        %v3348 = vmul.f32 %v3096, %v3263
        %v3349 = vmul.f32 %v3097, %v3268
        %v3350 = vmul.f32 %v3098, %v3273
        %v3351 = vmul.f32 %v3099, %v3278
        %v3352 = vmul.f32 %v3100, %v3283
        %v3353 = vmul.f32 %v3101, %v3288
        %v3354 = vmul.f32 %v3102, %v3293
        %v3355 = vmul.f32 %v3103, %v3298
        %v3356 = vmul.f32 %v3104, %v3303
        %v3357 = vmul.f32 %v3105, %v3308
        %v3358 = vmul.f32 %v3106, %v3313
        %v3359 = vmul.f32 %v3107, %v3318
        %v3360 = vmul.f32 %v3108, %v3323
        %v3361 = vpack.c.bf16 %v3326, %v3325
        %v3362 = vpack.c.bf16 %v3328, %v3327
        %v3363 = vpack.c.bf16 %v3330, %v3329
        %v3364 = vpack.c.bf16 %v3332, %v3331
        %v3365 = vpack.c.bf16 %v3334, %v3333
        %v3366 = vpack.c.bf16 %v3336, %v3335
        %v3367 = vpack.c.bf16 %v3338, %v3337
        %v3368 = vpack.c.bf16 %v3340, %v3339
        %v3369 = vpack.c.bf16 %v3342, %v3341
        %v3370 = vpack.c.bf16 %v3344, %v3343
        %v3371 = vpack.c.bf16 %v3346, %v3345
        %v3372 = vpack.c.bf16 %v3348, %v3347
        %v3373 = vpack.c.bf16 %v3350, %v3349
        %v3374 = vpack.c.bf16 %v3352, %v3351
        %v3375 = vpack.c.bf16 %v3354, %v3353
        %v3376 = vpack.c.bf16 %v3356, %v3355
        %v3377 = vpack.c.bf16 %v3358, %v3357
        %v3378 = vpack.c.bf16 %v3360, %v3359
        %v3397 = vunpack.c.l.b16 %v3361
        %v3398 = vunpack.c.h.b16 %v3361
        %v3399 = vunpack.c.l.b16 %v3362
        %v3400 = vunpack.c.h.b16 %v3362
        %v3401 = vunpack.c.l.b16 %v3363
        %v3402 = vunpack.c.h.b16 %v3363
        %v3403 = vunpack.c.l.b16 %v3364
        %v3404 = vunpack.c.h.b16 %v3364
        %v3405 = vunpack.c.l.b16 %v3365
        %v3406 = vunpack.c.h.b16 %v3365
        %v3407 = vunpack.c.l.b16 %v3366
        %v3408 = vunpack.c.h.b16 %v3366
        %v3409 = vunpack.c.l.b16 %v3367
        %v3410 = vunpack.c.h.b16 %v3367
        %v3411 = vunpack.c.l.b16 %v3368
        %v3412 = vunpack.c.h.b16 %v3368
        %v3413 = vunpack.c.l.b16 %v3369
        %v3414 = vunpack.c.h.b16 %v3369
        %v3415 = vunpack.c.l.b16 %v3370
        %v3416 = vunpack.c.h.b16 %v3370
        %v3417 = vunpack.c.l.b16 %v3371
        %v3418 = vunpack.c.h.b16 %v3371
        %v3419 = vunpack.c.l.b16 %v3372
        %v3420 = vunpack.c.h.b16 %v3372
        %v3421 = vunpack.c.l.b16 %v3373
        %v3422 = vunpack.c.h.b16 %v3373
        %v3423 = vunpack.c.l.b16 %v3374
        %v3424 = vunpack.c.h.b16 %v3374
        %v3425 = vunpack.c.l.b16 %v3375
        %v3426 = vunpack.c.h.b16 %v3375
        %v3427 = vunpack.c.l.b16 %v3376
        %v3428 = vunpack.c.h.b16 %v3376
        %v3429 = vunpack.c.l.b16 %v3377
        %v3430 = vunpack.c.h.b16 %v3377
        %v3431 = vunpack.c.l.b16 %v3378
        %v3432 = vunpack.c.h.b16 %v3378
        %v3433 = vpack.c.b16 %v3397, %v3397
        %v3434 = vpack.c.b16 %v3398, %v3398
        %v3435 = vpack.c.b16 %v3399, %v3399
        %v3436 = vpack.c.b16 %v3400, %v3400
        %v3437 = vpack.c.b16 %v3401, %v3401
        %v3438 = vpack.c.b16 %v3402, %v3402
        %v3439 = vpack.c.b16 %v3403, %v3403
        %v3440 = vpack.c.b16 %v3404, %v3404
        %v3441 = vpack.c.b16 %v3405, %v3405
        %v3442 = vpack.c.b16 %v3406, %v3406
        %v3443 = vpack.c.b16 %v3407, %v3407
        %v3444 = vpack.c.b16 %v3408, %v3408
        %v3445 = vpack.c.b16 %v3409, %v3409
        %v3446 = vpack.c.b16 %v3410, %v3410
        %v3447 = vpack.c.b16 %v3411, %v3411
        %v3448 = vpack.c.b16 %v3412, %v3412
        %v3449 = vpack.c.b16 %v3413, %v3413
        %v3450 = vpack.c.b16 %v3414, %v3414
        %v3451 = vpack.c.b16 %v3415, %v3415
        %v3452 = vpack.c.b16 %v3416, %v3416
        %v3453 = vpack.c.b16 %v3417, %v3417
        %v3454 = vpack.c.b16 %v3418, %v3418
        %v3455 = vpack.c.b16 %v3419, %v3419
        %v3456 = vpack.c.b16 %v3420, %v3420
        %v3457 = vpack.c.b16 %v3421, %v3421
        %v3458 = vpack.c.b16 %v3422, %v3422
        %v3459 = vpack.c.b16 %v3423, %v3423
        %v3460 = vpack.c.b16 %v3424, %v3424
        %v3461 = vpack.c.b16 %v3425, %v3425
        %v3462 = vpack.c.b16 %v3426, %v3426
        %v3463 = vpack.c.b16 %v3427, %v3427
        %v3464 = vpack.c.b16 %v3428, %v3428
        %v3465 = vpack.c.b16 %v3429, %v3429
        %v3466 = vpack.c.b16 %v3430, %v3430
        %v3467 = vpack.c.b16 %v3431, %v3431
        %v3468 = vpack.c.b16 %v3432, %v3432
        %3505 = vst [vmem:[%s248] sm:$0xf] %v3433
        %3506 = vst [vmem:[%s248 + $0x4] sm:$0xf] %v3434
        %3507 = vst [vmem:[%s248 + $0x8] sm:$0xf] %v3435
        %3508 = vst [vmem:[%s248 + $0xc] sm:$0xf] %v3436
        %3509 = vst [vmem:[%s248 + $0x10] sm:$0xf] %v3437
        %3510 = vst [vmem:[%s248 + $0x14] sm:$0xf] %v3438
        %3511 = vst [vmem:[%s248 + $0x18] sm:$0xf] %v3439
        %3512 = vst [vmem:[%s248 + $0x1c] sm:$0xf] %v3440
        %3513 = vst [vmem:[%s248 + $0x20] sm:$0xf] %v3441
        %3514 = vst [vmem:[%s248 + $0x24] sm:$0xf] %v3442
        %3515 = vst [vmem:[%s248 + $0x28] sm:$0xf] %v3443
        %3516 = vst [vmem:[%s248 + $0x2c] sm:$0xf] %v3444
        %3517 = vst [vmem:[%s248 + $0x30] sm:$0xf] %v3445
        %3518 = vst [vmem:[%s248 + $0x34] sm:$0xf] %v3446
        %3519 = vst [vmem:[%s248 + $0x38] sm:$0xf] %v3447
        %3520 = vst [vmem:[%s248 + $0x3c] sm:$0xf] %v3448
        %3521 = vst [vmem:[%s248 + $0x40] sm:$0xf] %v3449
        %3522 = vst [vmem:[%s248 + $0x44] sm:$0xf] %v3450
        %3523 = vst [vmem:[%s248 + $0x48] sm:$0xf] %v3451
        %3524 = vst [vmem:[%s248 + $0x4c] sm:$0xf] %v3452
        %3525 = vst [vmem:[%s248 + $0x50] sm:$0xf] %v3453
        %3526 = vst [vmem:[%s248 + $0x54] sm:$0xf] %v3454
        %3527 = vst [vmem:[%s248 + $0x58] sm:$0xf] %v3455
        %3528 = vst [vmem:[%s248 + $0x5c] sm:$0xf] %v3456
        %3529 = vst [vmem:[%s248 + $0x60] sm:$0xf] %v3457
        %3530 = vst [vmem:[%s248 + $0x64] sm:$0xf] %v3458
        %3531 = vst [vmem:[%s248 + $0x68] sm:$0xf] %v3459
        %3532 = vst [vmem:[%s248 + $0x6c] sm:$0xf] %v3460
        %3533 = vst [vmem:[%s248 + $0x70] sm:$0xf] %v3461
        %3534 = vst [vmem:[%s248 + $0x74] sm:$0xf] %v3462
        %3535 = vst [vmem:[%s248 + $0x78] sm:$0xf] %v3463
        %3536 = vst [vmem:[%s248 + $0x7c] sm:$0xf] %v3464
        %3537 = vst [vmem:[%s248 + $0x80] sm:$0xf] %v3465
        %3538 = vst [vmem:[%s248 + $0x84] sm:$0xf] %v3466
        %3539 = vst [vmem:[%s248 + $0x88] sm:$0xf] %v3467
        %3540 = vst [vmem:[%s248 + $0x8c] sm:$0xf] %v3468
        %v3541 = vadd.f32 %v3325, %v3326
        %v3542 = vadd.f32 %v3541, %v3327
        %v3543 = vadd.f32 %v3542, %v3328
        %v3544 = vadd.f32 %v3543, %v3329
        %v3545 = vadd.f32 %v3544, %v3330
        %v3546 = vadd.f32 %v3545, %v3331
        %v3547 = vadd.f32 %v3546, %v3332
        %v3548 = vadd.f32 %v3547, %v3333
        %v3549 = vadd.f32 %v3548, %v3334
        %v3550 = vadd.f32 %v3549, %v3335
        %v3551 = vadd.f32 %v3550, %v3336
        %v3552 = vadd.f32 %v3551, %v3337
        %v3553 = vadd.f32 %v3552, %v3338
        %v3554 = vadd.f32 %v3553, %v3339
        %v3555 = vadd.f32 %v3554, %v3340
        %v3556 = vadd.f32 %v3555, %v3341
        %v3557 = vadd.f32 %v3556, %v3342
        %v3558 = vadd.f32 %v3557, %v3343
        %v3559 = vadd.f32 %v3558, %v3344
        %v3560 = vadd.f32 %v3559, %v3345
        %v3561 = vadd.f32 %v3560, %v3346
        %v3562 = vadd.f32 %v3561, %v3347
        %v3563 = vadd.f32 %v3562, %v3348
        %v3564 = vadd.f32 %v3563, %v3349
        %v3565 = vadd.f32 %v3564, %v3350
        %v3566 = vadd.f32 %v3565, %v3351
        %v3567 = vadd.f32 %v3566, %v3352
        %v3568 = vadd.f32 %v3567, %v3353
        %v3569 = vadd.f32 %v3568, %v3354
        %v3570 = vadd.f32 %v3569, %v3355
        %v3571 = vadd.f32 %v3570, %v3356
        %v3572 = vadd.f32 %v3571, %v3357
        %v3573 = vadd.f32 %v3572, %v3358
        %v3574 = vadd.f32 %v3573, %v3359
        %v3575 = vadd.f32 %v3574, %v3360
        %v3576 = vrot.slane %v3575, 4
        %v3577 = vadd.f32 %v3575, %v3576
        %v3578 = vrot.slane %v3577, 2
        %v3579 = vadd.f32 %v3577, %v3578
        %v3580 = vrot.slane %v3579, 1
        %v3581 = vadd.f32 %v3579, %v3580
        %3582 = vst [vmem:[%s255] sm:$0x1] %v3581
        %v3583 = vmul.f32 %v3325, %v3325
        %v3584 = vmul.f32 %v3326, %v3326
        %v3585 = vmul.f32 %v3327, %v3327
        %v3586 = vmul.f32 %v3328, %v3328
        %v3587 = vmul.f32 %v3329, %v3329
        %v3588 = vmul.f32 %v3330, %v3330
        %v3589 = vmul.f32 %v3331, %v3331
        %v3590 = vmul.f32 %v3332, %v3332
        %v3591 = vmul.f32 %v3333, %v3333
        %v3592 = vmul.f32 %v3334, %v3334
        %v3593 = vmul.f32 %v3335, %v3335
        %v3594 = vmul.f32 %v3336, %v3336
        %v3595 = vmul.f32 %v3337, %v3337
        %v3596 = vmul.f32 %v3338, %v3338
        %v3597 = vmul.f32 %v3339, %v3339
        %v3598 = vmul.f32 %v3340, %v3340
        %v3599 = vmul.f32 %v3341, %v3341
        %v3600 = vmul.f32 %v3342, %v3342
        %v3601 = vmul.f32 %v3343, %v3343
        %v3602 = vmul.f32 %v3344, %v3344
        %v3603 = vmul.f32 %v3345, %v3345
        %v3604 = vmul.f32 %v3346, %v3346
        %v3605 = vmul.f32 %v3347, %v3347
        %v3606 = vmul.f32 %v3348, %v3348
        %v3607 = vmul.f32 %v3349, %v3349
        %v3608 = vmul.f32 %v3350, %v3350
        %v3609 = vmul.f32 %v3351, %v3351
        %v3610 = vmul.f32 %v3352, %v3352
        %v3611 = vmul.f32 %v3353, %v3353
        %v3612 = vmul.f32 %v3354, %v3354
        %v3613 = vmul.f32 %v3355, %v3355
        %v3614 = vmul.f32 %v3356, %v3356
        %v3615 = vmul.f32 %v3357, %v3357
        %v3616 = vmul.f32 %v3358, %v3358
        %v3617 = vmul.f32 %v3359, %v3359
        %v3618 = vmul.f32 %v3360, %v3360
        %v3619 = vadd.f32 %v3583, %v3584
        %v3620 = vadd.f32 %v3619, %v3585
        %v3621 = vadd.f32 %v3620, %v3586
        %v3622 = vadd.f32 %v3621, %v3587
        %v3623 = vadd.f32 %v3622, %v3588
        %v3624 = vadd.f32 %v3623, %v3589
        %v3625 = vadd.f32 %v3624, %v3590
        %v3626 = vadd.f32 %v3625, %v3591
        %v3627 = vadd.f32 %v3626, %v3592
        %v3628 = vadd.f32 %v3627, %v3593
        %v3629 = vadd.f32 %v3628, %v3594
        %v3630 = vadd.f32 %v3629, %v3595
        %v3631 = vadd.f32 %v3630, %v3596
        %v3632 = vadd.f32 %v3631, %v3597
        %v3633 = vadd.f32 %v3632, %v3598
        %v3634 = vadd.f32 %v3633, %v3599
        %v3635 = vadd.f32 %v3634, %v3600
        %v3636 = vadd.f32 %v3635, %v3601
        %v3637 = vadd.f32 %v3636, %v3602
        %v3638 = vadd.f32 %v3637, %v3603
        %v3639 = vadd.f32 %v3638, %v3604
        %v3640 = vadd.f32 %v3639, %v3605
        %v3641 = vadd.f32 %v3640, %v3606
        %v3642 = vadd.f32 %v3641, %v3607
        %v3643 = vadd.f32 %v3642, %v3608
        %v3644 = vadd.f32 %v3643, %v3609
        %v3645 = vadd.f32 %v3644, %v3610
        %v3646 = vadd.f32 %v3645, %v3611
        %v3647 = vadd.f32 %v3646, %v3612
        %v3648 = vadd.f32 %v3647, %v3613
        %v3649 = vadd.f32 %v3648, %v3614
        %v3650 = vadd.f32 %v3649, %v3615
        %v3651 = vadd.f32 %v3650, %v3616
        %v3652 = vadd.f32 %v3651, %v3617
        %v3653 = vadd.f32 %v3652, %v3618
        %v3654 = vrot.slane %v3653, 4
        %v3655 = vadd.f32 %v3653, %v3654
        %v3656 = vrot.slane %v3655, 2
        %v3657 = vadd.f32 %v3655, %v3656
        %v3658 = vrot.slane %v3657, 1
        %v3659 = vadd.f32 %v3657, %v3658
        %3660 = vst [vmem:[%s255 + $0x1] sm:$0x1] %v3659
        %s3661 = sand.u32 %s102, 1
        %s3662 = scalar_lea.sflag [#allocation4], %s3661
        %s3663 = sand.u32 %s102, 1
        %s3664 = smul.addr %s3663, 144
        %s3665 = scalar_lea.vmem [#allocation8], %s3664
        %s3666 = sand.u32 %s128, 1
        %s3667 = scalar_lea.sflag [#allocation10], %s3666
        %s3668 = sand.u32 %s128, 1
        %s3669 = smul.addr %s3668, 2
        %s3670 = scalar_lea.vmem [#allocation9], %s3669
        // Predicated region
        $region45: #{double_conv.4} parent=31 // pred_check
          %p3671 = pneg %p112
        $region46: #{double_conv.4} parent=31 // pred_check_branch
          %3673 = sbr.rel (%p3671) target = $region48
        $region47: #{double_conv.4} parent=31 // pred_region
          %s3675 = ssub.s32 2304, 2304
          %3676 = vsyncadd %s3662, %s3675
          %s3677 = smul.addr %s26, 36
          %s3678 = smul.addr %s3677, 64
          %s3679 = scalar_lea.hbm %s3, %s3678
          %s3680 = sshll.u32 %s3665, 4
          %s3681 = int_to_ptr.vmem [resolvable:$true] %s3680
          %3686 = dma.vmem_to_hbm [thread:$0]  %s3681, 2304, %s3679, %s3662, 64, 64, 4
        $region48: #{double_conv.4} parent=31 // pred_fallthru
          _
        // Predicated region
        $region49: #{double_conv.4} parent=31 // pred_check
          %p3687 = pneg %p138
        $region50: #{double_conv.4} parent=31 // pred_check_branch
          %3689 = sbr.rel (%p3687) target = $region52
        $region51: #{double_conv.4} parent=31 // pred_region
          %s3691 = ssub.s32 32, 32
          %3692 = vsyncadd %s3667, %s3691
          %s3693 = smul.addr %s26, 32
          %s3694 = scalar_lea.hbm %s4, %s3693
          %s3696 = sshll.u32 %s3670, 4
          %s3697 = int_to_ptr.vmem [resolvable:$true] %s3696
          %3699 = dma.vmem_to_hbm [thread:$0]  %s3697, 32, %s3694, %s3667
        $region52: #{double_conv.4} parent=31 // pred_fallthru
          _
      $region32: #{double_conv.4} parent=5 // pred_fallthru
        _
      %p3700 = scmp.le.s32.totalorder 2, %s21
      // Predicated region
      $region53: #{double_conv.4} parent=5 // pred_check
        %p3701 = pneg %p3700
      $region54: #{double_conv.4} parent=5 // pred_check_branch
        %3703 = sbr.rel (%p3701) target = $region56
      $region55: #{double_conv.4} parent=5 // pred_region
        %s3704 = ssub.s32 %s21, 2
        // Predicated region
        $region57: #{double_conv.4} parent=55 // pred_check
          %p3705 = pneg %p118
        $region58: #{double_conv.4} parent=55 // pred_check_branch
          %3707 = sbr.rel (%p3705) target = $region60
        $region59: #{double_conv.4} parent=55 // pred_region
          %s3708 = sand.u32 %s103, 1
          %s3709 = scalar_lea.sflag [#allocation4], %s3708
          %s3710 = sand.u32 %s103, 1
          %s3711 = smul.addr %s3710, 144
          %s3712 = scalar_lea.vmem [#allocation8], %s3711
          %3713 = dma.done %s3709, 2304
        $region60: #{double_conv.4} parent=55 // pred_fallthru
          _
        // Predicated region
        $region61: #{double_conv.4} parent=55 // pred_check
          %p3714 = pneg %p144
        $region62: #{double_conv.4} parent=55 // pred_check_branch
          %3716 = sbr.rel (%p3714) target = $region64
        $region63: #{double_conv.4} parent=55 // pred_region
          %s3717 = sand.u32 %s129, 1
          %s3718 = scalar_lea.sflag [#allocation10], %s3717
          %s3719 = sand.u32 %s129, 1
          %s3720 = smul.addr %s3719, 2
          %s3721 = scalar_lea.vmem [#allocation9], %s3720
          %3722 = dma.done %s3718, 32
        $region64: #{double_conv.4} parent=55 // pred_fallthru
          _
      $region56: #{double_conv.4} parent=5 // pred_fallthru
        _
    $region6: #{double_conv.4} parent=1 // loop_footer
      %s25 = sadd.s32 1, %s21
    $region7: #{double_conv.4} parent=1 // loop_footer_branch
      %20 = sbr.rel target = $region3
    $region8: #{double_conv.4} parent=1 // loop_exit
      _
    %3723 = vsyncpa [#allocation3], 1
    %s3724 = scalar_lea.sflag [#allocation3], 1
    %3725 = vsyncpa %s3724, 1
    %3726 = vsyncpa [#allocation6], 1
    %3727 = vsyncpa [#allocation4], 1
    %s3728 = scalar_lea.sflag [#allocation4], 1
    %3729 = vsyncpa %s3728, 1
    %3730 = vsyncpa [#allocation10], 1
    %s3731 = scalar_lea.sflag [#allocation10], 1
    %3732 = vsyncpa %s3731, 1

</llo_original>
